<compile_context>
chip_gen: v7x
topology: tpu7x:2x2x1
jax: 0.10.0
libtpu: 0.0.40
codegen_flags: <defaults>
</compile_context>

<pallas_src>
import functools

import jax
import jax.numpy as jnp
from jax import lax
from jax.experimental import pallas as pl
from jax.experimental.pallas import tpu as pltpu


# -----------------------------------------------------------------------------
# Fused Head kernel: one grid step per batch element.
# -----------------------------------------------------------------------------
def _head_kernel(
    # inputs
    x_ref,
    wall_ref, ball_ref,
    avg_ref, blkdn_ref, blknd_ref,
    fam_wq_ref, fam_bq_ref, fam_wkv_ref, fam_bkv_ref,
    arm_wqkv_ref, arm_bqkv_ref,
    edge_w_ref, ebn_s_ref, ebn_t_ref,
    # outputs
    fv_ref, fe_ref,
    # scratch
    fu_ref,
    *, N, D, C, Ch):
  f32 = jnp.float32
  x_b = x_ref[0]                                               # (D, C)

  # ---- 1) all N LinearBlocks as ONE wide matmul (eval BN1d folded host-side)
  y_all = jnp.dot(x_b, wall_ref[...], preferred_element_type=f32) + ball_ref[...]
  y_all = jnp.maximum(y_all, 0.0)                              # (D, N*C), ReLU
  # scatter to the (N*D, C) f_u slab (class n occupies rows n*D .. n*D+D-1)
  for n in range(N):
    fu_ref[pl.ds(n * D, D), :] = y_all[:, n * C:(n + 1) * C]
  fu = fu_ref[...]                                             # (N*D, C)

  # f_v: per-class token mean as one MXU matmul with the averaging matrix
  fv_ref[0] = jnp.dot(avg_ref[...], fu, preferred_element_type=f32)     # (N, C)

  # ---- 2) GEM.FAM cross-attention (q <- f_u, k/v <- global x) ---------------
  kv = jnp.dot(x_b, fam_wkv_ref[...], preferred_element_type=f32) + fam_bkv_ref[...]
  k_g = kv[:, :Ch]                                             # (D, Ch)
  v_g = kv[:, Ch:]                                             # (D, C)
  q_f = jnp.dot(fu, fam_wq_ref[...], preferred_element_type=f32) + fam_bq_ref[...]
  # 1/sqrt(Ch) scale is folded into fam_wq / fam_bq host-side.
  dots = lax.dot_general(q_f, k_g, (((1,), (1,)), ((), ())),
                         preferred_element_type=f32)           # (N*D, D)
  dots = dots - jnp.max(dots, axis=-1, keepdims=True)
  e = jnp.exp(dots)
  attn = e * pl.reciprocal(jnp.sum(e, axis=-1, keepdims=True), approx=True)
  feat = jnp.dot(attn, v_g, preferred_element_type=f32)        # (N*D, C)

  # ---- 3) GEM.ARM over class pairs + edge_proj + BN2d(eval) + token mean ----
  qkv = jnp.dot(feat, arm_wqkv_ref[...], preferred_element_type=f32) + arm_bqkv_ref[...]
  qa = qkv[:, :Ch]                                             # (N*D, Ch), scale folded
  ka = qkv[:, Ch:2 * Ch]                                       # (N*D, Ch)
  va = qkv[:, 2 * Ch:]                                         # (N*D, C)
  # edge_proj hoisted (linear, commutes with attention mix & token mean);
  # edge bias is folded into the BN2d shift host-side.
  vw = jnp.dot(va, edge_w_ref[...], preferred_element_type=f32)          # (N*D, C)

  # All pairwise scores at once.
  s = lax.dot_general(qa, ka, (((1,), (1,)), ((), ())),
                      preferred_element_type=f32)              # (N*D, N*D)
  # Per-pair softmax runs over each D-wide key block; subtracting the global
  # row max is a uniform shift inside every block -> mathematically exact.
  s = s - jnp.max(s, axis=-1, keepdims=True)
  e2 = jnp.exp(s)
  bsum = jnp.dot(e2, blkdn_ref[...], preferred_element_type=f32)         # (N*D, N)
  rec = pl.reciprocal(bsum, approx=True)                                 # (N*D, N)
  rec_full = jnp.dot(rec, blknd_ref[...], preferred_element_type=f32)    # (N*D, N*D)
  a2 = e2 * rec_full                                            # blockwise softmax
  # Token mean over the query-token axis for every pair, all at once.
  aa = jnp.dot(avg_ref[...], a2, preferred_element_type=f32)    # (N, N*D)

  # Residual per-key-class loop (statically unrolled, tiny independent matmuls)
  for i in range(N):
    m = jnp.dot(aa[:, i * D:(i + 1) * D], vw[i * D:(i + 1) * D, :],
                preferred_element_type=f32)                     # (N, C)
    # eval-mode BN2d per pair p = i*N + j (edge bias already folded into ebn_t)
    fe_ref[0, i] = m * ebn_s_ref[i] + ebn_t_ref[i]


# -----------------------------------------------------------------------------
# Parameter init (deterministic; shapes follow Head.__init__; weights stored
# as (in, out), i.e. already transposed vs. PyTorch's (out, in)).
# -----------------------------------------------------------------------------
def init_head_params(key, C, N):
  eps = 1e-5
  ks = jax.random.split(key, 12)

  def w(k, shape, fan_in):
    return jax.random.normal(k, shape, jnp.float32) / jnp.sqrt(float(fan_in))

  p = {}
  # per-class LinearBlock: Linear(C, C) + BN1d(C)
  p["lin_w"] = w(ks[0], (N, C, C), C)
  p["lin_b"] = 0.01 * jax.random.normal(ks[1], (N, 1, C), jnp.float32)
  gamma = jnp.ones((N, 1, C), jnp.float32)
  beta = jnp.zeros((N, 1, C), jnp.float32)
  rmean = jnp.zeros((N, 1, C), jnp.float32)
  rvar = jnp.ones((N, 1, C), jnp.float32)
  p["lin_bn_s"] = gamma / jnp.sqrt(rvar + eps)
  p["lin_bn_t"] = beta - rmean * p["lin_bn_s"]

  Ch = C // 2
  # GEM.FAM cross attention
  p["fam_wq"], p["fam_bq"] = w(ks[2], (C, Ch), C), jnp.zeros((1, Ch), jnp.float32)
  p["fam_wk"], p["fam_bk"] = w(ks[3], (C, Ch), C), jnp.zeros((1, Ch), jnp.float32)
  p["fam_wv"], p["fam_bv"] = w(ks[4], (C, C), C), jnp.zeros((1, C), jnp.float32)
  # GEM.ARM cross attention
  p["arm_wq"], p["arm_bq"] = w(ks[5], (C, Ch), C), jnp.zeros((1, Ch), jnp.float32)
  p["arm_wk"], p["arm_bk"] = w(ks[6], (C, Ch), C), jnp.zeros((1, Ch), jnp.float32)
  p["arm_wv"], p["arm_bv"] = w(ks[7], (C, C), C), jnp.zeros((1, C), jnp.float32)
  # GEM.edge_proj + BN2d(N*N)
  p["edge_w"] = w(ks[8], (C, C), C)
  p["edge_b"] = 0.01 * jax.random.normal(ks[9], (1, C), jnp.float32)
  g2 = jnp.ones((N * N,), jnp.float32)
  b2 = jnp.zeros((N * N,), jnp.float32)
  rm2 = jnp.zeros((N * N,), jnp.float32)
  rv2 = jnp.ones((N * N,), jnp.float32)
  s2 = g2 / jnp.sqrt(rv2 + eps)
  t2 = b2 - rm2 * s2
  p["edge_bn_s"] = s2.reshape(N, N, 1)
  p["edge_bn_t"] = t2.reshape(N, N, 1)
  return p


# -----------------------------------------------------------------------------
# Host-side folding: BN1d -> Linear, softmax scale -> q weights, edge bias ->
# BN2d shift, and projection-weight concatenation.  All exact in eval mode.
# -----------------------------------------------------------------------------
def _fold_params(params, N, C):
  Ch = C // 2
  scale = float(Ch) ** -0.5

  # BN1d folded into per-class Linear, then stacked to one wide (C, N*C) weight.
  lin_w_f = params["lin_w"] * params["lin_bn_s"]                       # (N, C, C)
  lin_b_f = params["lin_b"] * params["lin_bn_s"] + params["lin_bn_t"]  # (N, 1, C)
  wall = jnp.transpose(lin_w_f, (1, 0, 2)).reshape(C, N * C)
  ball = lin_b_f.reshape(1, N * C)

  # FAM: scale folded into q; k/v concatenated.
  fam_wq = params["fam_wq"] * scale
  fam_bq = params["fam_bq"] * scale
  fam_wkv = jnp.concatenate([params["fam_wk"], params["fam_wv"]], axis=1)
  fam_bkv = jnp.concatenate([params["fam_bk"], params["fam_bv"]], axis=1)

  # ARM: scale folded into q; q/k/v concatenated.
  arm_wqkv = jnp.concatenate(
      [params["arm_wq"] * scale, params["arm_wk"], params["arm_wv"]], axis=1)
  arm_bqkv = jnp.concatenate(
      [params["arm_bq"] * scale, params["arm_bk"], params["arm_bv"]], axis=1)

  # BN2d: edge_proj bias folded into the per-pair shift.
  ebn_s = params["edge_bn_s"]                                          # (N, N, 1)
  ebn_t = params["edge_bn_t"] + params["edge_bn_s"] * params["edge_b"].reshape(1, 1, C)

  return dict(wall=wall, ball=ball,
              fam_wq=fam_wq, fam_bq=fam_bq, fam_wkv=fam_wkv, fam_bkv=fam_bkv,
              arm_wqkv=arm_wqkv, arm_bqkv=arm_bqkv,
              edge_w=params["edge_w"], ebn_s=ebn_s, ebn_t=ebn_t)


# -----------------------------------------------------------------------------
# Head forward: one fused pallas_call, grid=(B,)
# -----------------------------------------------------------------------------
def head_forward(params, x):
  B, D, C = x.shape
  N = params["lin_w"].shape[0]
  Ch = C // 2

  fold = _fold_params(params, N, C)

  # averaging matrix (token mean as a matmul) and block-indicator matrices
  # for the per-key-block softmax normalization.
  eye = jnp.eye(N, dtype=jnp.float32)
  avg = jnp.repeat(eye, D, axis=1) * (1.0 / float(D))   # (N, N*D)
  blk_dn = jnp.repeat(eye, D, axis=0)                   # (N*D, N)
  blk_nd = jnp.repeat(eye, D, axis=1)                   # (N, N*D)

  kernel = functools.partial(_head_kernel, N=N, D=D, C=C, Ch=Ch)

  inputs = (
      x,
      fold["wall"], fold["ball"],
      avg, blk_dn, blk_nd,
      fold["fam_wq"], fold["fam_bq"], fold["fam_wkv"], fold["fam_bkv"],
      fold["arm_wqkv"], fold["arm_bqkv"],
      fold["edge_w"], fold["ebn_s"], fold["ebn_t"],
  )

  def const_spec(a):
    nd = a.ndim
    return pl.BlockSpec(a.shape, lambda b, _n=nd: (0,) * _n)

  in_specs = [pl.BlockSpec((1, D, C), lambda b: (b, 0, 0))]
  in_specs += [const_spec(a) for a in inputs[1:]]

  fv, fe = pl.pallas_call(
      kernel,
      out_shape=(jax.ShapeDtypeStruct((B, N, C), jnp.float32),
                 jax.ShapeDtypeStruct((B, N, N, C), jnp.float32)),
      grid_spec=pltpu.PrefetchScalarGridSpec(
          num_scalar_prefetch=0,
          grid=(B,),
          in_specs=in_specs,
          out_specs=[
              pl.BlockSpec((1, N, C), lambda b: (b, 0, 0)),
              pl.BlockSpec((1, N, N, C), lambda b: (b, 0, 0, 0)),
          ],
          scratch_shapes=[
              pltpu.VMEM((N * D, C), jnp.float32),    # f_u slab (stacked LinearBlock out)
          ]),
      compiler_params=pltpu.CompilerParams(
          dimension_semantics=("parallel",)),          # B=2 -> 2 TCs on v7x
  )(*inputs)

  f_v = fv                                # (B, N, C)
  f_e = fe.reshape(B, N * N, C)           # pair p = i*N + j (key i, query j)
  return f_v, f_e


if __name__ == "__main__":
  B, D, C = 2, 8, 32          # batch, tokens, in_channels
  N = 27                      # num_main_classes (Head default)

  key = jax.random.PRNGKey(0)
  kx, kp = jax.random.split(key)
  x = jax.random.normal(kx, (B, D, C), jnp.float32)
  params = init_head_params(kp, C, N)

  f_v, f_e = jax.jit(head_forward)(params, x)
  jax.block_until_ready((f_v, f_e))

  assert f_v.shape == (B, N, C), f_v.shape
  assert f_e.shape == (B, N * N, C), f_e.shape
  assert f_v.dtype == jnp.float32 and f_e.dtype == jnp.float32
  assert bool(jnp.all(jnp.isfinite(f_v))) and bool(jnp.all(jnp.isfinite(f_e)))
  print("KERNEL_OK")
</pallas_src>

<mosaic_0001>
module attributes {stable_mosaic.version = 11 : i64} {
  func.func @_head_kernel(%arg0: i32, %arg1: memref<1x8x32xf32, #tpu.memory_space<vmem>>, %arg2: memref<32x864xf32, #tpu.memory_space<vmem>>, %arg3: memref<1x864xf32, #tpu.memory_space<vmem>>, %arg4: memref<27x216xf32, #tpu.memory_space<vmem>>, %arg5: memref<216x27xf32, #tpu.memory_space<vmem>>, %arg6: memref<27x216xf32, #tpu.memory_space<vmem>>, %arg7: memref<32x16xf32, #tpu.memory_space<vmem>>, %arg8: memref<1x16xf32, #tpu.memory_space<vmem>>, %arg9: memref<32x48xf32, #tpu.memory_space<vmem>>, %arg10: memref<1x48xf32, #tpu.memory_space<vmem>>, %arg11: memref<32x64xf32, #tpu.memory_space<vmem>>, %arg12: memref<1x64xf32, #tpu.memory_space<vmem>>, %arg13: memref<32x32xf32, #tpu.memory_space<vmem>>, %arg14: memref<27x27x1xf32, #tpu.memory_space<vmem>>, %arg15: memref<27x27x32xf32, #tpu.memory_space<vmem>>, %arg16: memref<1x27x32xf32, #tpu.memory_space<vmem>>, %arg17: memref<1x27x27x32xf32, #tpu.memory_space<vmem>>, %arg18: memref<216x32xf32, #tpu.memory_space<vmem>>) attributes {dimension_semantics = [#tpu.dimension_semantics<parallel>], iteration_bounds = array<i64: 2>, scalar_prefetch = 0 : i64, scratch_operands = 1 : i64, tpu.core_type = #tpu.core_type<tc>, window_params = [{transform_indices = @transform_0, window_bounds = array<i64: 1, 8, 32>}, {pipeline_mode = #tpu.pipeline_mode<synchronous>, transform_indices = @transform_1, window_bounds = array<i64: 32, 864>}, {pipeline_mode = #tpu.pipeline_mode<synchronous>, transform_indices = @transform_2, window_bounds = array<i64: 1, 864>}, {pipeline_mode = #tpu.pipeline_mode<synchronous>, transform_indices = @transform_3, window_bounds = array<i64: 27, 216>}, {pipeline_mode = #tpu.pipeline_mode<synchronous>, transform_indices = @transform_4, window_bounds = array<i64: 216, 27>}, {pipeline_mode = #tpu.pipeline_mode<synchronous>, transform_indices = @transform_5, window_bounds = array<i64: 27, 216>}, {pipeline_mode = #tpu.pipeline_mode<synchronous>, transform_indices = @transform_6, window_bounds = array<i64: 32, 16>}, {pipeline_mode = #tpu.pipeline_mode<synchronous>, transform_indices = @transform_7, window_bounds = array<i64: 1, 16>}, {pipeline_mode = #tpu.pipeline_mode<synchronous>, transform_indices = @transform_8, window_bounds = array<i64: 32, 48>}, {pipeline_mode = #tpu.pipeline_mode<synchronous>, transform_indices = @transform_9, window_bounds = array<i64: 1, 48>}, {pipeline_mode = #tpu.pipeline_mode<synchronous>, transform_indices = @transform_10, window_bounds = array<i64: 32, 64>}, {pipeline_mode = #tpu.pipeline_mode<synchronous>, transform_indices = @transform_11, window_bounds = array<i64: 1, 64>}, {pipeline_mode = #tpu.pipeline_mode<synchronous>, transform_indices = @transform_12, window_bounds = array<i64: 32, 32>}, {pipeline_mode = #tpu.pipeline_mode<synchronous>, transform_indices = @transform_13, window_bounds = array<i64: 27, 27, 1>}, {pipeline_mode = #tpu.pipeline_mode<synchronous>, transform_indices = @transform_14, window_bounds = array<i64: 27, 27, 32>}, {transform_indices = @transform_15, window_bounds = array<i64: 1, 27, 32>}, {transform_indices = @transform_16, window_bounds = array<i64: 1, 27, 27, 32>}]} {
    %c0 = arith.constant 0 : index
    %c0_0 = arith.constant 0 : index
    %c0_1 = arith.constant 0 : index
    %0 = vector.load %arg1[%c0, %c0_0, %c0_1] : memref<1x8x32xf32, #tpu.memory_space<vmem>>, vector<1x8x32xf32>
    %1 = vector.shape_cast %0 : vector<1x8x32xf32> to vector<8x32xf32>
    %c0_2 = arith.constant 0 : index
    %c0_3 = arith.constant 0 : index
    %2 = vector.load %arg2[%c0_2, %c0_3] : memref<32x864xf32, #tpu.memory_space<vmem>>, vector<32x864xf32>
    %cst = arith.constant dense<0.000000e+00> : vector<8x864xf32>
    %3 = tpu.matmul %1, %2, %cst {dimension_numbers = #tpu.dot_dimension_numbers<[1], [0], [0], [1], [0, 0, 1, 1], [], []>} : vector<8x32xf32>, vector<32x864xf32>, vector<8x864xf32> -> vector<8x864xf32>
    %c0_4 = arith.constant 0 : index
    %c0_5 = arith.constant 0 : index
    %4 = vector.load %arg3[%c0_4, %c0_5] : memref<1x864xf32, #tpu.memory_space<vmem>>, vector<1x864xf32>
    %5 = vector.broadcast %4 : vector<1x864xf32> to vector<8x864xf32>
    %6 = arith.addf %3, %5 : vector<8x864xf32>
    %cst_6 = arith.constant 0.000000e+00 : f32
    %7 = vector.broadcast %cst_6 : f32 to vector<8x864xf32>
    %8 = arith.maximumf %6, %7 : vector<8x864xf32>
    %9 = vector.extract_strided_slice %8 {offsets = [0, 0], sizes = [8, 32], strides = [1, 1]} : vector<8x864xf32> to vector<8x32xf32>
    %c0_7 = arith.constant 0 : index
    %c0_8 = arith.constant 0 : index
    %10 = vector.load %arg18[%c0_7, %c0_8] : memref<216x32xf32, #tpu.memory_space<vmem>>, vector<8x32xf32>
    tpu.vector_store %arg18[%c0_7, %c0_8], %9 {strides = array<i32>} : memref<216x32xf32, #tpu.memory_space<vmem>>, vector<8x32xf32>,
    %11 = vector.extract_strided_slice %8 {offsets = [0, 32], sizes = [8, 32], strides = [1, 1]} : vector<8x864xf32> to vector<8x32xf32>
    %c8 = arith.constant 8 : index
    %c0_9 = arith.constant 0 : index
    %12 = vector.load %arg18[%c8, %c0_9] : memref<216x32xf32, #tpu.memory_space<vmem>>, vector<8x32xf32>
    tpu.vector_store %arg18[%c8, %c0_9], %11 {strides = array<i32>} : memref<216x32xf32, #tpu.memory_space<vmem>>, vector<8x32xf32>,
    %13 = vector.extract_strided_slice %8 {offsets = [0, 64], sizes = [8, 32], strides = [1, 1]} : vector<8x864xf32> to vector<8x32xf32>
    %c16 = arith.constant 16 : index
    %c0_10 = arith.constant 0 : index
    %14 = vector.load %arg18[%c16, %c0_10] : memref<216x32xf32, #tpu.memory_space<vmem>>, vector<8x32xf32>
    tpu.vector_store %arg18[%c16, %c0_10], %13 {strides = array<i32>} : memref<216x32xf32, #tpu.memory_space<vmem>>, vector<8x32xf32>,
    %15 = vector.extract_strided_slice %8 {offsets = [0, 96], sizes = [8, 32], strides = [1, 1]} : vector<8x864xf32> to vector<8x32xf32>
    %c24 = arith.constant 24 : index
    %c0_11 = arith.constant 0 : index
    %16 = vector.load %arg18[%c24, %c0_11] : memref<216x32xf32, #tpu.memory_space<vmem>>, vector<8x32xf32>
    tpu.vector_store %arg18[%c24, %c0_11], %15 {strides = array<i32>} : memref<216x32xf32, #tpu.memory_space<vmem>>, vector<8x32xf32>,
    %17 = vector.extract_strided_slice %8 {offsets = [0, 128], sizes = [8, 32], strides = [1, 1]} : vector<8x864xf32> to vector<8x32xf32>
    %c32 = arith.constant 32 : index
    %c0_12 = arith.constant 0 : index
    %18 = vector.load %arg18[%c32, %c0_12] : memref<216x32xf32, #tpu.memory_space<vmem>>, vector<8x32xf32>
    tpu.vector_store %arg18[%c32, %c0_12], %17 {strides = array<i32>} : memref<216x32xf32, #tpu.memory_space<vmem>>, vector<8x32xf32>,
    %19 = vector.extract_strided_slice %8 {offsets = [0, 160], sizes = [8, 32], strides = [1, 1]} : vector<8x864xf32> to vector<8x32xf32>
    %c40 = arith.constant 40 : index
    %c0_13 = arith.constant 0 : index
    %20 = vector.load %arg18[%c40, %c0_13] : memref<216x32xf32, #tpu.memory_space<vmem>>, vector<8x32xf32>
    tpu.vector_store %arg18[%c40, %c0_13], %19 {strides = array<i32>} : memref<216x32xf32, #tpu.memory_space<vmem>>, vector<8x32xf32>,
    %21 = vector.extract_strided_slice %8 {offsets = [0, 192], sizes = [8, 32], strides = [1, 1]} : vector<8x864xf32> to vector<8x32xf32>
    %c48 = arith.constant 48 : index
    %c0_14 = arith.constant 0 : index
    %22 = vector.load %arg18[%c48, %c0_14] : memref<216x32xf32, #tpu.memory_space<vmem>>, vector<8x32xf32>
    tpu.vector_store %arg18[%c48, %c0_14], %21 {strides = array<i32>} : memref<216x32xf32, #tpu.memory_space<vmem>>, vector<8x32xf32>,
    %23 = vector.extract_strided_slice %8 {offsets = [0, 224], sizes = [8, 32], strides = [1, 1]} : vector<8x864xf32> to vector<8x32xf32>
    %c56 = arith.constant 56 : index
    %c0_15 = arith.constant 0 : index
    %24 = vector.load %arg18[%c56, %c0_15] : memref<216x32xf32, #tpu.memory_space<vmem>>, vector<8x32xf32>
    tpu.vector_store %arg18[%c56, %c0_15], %23 {strides = array<i32>} : memref<216x32xf32, #tpu.memory_space<vmem>>, vector<8x32xf32>,
    %25 = vector.extract_strided_slice %8 {offsets = [0, 256], sizes = [8, 32], strides = [1, 1]} : vector<8x864xf32> to vector<8x32xf32>
    %c64 = arith.constant 64 : index
    %c0_16 = arith.constant 0 : index
    %26 = vector.load %arg18[%c64, %c0_16] : memref<216x32xf32, #tpu.memory_space<vmem>>, vector<8x32xf32>
    tpu.vector_store %arg18[%c64, %c0_16], %25 {strides = array<i32>} : memref<216x32xf32, #tpu.memory_space<vmem>>, vector<8x32xf32>,
    %27 = vector.extract_strided_slice %8 {offsets = [0, 288], sizes = [8, 32], strides = [1, 1]} : vector<8x864xf32> to vector<8x32xf32>
    %c72 = arith.constant 72 : index
    %c0_17 = arith.constant 0 : index
    %28 = vector.load %arg18[%c72, %c0_17] : memref<216x32xf32, #tpu.memory_space<vmem>>, vector<8x32xf32>
    tpu.vector_store %arg18[%c72, %c0_17], %27 {strides = array<i32>} : memref<216x32xf32, #tpu.memory_space<vmem>>, vector<8x32xf32>,
    %29 = vector.extract_strided_slice %8 {offsets = [0, 320], sizes = [8, 32], strides = [1, 1]} : vector<8x864xf32> to vector<8x32xf32>
    %c80 = arith.constant 80 : index
    %c0_18 = arith.constant 0 : index
    %30 = vector.load %arg18[%c80, %c0_18] : memref<216x32xf32, #tpu.memory_space<vmem>>, vector<8x32xf32>
    tpu.vector_store %arg18[%c80, %c0_18], %29 {strides = array<i32>} : memref<216x32xf32, #tpu.memory_space<vmem>>, vector<8x32xf32>,
    %31 = vector.extract_strided_slice %8 {offsets = [0, 352], sizes = [8, 32], strides = [1, 1]} : vector<8x864xf32> to vector<8x32xf32>
    %c88 = arith.constant 88 : index
    %c0_19 = arith.constant 0 : index
    %32 = vector.load %arg18[%c88, %c0_19] : memref<216x32xf32, #tpu.memory_space<vmem>>, vector<8x32xf32>
    tpu.vector_store %arg18[%c88, %c0_19], %31 {strides = array<i32>} : memref<216x32xf32, #tpu.memory_space<vmem>>, vector<8x32xf32>,
    %33 = vector.extract_strided_slice %8 {offsets = [0, 384], sizes = [8, 32], strides = [1, 1]} : vector<8x864xf32> to vector<8x32xf32>
    %c96 = arith.constant 96 : index
    %c0_20 = arith.constant 0 : index
    %34 = vector.load %arg18[%c96, %c0_20] : memref<216x32xf32, #tpu.memory_space<vmem>>, vector<8x32xf32>
    tpu.vector_store %arg18[%c96, %c0_20], %33 {strides = array<i32>} : memref<216x32xf32, #tpu.memory_space<vmem>>, vector<8x32xf32>,
    %35 = vector.extract_strided_slice %8 {offsets = [0, 416], sizes = [8, 32], strides = [1, 1]} : vector<8x864xf32> to vector<8x32xf32>
    %c104 = arith.constant 104 : index
    %c0_21 = arith.constant 0 : index
    %36 = vector.load %arg18[%c104, %c0_21] : memref<216x32xf32, #tpu.memory_space<vmem>>, vector<8x32xf32>
    tpu.vector_store %arg18[%c104, %c0_21], %35 {strides = array<i32>} : memref<216x32xf32, #tpu.memory_space<vmem>>, vector<8x32xf32>,
    %37 = vector.extract_strided_slice %8 {offsets = [0, 448], sizes = [8, 32], strides = [1, 1]} : vector<8x864xf32> to vector<8x32xf32>
    %c112 = arith.constant 112 : index
    %c0_22 = arith.constant 0 : index
    %38 = vector.load %arg18[%c112, %c0_22] : memref<216x32xf32, #tpu.memory_space<vmem>>, vector<8x32xf32>
    tpu.vector_store %arg18[%c112, %c0_22], %37 {strides = array<i32>} : memref<216x32xf32, #tpu.memory_space<vmem>>, vector<8x32xf32>,
    %39 = vector.extract_strided_slice %8 {offsets = [0, 480], sizes = [8, 32], strides = [1, 1]} : vector<8x864xf32> to vector<8x32xf32>
    %c120 = arith.constant 120 : index
    %c0_23 = arith.constant 0 : index
    %40 = vector.load %arg18[%c120, %c0_23] : memref<216x32xf32, #tpu.memory_space<vmem>>, vector<8x32xf32>
    tpu.vector_store %arg18[%c120, %c0_23], %39 {strides = array<i32>} : memref<216x32xf32, #tpu.memory_space<vmem>>, vector<8x32xf32>,
    %41 = vector.extract_strided_slice %8 {offsets = [0, 512], sizes = [8, 32], strides = [1, 1]} : vector<8x864xf32> to vector<8x32xf32>
    %c128 = arith.constant 128 : index
    %c0_24 = arith.constant 0 : index
    %42 = vector.load %arg18[%c128, %c0_24] : memref<216x32xf32, #tpu.memory_space<vmem>>, vector<8x32xf32>
    tpu.vector_store %arg18[%c128, %c0_24], %41 {strides = array<i32>} : memref<216x32xf32, #tpu.memory_space<vmem>>, vector<8x32xf32>,
    %43 = vector.extract_strided_slice %8 {offsets = [0, 544], sizes = [8, 32], strides = [1, 1]} : vector<8x864xf32> to vector<8x32xf32>
    %c136 = arith.constant 136 : index
    %c0_25 = arith.constant 0 : index
    %44 = vector.load %arg18[%c136, %c0_25] : memref<216x32xf32, #tpu.memory_space<vmem>>, vector<8x32xf32>
    tpu.vector_store %arg18[%c136, %c0_25], %43 {strides = array<i32>} : memref<216x32xf32, #tpu.memory_space<vmem>>, vector<8x32xf32>,
    %45 = vector.extract_strided_slice %8 {offsets = [0, 576], sizes = [8, 32], strides = [1, 1]} : vector<8x864xf32> to vector<8x32xf32>
    %c144 = arith.constant 144 : index
    %c0_26 = arith.constant 0 : index
    %46 = vector.load %arg18[%c144, %c0_26] : memref<216x32xf32, #tpu.memory_space<vmem>>, vector<8x32xf32>
    tpu.vector_store %arg18[%c144, %c0_26], %45 {strides = array<i32>} : memref<216x32xf32, #tpu.memory_space<vmem>>, vector<8x32xf32>,
    %47 = vector.extract_strided_slice %8 {offsets = [0, 608], sizes = [8, 32], strides = [1, 1]} : vector<8x864xf32> to vector<8x32xf32>
    %c152 = arith.constant 152 : index
    %c0_27 = arith.constant 0 : index
    %48 = vector.load %arg18[%c152, %c0_27] : memref<216x32xf32, #tpu.memory_space<vmem>>, vector<8x32xf32>
    tpu.vector_store %arg18[%c152, %c0_27], %47 {strides = array<i32>} : memref<216x32xf32, #tpu.memory_space<vmem>>, vector<8x32xf32>,
    %49 = vector.extract_strided_slice %8 {offsets = [0, 640], sizes = [8, 32], strides = [1, 1]} : vector<8x864xf32> to vector<8x32xf32>
    %c160 = arith.constant 160 : index
    %c0_28 = arith.constant 0 : index
    %50 = vector.load %arg18[%c160, %c0_28] : memref<216x32xf32, #tpu.memory_space<vmem>>, vector<8x32xf32>
    tpu.vector_store %arg18[%c160, %c0_28], %49 {strides = array<i32>} : memref<216x32xf32, #tpu.memory_space<vmem>>, vector<8x32xf32>,
    %51 = vector.extract_strided_slice %8 {offsets = [0, 672], sizes = [8, 32], strides = [1, 1]} : vector<8x864xf32> to vector<8x32xf32>
    %c168 = arith.constant 168 : index
    %c0_29 = arith.constant 0 : index
    %52 = vector.load %arg18[%c168, %c0_29] : memref<216x32xf32, #tpu.memory_space<vmem>>, vector<8x32xf32>
    tpu.vector_store %arg18[%c168, %c0_29], %51 {strides = array<i32>} : memref<216x32xf32, #tpu.memory_space<vmem>>, vector<8x32xf32>,
    %53 = vector.extract_strided_slice %8 {offsets = [0, 704], sizes = [8, 32], strides = [1, 1]} : vector<8x864xf32> to vector<8x32xf32>
    %c176 = arith.constant 176 : index
    %c0_30 = arith.constant 0 : index
    %54 = vector.load %arg18[%c176, %c0_30] : memref<216x32xf32, #tpu.memory_space<vmem>>, vector<8x32xf32>
    tpu.vector_store %arg18[%c176, %c0_30], %53 {strides = array<i32>} : memref<216x32xf32, #tpu.memory_space<vmem>>, vector<8x32xf32>,
    %55 = vector.extract_strided_slice %8 {offsets = [0, 736], sizes = [8, 32], strides = [1, 1]} : vector<8x864xf32> to vector<8x32xf32>
    %c184 = arith.constant 184 : index
    %c0_31 = arith.constant 0 : index
    %56 = vector.load %arg18[%c184, %c0_31] : memref<216x32xf32, #tpu.memory_space<vmem>>, vector<8x32xf32>
    tpu.vector_store %arg18[%c184, %c0_31], %55 {strides = array<i32>} : memref<216x32xf32, #tpu.memory_space<vmem>>, vector<8x32xf32>,
    %57 = vector.extract_strided_slice %8 {offsets = [0, 768], sizes = [8, 32], strides = [1, 1]} : vector<8x864xf32> to vector<8x32xf32>
    %c192 = arith.constant 192 : index
    %c0_32 = arith.constant 0 : index
    %58 = vector.load %arg18[%c192, %c0_32] : memref<216x32xf32, #tpu.memory_space<vmem>>, vector<8x32xf32>
    tpu.vector_store %arg18[%c192, %c0_32], %57 {strides = array<i32>} : memref<216x32xf32, #tpu.memory_space<vmem>>, vector<8x32xf32>,
    %59 = vector.extract_strided_slice %8 {offsets = [0, 800], sizes = [8, 32], strides = [1, 1]} : vector<8x864xf32> to vector<8x32xf32>
    %c200 = arith.constant 200 : index
    %c0_33 = arith.constant 0 : index
    %60 = vector.load %arg18[%c200, %c0_33] : memref<216x32xf32, #tpu.memory_space<vmem>>, vector<8x32xf32>
    tpu.vector_store %arg18[%c200, %c0_33], %59 {strides = array<i32>} : memref<216x32xf32, #tpu.memory_space<vmem>>, vector<8x32xf32>,
    %61 = vector.extract_strided_slice %8 {offsets = [0, 832], sizes = [8, 32], strides = [1, 1]} : vector<8x864xf32> to vector<8x32xf32>
    %c208 = arith.constant 208 : index
    %c0_34 = arith.constant 0 : index
    %62 = vector.load %arg18[%c208, %c0_34] : memref<216x32xf32, #tpu.memory_space<vmem>>, vector<8x32xf32>
    tpu.vector_store %arg18[%c208, %c0_34], %61 {strides = array<i32>} : memref<216x32xf32, #tpu.memory_space<vmem>>, vector<8x32xf32>,
    %c0_35 = arith.constant 0 : index
    %c0_36 = arith.constant 0 : index
    %63 = vector.load %arg18[%c0_35, %c0_36] : memref<216x32xf32, #tpu.memory_space<vmem>>, vector<216x32xf32>
    %c0_37 = arith.constant 0 : index
    %c0_38 = arith.constant 0 : index
    %64 = vector.load %arg4[%c0_37, %c0_38] : memref<27x216xf32, #tpu.memory_space<vmem>>, vector<27x216xf32>
    %cst_39 = arith.constant dense<0.000000e+00> : vector<27x32xf32>
    %65 = tpu.matmul %64, %63, %cst_39 {dimension_numbers = #tpu.dot_dimension_numbers<[1], [0], [0], [1], [0, 0, 1, 1], [], []>} : vector<27x216xf32>, vector<216x32xf32>, vector<27x32xf32> -> vector<27x32xf32>
    %c0_40 = arith.constant 0 : index
    %c0_41 = arith.constant 0 : index
    %c0_42 = arith.constant 0 : index
    %66 = vector.load %arg16[%c0_40, %c0_41, %c0_42] : memref<1x27x32xf32, #tpu.memory_space<vmem>>, vector<1x27x32xf32>
    %67 = vector.shape_cast %66 : vector<1x27x32xf32> to vector<27x32xf32>
    %68 = vector.shape_cast %65 : vector<27x32xf32> to vector<1x27x32xf32>
    tpu.vector_store %arg16[%c0_40, %c0_41, %c0_42], %68 {strides = array<i32>} : memref<1x27x32xf32, #tpu.memory_space<vmem>>, vector<1x27x32xf32>,
    %c0_43 = arith.constant 0 : index
    %c0_44 = arith.constant 0 : index
    %69 = vector.load %arg9[%c0_43, %c0_44] : memref<32x48xf32, #tpu.memory_space<vmem>>, vector<32x48xf32>
    %cst_45 = arith.constant dense<0.000000e+00> : vector<8x48xf32>
    %70 = tpu.matmul %1, %69, %cst_45 {dimension_numbers = #tpu.dot_dimension_numbers<[1], [0], [0], [1], [0, 0, 1, 1], [], []>} : vector<8x32xf32>, vector<32x48xf32>, vector<8x48xf32> -> vector<8x48xf32>
    %c0_46 = arith.constant 0 : index
    %c0_47 = arith.constant 0 : index
    %71 = vector.load %arg10[%c0_46, %c0_47] : memref<1x48xf32, #tpu.memory_space<vmem>>, vector<1x48xf32>
    %72 = vector.broadcast %71 : vector<1x48xf32> to vector<8x48xf32>
    %73 = arith.addf %70, %72 : vector<8x48xf32>
    %74 = vector.extract_strided_slice %73 {offsets = [0, 0], sizes = [8, 16], strides = [1, 1]} : vector<8x48xf32> to vector<8x16xf32>
    %75 = vector.extract_strided_slice %73 {offsets = [0, 16], sizes = [8, 32], strides = [1, 1]} : vector<8x48xf32> to vector<8x32xf32>
    %c0_48 = arith.constant 0 : index
    %c0_49 = arith.constant 0 : index
    %76 = vector.load %arg7[%c0_48, %c0_49] : memref<32x16xf32, #tpu.memory_space<vmem>>, vector<32x16xf32>
    %cst_50 = arith.constant dense<0.000000e+00> : vector<216x16xf32>
    %77 = tpu.matmul %63, %76, %cst_50 {dimension_numbers = #tpu.dot_dimension_numbers<[1], [0], [0], [1], [0, 0, 1, 1], [], []>} : vector<216x32xf32>, vector<32x16xf32>, vector<216x16xf32> -> vector<216x16xf32>
    %c0_51 = arith.constant 0 : index
    %c0_52 = arith.constant 0 : index
    %78 = vector.load %arg8[%c0_51, %c0_52] : memref<1x16xf32, #tpu.memory_space<vmem>>, vector<1x16xf32>
    %79 = vector.broadcast %78 : vector<1x16xf32> to vector<216x16xf32>
    %80 = arith.addf %77, %79 : vector<216x16xf32>
    %cst_53 = arith.constant dense<0.000000e+00> : vector<216x8xf32>
    %81 = tpu.matmul %80, %74, %cst_53 {dimension_numbers = #tpu.dot_dimension_numbers<[1], [1], [0], [0], [0, 0, 1, 0], [], []>} : vector<216x16xf32>, vector<8x16xf32>, vector<216x8xf32> -> vector<216x8xf32>
    %cst_54 = arith.constant dense<0xFF800000> : vector<216xf32>
    %82 = vector.multi_reduction <maximumf>, %81, %cst_54 [1] : vector<216x8xf32> to vector<216xf32>
    %83 = vector.shape_cast %82 : vector<216xf32> to vector<216x1xf32>
    %84 = vector.broadcast %83 : vector<216x1xf32> to vector<216x8xf32>
    %85 = arith.subf %81, %84 : vector<216x8xf32>
    %86 = math.exp %85 : vector<216x8xf32>
    %cst_55 = arith.constant dense<0.000000e+00> : vector<216xf32>
    %87 = vector.multi_reduction <add>, %86, %cst_55 [1] : vector<216x8xf32> to vector<216xf32>
    %88 = vector.shape_cast %87 : vector<216xf32> to vector<216x1xf32>
    %89 = tpu.reciprocal %88 {approx = true} : vector<216x1xf32> -> vector<216x1xf32>
    %90 = vector.broadcast %89 : vector<216x1xf32> to vector<216x8xf32>
    %91 = arith.mulf %86, %90 : vector<216x8xf32>
    %cst_56 = arith.constant dense<0.000000e+00> : vector<216x32xf32>
    %92 = tpu.matmul %91, %75, %cst_56 {dimension_numbers = #tpu.dot_dimension_numbers<[1], [0], [0], [1], [0, 0, 1, 1], [], []>} : vector<216x8xf32>, vector<8x32xf32>, vector<216x32xf32> -> vector<216x32xf32>
    %c0_57 = arith.constant 0 : index
    %c0_58 = arith.constant 0 : index
    %93 = vector.load %arg11[%c0_57, %c0_58] : memref<32x64xf32, #tpu.memory_space<vmem>>, vector<32x64xf32>
    %cst_59 = arith.constant dense<0.000000e+00> : vector<216x64xf32>
    %94 = tpu.matmul %92, %93, %cst_59 {dimension_numbers = #tpu.dot_dimension_numbers<[1], [0], [0], [1], [0, 0, 1, 1], [], []>} : vector<216x32xf32>, vector<32x64xf32>, vector<216x64xf32> -> vector<216x64xf32>
    %c0_60 = arith.constant 0 : index
    %c0_61 = arith.constant 0 : index
    %95 = vector.load %arg12[%c0_60, %c0_61] : memref<1x64xf32, #tpu.memory_space<vmem>>, vector<1x64xf32>
    %96 = vector.broadcast %95 : vector<1x64xf32> to vector<216x64xf32>
    %97 = arith.addf %94, %96 : vector<216x64xf32>
    %98 = vector.extract_strided_slice %97 {offsets = [0, 0], sizes = [216, 16], strides = [1, 1]} : vector<216x64xf32> to vector<216x16xf32>
    %99 = vector.extract_strided_slice %97 {offsets = [0, 16], sizes = [216, 16], strides = [1, 1]} : vector<216x64xf32> to vector<216x16xf32>
    %100 = vector.extract_strided_slice %97 {offsets = [0, 32], sizes = [216, 32], strides = [1, 1]} : vector<216x64xf32> to vector<216x32xf32>
    %c0_62 = arith.constant 0 : index
    %c0_63 = arith.constant 0 : index
    %101 = vector.load %arg13[%c0_62, %c0_63] : memref<32x32xf32, #tpu.memory_space<vmem>>, vector<32x32xf32>
    %cst_64 = arith.constant dense<0.000000e+00> : vector<216x32xf32>
    %102 = tpu.matmul %100, %101, %cst_64 {dimension_numbers = #tpu.dot_dimension_numbers<[1], [0], [0], [1], [0, 0, 1, 1], [], []>} : vector<216x32xf32>, vector<32x32xf32>, vector<216x32xf32> -> vector<216x32xf32>
    %cst_65 = arith.constant dense<0.000000e+00> : vector<216x216xf32>
    %103 = tpu.matmul %98, %99, %cst_65 {dimension_numbers = #tpu.dot_dimension_numbers<[1], [1], [0], [0], [0, 0, 1, 0], [], []>} : vector<216x16xf32>, vector<216x16xf32>, vector<216x216xf32> -> vector<216x216xf32>
    %cst_66 = arith.constant dense<0xFF800000> : vector<216xf32>
    %104 = vector.multi_reduction <maximumf>, %103, %cst_66 [1] : vector<216x216xf32> to vector<216xf32>
    %105 = vector.shape_cast %104 : vector<216xf32> to vector<216x1xf32>
    %106 = vector.broadcast %105 : vector<216x1xf32> to vector<216x216xf32>
    %107 = arith.subf %103, %106 : vector<216x216xf32>
    %108 = math.exp %107 : vector<216x216xf32>
    %c0_67 = arith.constant 0 : index
    %c0_68 = arith.constant 0 : index
    %109 = vector.load %arg5[%c0_67, %c0_68] : memref<216x27xf32, #tpu.memory_space<vmem>>, vector<216x27xf32>
    %cst_69 = arith.constant dense<0.000000e+00> : vector<216x27xf32>
    %110 = tpu.matmul %108, %109, %cst_69 {dimension_numbers = #tpu.dot_dimension_numbers<[1], [0], [0], [1], [0, 0, 1, 1], [], []>} : vector<216x216xf32>, vector<216x27xf32>, vector<216x27xf32> -> vector<216x27xf32>
    %111 = tpu.reciprocal %110 {approx = true} : vector<216x27xf32> -> vector<216x27xf32>
    %c0_70 = arith.constant 0 : index
    %c0_71 = arith.constant 0 : index
    %112 = vector.load %arg6[%c0_70, %c0_71] : memref<27x216xf32, #tpu.memory_space<vmem>>, vector<27x216xf32>
    %cst_72 = arith.constant dense<0.000000e+00> : vector<216x216xf32>
    %113 = tpu.matmul %111, %112, %cst_72 {dimension_numbers = #tpu.dot_dimension_numbers<[1], [0], [0], [1], [0, 0, 1, 1], [], []>} : vector<216x27xf32>, vector<27x216xf32>, vector<216x216xf32> -> vector<216x216xf32>
    %114 = arith.mulf %108, %113 : vector<216x216xf32>
    %c0_73 = arith.constant 0 : index
    %c0_74 = arith.constant 0 : index
    %115 = vector.load %arg4[%c0_73, %c0_74] : memref<27x216xf32, #tpu.memory_space<vmem>>, vector<27x216xf32>
    %cst_75 = arith.constant dense<0.000000e+00> : vector<27x216xf32>
    %116 = tpu.matmul %115, %114, %cst_75 {dimension_numbers = #tpu.dot_dimension_numbers<[1], [0], [0], [1], [0, 0, 1, 1], [], []>} : vector<27x216xf32>, vector<216x216xf32>, vector<27x216xf32> -> vector<27x216xf32>
    %117 = vector.extract_strided_slice %116 {offsets = [0, 0], sizes = [27, 8], strides = [1, 1]} : vector<27x216xf32> to vector<27x8xf32>
    %118 = vector.extract_strided_slice %102 {offsets = [0, 0], sizes = [8, 32], strides = [1, 1]} : vector<216x32xf32> to vector<8x32xf32>
    %cst_76 = arith.constant dense<0.000000e+00> : vector<27x32xf32>
    %119 = tpu.matmul %117, %118, %cst_76 {dimension_numbers = #tpu.dot_dimension_numbers<[1], [0], [0], [1], [0, 0, 1, 1], [], []>} : vector<27x8xf32>, vector<8x32xf32>, vector<27x32xf32> -> vector<27x32xf32>
    %c0_77 = arith.constant 0 : index
    %c0_78 = arith.constant 0 : index
    %c0_79 = arith.constant 0 : index
    %120 = vector.load %arg14[%c0_77, %c0_78, %c0_79] : memref<27x27x1xf32, #tpu.memory_space<vmem>>, vector<1x27x1xf32>
    %121 = vector.shape_cast %120 : vector<1x27x1xf32> to vector<27x1xf32>
    %122 = vector.broadcast %121 : vector<27x1xf32> to vector<27x32xf32>
    %123 = arith.mulf %119, %122 : vector<27x32xf32>
    %c0_80 = arith.constant 0 : index
    %c0_81 = arith.constant 0 : index
    %c0_82 = arith.constant 0 : index
    %124 = vector.load %arg15[%c0_80, %c0_81, %c0_82] : memref<27x27x32xf32, #tpu.memory_space<vmem>>, vector<1x27x32xf32>
    %125 = vector.shape_cast %124 : vector<1x27x32xf32> to vector<27x32xf32>
    %126 = arith.addf %123, %125 : vector<27x32xf32>
    %c0_83 = arith.constant 0 : index
    %c0_84 = arith.constant 0 : index
    %c0_85 = arith.constant 0 : index
    %c0_86 = arith.constant 0 : index
    %127 = vector.load %arg17[%c0_83, %c0_84, %c0_85, %c0_86] : memref<1x27x27x32xf32, #tpu.memory_space<vmem>>, vector<1x1x27x32xf32>
    %128 = vector.shape_cast %127 : vector<1x1x27x32xf32> to vector<27x32xf32>
    %129 = vector.shape_cast %126 : vector<27x32xf32> to vector<1x1x27x32xf32>
    tpu.vector_store %arg17[%c0_83, %c0_84, %c0_85, %c0_86], %129 {strides = array<i32>} : memref<1x27x27x32xf32, #tpu.memory_space<vmem>>, vector<1x1x27x32xf32>,
    %130 = vector.extract_strided_slice %116 {offsets = [0, 8], sizes = [27, 8], strides = [1, 1]} : vector<27x216xf32> to vector<27x8xf32>
    %131 = vector.extract_strided_slice %102 {offsets = [8, 0], sizes = [8, 32], strides = [1, 1]} : vector<216x32xf32> to vector<8x32xf32>
    %cst_87 = arith.constant dense<0.000000e+00> : vector<27x32xf32>
    %132 = tpu.matmul %130, %131, %cst_87 {dimension_numbers = #tpu.dot_dimension_numbers<[1], [0], [0], [1], [0, 0, 1, 1], [], []>} : vector<27x8xf32>, vector<8x32xf32>, vector<27x32xf32> -> vector<27x32xf32>
    %c1 = arith.constant 1 : index
    %c0_88 = arith.constant 0 : index
    %c0_89 = arith.constant 0 : index
    %133 = vector.load %arg14[%c1, %c0_88, %c0_89] : memref<27x27x1xf32, #tpu.memory_space<vmem>>, vector<1x27x1xf32>
    %134 = vector.shape_cast %133 : vector<1x27x1xf32> to vector<27x1xf32>
    %135 = vector.broadcast %134 : vector<27x1xf32> to vector<27x32xf32>
    %136 = arith.mulf %132, %135 : vector<27x32xf32>
    %c1_90 = arith.constant 1 : index
    %c0_91 = arith.constant 0 : index
    %c0_92 = arith.constant 0 : index
    %137 = vector.load %arg15[%c1_90, %c0_91, %c0_92] : memref<27x27x32xf32, #tpu.memory_space<vmem>>, vector<1x27x32xf32>
    %138 = vector.shape_cast %137 : vector<1x27x32xf32> to vector<27x32xf32>
    %139 = arith.addf %136, %138 : vector<27x32xf32>
    %c0_93 = arith.constant 0 : index
    %c1_94 = arith.constant 1 : index
    %c0_95 = arith.constant 0 : index
    %c0_96 = arith.constant 0 : index
    %140 = vector.load %arg17[%c0_93, %c1_94, %c0_95, %c0_96] : memref<1x27x27x32xf32, #tpu.memory_space<vmem>>, vector<1x1x27x32xf32>
    %141 = vector.shape_cast %140 : vector<1x1x27x32xf32> to vector<27x32xf32>
    %142 = vector.shape_cast %139 : vector<27x32xf32> to vector<1x1x27x32xf32>
    tpu.vector_store %arg17[%c0_93, %c1_94, %c0_95, %c0_96], %142 {strides = array<i32>} : memref<1x27x27x32xf32, #tpu.memory_space<vmem>>, vector<1x1x27x32xf32>,
    %143 = vector.extract_strided_slice %116 {offsets = [0, 16], sizes = [27, 8], strides = [1, 1]} : vector<27x216xf32> to vector<27x8xf32>
    %144 = vector.extract_strided_slice %102 {offsets = [16, 0], sizes = [8, 32], strides = [1, 1]} : vector<216x32xf32> to vector<8x32xf32>
    %cst_97 = arith.constant dense<0.000000e+00> : vector<27x32xf32>
    %145 = tpu.matmul %143, %144, %cst_97 {dimension_numbers = #tpu.dot_dimension_numbers<[1], [0], [0], [1], [0, 0, 1, 1], [], []>} : vector<27x8xf32>, vector<8x32xf32>, vector<27x32xf32> -> vector<27x32xf32>
    %c2 = arith.constant 2 : index
    %c0_98 = arith.constant 0 : index
    %c0_99 = arith.constant 0 : index
    %146 = vector.load %arg14[%c2, %c0_98, %c0_99] : memref<27x27x1xf32, #tpu.memory_space<vmem>>, vector<1x27x1xf32>
    %147 = vector.shape_cast %146 : vector<1x27x1xf32> to vector<27x1xf32>
    %148 = vector.broadcast %147 : vector<27x1xf32> to vector<27x32xf32>
    %149 = arith.mulf %145, %148 : vector<27x32xf32>
    %c2_100 = arith.constant 2 : index
    %c0_101 = arith.constant 0 : index
    %c0_102 = arith.constant 0 : index
    %150 = vector.load %arg15[%c2_100, %c0_101, %c0_102] : memref<27x27x32xf32, #tpu.memory_space<vmem>>, vector<1x27x32xf32>
    %151 = vector.shape_cast %150 : vector<1x27x32xf32> to vector<27x32xf32>
    %152 = arith.addf %149, %151 : vector<27x32xf32>
    %c0_103 = arith.constant 0 : index
    %c2_104 = arith.constant 2 : index
    %c0_105 = arith.constant 0 : index
    %c0_106 = arith.constant 0 : index
    %153 = vector.load %arg17[%c0_103, %c2_104, %c0_105, %c0_106] : memref<1x27x27x32xf32, #tpu.memory_space<vmem>>, vector<1x1x27x32xf32>
    %154 = vector.shape_cast %153 : vector<1x1x27x32xf32> to vector<27x32xf32>
    %155 = vector.shape_cast %152 : vector<27x32xf32> to vector<1x1x27x32xf32>
    tpu.vector_store %arg17[%c0_103, %c2_104, %c0_105, %c0_106], %155 {strides = array<i32>} : memref<1x27x27x32xf32, #tpu.memory_space<vmem>>, vector<1x1x27x32xf32>,
    %156 = vector.extract_strided_slice %116 {offsets = [0, 24], sizes = [27, 8], strides = [1, 1]} : vector<27x216xf32> to vector<27x8xf32>
    %157 = vector.extract_strided_slice %102 {offsets = [24, 0], sizes = [8, 32], strides = [1, 1]} : vector<216x32xf32> to vector<8x32xf32>
    %cst_107 = arith.constant dense<0.000000e+00> : vector<27x32xf32>
    %158 = tpu.matmul %156, %157, %cst_107 {dimension_numbers = #tpu.dot_dimension_numbers<[1], [0], [0], [1], [0, 0, 1, 1], [], []>} : vector<27x8xf32>, vector<8x32xf32>, vector<27x32xf32> -> vector<27x32xf32>
    %c3 = arith.constant 3 : index
    %c0_108 = arith.constant 0 : index
    %c0_109 = arith.constant 0 : index
    %159 = vector.load %arg14[%c3, %c0_108, %c0_109] : memref<27x27x1xf32, #tpu.memory_space<vmem>>, vector<1x27x1xf32>
    %160 = vector.shape_cast %159 : vector<1x27x1xf32> to vector<27x1xf32>
    %161 = vector.broadcast %160 : vector<27x1xf32> to vector<27x32xf32>
    %162 = arith.mulf %158, %161 : vector<27x32xf32>
    %c3_110 = arith.constant 3 : index
    %c0_111 = arith.constant 0 : index
    %c0_112 = arith.constant 0 : index
    %163 = vector.load %arg15[%c3_110, %c0_111, %c0_112] : memref<27x27x32xf32, #tpu.memory_space<vmem>>, vector<1x27x32xf32>
    %164 = vector.shape_cast %163 : vector<1x27x32xf32> to vector<27x32xf32>
    %165 = arith.addf %162, %164 : vector<27x32xf32>
    %c0_113 = arith.constant 0 : index
    %c3_114 = arith.constant 3 : index
    %c0_115 = arith.constant 0 : index
    %c0_116 = arith.constant 0 : index
    %166 = vector.load %arg17[%c0_113, %c3_114, %c0_115, %c0_116] : memref<1x27x27x32xf32, #tpu.memory_space<vmem>>, vector<1x1x27x32xf32>
    %167 = vector.shape_cast %166 : vector<1x1x27x32xf32> to vector<27x32xf32>
    %168 = vector.shape_cast %165 : vector<27x32xf32> to vector<1x1x27x32xf32>
    tpu.vector_store %arg17[%c0_113, %c3_114, %c0_115, %c0_116], %168 {strides = array<i32>} : memref<1x27x27x32xf32, #tpu.memory_space<vmem>>, vector<1x1x27x32xf32>,
    %169 = vector.extract_strided_slice %116 {offsets = [0, 32], sizes = [27, 8], strides = [1, 1]} : vector<27x216xf32> to vector<27x8xf32>
    %170 = vector.extract_strided_slice %102 {offsets = [32, 0], sizes = [8, 32], strides = [1, 1]} : vector<216x32xf32> to vector<8x32xf32>
    %cst_117 = arith.constant dense<0.000000e+00> : vector<27x32xf32>
    %171 = tpu.matmul %169, %170, %cst_117 {dimension_numbers = #tpu.dot_dimension_numbers<[1], [0], [0], [1], [0, 0, 1, 1], [], []>} : vector<27x8xf32>, vector<8x32xf32>, vector<27x32xf32> -> vector<27x32xf32>
    %c4 = arith.constant 4 : index
    %c0_118 = arith.constant 0 : index
    %c0_119 = arith.constant 0 : index
    %172 = vector.load %arg14[%c4, %c0_118, %c0_119] : memref<27x27x1xf32, #tpu.memory_space<vmem>>, vector<1x27x1xf32>
    %173 = vector.shape_cast %172 : vector<1x27x1xf32> to vector<27x1xf32>
    %174 = vector.broadcast %173 : vector<27x1xf32> to vector<27x32xf32>
    %175 = arith.mulf %171, %174 : vector<27x32xf32>
    %c4_120 = arith.constant 4 : index
    %c0_121 = arith.constant 0 : index
    %c0_122 = arith.constant 0 : index
    %176 = vector.load %arg15[%c4_120, %c0_121, %c0_122] : memref<27x27x32xf32, #tpu.memory_space<vmem>>, vector<1x27x32xf32>
    %177 = vector.shape_cast %176 : vector<1x27x32xf32> to vector<27x32xf32>
    %178 = arith.addf %175, %177 : vector<27x32xf32>
    %c0_123 = arith.constant 0 : index
    %c4_124 = arith.constant 4 : index
    %c0_125 = arith.constant 0 : index
    %c0_126 = arith.constant 0 : index
    %179 = vector.load %arg17[%c0_123, %c4_124, %c0_125, %c0_126] : memref<1x27x27x32xf32, #tpu.memory_space<vmem>>, vector<1x1x27x32xf32>
    %180 = vector.shape_cast %179 : vector<1x1x27x32xf32> to vector<27x32xf32>
    %181 = vector.shape_cast %178 : vector<27x32xf32> to vector<1x1x27x32xf32>
    tpu.vector_store %arg17[%c0_123, %c4_124, %c0_125, %c0_126], %181 {strides = array<i32>} : memref<1x27x27x32xf32, #tpu.memory_space<vmem>>, vector<1x1x27x32xf32>,
    %182 = vector.extract_strided_slice %116 {offsets = [0, 40], sizes = [27, 8], strides = [1, 1]} : vector<27x216xf32> to vector<27x8xf32>
    %183 = vector.extract_strided_slice %102 {offsets = [40, 0], sizes = [8, 32], strides = [1, 1]} : vector<216x32xf32> to vector<8x32xf32>
    %cst_127 = arith.constant dense<0.000000e+00> : vector<27x32xf32>
    %184 = tpu.matmul %182, %183, %cst_127 {dimension_numbers = #tpu.dot_dimension_numbers<[1], [0], [0], [1], [0, 0, 1, 1], [], []>} : vector<27x8xf32>, vector<8x32xf32>, vector<27x32xf32> -> vector<27x32xf32>
    %c5 = arith.constant 5 : index
    %c0_128 = arith.constant 0 : index
    %c0_129 = arith.constant 0 : index
    %185 = vector.load %arg14[%c5, %c0_128, %c0_129] : memref<27x27x1xf32, #tpu.memory_space<vmem>>, vector<1x27x1xf32>
    %186 = vector.shape_cast %185 : vector<1x27x1xf32> to vector<27x1xf32>
    %187 = vector.broadcast %186 : vector<27x1xf32> to vector<27x32xf32>
    %188 = arith.mulf %184, %187 : vector<27x32xf32>
    %c5_130 = arith.constant 5 : index
    %c0_131 = arith.constant 0 : index
    %c0_132 = arith.constant 0 : index
    %189 = vector.load %arg15[%c5_130, %c0_131, %c0_132] : memref<27x27x32xf32, #tpu.memory_space<vmem>>, vector<1x27x32xf32>
    %190 = vector.shape_cast %189 : vector<1x27x32xf32> to vector<27x32xf32>
    %191 = arith.addf %188, %190 : vector<27x32xf32>
    %c0_133 = arith.constant 0 : index
    %c5_134 = arith.constant 5 : index
    %c0_135 = arith.constant 0 : index
    %c0_136 = arith.constant 0 : index
    %192 = vector.load %arg17[%c0_133, %c5_134, %c0_135, %c0_136] : memref<1x27x27x32xf32, #tpu.memory_space<vmem>>, vector<1x1x27x32xf32>
    %193 = vector.shape_cast %192 : vector<1x1x27x32xf32> to vector<27x32xf32>
    %194 = vector.shape_cast %191 : vector<27x32xf32> to vector<1x1x27x32xf32>
    tpu.vector_store %arg17[%c0_133, %c5_134, %c0_135, %c0_136], %194 {strides = array<i32>} : memref<1x27x27x32xf32, #tpu.memory_space<vmem>>, vector<1x1x27x32xf32>,
    %195 = vector.extract_strided_slice %116 {offsets = [0, 48], sizes = [27, 8], strides = [1, 1]} : vector<27x216xf32> to vector<27x8xf32>
    %196 = vector.extract_strided_slice %102 {offsets = [48, 0], sizes = [8, 32], strides = [1, 1]} : vector<216x32xf32> to vector<8x32xf32>
    %cst_137 = arith.constant dense<0.000000e+00> : vector<27x32xf32>
    %197 = tpu.matmul %195, %196, %cst_137 {dimension_numbers = #tpu.dot_dimension_numbers<[1], [0], [0], [1], [0, 0, 1, 1], [], []>} : vector<27x8xf32>, vector<8x32xf32>, vector<27x32xf32> -> vector<27x32xf32>
    %c6 = arith.constant 6 : index
    %c0_138 = arith.constant 0 : index
    %c0_139 = arith.constant 0 : index
    %198 = vector.load %arg14[%c6, %c0_138, %c0_139] : memref<27x27x1xf32, #tpu.memory_space<vmem>>, vector<1x27x1xf32>
    %199 = vector.shape_cast %198 : vector<1x27x1xf32> to vector<27x1xf32>
    %200 = vector.broadcast %199 : vector<27x1xf32> to vector<27x32xf32>
    %201 = arith.mulf %197, %200 : vector<27x32xf32>
    %c6_140 = arith.constant 6 : index
    %c0_141 = arith.constant 0 : index
    %c0_142 = arith.constant 0 : index
    %202 = vector.load %arg15[%c6_140, %c0_141, %c0_142] : memref<27x27x32xf32, #tpu.memory_space<vmem>>, vector<1x27x32xf32>
    %203 = vector.shape_cast %202 : vector<1x27x32xf32> to vector<27x32xf32>
    %204 = arith.addf %201, %203 : vector<27x32xf32>
    %c0_143 = arith.constant 0 : index
    %c6_144 = arith.constant 6 : index
    %c0_145 = arith.constant 0 : index
    %c0_146 = arith.constant 0 : index
    %205 = vector.load %arg17[%c0_143, %c6_144, %c0_145, %c0_146] : memref<1x27x27x32xf32, #tpu.memory_space<vmem>>, vector<1x1x27x32xf32>
    %206 = vector.shape_cast %205 : vector<1x1x27x32xf32> to vector<27x32xf32>
    %207 = vector.shape_cast %204 : vector<27x32xf32> to vector<1x1x27x32xf32>
    tpu.vector_store %arg17[%c0_143, %c6_144, %c0_145, %c0_146], %207 {strides = array<i32>} : memref<1x27x27x32xf32, #tpu.memory_space<vmem>>, vector<1x1x27x32xf32>,
    %208 = vector.extract_strided_slice %116 {offsets = [0, 56], sizes = [27, 8], strides = [1, 1]} : vector<27x216xf32> to vector<27x8xf32>
    %209 = vector.extract_strided_slice %102 {offsets = [56, 0], sizes = [8, 32], strides = [1, 1]} : vector<216x32xf32> to vector<8x32xf32>
    %cst_147 = arith.constant dense<0.000000e+00> : vector<27x32xf32>
    %210 = tpu.matmul %208, %209, %cst_147 {dimension_numbers = #tpu.dot_dimension_numbers<[1], [0], [0], [1], [0, 0, 1, 1], [], []>} : vector<27x8xf32>, vector<8x32xf32>, vector<27x32xf32> -> vector<27x32xf32>
    %c7 = arith.constant 7 : index
    %c0_148 = arith.constant 0 : index
    %c0_149 = arith.constant 0 : index
    %211 = vector.load %arg14[%c7, %c0_148, %c0_149] : memref<27x27x1xf32, #tpu.memory_space<vmem>>, vector<1x27x1xf32>
    %212 = vector.shape_cast %211 : vector<1x27x1xf32> to vector<27x1xf32>
    %213 = vector.broadcast %212 : vector<27x1xf32> to vector<27x32xf32>
    %214 = arith.mulf %210, %213 : vector<27x32xf32>
    %c7_150 = arith.constant 7 : index
    %c0_151 = arith.constant 0 : index
    %c0_152 = arith.constant 0 : index
    %215 = vector.load %arg15[%c7_150, %c0_151, %c0_152] : memref<27x27x32xf32, #tpu.memory_space<vmem>>, vector<1x27x32xf32>
    %216 = vector.shape_cast %215 : vector<1x27x32xf32> to vector<27x32xf32>
    %217 = arith.addf %214, %216 : vector<27x32xf32>
    %c0_153 = arith.constant 0 : index
    %c7_154 = arith.constant 7 : index
    %c0_155 = arith.constant 0 : index
    %c0_156 = arith.constant 0 : index
    %218 = vector.load %arg17[%c0_153, %c7_154, %c0_155, %c0_156] : memref<1x27x27x32xf32, #tpu.memory_space<vmem>>, vector<1x1x27x32xf32>
    %219 = vector.shape_cast %218 : vector<1x1x27x32xf32> to vector<27x32xf32>
    %220 = vector.shape_cast %217 : vector<27x32xf32> to vector<1x1x27x32xf32>
    tpu.vector_store %arg17[%c0_153, %c7_154, %c0_155, %c0_156], %220 {strides = array<i32>} : memref<1x27x27x32xf32, #tpu.memory_space<vmem>>, vector<1x1x27x32xf32>,
    %221 = vector.extract_strided_slice %116 {offsets = [0, 64], sizes = [27, 8], strides = [1, 1]} : vector<27x216xf32> to vector<27x8xf32>
    %222 = vector.extract_strided_slice %102 {offsets = [64, 0], sizes = [8, 32], strides = [1, 1]} : vector<216x32xf32> to vector<8x32xf32>
    %cst_157 = arith.constant dense<0.000000e+00> : vector<27x32xf32>
    %223 = tpu.matmul %221, %222, %cst_157 {dimension_numbers = #tpu.dot_dimension_numbers<[1], [0], [0], [1], [0, 0, 1, 1], [], []>} : vector<27x8xf32>, vector<8x32xf32>, vector<27x32xf32> -> vector<27x32xf32>
    %c8_158 = arith.constant 8 : index
    %c0_159 = arith.constant 0 : index
    %c0_160 = arith.constant 0 : index
    %224 = vector.load %arg14[%c8_158, %c0_159, %c0_160] : memref<27x27x1xf32, #tpu.memory_space<vmem>>, vector<1x27x1xf32>
    %225 = vector.shape_cast %224 : vector<1x27x1xf32> to vector<27x1xf32>
    %226 = vector.broadcast %225 : vector<27x1xf32> to vector<27x32xf32>
    %227 = arith.mulf %223, %226 : vector<27x32xf32>
    %c8_161 = arith.constant 8 : index
    %c0_162 = arith.constant 0 : index
    %c0_163 = arith.constant 0 : index
    %228 = vector.load %arg15[%c8_161, %c0_162, %c0_163] : memref<27x27x32xf32, #tpu.memory_space<vmem>>, vector<1x27x32xf32>
    %229 = vector.shape_cast %228 : vector<1x27x32xf32> to vector<27x32xf32>
    %230 = arith.addf %227, %229 : vector<27x32xf32>
    %c0_164 = arith.constant 0 : index
    %c8_165 = arith.constant 8 : index
    %c0_166 = arith.constant 0 : index
    %c0_167 = arith.constant 0 : index
    %231 = vector.load %arg17[%c0_164, %c8_165, %c0_166, %c0_167] : memref<1x27x27x32xf32, #tpu.memory_space<vmem>>, vector<1x1x27x32xf32>
    %232 = vector.shape_cast %231 : vector<1x1x27x32xf32> to vector<27x32xf32>
    %233 = vector.shape_cast %230 : vector<27x32xf32> to vector<1x1x27x32xf32>
    tpu.vector_store %arg17[%c0_164, %c8_165, %c0_166, %c0_167], %233 {strides = array<i32>} : memref<1x27x27x32xf32, #tpu.memory_space<vmem>>, vector<1x1x27x32xf32>,
    %234 = vector.extract_strided_slice %116 {offsets = [0, 72], sizes = [27, 8], strides = [1, 1]} : vector<27x216xf32> to vector<27x8xf32>
    %235 = vector.extract_strided_slice %102 {offsets = [72, 0], sizes = [8, 32], strides = [1, 1]} : vector<216x32xf32> to vector<8x32xf32>
    %cst_168 = arith.constant dense<0.000000e+00> : vector<27x32xf32>
    %236 = tpu.matmul %234, %235, %cst_168 {dimension_numbers = #tpu.dot_dimension_numbers<[1], [0], [0], [1], [0, 0, 1, 1], [], []>} : vector<27x8xf32>, vector<8x32xf32>, vector<27x32xf32> -> vector<27x32xf32>
    %c9 = arith.constant 9 : index
    %c0_169 = arith.constant 0 : index
    %c0_170 = arith.constant 0 : index
    %237 = vector.load %arg14[%c9, %c0_169, %c0_170] : memref<27x27x1xf32, #tpu.memory_space<vmem>>, vector<1x27x1xf32>
    %238 = vector.shape_cast %237 : vector<1x27x1xf32> to vector<27x1xf32>
    %239 = vector.broadcast %238 : vector<27x1xf32> to vector<27x32xf32>
    %240 = arith.mulf %236, %239 : vector<27x32xf32>
    %c9_171 = arith.constant 9 : index
    %c0_172 = arith.constant 0 : index
    %c0_173 = arith.constant 0 : index
    %241 = vector.load %arg15[%c9_171, %c0_172, %c0_173] : memref<27x27x32xf32, #tpu.memory_space<vmem>>, vector<1x27x32xf32>
    %242 = vector.shape_cast %241 : vector<1x27x32xf32> to vector<27x32xf32>
    %243 = arith.addf %240, %242 : vector<27x32xf32>
    %c0_174 = arith.constant 0 : index
    %c9_175 = arith.constant 9 : index
    %c0_176 = arith.constant 0 : index
    %c0_177 = arith.constant 0 : index
    %244 = vector.load %arg17[%c0_174, %c9_175, %c0_176, %c0_177] : memref<1x27x27x32xf32, #tpu.memory_space<vmem>>, vector<1x1x27x32xf32>
    %245 = vector.shape_cast %244 : vector<1x1x27x32xf32> to vector<27x32xf32>
    %246 = vector.shape_cast %243 : vector<27x32xf32> to vector<1x1x27x32xf32>
    tpu.vector_store %arg17[%c0_174, %c9_175, %c0_176, %c0_177], %246 {strides = array<i32>} : memref<1x27x27x32xf32, #tpu.memory_space<vmem>>, vector<1x1x27x32xf32>,
    %247 = vector.extract_strided_slice %116 {offsets = [0, 80], sizes = [27, 8], strides = [1, 1]} : vector<27x216xf32> to vector<27x8xf32>
    %248 = vector.extract_strided_slice %102 {offsets = [80, 0], sizes = [8, 32], strides = [1, 1]} : vector<216x32xf32> to vector<8x32xf32>
    %cst_178 = arith.constant dense<0.000000e+00> : vector<27x32xf32>
    %249 = tpu.matmul %247, %248, %cst_178 {dimension_numbers = #tpu.dot_dimension_numbers<[1], [0], [0], [1], [0, 0, 1, 1], [], []>} : vector<27x8xf32>, vector<8x32xf32>, vector<27x32xf32> -> vector<27x32xf32>
    %c10 = arith.constant 10 : index
    %c0_179 = arith.constant 0 : index
    %c0_180 = arith.constant 0 : index
    %250 = vector.load %arg14[%c10, %c0_179, %c0_180] : memref<27x27x1xf32, #tpu.memory_space<vmem>>, vector<1x27x1xf32>
    %251 = vector.shape_cast %250 : vector<1x27x1xf32> to vector<27x1xf32>
    %252 = vector.broadcast %251 : vector<27x1xf32> to vector<27x32xf32>
    %253 = arith.mulf %249, %252 : vector<27x32xf32>
    %c10_181 = arith.constant 10 : index
    %c0_182 = arith.constant 0 : index
    %c0_183 = arith.constant 0 : index
    %254 = vector.load %arg15[%c10_181, %c0_182, %c0_183] : memref<27x27x32xf32, #tpu.memory_space<vmem>>, vector<1x27x32xf32>
    %255 = vector.shape_cast %254 : vector<1x27x32xf32> to vector<27x32xf32>
    %256 = arith.addf %253, %255 : vector<27x32xf32>
    %c0_184 = arith.constant 0 : index
    %c10_185 = arith.constant 10 : index
    %c0_186 = arith.constant 0 : index
    %c0_187 = arith.constant 0 : index
    %257 = vector.load %arg17[%c0_184, %c10_185, %c0_186, %c0_187] : memref<1x27x27x32xf32, #tpu.memory_space<vmem>>, vector<1x1x27x32xf32>
    %258 = vector.shape_cast %257 : vector<1x1x27x32xf32> to vector<27x32xf32>
    %259 = vector.shape_cast %256 : vector<27x32xf32> to vector<1x1x27x32xf32>
    tpu.vector_store %arg17[%c0_184, %c10_185, %c0_186, %c0_187], %259 {strides = array<i32>} : memref<1x27x27x32xf32, #tpu.memory_space<vmem>>, vector<1x1x27x32xf32>,
    %260 = vector.extract_strided_slice %116 {offsets = [0, 88], sizes = [27, 8], strides = [1, 1]} : vector<27x216xf32> to vector<27x8xf32>
    %261 = vector.extract_strided_slice %102 {offsets = [88, 0], sizes = [8, 32], strides = [1, 1]} : vector<216x32xf32> to vector<8x32xf32>
    %cst_188 = arith.constant dense<0.000000e+00> : vector<27x32xf32>
    %262 = tpu.matmul %260, %261, %cst_188 {dimension_numbers = #tpu.dot_dimension_numbers<[1], [0], [0], [1], [0, 0, 1, 1], [], []>} : vector<27x8xf32>, vector<8x32xf32>, vector<27x32xf32> -> vector<27x32xf32>
    %c11 = arith.constant 11 : index
    %c0_189 = arith.constant 0 : index
    %c0_190 = arith.constant 0 : index
    %263 = vector.load %arg14[%c11, %c0_189, %c0_190] : memref<27x27x1xf32, #tpu.memory_space<vmem>>, vector<1x27x1xf32>
    %264 = vector.shape_cast %263 : vector<1x27x1xf32> to vector<27x1xf32>
    %265 = vector.broadcast %264 : vector<27x1xf32> to vector<27x32xf32>
    %266 = arith.mulf %262, %265 : vector<27x32xf32>
    %c11_191 = arith.constant 11 : index
    %c0_192 = arith.constant 0 : index
    %c0_193 = arith.constant 0 : index
    %267 = vector.load %arg15[%c11_191, %c0_192, %c0_193] : memref<27x27x32xf32, #tpu.memory_space<vmem>>, vector<1x27x32xf32>
    %268 = vector.shape_cast %267 : vector<1x27x32xf32> to vector<27x32xf32>
    %269 = arith.addf %266, %268 : vector<27x32xf32>
    %c0_194 = arith.constant 0 : index
    %c11_195 = arith.constant 11 : index
    %c0_196 = arith.constant 0 : index
    %c0_197 = arith.constant 0 : index
    %270 = vector.load %arg17[%c0_194, %c11_195, %c0_196, %c0_197] : memref<1x27x27x32xf32, #tpu.memory_space<vmem>>, vector<1x1x27x32xf32>
    %271 = vector.shape_cast %270 : vector<1x1x27x32xf32> to vector<27x32xf32>
    %272 = vector.shape_cast %269 : vector<27x32xf32> to vector<1x1x27x32xf32>
    tpu.vector_store %arg17[%c0_194, %c11_195, %c0_196, %c0_197], %272 {strides = array<i32>} : memref<1x27x27x32xf32, #tpu.memory_space<vmem>>, vector<1x1x27x32xf32>,
    %273 = vector.extract_strided_slice %116 {offsets = [0, 96], sizes = [27, 8], strides = [1, 1]} : vector<27x216xf32> to vector<27x8xf32>
    %274 = vector.extract_strided_slice %102 {offsets = [96, 0], sizes = [8, 32], strides = [1, 1]} : vector<216x32xf32> to vector<8x32xf32>
    %cst_198 = arith.constant dense<0.000000e+00> : vector<27x32xf32>
    %275 = tpu.matmul %273, %274, %cst_198 {dimension_numbers = #tpu.dot_dimension_numbers<[1], [0], [0], [1], [0, 0, 1, 1], [], []>} : vector<27x8xf32>, vector<8x32xf32>, vector<27x32xf32> -> vector<27x32xf32>
    %c12 = arith.constant 12 : index
    %c0_199 = arith.constant 0 : index
    %c0_200 = arith.constant 0 : index
    %276 = vector.load %arg14[%c12, %c0_199, %c0_200] : memref<27x27x1xf32, #tpu.memory_space<vmem>>, vector<1x27x1xf32>
    %277 = vector.shape_cast %276 : vector<1x27x1xf32> to vector<27x1xf32>
    %278 = vector.broadcast %277 : vector<27x1xf32> to vector<27x32xf32>
    %279 = arith.mulf %275, %278 : vector<27x32xf32>
    %c12_201 = arith.constant 12 : index
    %c0_202 = arith.constant 0 : index
    %c0_203 = arith.constant 0 : index
    %280 = vector.load %arg15[%c12_201, %c0_202, %c0_203] : memref<27x27x32xf32, #tpu.memory_space<vmem>>, vector<1x27x32xf32>
    %281 = vector.shape_cast %280 : vector<1x27x32xf32> to vector<27x32xf32>
    %282 = arith.addf %279, %281 : vector<27x32xf32>
    %c0_204 = arith.constant 0 : index
    %c12_205 = arith.constant 12 : index
    %c0_206 = arith.constant 0 : index
    %c0_207 = arith.constant 0 : index
    %283 = vector.load %arg17[%c0_204, %c12_205, %c0_206, %c0_207] : memref<1x27x27x32xf32, #tpu.memory_space<vmem>>, vector<1x1x27x32xf32>
    %284 = vector.shape_cast %283 : vector<1x1x27x32xf32> to vector<27x32xf32>
    %285 = vector.shape_cast %282 : vector<27x32xf32> to vector<1x1x27x32xf32>
    tpu.vector_store %arg17[%c0_204, %c12_205, %c0_206, %c0_207], %285 {strides = array<i32>} : memref<1x27x27x32xf32, #tpu.memory_space<vmem>>, vector<1x1x27x32xf32>,
    %286 = vector.extract_strided_slice %116 {offsets = [0, 104], sizes = [27, 8], strides = [1, 1]} : vector<27x216xf32> to vector<27x8xf32>
    %287 = vector.extract_strided_slice %102 {offsets = [104, 0], sizes = [8, 32], strides = [1, 1]} : vector<216x32xf32> to vector<8x32xf32>
    %cst_208 = arith.constant dense<0.000000e+00> : vector<27x32xf32>
    %288 = tpu.matmul %286, %287, %cst_208 {dimension_numbers = #tpu.dot_dimension_numbers<[1], [0], [0], [1], [0, 0, 1, 1], [], []>} : vector<27x8xf32>, vector<8x32xf32>, vector<27x32xf32> -> vector<27x32xf32>
    %c13 = arith.constant 13 : index
    %c0_209 = arith.constant 0 : index
    %c0_210 = arith.constant 0 : index
    %289 = vector.load %arg14[%c13, %c0_209, %c0_210] : memref<27x27x1xf32, #tpu.memory_space<vmem>>, vector<1x27x1xf32>
    %290 = vector.shape_cast %289 : vector<1x27x1xf32> to vector<27x1xf32>
    %291 = vector.broadcast %290 : vector<27x1xf32> to vector<27x32xf32>
    %292 = arith.mulf %288, %291 : vector<27x32xf32>
    %c13_211 = arith.constant 13 : index
    %c0_212 = arith.constant 0 : index
    %c0_213 = arith.constant 0 : index
    %293 = vector.load %arg15[%c13_211, %c0_212, %c0_213] : memref<27x27x32xf32, #tpu.memory_space<vmem>>, vector<1x27x32xf32>
    %294 = vector.shape_cast %293 : vector<1x27x32xf32> to vector<27x32xf32>
    %295 = arith.addf %292, %294 : vector<27x32xf32>
    %c0_214 = arith.constant 0 : index
    %c13_215 = arith.constant 13 : index
    %c0_216 = arith.constant 0 : index
    %c0_217 = arith.constant 0 : index
    %296 = vector.load %arg17[%c0_214, %c13_215, %c0_216, %c0_217] : memref<1x27x27x32xf32, #tpu.memory_space<vmem>>, vector<1x1x27x32xf32>
    %297 = vector.shape_cast %296 : vector<1x1x27x32xf32> to vector<27x32xf32>
    %298 = vector.shape_cast %295 : vector<27x32xf32> to vector<1x1x27x32xf32>
    tpu.vector_store %arg17[%c0_214, %c13_215, %c0_216, %c0_217], %298 {strides = array<i32>} : memref<1x27x27x32xf32, #tpu.memory_space<vmem>>, vector<1x1x27x32xf32>,
    %299 = vector.extract_strided_slice %116 {offsets = [0, 112], sizes = [27, 8], strides = [1, 1]} : vector<27x216xf32> to vector<27x8xf32>
    %300 = vector.extract_strided_slice %102 {offsets = [112, 0], sizes = [8, 32], strides = [1, 1]} : vector<216x32xf32> to vector<8x32xf32>
    %cst_218 = arith.constant dense<0.000000e+00> : vector<27x32xf32>
    %301 = tpu.matmul %299, %300, %cst_218 {dimension_numbers = #tpu.dot_dimension_numbers<[1], [0], [0], [1], [0, 0, 1, 1], [], []>} : vector<27x8xf32>, vector<8x32xf32>, vector<27x32xf32> -> vector<27x32xf32>
    %c14 = arith.constant 14 : index
    %c0_219 = arith.constant 0 : index
    %c0_220 = arith.constant 0 : index
    %302 = vector.load %arg14[%c14, %c0_219, %c0_220] : memref<27x27x1xf32, #tpu.memory_space<vmem>>, vector<1x27x1xf32>
    %303 = vector.shape_cast %302 : vector<1x27x1xf32> to vector<27x1xf32>
    %304 = vector.broadcast %303 : vector<27x1xf32> to vector<27x32xf32>
    %305 = arith.mulf %301, %304 : vector<27x32xf32>
    %c14_221 = arith.constant 14 : index
    %c0_222 = arith.constant 0 : index
    %c0_223 = arith.constant 0 : index
    %306 = vector.load %arg15[%c14_221, %c0_222, %c0_223] : memref<27x27x32xf32, #tpu.memory_space<vmem>>, vector<1x27x32xf32>
    %307 = vector.shape_cast %306 : vector<1x27x32xf32> to vector<27x32xf32>
    %308 = arith.addf %305, %307 : vector<27x32xf32>
    %c0_224 = arith.constant 0 : index
    %c14_225 = arith.constant 14 : index
    %c0_226 = arith.constant 0 : index
    %c0_227 = arith.constant 0 : index
    %309 = vector.load %arg17[%c0_224, %c14_225, %c0_226, %c0_227] : memref<1x27x27x32xf32, #tpu.memory_space<vmem>>, vector<1x1x27x32xf32>
    %310 = vector.shape_cast %309 : vector<1x1x27x32xf32> to vector<27x32xf32>
    %311 = vector.shape_cast %308 : vector<27x32xf32> to vector<1x1x27x32xf32>
    tpu.vector_store %arg17[%c0_224, %c14_225, %c0_226, %c0_227], %311 {strides = array<i32>} : memref<1x27x27x32xf32, #tpu.memory_space<vmem>>, vector<1x1x27x32xf32>,
    %312 = vector.extract_strided_slice %116 {offsets = [0, 120], sizes = [27, 8], strides = [1, 1]} : vector<27x216xf32> to vector<27x8xf32>
    %313 = vector.extract_strided_slice %102 {offsets = [120, 0], sizes = [8, 32], strides = [1, 1]} : vector<216x32xf32> to vector<8x32xf32>
    %cst_228 = arith.constant dense<0.000000e+00> : vector<27x32xf32>
    %314 = tpu.matmul %312, %313, %cst_228 {dimension_numbers = #tpu.dot_dimension_numbers<[1], [0], [0], [1], [0, 0, 1, 1], [], []>} : vector<27x8xf32>, vector<8x32xf32>, vector<27x32xf32> -> vector<27x32xf32>
    %c15 = arith.constant 15 : index
    %c0_229 = arith.constant 0 : index
    %c0_230 = arith.constant 0 : index
    %315 = vector.load %arg14[%c15, %c0_229, %c0_230] : memref<27x27x1xf32, #tpu.memory_space<vmem>>, vector<1x27x1xf32>
    %316 = vector.shape_cast %315 : vector<1x27x1xf32> to vector<27x1xf32>
    %317 = vector.broadcast %316 : vector<27x1xf32> to vector<27x32xf32>
    %318 = arith.mulf %314, %317 : vector<27x32xf32>
    %c15_231 = arith.constant 15 : index
    %c0_232 = arith.constant 0 : index
    %c0_233 = arith.constant 0 : index
    %319 = vector.load %arg15[%c15_231, %c0_232, %c0_233] : memref<27x27x32xf32, #tpu.memory_space<vmem>>, vector<1x27x32xf32>
    %320 = vector.shape_cast %319 : vector<1x27x32xf32> to vector<27x32xf32>
    %321 = arith.addf %318, %320 : vector<27x32xf32>
    %c0_234 = arith.constant 0 : index
    %c15_235 = arith.constant 15 : index
    %c0_236 = arith.constant 0 : index
    %c0_237 = arith.constant 0 : index
    %322 = vector.load %arg17[%c0_234, %c15_235, %c0_236, %c0_237] : memref<1x27x27x32xf32, #tpu.memory_space<vmem>>, vector<1x1x27x32xf32>
    %323 = vector.shape_cast %322 : vector<1x1x27x32xf32> to vector<27x32xf32>
    %324 = vector.shape_cast %321 : vector<27x32xf32> to vector<1x1x27x32xf32>
    tpu.vector_store %arg17[%c0_234, %c15_235, %c0_236, %c0_237], %324 {strides = array<i32>} : memref<1x27x27x32xf32, #tpu.memory_space<vmem>>, vector<1x1x27x32xf32>,
    %325 = vector.extract_strided_slice %116 {offsets = [0, 128], sizes = [27, 8], strides = [1, 1]} : vector<27x216xf32> to vector<27x8xf32>
    %326 = vector.extract_strided_slice %102 {offsets = [128, 0], sizes = [8, 32], strides = [1, 1]} : vector<216x32xf32> to vector<8x32xf32>
    %cst_238 = arith.constant dense<0.000000e+00> : vector<27x32xf32>
    %327 = tpu.matmul %325, %326, %cst_238 {dimension_numbers = #tpu.dot_dimension_numbers<[1], [0], [0], [1], [0, 0, 1, 1], [], []>} : vector<27x8xf32>, vector<8x32xf32>, vector<27x32xf32> -> vector<27x32xf32>
    %c16_239 = arith.constant 16 : index
    %c0_240 = arith.constant 0 : index
    %c0_241 = arith.constant 0 : index
    %328 = vector.load %arg14[%c16_239, %c0_240, %c0_241] : memref<27x27x1xf32, #tpu.memory_space<vmem>>, vector<1x27x1xf32>
    %329 = vector.shape_cast %328 : vector<1x27x1xf32> to vector<27x1xf32>
    %330 = vector.broadcast %329 : vector<27x1xf32> to vector<27x32xf32>
    %331 = arith.mulf %327, %330 : vector<27x32xf32>
    %c16_242 = arith.constant 16 : index
    %c0_243 = arith.constant 0 : index
    %c0_244 = arith.constant 0 : index
    %332 = vector.load %arg15[%c16_242, %c0_243, %c0_244] : memref<27x27x32xf32, #tpu.memory_space<vmem>>, vector<1x27x32xf32>
    %333 = vector.shape_cast %332 : vector<1x27x32xf32> to vector<27x32xf32>
    %334 = arith.addf %331, %333 : vector<27x32xf32>
    %c0_245 = arith.constant 0 : index
    %c16_246 = arith.constant 16 : index
    %c0_247 = arith.constant 0 : index
    %c0_248 = arith.constant 0 : index
    %335 = vector.load %arg17[%c0_245, %c16_246, %c0_247, %c0_248] : memref<1x27x27x32xf32, #tpu.memory_space<vmem>>, vector<1x1x27x32xf32>
    %336 = vector.shape_cast %335 : vector<1x1x27x32xf32> to vector<27x32xf32>
    %337 = vector.shape_cast %334 : vector<27x32xf32> to vector<1x1x27x32xf32>
    tpu.vector_store %arg17[%c0_245, %c16_246, %c0_247, %c0_248], %337 {strides = array<i32>} : memref<1x27x27x32xf32, #tpu.memory_space<vmem>>, vector<1x1x27x32xf32>,
    %338 = vector.extract_strided_slice %116 {offsets = [0, 136], sizes = [27, 8], strides = [1, 1]} : vector<27x216xf32> to vector<27x8xf32>
    %339 = vector.extract_strided_slice %102 {offsets = [136, 0], sizes = [8, 32], strides = [1, 1]} : vector<216x32xf32> to vector<8x32xf32>
    %cst_249 = arith.constant dense<0.000000e+00> : vector<27x32xf32>
    %340 = tpu.matmul %338, %339, %cst_249 {dimension_numbers = #tpu.dot_dimension_numbers<[1], [0], [0], [1], [0, 0, 1, 1], [], []>} : vector<27x8xf32>, vector<8x32xf32>, vector<27x32xf32> -> vector<27x32xf32>
    %c17 = arith.constant 17 : index
    %c0_250 = arith.constant 0 : index
    %c0_251 = arith.constant 0 : index
    %341 = vector.load %arg14[%c17, %c0_250, %c0_251] : memref<27x27x1xf32, #tpu.memory_space<vmem>>, vector<1x27x1xf32>
    %342 = vector.shape_cast %341 : vector<1x27x1xf32> to vector<27x1xf32>
    %343 = vector.broadcast %342 : vector<27x1xf32> to vector<27x32xf32>
    %344 = arith.mulf %340, %343 : vector<27x32xf32>
    %c17_252 = arith.constant 17 : index
    %c0_253 = arith.constant 0 : index
    %c0_254 = arith.constant 0 : index
    %345 = vector.load %arg15[%c17_252, %c0_253, %c0_254] : memref<27x27x32xf32, #tpu.memory_space<vmem>>, vector<1x27x32xf32>
    %346 = vector.shape_cast %345 : vector<1x27x32xf32> to vector<27x32xf32>
    %347 = arith.addf %344, %346 : vector<27x32xf32>
    %c0_255 = arith.constant 0 : index
    %c17_256 = arith.constant 17 : index
    %c0_257 = arith.constant 0 : index
    %c0_258 = arith.constant 0 : index
    %348 = vector.load %arg17[%c0_255, %c17_256, %c0_257, %c0_258] : memref<1x27x27x32xf32, #tpu.memory_space<vmem>>, vector<1x1x27x32xf32>
    %349 = vector.shape_cast %348 : vector<1x1x27x32xf32> to vector<27x32xf32>
    %350 = vector.shape_cast %347 : vector<27x32xf32> to vector<1x1x27x32xf32>
    tpu.vector_store %arg17[%c0_255, %c17_256, %c0_257, %c0_258], %350 {strides = array<i32>} : memref<1x27x27x32xf32, #tpu.memory_space<vmem>>, vector<1x1x27x32xf32>,
    %351 = vector.extract_strided_slice %116 {offsets = [0, 144], sizes = [27, 8], strides = [1, 1]} : vector<27x216xf32> to vector<27x8xf32>
    %352 = vector.extract_strided_slice %102 {offsets = [144, 0], sizes = [8, 32], strides = [1, 1]} : vector<216x32xf32> to vector<8x32xf32>
    %cst_259 = arith.constant dense<0.000000e+00> : vector<27x32xf32>
    %353 = tpu.matmul %351, %352, %cst_259 {dimension_numbers = #tpu.dot_dimension_numbers<[1], [0], [0], [1], [0, 0, 1, 1], [], []>} : vector<27x8xf32>, vector<8x32xf32>, vector<27x32xf32> -> vector<27x32xf32>
    %c18 = arith.constant 18 : index
    %c0_260 = arith.constant 0 : index
    %c0_261 = arith.constant 0 : index
    %354 = vector.load %arg14[%c18, %c0_260, %c0_261] : memref<27x27x1xf32, #tpu.memory_space<vmem>>, vector<1x27x1xf32>
    %355 = vector.shape_cast %354 : vector<1x27x1xf32> to vector<27x1xf32>
    %356 = vector.broadcast %355 : vector<27x1xf32> to vector<27x32xf32>
    %357 = arith.mulf %353, %356 : vector<27x32xf32>
    %c18_262 = arith.constant 18 : index
    %c0_263 = arith.constant 0 : index
    %c0_264 = arith.constant 0 : index
    %358 = vector.load %arg15[%c18_262, %c0_263, %c0_264] : memref<27x27x32xf32, #tpu.memory_space<vmem>>, vector<1x27x32xf32>
    %359 = vector.shape_cast %358 : vector<1x27x32xf32> to vector<27x32xf32>
    %360 = arith.addf %357, %359 : vector<27x32xf32>
    %c0_265 = arith.constant 0 : index
    %c18_266 = arith.constant 18 : index
    %c0_267 = arith.constant 0 : index
    %c0_268 = arith.constant 0 : index
    %361 = vector.load %arg17[%c0_265, %c18_266, %c0_267, %c0_268] : memref<1x27x27x32xf32, #tpu.memory_space<vmem>>, vector<1x1x27x32xf32>
    %362 = vector.shape_cast %361 : vector<1x1x27x32xf32> to vector<27x32xf32>
    %363 = vector.shape_cast %360 : vector<27x32xf32> to vector<1x1x27x32xf32>
    tpu.vector_store %arg17[%c0_265, %c18_266, %c0_267, %c0_268], %363 {strides = array<i32>} : memref<1x27x27x32xf32, #tpu.memory_space<vmem>>, vector<1x1x27x32xf32>,
    %364 = vector.extract_strided_slice %116 {offsets = [0, 152], sizes = [27, 8], strides = [1, 1]} : vector<27x216xf32> to vector<27x8xf32>
    %365 = vector.extract_strided_slice %102 {offsets = [152, 0], sizes = [8, 32], strides = [1, 1]} : vector<216x32xf32> to vector<8x32xf32>
    %cst_269 = arith.constant dense<0.000000e+00> : vector<27x32xf32>
    %366 = tpu.matmul %364, %365, %cst_269 {dimension_numbers = #tpu.dot_dimension_numbers<[1], [0], [0], [1], [0, 0, 1, 1], [], []>} : vector<27x8xf32>, vector<8x32xf32>, vector<27x32xf32> -> vector<27x32xf32>
    %c19 = arith.constant 19 : index
    %c0_270 = arith.constant 0 : index
    %c0_271 = arith.constant 0 : index
    %367 = vector.load %arg14[%c19, %c0_270, %c0_271] : memref<27x27x1xf32, #tpu.memory_space<vmem>>, vector<1x27x1xf32>
    %368 = vector.shape_cast %367 : vector<1x27x1xf32> to vector<27x1xf32>
    %369 = vector.broadcast %368 : vector<27x1xf32> to vector<27x32xf32>
    %370 = arith.mulf %366, %369 : vector<27x32xf32>
    %c19_272 = arith.constant 19 : index
    %c0_273 = arith.constant 0 : index
    %c0_274 = arith.constant 0 : index
    %371 = vector.load %arg15[%c19_272, %c0_273, %c0_274] : memref<27x27x32xf32, #tpu.memory_space<vmem>>, vector<1x27x32xf32>
    %372 = vector.shape_cast %371 : vector<1x27x32xf32> to vector<27x32xf32>
    %373 = arith.addf %370, %372 : vector<27x32xf32>
    %c0_275 = arith.constant 0 : index
    %c19_276 = arith.constant 19 : index
    %c0_277 = arith.constant 0 : index
    %c0_278 = arith.constant 0 : index
    %374 = vector.load %arg17[%c0_275, %c19_276, %c0_277, %c0_278] : memref<1x27x27x32xf32, #tpu.memory_space<vmem>>, vector<1x1x27x32xf32>
    %375 = vector.shape_cast %374 : vector<1x1x27x32xf32> to vector<27x32xf32>
    %376 = vector.shape_cast %373 : vector<27x32xf32> to vector<1x1x27x32xf32>
    tpu.vector_store %arg17[%c0_275, %c19_276, %c0_277, %c0_278], %376 {strides = array<i32>} : memref<1x27x27x32xf32, #tpu.memory_space<vmem>>, vector<1x1x27x32xf32>,
    %377 = vector.extract_strided_slice %116 {offsets = [0, 160], sizes = [27, 8], strides = [1, 1]} : vector<27x216xf32> to vector<27x8xf32>
    %378 = vector.extract_strided_slice %102 {offsets = [160, 0], sizes = [8, 32], strides = [1, 1]} : vector<216x32xf32> to vector<8x32xf32>
    %cst_279 = arith.constant dense<0.000000e+00> : vector<27x32xf32>
    %379 = tpu.matmul %377, %378, %cst_279 {dimension_numbers = #tpu.dot_dimension_numbers<[1], [0], [0], [1], [0, 0, 1, 1], [], []>} : vector<27x8xf32>, vector<8x32xf32>, vector<27x32xf32> -> vector<27x32xf32>
    %c20 = arith.constant 20 : index
    %c0_280 = arith.constant 0 : index
    %c0_281 = arith.constant 0 : index
    %380 = vector.load %arg14[%c20, %c0_280, %c0_281] : memref<27x27x1xf32, #tpu.memory_space<vmem>>, vector<1x27x1xf32>
    %381 = vector.shape_cast %380 : vector<1x27x1xf32> to vector<27x1xf32>
    %382 = vector.broadcast %381 : vector<27x1xf32> to vector<27x32xf32>
    %383 = arith.mulf %379, %382 : vector<27x32xf32>
    %c20_282 = arith.constant 20 : index
    %c0_283 = arith.constant 0 : index
    %c0_284 = arith.constant 0 : index
    %384 = vector.load %arg15[%c20_282, %c0_283, %c0_284] : memref<27x27x32xf32, #tpu.memory_space<vmem>>, vector<1x27x32xf32>
    %385 = vector.shape_cast %384 : vector<1x27x32xf32> to vector<27x32xf32>
    %386 = arith.addf %383, %385 : vector<27x32xf32>
    %c0_285 = arith.constant 0 : index
    %c20_286 = arith.constant 20 : index
    %c0_287 = arith.constant 0 : index
    %c0_288 = arith.constant 0 : index
    %387 = vector.load %arg17[%c0_285, %c20_286, %c0_287, %c0_288] : memref<1x27x27x32xf32, #tpu.memory_space<vmem>>, vector<1x1x27x32xf32>
    %388 = vector.shape_cast %387 : vector<1x1x27x32xf32> to vector<27x32xf32>
    %389 = vector.shape_cast %386 : vector<27x32xf32> to vector<1x1x27x32xf32>
    tpu.vector_store %arg17[%c0_285, %c20_286, %c0_287, %c0_288], %389 {strides = array<i32>} : memref<1x27x27x32xf32, #tpu.memory_space<vmem>>, vector<1x1x27x32xf32>,
    %390 = vector.extract_strided_slice %116 {offsets = [0, 168], sizes = [27, 8], strides = [1, 1]} : vector<27x216xf32> to vector<27x8xf32>
    %391 = vector.extract_strided_slice %102 {offsets = [168, 0], sizes = [8, 32], strides = [1, 1]} : vector<216x32xf32> to vector<8x32xf32>
    %cst_289 = arith.constant dense<0.000000e+00> : vector<27x32xf32>
    %392 = tpu.matmul %390, %391, %cst_289 {dimension_numbers = #tpu.dot_dimension_numbers<[1], [0], [0], [1], [0, 0, 1, 1], [], []>} : vector<27x8xf32>, vector<8x32xf32>, vector<27x32xf32> -> vector<27x32xf32>
    %c21 = arith.constant 21 : index
    %c0_290 = arith.constant 0 : index
    %c0_291 = arith.constant 0 : index
    %393 = vector.load %arg14[%c21, %c0_290, %c0_291] : memref<27x27x1xf32, #tpu.memory_space<vmem>>, vector<1x27x1xf32>
    %394 = vector.shape_cast %393 : vector<1x27x1xf32> to vector<27x1xf32>
    %395 = vector.broadcast %394 : vector<27x1xf32> to vector<27x32xf32>
    %396 = arith.mulf %392, %395 : vector<27x32xf32>
    %c21_292 = arith.constant 21 : index
    %c0_293 = arith.constant 0 : index
    %c0_294 = arith.constant 0 : index
    %397 = vector.load %arg15[%c21_292, %c0_293, %c0_294] : memref<27x27x32xf32, #tpu.memory_space<vmem>>, vector<1x27x32xf32>
    %398 = vector.shape_cast %397 : vector<1x27x32xf32> to vector<27x32xf32>
    %399 = arith.addf %396, %398 : vector<27x32xf32>
    %c0_295 = arith.constant 0 : index
    %c21_296 = arith.constant 21 : index
    %c0_297 = arith.constant 0 : index
    %c0_298 = arith.constant 0 : index
    %400 = vector.load %arg17[%c0_295, %c21_296, %c0_297, %c0_298] : memref<1x27x27x32xf32, #tpu.memory_space<vmem>>, vector<1x1x27x32xf32>
    %401 = vector.shape_cast %400 : vector<1x1x27x32xf32> to vector<27x32xf32>
    %402 = vector.shape_cast %399 : vector<27x32xf32> to vector<1x1x27x32xf32>
    tpu.vector_store %arg17[%c0_295, %c21_296, %c0_297, %c0_298], %402 {strides = array<i32>} : memref<1x27x27x32xf32, #tpu.memory_space<vmem>>, vector<1x1x27x32xf32>,
    %403 = vector.extract_strided_slice %116 {offsets = [0, 176], sizes = [27, 8], strides = [1, 1]} : vector<27x216xf32> to vector<27x8xf32>
    %404 = vector.extract_strided_slice %102 {offsets = [176, 0], sizes = [8, 32], strides = [1, 1]} : vector<216x32xf32> to vector<8x32xf32>
    %cst_299 = arith.constant dense<0.000000e+00> : vector<27x32xf32>
    %405 = tpu.matmul %403, %404, %cst_299 {dimension_numbers = #tpu.dot_dimension_numbers<[1], [0], [0], [1], [0, 0, 1, 1], [], []>} : vector<27x8xf32>, vector<8x32xf32>, vector<27x32xf32> -> vector<27x32xf32>
    %c22 = arith.constant 22 : index
    %c0_300 = arith.constant 0 : index
    %c0_301 = arith.constant 0 : index
    %406 = vector.load %arg14[%c22, %c0_300, %c0_301] : memref<27x27x1xf32, #tpu.memory_space<vmem>>, vector<1x27x1xf32>
    %407 = vector.shape_cast %406 : vector<1x27x1xf32> to vector<27x1xf32>
    %408 = vector.broadcast %407 : vector<27x1xf32> to vector<27x32xf32>
    %409 = arith.mulf %405, %408 : vector<27x32xf32>
    %c22_302 = arith.constant 22 : index
    %c0_303 = arith.constant 0 : index
    %c0_304 = arith.constant 0 : index
    %410 = vector.load %arg15[%c22_302, %c0_303, %c0_304] : memref<27x27x32xf32, #tpu.memory_space<vmem>>, vector<1x27x32xf32>
    %411 = vector.shape_cast %410 : vector<1x27x32xf32> to vector<27x32xf32>
    %412 = arith.addf %409, %411 : vector<27x32xf32>
    %c0_305 = arith.constant 0 : index
    %c22_306 = arith.constant 22 : index
    %c0_307 = arith.constant 0 : index
    %c0_308 = arith.constant 0 : index
    %413 = vector.load %arg17[%c0_305, %c22_306, %c0_307, %c0_308] : memref<1x27x27x32xf32, #tpu.memory_space<vmem>>, vector<1x1x27x32xf32>
    %414 = vector.shape_cast %413 : vector<1x1x27x32xf32> to vector<27x32xf32>
    %415 = vector.shape_cast %412 : vector<27x32xf32> to vector<1x1x27x32xf32>
    tpu.vector_store %arg17[%c0_305, %c22_306, %c0_307, %c0_308], %415 {strides = array<i32>} : memref<1x27x27x32xf32, #tpu.memory_space<vmem>>, vector<1x1x27x32xf32>,
    %416 = vector.extract_strided_slice %116 {offsets = [0, 184], sizes = [27, 8], strides = [1, 1]} : vector<27x216xf32> to vector<27x8xf32>
    %417 = vector.extract_strided_slice %102 {offsets = [184, 0], sizes = [8, 32], strides = [1, 1]} : vector<216x32xf32> to vector<8x32xf32>
    %cst_309 = arith.constant dense<0.000000e+00> : vector<27x32xf32>
    %418 = tpu.matmul %416, %417, %cst_309 {dimension_numbers = #tpu.dot_dimension_numbers<[1], [0], [0], [1], [0, 0, 1, 1], [], []>} : vector<27x8xf32>, vector<8x32xf32>, vector<27x32xf32> -> vector<27x32xf32>
    %c23 = arith.constant 23 : index
    %c0_310 = arith.constant 0 : index
    %c0_311 = arith.constant 0 : index
    %419 = vector.load %arg14[%c23, %c0_310, %c0_311] : memref<27x27x1xf32, #tpu.memory_space<vmem>>, vector<1x27x1xf32>
    %420 = vector.shape_cast %419 : vector<1x27x1xf32> to vector<27x1xf32>
    %421 = vector.broadcast %420 : vector<27x1xf32> to vector<27x32xf32>
    %422 = arith.mulf %418, %421 : vector<27x32xf32>
    %c23_312 = arith.constant 23 : index
    %c0_313 = arith.constant 0 : index
    %c0_314 = arith.constant 0 : index
    %423 = vector.load %arg15[%c23_312, %c0_313, %c0_314] : memref<27x27x32xf32, #tpu.memory_space<vmem>>, vector<1x27x32xf32>
    %424 = vector.shape_cast %423 : vector<1x27x32xf32> to vector<27x32xf32>
    %425 = arith.addf %422, %424 : vector<27x32xf32>
    %c0_315 = arith.constant 0 : index
    %c23_316 = arith.constant 23 : index
    %c0_317 = arith.constant 0 : index
    %c0_318 = arith.constant 0 : index
    %426 = vector.load %arg17[%c0_315, %c23_316, %c0_317, %c0_318] : memref<1x27x27x32xf32, #tpu.memory_space<vmem>>, vector<1x1x27x32xf32>
    %427 = vector.shape_cast %426 : vector<1x1x27x32xf32> to vector<27x32xf32>
    %428 = vector.shape_cast %425 : vector<27x32xf32> to vector<1x1x27x32xf32>
    tpu.vector_store %arg17[%c0_315, %c23_316, %c0_317, %c0_318], %428 {strides = array<i32>} : memref<1x27x27x32xf32, #tpu.memory_space<vmem>>, vector<1x1x27x32xf32>,
    %429 = vector.extract_strided_slice %116 {offsets = [0, 192], sizes = [27, 8], strides = [1, 1]} : vector<27x216xf32> to vector<27x8xf32>
    %430 = vector.extract_strided_slice %102 {offsets = [192, 0], sizes = [8, 32], strides = [1, 1]} : vector<216x32xf32> to vector<8x32xf32>
    %cst_319 = arith.constant dense<0.000000e+00> : vector<27x32xf32>
    %431 = tpu.matmul %429, %430, %cst_319 {dimension_numbers = #tpu.dot_dimension_numbers<[1], [0], [0], [1], [0, 0, 1, 1], [], []>} : vector<27x8xf32>, vector<8x32xf32>, vector<27x32xf32> -> vector<27x32xf32>
    %c24_320 = arith.constant 24 : index
    %c0_321 = arith.constant 0 : index
    %c0_322 = arith.constant 0 : index
    %432 = vector.load %arg14[%c24_320, %c0_321, %c0_322] : memref<27x27x1xf32, #tpu.memory_space<vmem>>, vector<1x27x1xf32>
    %433 = vector.shape_cast %432 : vector<1x27x1xf32> to vector<27x1xf32>
    %434 = vector.broadcast %433 : vector<27x1xf32> to vector<27x32xf32>
    %435 = arith.mulf %431, %434 : vector<27x32xf32>
    %c24_323 = arith.constant 24 : index
    %c0_324 = arith.constant 0 : index
    %c0_325 = arith.constant 0 : index
    %436 = vector.load %arg15[%c24_323, %c0_324, %c0_325] : memref<27x27x32xf32, #tpu.memory_space<vmem>>, vector<1x27x32xf32>
    %437 = vector.shape_cast %436 : vector<1x27x32xf32> to vector<27x32xf32>
    %438 = arith.addf %435, %437 : vector<27x32xf32>
    %c0_326 = arith.constant 0 : index
    %c24_327 = arith.constant 24 : index
    %c0_328 = arith.constant 0 : index
    %c0_329 = arith.constant 0 : index
    %439 = vector.load %arg17[%c0_326, %c24_327, %c0_328, %c0_329] : memref<1x27x27x32xf32, #tpu.memory_space<vmem>>, vector<1x1x27x32xf32>
    %440 = vector.shape_cast %439 : vector<1x1x27x32xf32> to vector<27x32xf32>
    %441 = vector.shape_cast %438 : vector<27x32xf32> to vector<1x1x27x32xf32>
    tpu.vector_store %arg17[%c0_326, %c24_327, %c0_328, %c0_329], %441 {strides = array<i32>} : memref<1x27x27x32xf32, #tpu.memory_space<vmem>>, vector<1x1x27x32xf32>,
    %442 = vector.extract_strided_slice %116 {offsets = [0, 200], sizes = [27, 8], strides = [1, 1]} : vector<27x216xf32> to vector<27x8xf32>
    %443 = vector.extract_strided_slice %102 {offsets = [200, 0], sizes = [8, 32], strides = [1, 1]} : vector<216x32xf32> to vector<8x32xf32>
    %cst_330 = arith.constant dense<0.000000e+00> : vector<27x32xf32>
    %444 = tpu.matmul %442, %443, %cst_330 {dimension_numbers = #tpu.dot_dimension_numbers<[1], [0], [0], [1], [0, 0, 1, 1], [], []>} : vector<27x8xf32>, vector<8x32xf32>, vector<27x32xf32> -> vector<27x32xf32>
    %c25 = arith.constant 25 : index
    %c0_331 = arith.constant 0 : index
    %c0_332 = arith.constant 0 : index
    %445 = vector.load %arg14[%c25, %c0_331, %c0_332] : memref<27x27x1xf32, #tpu.memory_space<vmem>>, vector<1x27x1xf32>
    %446 = vector.shape_cast %445 : vector<1x27x1xf32> to vector<27x1xf32>
    %447 = vector.broadcast %446 : vector<27x1xf32> to vector<27x32xf32>
    %448 = arith.mulf %444, %447 : vector<27x32xf32>
    %c25_333 = arith.constant 25 : index
    %c0_334 = arith.constant 0 : index
    %c0_335 = arith.constant 0 : index
    %449 = vector.load %arg15[%c25_333, %c0_334, %c0_335] : memref<27x27x32xf32, #tpu.memory_space<vmem>>, vector<1x27x32xf32>
    %450 = vector.shape_cast %449 : vector<1x27x32xf32> to vector<27x32xf32>
    %451 = arith.addf %448, %450 : vector<27x32xf32>
    %c0_336 = arith.constant 0 : index
    %c25_337 = arith.constant 25 : index
    %c0_338 = arith.constant 0 : index
    %c0_339 = arith.constant 0 : index
    %452 = vector.load %arg17[%c0_336, %c25_337, %c0_338, %c0_339] : memref<1x27x27x32xf32, #tpu.memory_space<vmem>>, vector<1x1x27x32xf32>
    %453 = vector.shape_cast %452 : vector<1x1x27x32xf32> to vector<27x32xf32>
    %454 = vector.shape_cast %451 : vector<27x32xf32> to vector<1x1x27x32xf32>
    tpu.vector_store %arg17[%c0_336, %c25_337, %c0_338, %c0_339], %454 {strides = array<i32>} : memref<1x27x27x32xf32, #tpu.memory_space<vmem>>, vector<1x1x27x32xf32>,
    %455 = vector.extract_strided_slice %116 {offsets = [0, 208], sizes = [27, 8], strides = [1, 1]} : vector<27x216xf32> to vector<27x8xf32>
    %456 = vector.extract_strided_slice %102 {offsets = [208, 0], sizes = [8, 32], strides = [1, 1]} : vector<216x32xf32> to vector<8x32xf32>
    %cst_340 = arith.constant dense<0.000000e+00> : vector<27x32xf32>
    %457 = tpu.matmul %455, %456, %cst_340 {dimension_numbers = #tpu.dot_dimension_numbers<[1], [0], [0], [1], [0, 0, 1, 1], [], []>} : vector<27x8xf32>, vector<8x32xf32>, vector<27x32xf32> -> vector<27x32xf32>
    %c26 = arith.constant 26 : index
    %c0_341 = arith.constant 0 : index
    %c0_342 = arith.constant 0 : index
    %458 = vector.load %arg14[%c26, %c0_341, %c0_342] : memref<27x27x1xf32, #tpu.memory_space<vmem>>, vector<1x27x1xf32>
    %459 = vector.shape_cast %458 : vector<1x27x1xf32> to vector<27x1xf32>
    %460 = vector.broadcast %459 : vector<27x1xf32> to vector<27x32xf32>
    %461 = arith.mulf %457, %460 : vector<27x32xf32>
    %c26_343 = arith.constant 26 : index
    %c0_344 = arith.constant 0 : index
    %c0_345 = arith.constant 0 : index
    %462 = vector.load %arg15[%c26_343, %c0_344, %c0_345] : memref<27x27x32xf32, #tpu.memory_space<vmem>>, vector<1x27x32xf32>
    %463 = vector.shape_cast %462 : vector<1x27x32xf32> to vector<27x32xf32>
    %464 = arith.addf %461, %463 : vector<27x32xf32>
    %c0_346 = arith.constant 0 : index
    %c26_347 = arith.constant 26 : index
    %c0_348 = arith.constant 0 : index
    %c0_349 = arith.constant 0 : index
    %465 = vector.load %arg17[%c0_346, %c26_347, %c0_348, %c0_349] : memref<1x27x27x32xf32, #tpu.memory_space<vmem>>, vector<1x1x27x32xf32>
    %466 = vector.shape_cast %465 : vector<1x1x27x32xf32> to vector<27x32xf32>
    %467 = vector.shape_cast %464 : vector<27x32xf32> to vector<1x1x27x32xf32>
    tpu.vector_store %arg17[%c0_346, %c26_347, %c0_348, %c0_349], %467 {strides = array<i32>} : memref<1x27x27x32xf32, #tpu.memory_space<vmem>>, vector<1x1x27x32xf32>,
    return
  }
  func.func @transform_0(%arg0: i32) -> (i32, i32, i32) {
    %c0_i32 = arith.constant 0 : i32
    %c0_i32_0 = arith.constant 0 : i32
    %c0_i32_1 = arith.constant 0 : i32
    return %arg0, %c0_i32, %c0_i32_0 : i32, i32, i32
  }
  func.func @transform_1(%arg0: i32) -> (i32, i32) {
    %c0_i32 = arith.constant 0 : i32
    %c0_i32_0 = arith.constant 0 : i32
    %c0_i32_1 = arith.constant 0 : i32
    return %c0_i32, %c0_i32_0 : i32, i32
  }
  func.func @transform_2(%arg0: i32) -> (i32, i32) {
    %c0_i32 = arith.constant 0 : i32
    %c0_i32_0 = arith.constant 0 : i32
    %c0_i32_1 = arith.constant 0 : i32
    return %c0_i32, %c0_i32_0 : i32, i32
  }
  func.func @transform_3(%arg0: i32) -> (i32, i32) {
    %c0_i32 = arith.constant 0 : i32
    %c0_i32_0 = arith.constant 0 : i32
    %c0_i32_1 = arith.constant 0 : i32
    return %c0_i32, %c0_i32_0 : i32, i32
  }
  func.func @transform_4(%arg0: i32) -> (i32, i32) {
    %c0_i32 = arith.constant 0 : i32
    %c0_i32_0 = arith.constant 0 : i32
    %c0_i32_1 = arith.constant 0 : i32
    return %c0_i32, %c0_i32_0 : i32, i32
  }
  func.func @transform_5(%arg0: i32) -> (i32, i32) {
    %c0_i32 = arith.constant 0 : i32
    %c0_i32_0 = arith.constant 0 : i32
    %c0_i32_1 = arith.constant 0 : i32
    return %c0_i32, %c0_i32_0 : i32, i32
  }
  func.func @transform_6(%arg0: i32) -> (i32, i32) {
    %c0_i32 = arith.constant 0 : i32
    %c0_i32_0 = arith.constant 0 : i32
    %c0_i32_1 = arith.constant 0 : i32
    return %c0_i32, %c0_i32_0 : i32, i32
  }
  func.func @transform_7(%arg0: i32) -> (i32, i32) {
    %c0_i32 = arith.constant 0 : i32
    %c0_i32_0 = arith.constant 0 : i32
    %c0_i32_1 = arith.constant 0 : i32
    return %c0_i32, %c0_i32_0 : i32, i32
  }
  func.func @transform_8(%arg0: i32) -> (i32, i32) {
    %c0_i32 = arith.constant 0 : i32
    %c0_i32_0 = arith.constant 0 : i32
    %c0_i32_1 = arith.constant 0 : i32
    return %c0_i32, %c0_i32_0 : i32, i32
  }
  func.func @transform_9(%arg0: i32) -> (i32, i32) {
    %c0_i32 = arith.constant 0 : i32
    %c0_i32_0 = arith.constant 0 : i32
    %c0_i32_1 = arith.constant 0 : i32
    return %c0_i32, %c0_i32_0 : i32, i32
  }
  func.func @transform_10(%arg0: i32) -> (i32, i32) {
    %c0_i32 = arith.constant 0 : i32
    %c0_i32_0 = arith.constant 0 : i32
    %c0_i32_1 = arith.constant 0 : i32
    return %c0_i32, %c0_i32_0 : i32, i32
  }
  func.func @transform_11(%arg0: i32) -> (i32, i32) {
    %c0_i32 = arith.constant 0 : i32
    %c0_i32_0 = arith.constant 0 : i32
    %c0_i32_1 = arith.constant 0 : i32
    return %c0_i32, %c0_i32_0 : i32, i32
  }
  func.func @transform_12(%arg0: i32) -> (i32, i32) {
    %c0_i32 = arith.constant 0 : i32
    %c0_i32_0 = arith.constant 0 : i32
    %c0_i32_1 = arith.constant 0 : i32
    return %c0_i32, %c0_i32_0 : i32, i32
  }
  func.func @transform_13(%arg0: i32) -> (i32, i32, i32) {
    %c0_i32 = arith.constant 0 : i32
    %c0_i32_0 = arith.constant 0 : i32
    %c0_i32_1 = arith.constant 0 : i32
    %c0_i32_2 = arith.constant 0 : i32
    return %c0_i32, %c0_i32_0, %c0_i32_1 : i32, i32, i32
  }
  func.func @transform_14(%arg0: i32) -> (i32, i32, i32) {
    %c0_i32 = arith.constant 0 : i32
    %c0_i32_0 = arith.constant 0 : i32
    %c0_i32_1 = arith.constant 0 : i32
    %c0_i32_2 = arith.constant 0 : i32
    return %c0_i32, %c0_i32_0, %c0_i32_1 : i32, i32, i32
  }
  func.func @transform_15(%arg0: i32) -> (i32, i32, i32) {
    %c0_i32 = arith.constant 0 : i32
    %c0_i32_0 = arith.constant 0 : i32
    %c0_i32_1 = arith.constant 0 : i32
    return %arg0, %c0_i32, %c0_i32_0 : i32, i32, i32
  }
  func.func @transform_16(%arg0: i32) -> (i32, i32, i32, i32) {
    %c0_i32 = arith.constant 0 : i32
    %c0_i32_0 = arith.constant 0 : i32
    %c0_i32_1 = arith.constant 0 : i32
    %c0_i32_2 = arith.constant 0 : i32
    return %arg0, %c0_i32, %c0_i32_0, %c0_i32_1 : i32, i32, i32, i32
  }
}

</mosaic_0001>

<llo_original>
// kernel: head_forward.1
$region0: #{head_forward.1}
  #allocation0 [shape = 'u32[]', space=smem, size = 0x4, offset = 0x4, fixed_abs, tag = 'smem constant byte address 0x4 - core index']
  #allocation1 [shape = 'u32[144,128]{1,0:T(1,128)}', space=vmem, size = 0x12000, scoped, tag = 'internal scratch']
  #allocation2 [shape = 'f32[216,32]{1,0:T(8,128)}', space=vmem, size = 0x1b000, scoped, tag = 'scratch operand']
  %s0 = inlined_call_operand.vmem [shape: f32[2,8,32], index: 0, kind: input, shape index: {}]
  %s1 = inlined_call_operand.vmem [shape: f32[32,864], index: 1, kind: input, shape index: {}]
  %s2 = inlined_call_operand.vmem [shape: f32[1,864], index: 2, kind: input, shape index: {}]
  %s3 = inlined_call_operand.vmem [shape: f32[27,216], index: 3, kind: input, shape index: {}]
  %s4 = inlined_call_operand.vmem [shape: f32[216,27], index: 4, kind: input, shape index: {}]
  %s5 = inlined_call_operand.vmem [shape: f32[27,216], index: 5, kind: input, shape index: {}]
  %s6 = inlined_call_operand.vmem [shape: f32[32,16], index: 6, kind: input, shape index: {}]
  %s7 = inlined_call_operand.vmem [shape: f32[1,16], index: 7, kind: input, shape index: {}]
  %s8 = inlined_call_operand.vmem [shape: f32[32,48], index: 8, kind: input, shape index: {}]
  %s9 = inlined_call_operand.vmem [shape: f32[1,48], index: 9, kind: input, shape index: {}]
  %s10 = inlined_call_operand.vmem [shape: f32[32,64], index: 10, kind: input, shape index: {}]
  %s11 = inlined_call_operand.vmem [shape: f32[1,64], index: 11, kind: input, shape index: {}]
  %s12 = inlined_call_operand.vmem [shape: f32[32,32], index: 12, kind: input, shape index: {}]
  %s13 = inlined_call_operand.vmem [shape: f32[27,27,1], index: 13, kind: input, shape index: {}]
  %s14 = inlined_call_operand.vmem [shape: f32[27,27,32], index: 14, kind: input, shape index: {}]
  %s15 = inlined_call_operand.vmem [shape: f32[2,27,32], index: 15, kind: output, shape index: {0}]
  %s16 = inlined_call_operand.vmem [shape: f32[2,27,27,32], index: 16, kind: output, shape index: {1}]
  %17 = xla_tuple %s15, %s16
  %s18 = sld [smem:[#allocation0]]
  $region101: #{head_forward.1} parent=0
    _
  %s20 = ssub.s32 1, %s18
  %s21 = scalar_select 0, %s20, %s18
  loop: start=0, step=1, limit=4
  $region2: #{head_forward.1} parent=0 // loop_pre_header
    _
  $region3: #{head_forward.1} parent=0 // loop_header
    %s23 = sphi 0, %s27
    %p24 = scmp.ge.s32.totalorder %s23, 4
    %s33 = sphi 0, %s35
    %s36 = sphi 0, %s33
    %s37 = sphi 0, %s36
    %s53 = sphi 0, %s37
    %s57 = sphi 0, %s57
    %s59 = sphi 0, %s57
    %s60 = sphi 0, %s59
    %s74 = sphi 0, %s60
    %s78 = sphi 0, %s78
    %s80 = sphi 0, %s78
    %s81 = sphi 0, %s80
    %s95 = sphi 0, %s81
    %s99 = sphi 0, %s99
    %s101 = sphi 0, %s99
    %s102 = sphi 0, %s101
    %s116 = sphi 0, %s102
    %s120 = sphi 0, %s120
    %s122 = sphi 0, %s120
    %s123 = sphi 0, %s122
    %s137 = sphi 0, %s123
    %s141 = sphi 0, %s141
    %s143 = sphi 0, %s141
    %s144 = sphi 0, %s143
    %s158 = sphi 0, %s144
    %s162 = sphi 0, %s162
    %s164 = sphi 0, %s162
    %s165 = sphi 0, %s164
    %s179 = sphi 0, %s165
    %s183 = sphi 0, %s183
    %s185 = sphi 0, %s183
    %s186 = sphi 0, %s185
    %s200 = sphi 0, %s186
    %s204 = sphi 0, %s204
    %s206 = sphi 0, %s204
    %s207 = sphi 0, %s206
    %s221 = sphi 0, %s207
    %s225 = sphi 0, %s225
    %s227 = sphi 0, %s225
    %s228 = sphi 0, %s227
    %s242 = sphi 0, %s228
    %s246 = sphi 0, %s246
    %s248 = sphi 0, %s246
    %s249 = sphi 0, %s248
    %s263 = sphi 0, %s249
    %s267 = sphi 0, %s267
    %s269 = sphi 0, %s267
    %s270 = sphi 0, %s269
    %s284 = sphi 0, %s270
    %s288 = sphi 0, %s288
    %s290 = sphi 0, %s288
    %s291 = sphi 0, %s290
    %s305 = sphi 0, %s291
    %s309 = sphi 0, %s309
    %s311 = sphi 0, %s309
    %s312 = sphi 0, %s311
    %s326 = sphi 0, %s312
    %s330 = sphi 0, %s330
    %s332 = sphi 0, %s330
    %s333 = sphi 0, %s332
    %s347 = sphi 0, %s333
    %s353 = sphi 0, %s355
    %s356 = sphi 0, %s353
    %s357 = sphi 0, %s356
    %s373 = sphi 0, %s357
    %s379 = sphi 0, %s381
    %s382 = sphi 0, %s379
    %s383 = sphi 0, %s382
    %s399 = sphi 0, %s383
  $region4: #{head_forward.1} parent=0 // loop_header_branch
    %26 = sbr.rel (%p24) target = $region8
  $region5: #{head_forward.1} parent=0 // loop_body
    %s28 = ssub.s32 %s23, 1
    %s29 = ssub.s32 %s23, 2
    %s30 = sadd.s32 %s23, 1
    %s31 = ssub.s32 %s23, %s30
    %p32 = scmp.eq.s32.totalorder %s31, 0
    %s34 = sadd.s32 %s33, 1
    %s35 = scalar_select %p32, %s33, %s34
    %p38 = pneg %p32
    %p39 = scmp.eq.s32.totalorder %s23, 1
    %p40 = por %p38, %p39
    %p41 = scmp.ne.s32.totalorder %s33, %s36
    %p42 = scmp.eq.s32.totalorder %s23, 0
    %p43 = por %p41, %p42
    %p44 = scmp.ne.s32.totalorder %s33, %s36
    %p45 = scmp.eq.s32.totalorder %s28, 1
    %p46 = por %p44, %p45
    %p47 = scmp.ne.s32.totalorder %s36, %s37
    %p48 = scmp.eq.s32.totalorder %s28, 0
    %p49 = por %p47, %p48
    %p50 = scmp.ne.s32.totalorder %s36, %s37
    %p51 = scmp.eq.s32.totalorder %s29, 1
    %p52 = por %p50, %p51
    %p54 = scmp.ne.s32.totalorder %s37, %s53
    %p55 = scmp.eq.s32.totalorder %s29, 0
    %p56 = por %p54, %p55
    %s58 = sadd.s32 %s57, 1
    %p61 = scmp.eq.s32.totalorder %s23, 1
    %p62 = scmp.ne.s32.totalorder %s57, %s59
    %p63 = scmp.eq.s32.totalorder %s23, 0
    %p64 = por %p62, %p63
    %p65 = scmp.ne.s32.totalorder %s57, %s59
    %p66 = scmp.eq.s32.totalorder %s28, 1
    %p67 = por %p65, %p66
    %p68 = scmp.ne.s32.totalorder %s59, %s60
    %p69 = scmp.eq.s32.totalorder %s28, 0
    %p70 = por %p68, %p69
    %p71 = scmp.ne.s32.totalorder %s59, %s60
    %p72 = scmp.eq.s32.totalorder %s29, 1
    %p73 = por %p71, %p72
    %p75 = scmp.ne.s32.totalorder %s60, %s74
    %p76 = scmp.eq.s32.totalorder %s29, 0
    %p77 = por %p75, %p76
    %s79 = sadd.s32 %s78, 1
    %p82 = scmp.eq.s32.totalorder %s23, 1
    %p83 = scmp.ne.s32.totalorder %s78, %s80
    %p84 = scmp.eq.s32.totalorder %s23, 0
    %p85 = por %p83, %p84
    %p86 = scmp.ne.s32.totalorder %s78, %s80
    %p87 = scmp.eq.s32.totalorder %s28, 1
    %p88 = por %p86, %p87
    %p89 = scmp.ne.s32.totalorder %s80, %s81
    %p90 = scmp.eq.s32.totalorder %s28, 0
    %p91 = por %p89, %p90
    %p92 = scmp.ne.s32.totalorder %s80, %s81
    %p93 = scmp.eq.s32.totalorder %s29, 1
    %p94 = por %p92, %p93
    %p96 = scmp.ne.s32.totalorder %s81, %s95
    %p97 = scmp.eq.s32.totalorder %s29, 0
    %p98 = por %p96, %p97
    %s100 = sadd.s32 %s99, 1
    %p103 = scmp.eq.s32.totalorder %s23, 1
    %p104 = scmp.ne.s32.totalorder %s99, %s101
    %p105 = scmp.eq.s32.totalorder %s23, 0
    %p106 = por %p104, %p105
    %p107 = scmp.ne.s32.totalorder %s99, %s101
    %p108 = scmp.eq.s32.totalorder %s28, 1
    %p109 = por %p107, %p108
    %p110 = scmp.ne.s32.totalorder %s101, %s102
    %p111 = scmp.eq.s32.totalorder %s28, 0
    %p112 = por %p110, %p111
    %p113 = scmp.ne.s32.totalorder %s101, %s102
    %p114 = scmp.eq.s32.totalorder %s29, 1
    %p115 = por %p113, %p114
    %p117 = scmp.ne.s32.totalorder %s102, %s116
    %p118 = scmp.eq.s32.totalorder %s29, 0
    %p119 = por %p117, %p118
    %s121 = sadd.s32 %s120, 1
    %p124 = scmp.eq.s32.totalorder %s23, 1
    %p125 = scmp.ne.s32.totalorder %s120, %s122
    %p126 = scmp.eq.s32.totalorder %s23, 0
    %p127 = por %p125, %p126
    %p128 = scmp.ne.s32.totalorder %s120, %s122
    %p129 = scmp.eq.s32.totalorder %s28, 1
    %p130 = por %p128, %p129
    %p131 = scmp.ne.s32.totalorder %s122, %s123
    %p132 = scmp.eq.s32.totalorder %s28, 0
    %p133 = por %p131, %p132
    %p134 = scmp.ne.s32.totalorder %s122, %s123
    %p135 = scmp.eq.s32.totalorder %s29, 1
    %p136 = por %p134, %p135
    %p138 = scmp.ne.s32.totalorder %s123, %s137
    %p139 = scmp.eq.s32.totalorder %s29, 0
    %p140 = por %p138, %p139
    %s142 = sadd.s32 %s141, 1
    %p145 = scmp.eq.s32.totalorder %s23, 1
    %p146 = scmp.ne.s32.totalorder %s141, %s143
    %p147 = scmp.eq.s32.totalorder %s23, 0
    %p148 = por %p146, %p147
    %p149 = scmp.ne.s32.totalorder %s141, %s143
    %p150 = scmp.eq.s32.totalorder %s28, 1
    %p151 = por %p149, %p150
    %p152 = scmp.ne.s32.totalorder %s143, %s144
    %p153 = scmp.eq.s32.totalorder %s28, 0
    %p154 = por %p152, %p153
    %p155 = scmp.ne.s32.totalorder %s143, %s144
    %p156 = scmp.eq.s32.totalorder %s29, 1
    %p157 = por %p155, %p156
    %p159 = scmp.ne.s32.totalorder %s144, %s158
    %p160 = scmp.eq.s32.totalorder %s29, 0
    %p161 = por %p159, %p160
    %s163 = sadd.s32 %s162, 1
    %p166 = scmp.eq.s32.totalorder %s23, 1
    %p167 = scmp.ne.s32.totalorder %s162, %s164
    %p168 = scmp.eq.s32.totalorder %s23, 0
    %p169 = por %p167, %p168
    %p170 = scmp.ne.s32.totalorder %s162, %s164
    %p171 = scmp.eq.s32.totalorder %s28, 1
    %p172 = por %p170, %p171
    %p173 = scmp.ne.s32.totalorder %s164, %s165
    %p174 = scmp.eq.s32.totalorder %s28, 0
    %p175 = por %p173, %p174
    %p176 = scmp.ne.s32.totalorder %s164, %s165
    %p177 = scmp.eq.s32.totalorder %s29, 1
    %p178 = por %p176, %p177
    %p180 = scmp.ne.s32.totalorder %s165, %s179
    %p181 = scmp.eq.s32.totalorder %s29, 0
    %p182 = por %p180, %p181
    %s184 = sadd.s32 %s183, 1
    %p187 = scmp.eq.s32.totalorder %s23, 1
    %p188 = scmp.ne.s32.totalorder %s183, %s185
    %p189 = scmp.eq.s32.totalorder %s23, 0
    %p190 = por %p188, %p189
    %p191 = scmp.ne.s32.totalorder %s183, %s185
    %p192 = scmp.eq.s32.totalorder %s28, 1
    %p193 = por %p191, %p192
    %p194 = scmp.ne.s32.totalorder %s185, %s186
    %p195 = scmp.eq.s32.totalorder %s28, 0
    %p196 = por %p194, %p195
    %p197 = scmp.ne.s32.totalorder %s185, %s186
    %p198 = scmp.eq.s32.totalorder %s29, 1
    %p199 = por %p197, %p198
    %p201 = scmp.ne.s32.totalorder %s186, %s200
    %p202 = scmp.eq.s32.totalorder %s29, 0
    %p203 = por %p201, %p202
    %s205 = sadd.s32 %s204, 1
    %p208 = scmp.eq.s32.totalorder %s23, 1
    %p209 = scmp.ne.s32.totalorder %s204, %s206
    %p210 = scmp.eq.s32.totalorder %s23, 0
    %p211 = por %p209, %p210
    %p212 = scmp.ne.s32.totalorder %s204, %s206
    %p213 = scmp.eq.s32.totalorder %s28, 1
    %p214 = por %p212, %p213
    %p215 = scmp.ne.s32.totalorder %s206, %s207
    %p216 = scmp.eq.s32.totalorder %s28, 0
    %p217 = por %p215, %p216
    %p218 = scmp.ne.s32.totalorder %s206, %s207
    %p219 = scmp.eq.s32.totalorder %s29, 1
    %p220 = por %p218, %p219
    %p222 = scmp.ne.s32.totalorder %s207, %s221
    %p223 = scmp.eq.s32.totalorder %s29, 0
    %p224 = por %p222, %p223
    %s226 = sadd.s32 %s225, 1
    %p229 = scmp.eq.s32.totalorder %s23, 1
    %p230 = scmp.ne.s32.totalorder %s225, %s227
    %p231 = scmp.eq.s32.totalorder %s23, 0
    %p232 = por %p230, %p231
    %p233 = scmp.ne.s32.totalorder %s225, %s227
    %p234 = scmp.eq.s32.totalorder %s28, 1
    %p235 = por %p233, %p234
    %p236 = scmp.ne.s32.totalorder %s227, %s228
    %p237 = scmp.eq.s32.totalorder %s28, 0
    %p238 = por %p236, %p237
    %p239 = scmp.ne.s32.totalorder %s227, %s228
    %p240 = scmp.eq.s32.totalorder %s29, 1
    %p241 = por %p239, %p240
    %p243 = scmp.ne.s32.totalorder %s228, %s242
    %p244 = scmp.eq.s32.totalorder %s29, 0
    %p245 = por %p243, %p244
    %s247 = sadd.s32 %s246, 1
    %p250 = scmp.eq.s32.totalorder %s23, 1
    %p251 = scmp.ne.s32.totalorder %s246, %s248
    %p252 = scmp.eq.s32.totalorder %s23, 0
    %p253 = por %p251, %p252
    %p254 = scmp.ne.s32.totalorder %s246, %s248
    %p255 = scmp.eq.s32.totalorder %s28, 1
    %p256 = por %p254, %p255
    %p257 = scmp.ne.s32.totalorder %s248, %s249
    %p258 = scmp.eq.s32.totalorder %s28, 0
    %p259 = por %p257, %p258
    %p260 = scmp.ne.s32.totalorder %s248, %s249
    %p261 = scmp.eq.s32.totalorder %s29, 1
    %p262 = por %p260, %p261
    %p264 = scmp.ne.s32.totalorder %s249, %s263
    %p265 = scmp.eq.s32.totalorder %s29, 0
    %p266 = por %p264, %p265
    %s268 = sadd.s32 %s267, 1
    %p271 = scmp.eq.s32.totalorder %s23, 1
    %p272 = scmp.ne.s32.totalorder %s267, %s269
    %p273 = scmp.eq.s32.totalorder %s23, 0
    %p274 = por %p272, %p273
    %p275 = scmp.ne.s32.totalorder %s267, %s269
    %p276 = scmp.eq.s32.totalorder %s28, 1
    %p277 = por %p275, %p276
    %p278 = scmp.ne.s32.totalorder %s269, %s270
    %p279 = scmp.eq.s32.totalorder %s28, 0
    %p280 = por %p278, %p279
    %p281 = scmp.ne.s32.totalorder %s269, %s270
    %p282 = scmp.eq.s32.totalorder %s29, 1
    %p283 = por %p281, %p282
    %p285 = scmp.ne.s32.totalorder %s270, %s284
    %p286 = scmp.eq.s32.totalorder %s29, 0
    %p287 = por %p285, %p286
    %s289 = sadd.s32 %s288, 1
    %p292 = scmp.eq.s32.totalorder %s23, 1
    %p293 = scmp.ne.s32.totalorder %s288, %s290
    %p294 = scmp.eq.s32.totalorder %s23, 0
    %p295 = por %p293, %p294
    %p296 = scmp.ne.s32.totalorder %s288, %s290
    %p297 = scmp.eq.s32.totalorder %s28, 1
    %p298 = por %p296, %p297
    %p299 = scmp.ne.s32.totalorder %s290, %s291
    %p300 = scmp.eq.s32.totalorder %s28, 0
    %p301 = por %p299, %p300
    %p302 = scmp.ne.s32.totalorder %s290, %s291
    %p303 = scmp.eq.s32.totalorder %s29, 1
    %p304 = por %p302, %p303
    %p306 = scmp.ne.s32.totalorder %s291, %s305
    %p307 = scmp.eq.s32.totalorder %s29, 0
    %p308 = por %p306, %p307
    %s310 = sadd.s32 %s309, 1
    %p313 = scmp.eq.s32.totalorder %s23, 1
    %p314 = scmp.ne.s32.totalorder %s309, %s311
    %p315 = scmp.eq.s32.totalorder %s23, 0
    %p316 = por %p314, %p315
    %p317 = scmp.ne.s32.totalorder %s309, %s311
    %p318 = scmp.eq.s32.totalorder %s28, 1
    %p319 = por %p317, %p318
    %p320 = scmp.ne.s32.totalorder %s311, %s312
    %p321 = scmp.eq.s32.totalorder %s28, 0
    %p322 = por %p320, %p321
    %p323 = scmp.ne.s32.totalorder %s311, %s312
    %p324 = scmp.eq.s32.totalorder %s29, 1
    %p325 = por %p323, %p324
    %p327 = scmp.ne.s32.totalorder %s312, %s326
    %p328 = scmp.eq.s32.totalorder %s29, 0
    %p329 = por %p327, %p328
    %s331 = sadd.s32 %s330, 1
    %p334 = scmp.eq.s32.totalorder %s23, 1
    %p335 = scmp.ne.s32.totalorder %s330, %s332
    %p336 = scmp.eq.s32.totalorder %s23, 0
    %p337 = por %p335, %p336
    %p338 = scmp.ne.s32.totalorder %s330, %s332
    %p339 = scmp.eq.s32.totalorder %s28, 1
    %p340 = por %p338, %p339
    %p341 = scmp.ne.s32.totalorder %s332, %s333
    %p342 = scmp.eq.s32.totalorder %s28, 0
    %p343 = por %p341, %p342
    %p344 = scmp.ne.s32.totalorder %s332, %s333
    %p345 = scmp.eq.s32.totalorder %s29, 1
    %p346 = por %p344, %p345
    %p348 = scmp.ne.s32.totalorder %s333, %s347
    %p349 = scmp.eq.s32.totalorder %s29, 0
    %p350 = por %p348, %p349
    %s351 = ssub.s32 %s23, %s30
    %p352 = scmp.eq.s32.totalorder %s351, 0
    %s354 = sadd.s32 %s353, 1
    %s355 = scalar_select %p352, %s353, %s354
    %p358 = pneg %p352
    %p359 = scmp.eq.s32.totalorder %s23, 1
    %p360 = por %p358, %p359
    %p361 = scmp.ne.s32.totalorder %s353, %s356
    %p362 = scmp.eq.s32.totalorder %s23, 0
    %p363 = por %p361, %p362
    %p364 = scmp.ne.s32.totalorder %s353, %s356
    %p365 = scmp.eq.s32.totalorder %s28, 1
    %p366 = por %p364, %p365
    %p367 = scmp.ne.s32.totalorder %s356, %s357
    %p368 = scmp.eq.s32.totalorder %s28, 0
    %p369 = por %p367, %p368
    %p370 = scmp.ne.s32.totalorder %s356, %s357
    %p371 = scmp.eq.s32.totalorder %s29, 1
    %p372 = por %p370, %p371
    %p374 = scmp.ne.s32.totalorder %s357, %s373
    %p375 = scmp.eq.s32.totalorder %s29, 0
    %p376 = por %p374, %p375
    %s377 = ssub.s32 %s23, %s30
    %p378 = scmp.eq.s32.totalorder %s377, 0
    %s380 = sadd.s32 %s379, 1
    %s381 = scalar_select %p378, %s379, %s380
    %p384 = pneg %p378
    %p385 = scmp.eq.s32.totalorder %s23, 1
    %p386 = por %p384, %p385
    %p387 = scmp.ne.s32.totalorder %s379, %s382
    %p388 = scmp.eq.s32.totalorder %s23, 0
    %p389 = por %p387, %p388
    %p390 = scmp.ne.s32.totalorder %s379, %s382
    %p391 = scmp.eq.s32.totalorder %s28, 1
    %p392 = por %p390, %p391
    %p393 = scmp.ne.s32.totalorder %s382, %s383
    %p394 = scmp.eq.s32.totalorder %s28, 0
    %p395 = por %p393, %p394
    %p396 = scmp.ne.s32.totalorder %s382, %s383
    %p397 = scmp.eq.s32.totalorder %s29, 1
    %p398 = por %p396, %p397
    %p400 = scmp.ne.s32.totalorder %s383, %s399
    %p401 = scmp.eq.s32.totalorder %s29, 0
    %p402 = por %p400, %p401
    %p403 = scmp.le.s32.totalorder 1, %s23
    %p404 = scmp.lt.s32.totalorder %s23, 3
    %p405 = pnand %p403, %p404
    %p406 = pneg %p405
    // Predicated region
    $region9: #{head_forward.1} parent=5 // pred_check
      _
    $region10: #{head_forward.1} parent=5 // pred_check_branch
      %408 = sbr.rel (%p405) target = $region12
    $region11: #{head_forward.1} parent=5 // pred_region
      %s409 = ssub.s32 %s23, 1
      // Predicated region
      $region13: #{head_forward.1} parent=11 // pred_check
        %p410 = pneg %p70
      $region14: #{head_forward.1} parent=11 // pred_check_branch
        %412 = sbr.rel (%p410) target = $region16
      $region15: #{head_forward.1} parent=11 // pred_region
        _
      $region16: #{head_forward.1} parent=11 // pred_fallthru
        _
      // Predicated region
      $region17: #{head_forward.1} parent=11 // pred_check
        %p413 = pneg %p91
      $region18: #{head_forward.1} parent=11 // pred_check_branch
        %415 = sbr.rel (%p413) target = $region20
      $region19: #{head_forward.1} parent=11 // pred_region
        _
      $region20: #{head_forward.1} parent=11 // pred_fallthru
        _
      // Predicated region
      $region21: #{head_forward.1} parent=11 // pred_check
        %p416 = pneg %p112
      $region22: #{head_forward.1} parent=11 // pred_check_branch
        %418 = sbr.rel (%p416) target = $region24
      $region23: #{head_forward.1} parent=11 // pred_region
        _
      $region24: #{head_forward.1} parent=11 // pred_fallthru
        _
      // Predicated region
      $region25: #{head_forward.1} parent=11 // pred_check
        %p419 = pneg %p133
      $region26: #{head_forward.1} parent=11 // pred_check_branch
        %421 = sbr.rel (%p419) target = $region28
      $region27: #{head_forward.1} parent=11 // pred_region
        _
      $region28: #{head_forward.1} parent=11 // pred_fallthru
        _
      // Predicated region
      $region29: #{head_forward.1} parent=11 // pred_check
        %p422 = pneg %p154
      $region30: #{head_forward.1} parent=11 // pred_check_branch
        %424 = sbr.rel (%p422) target = $region32
      $region31: #{head_forward.1} parent=11 // pred_region
        _
      $region32: #{head_forward.1} parent=11 // pred_fallthru
        _
      // Predicated region
      $region33: #{head_forward.1} parent=11 // pred_check
        %p425 = pneg %p175
      $region34: #{head_forward.1} parent=11 // pred_check_branch
        %427 = sbr.rel (%p425) target = $region36
      $region35: #{head_forward.1} parent=11 // pred_region
        _
      $region36: #{head_forward.1} parent=11 // pred_fallthru
        _
      // Predicated region
      $region37: #{head_forward.1} parent=11 // pred_check
        %p428 = pneg %p196
      $region38: #{head_forward.1} parent=11 // pred_check_branch
        %430 = sbr.rel (%p428) target = $region40
      $region39: #{head_forward.1} parent=11 // pred_region
        _
      $region40: #{head_forward.1} parent=11 // pred_fallthru
        _
      // Predicated region
      $region41: #{head_forward.1} parent=11 // pred_check
        %p431 = pneg %p217
      $region42: #{head_forward.1} parent=11 // pred_check_branch
        %433 = sbr.rel (%p431) target = $region44
      $region43: #{head_forward.1} parent=11 // pred_region
        _
      $region44: #{head_forward.1} parent=11 // pred_fallthru
        _
      // Predicated region
      $region45: #{head_forward.1} parent=11 // pred_check
        %p434 = pneg %p238
      $region46: #{head_forward.1} parent=11 // pred_check_branch
        %436 = sbr.rel (%p434) target = $region48
      $region47: #{head_forward.1} parent=11 // pred_region
        _
      $region48: #{head_forward.1} parent=11 // pred_fallthru
        _
      // Predicated region
      $region49: #{head_forward.1} parent=11 // pred_check
        %p437 = pneg %p259
      $region50: #{head_forward.1} parent=11 // pred_check_branch
        %439 = sbr.rel (%p437) target = $region52
      $region51: #{head_forward.1} parent=11 // pred_region
        _
      $region52: #{head_forward.1} parent=11 // pred_fallthru
        _
      // Predicated region
      $region53: #{head_forward.1} parent=11 // pred_check
        %p440 = pneg %p280
      $region54: #{head_forward.1} parent=11 // pred_check_branch
        %442 = sbr.rel (%p440) target = $region56
      $region55: #{head_forward.1} parent=11 // pred_region
        _
      $region56: #{head_forward.1} parent=11 // pred_fallthru
        _
      // Predicated region
      $region57: #{head_forward.1} parent=11 // pred_check
        %p443 = pneg %p301
      $region58: #{head_forward.1} parent=11 // pred_check_branch
        %445 = sbr.rel (%p443) target = $region60
      $region59: #{head_forward.1} parent=11 // pred_region
        _
      $region60: #{head_forward.1} parent=11 // pred_fallthru
        _
      // Predicated region
      $region61: #{head_forward.1} parent=11 // pred_check
        %p446 = pneg %p322
      $region62: #{head_forward.1} parent=11 // pred_check_branch
        %448 = sbr.rel (%p446) target = $region64
      $region63: #{head_forward.1} parent=11 // pred_region
        _
      $region64: #{head_forward.1} parent=11 // pred_fallthru
        _
      // Predicated region
      $region65: #{head_forward.1} parent=11 // pred_check
        %p449 = pneg %p343
      $region66: #{head_forward.1} parent=11 // pred_check_branch
        %451 = sbr.rel (%p449) target = $region68
      $region67: #{head_forward.1} parent=11 // pred_region
        _
      $region68: #{head_forward.1} parent=11 // pred_fallthru
        _
    $region12: #{head_forward.1} parent=5 // pred_fallthru
      _
    %p452 = scmp.lt.s32.totalorder %s23, 2
    // Predicated region
    $region69: #{head_forward.1} parent=5 // pred_check
      %p453 = pneg %p452
    $region70: #{head_forward.1} parent=5 // pred_check_branch
      %455 = sbr.rel (%p453) target = $region72
    $region71: #{head_forward.1} parent=5 // pred_region
      // Predicated region
      $region73: #{head_forward.1} parent=71 // pred_check
        %p456 = pneg %p43
      $region74: #{head_forward.1} parent=71 // pred_check_branch
        %458 = sbr.rel (%p456) target = $region76
      $region75: #{head_forward.1} parent=71 // pred_region
        %p459 = scmp.lt.s32.totalorder %s23, 1
        %s460 = scalar_select %p459, %s23, 1
        %s461 = smul.addr %s460, 8
        %s462 = scalar_lea.vmem %s0, %s461
      $region76: #{head_forward.1} parent=71 // pred_fallthru
        _
    $region72: #{head_forward.1} parent=5 // pred_fallthru
      _
    %p463 = scmp.le.s32.totalorder 1, %s23
    %p464 = scmp.lt.s32.totalorder %s23, 3
    %p465 = pnand %p463, %p464
    %p466 = pneg %p465
    // Predicated region
    $region77: #{head_forward.1} parent=5 // pred_check
      _
    $region78: #{head_forward.1} parent=5 // pred_check_branch
      %468 = sbr.rel (%p465) target = $region80
    $region79: #{head_forward.1} parent=5 // pred_region
      %s469 = ssub.s32 %s23, 1
      %p470 = scmp.lt.s32.totalorder %s28, 1
      %s471 = scalar_select %p470, %s28, 1
      %s472 = smul.addr %s471, 8
      %s473 = scalar_lea.vmem %s0, %s472
      %p474 = pneg %p49
      %p475 = pneg %p46
      %p476 = pneg %p70
      %p477 = pneg %p67
      %p478 = pneg %p91
      %p479 = pneg %p88
      %p480 = pneg %p112
      %p481 = pneg %p109
      %p482 = pneg %p133
      %p483 = pneg %p130
      %p484 = pneg %p154
      %p485 = pneg %p151
      %p486 = pneg %p175
      %p487 = pneg %p172
      %p488 = pneg %p196
      %p489 = pneg %p193
      %p490 = pneg %p217
      %p491 = pneg %p214
      %p492 = pneg %p238
      %p493 = pneg %p235
      %p494 = pneg %p259
      %p495 = pneg %p256
      %p496 = pneg %p280
      %p497 = pneg %p277
      %p498 = pneg %p301
      %p499 = pneg %p298
      %p500 = pneg %p322
      %p501 = pneg %p319
      %p502 = pneg %p343
      %p503 = pneg %p340
      %p504 = pneg %p369
      %p505 = pneg %p366
      %p506 = scmp.lt.s32.totalorder %s28, 1
      %s507 = scalar_select %p506, %s28, 1
      %s508 = smul.addr %s507, 4
      %s509 = smul.addr %s508, 8
      %s510 = scalar_lea.vmem %s15, %s509
      %p511 = pneg %p395
      %p512 = pneg %p392
      %p513 = scmp.lt.s32.totalorder %s28, 1
      %s514 = scalar_select %p513, %s28, 1
      %s515 = smul.addr %s514, 108
      %s516 = smul.addr %s515, 8
      %s517 = scalar_lea.vmem %s16, %s516
      %p518 = scmp.lt.s32.totalorder %s28, 1
      %s519 = scalar_select %p518, %s28, 1
      %s520 = smul.addr %s519, 8
      %s521 = scalar_lea.vmem %s0, %s520
      %p522 = scmp.lt.s32.totalorder %s28, 1
      %s523 = scalar_select %p522, %s28, 1
      %s524 = smul.addr %s523, 4
      %s525 = smul.addr %s524, 8
      %s526 = scalar_lea.vmem %s15, %s525
      %p527 = scmp.lt.s32.totalorder %s28, 1
      %s528 = scalar_select %p527, %s28, 1
      %s529 = smul.addr %s528, 108
      %s530 = smul.addr %s529, 8
      %s531 = scalar_lea.vmem %s16, %s530
      %v532 = vld [vmem:[%s521] sm:$0xff]
      %v533 = vld [vmem:[%s1] sm:$0xff]
      %v534 = vld [vmem:[%s1 + $0x8] sm:$0xff]
      %v535 = vld [vmem:[%s1 + $0x10] sm:$0xff]
      %v536 = vld [vmem:[%s1 + $0x18] sm:$0xff]
      %v537 = vld [vmem:[%s1 + $0x20] sm:$0xff]
      %v538 = vld [vmem:[%s1 + $0x28] sm:$0xff]
      %v539 = vld [vmem:[%s1 + $0x30] sm:$0xff]
      %v540 = vld [vmem:[%s1 + $0x38] sm:$0xff]
      %v541 = vld [vmem:[%s1 + $0x40] sm:$0xff]
      %v542 = vld [vmem:[%s1 + $0x48] sm:$0xff]
      %v543 = vld [vmem:[%s1 + $0x50] sm:$0xff]
      %v544 = vld [vmem:[%s1 + $0x58] sm:$0xff]
      %v545 = vld [vmem:[%s1 + $0x60] sm:$0xff]
      %v546 = vld [vmem:[%s1 + $0x68] sm:$0xff]
      %v547 = vld [vmem:[%s1 + $0x70] sm:$0xff]
      %v548 = vld [vmem:[%s1 + $0x78] sm:$0xff]
      %v549 = vld [vmem:[%s1 + $0x80] sm:$0xff]
      %v550 = vld [vmem:[%s1 + $0x88] sm:$0xff]
      %v551 = vld [vmem:[%s1 + $0x90] sm:$0xff]
      %v552 = vld [vmem:[%s1 + $0x98] sm:$0xff]
      %v553 = vld [vmem:[%s1 + $0xa0] sm:$0xff]
      %v554 = vld [vmem:[%s1 + $0xa8] sm:$0xff]
      %v555 = vld [vmem:[%s1 + $0xb0] sm:$0xff]
      %v556 = vld [vmem:[%s1 + $0xb8] sm:$0xff]
      %v557 = vld [vmem:[%s1 + $0xc0] sm:$0xff]
      %v558 = vld [vmem:[%s1 + $0xc8] sm:$0xff]
      %v559 = vld [vmem:[%s1 + $0xd0] sm:$0xff]
      %v560 = vld [vmem:[%s1 + $0xd8] sm:$0xff]
      %v561 = vld [vmem:[%s2] sm:$0x7f]
      %v563 = vlaneseq
      %v564 = vshrl.u32 %v563, 7
      %v565 = vsub.s32 0, %v564
      %v566 = vrot.slane %v561, %v565
      %v567 = vlaneseq
      %v568 = vshrl.u32 %v567, 7
      %v569 = vsub.s32 1, %v568
      %v570 = vrot.slane %v561, %v569
      %v571 = vlaneseq
      %v572 = vshrl.u32 %v571, 7
      %v573 = vsub.s32 2, %v572
      %v574 = vrot.slane %v561, %v573
      %v575 = vlaneseq
      %v576 = vshrl.u32 %v575, 7
      %v577 = vsub.s32 3, %v576
      %v578 = vrot.slane %v561, %v577
      %v579 = vlaneseq
      %v580 = vshrl.u32 %v579, 7
      %v581 = vsub.s32 4, %v580
      %v582 = vrot.slane %v561, %v581
      %v583 = vlaneseq
      %v584 = vshrl.u32 %v583, 7
      %v585 = vsub.s32 5, %v584
      %v586 = vrot.slane %v561, %v585
      %v587 = vlaneseq
      %v588 = vshrl.u32 %v587, 7
      %v589 = vsub.s32 6, %v588
      %v590 = vrot.slane %v561, %v589
      %vm598 = vcmask 261120
      %v600 = vsel %vm598, %v532, 0
      %602 = vmatprep.subr.mxu0 %v534
      %603 = vmatpush1.msra.mxu0 %v533
      %604 = vmatprep.subr.mxu0 %v541
      %605 = vmatpush1.msra.mxu0 %v540
      %606 = vmatprep.subr.mxu0 %v548
      %607 = vmatpush1.msra.mxu0 %v547
      %608 = vmatprep.subr.mxu0 %v555
      %609 = vmatpush1.msra.mxu0 %v554
      %610 = vmatprep.subr.mxu0 0.0
      %611 = vmatpush1.msra.mxu0 0.0
      %612 = vmatprep.subr.mxu0 0.0
      %613 = vmatpush1.msra.mxu0 0.0
      %614 = vmatprep.subr.mxu0 0.0
      %615 = vmatpush1.msra.mxu0 0.0
      %616 = vmatprep.subr.mxu0 0.0
      %617 = vmatpush1.msra.mxu0 0.0
      %618 = vmatprep.subr.mxu0 0.0
      %619 = vmatpush1.msra.mxu0 0.0
      %620 = vmatprep.subr.mxu0 0.0
      %621 = vmatpush1.msra.mxu0 0.0
      %622 = vmatprep.subr.mxu0 0.0
      %623 = vmatpush1.msra.mxu0 0.0
      %624 = vmatprep.subr.mxu0 0.0
      %625 = vmatpush1.msra.mxu0 0.0
      %626 = vmatprep.subr.mxu0 0.0
      %627 = vmatpush1.msra.mxu0 0.0
      %628 = vmatprep.subr.mxu0 0.0
      %629 = vmatpush1.msra.mxu0 0.0
      %630 = vmatprep.subr.mxu0 0.0
      %631 = vmatpush1.msra.mxu0 0.0
      %632 = vmatprep.subr.mxu0 0.0
      %633 = vmatpush1.msra.mxu0 0.0
      %634 = vmatprep.subr.mxu0 0.0
      %635 = vmatpush1.msra.mxu0 0.0
      %636 = vmatprep.subr.mxu0 0.0
      %637 = vmatpush1.msra.mxu0 0.0
      %638 = vmatprep.subr.mxu0 0.0
      %639 = vmatpush1.msra.mxu0 0.0
      %640 = vmatprep.subr.mxu0 0.0
      %641 = vmatpush1.msra.mxu0 0.0
      %642 = vmatprep.subr.mxu0 0.0
      %643 = vmatpush1.msra.mxu0 0.0
      %644 = vmatprep.subr.mxu0 0.0
      %645 = vmatpush1.msra.mxu0 0.0
      %646 = vmatprep.subr.mxu0 0.0
      %647 = vmatpush1.msra.mxu0 0.0
      %648 = vmatprep.subr.mxu0 0.0
      %649 = vmatpush1.msra.mxu0 0.0
      %650 = vmatprep.subr.mxu0 0.0
      %651 = vmatpush1.msra.mxu0 0.0
      %652 = vmatprep.subr.mxu0 0.0
      %653 = vmatpush1.msra.mxu0 0.0
      %654 = vmatprep.subr.mxu0 0.0
      %655 = vmatpush1.msra.mxu0 0.0
      %656 = vmatprep.subr.mxu0 0.0
      %657 = vmatpush1.msra.mxu0 0.0
      %658 = vmatprep.subr.mxu0 0.0
      %659 = vmatpush1.msra.mxu0 0.0
      %660 = vmatprep.subr.mxu0 0.0
      %661 = vmatpush1.msra.mxu0 0.0
      %662 = vmatprep.subr.mxu0 0.0
      %663 = vmatpush1.msra.mxu0 0.0
      %664 = vmatprep.subr.mxu0 0.0
      %665 = vmatpush1.msra.mxu0 0.0
      %666 = vmatprep.mubr.f32.mxu0 0.0
      %667 = vmatmul.mubr.f32.gmra.mrb[0].mxu0 %v600
      %v668 = vpop.f32.mrb[0].mxu0
      %v669 = vadd.f32 %v566, %v668
      %v670 = vpop.f32.mrb[0].mxu0
      %v671 = vadd.f32 %v570, %v670
      %672 = vdwg.mxu0
      %673 = vmatprep.subr.mxu0 %v536
      %674 = vmatpush1.msra.mxu0 %v535
      %675 = vmatprep.subr.mxu0 %v543
      %676 = vmatpush1.msra.mxu0 %v542
      %677 = vmatprep.subr.mxu0 %v550
      %678 = vmatpush1.msra.mxu0 %v549
      %679 = vmatprep.subr.mxu0 %v557
      %680 = vmatpush1.msra.mxu0 %v556
      %681 = vmatprep.subr.mxu0 0.0
      %682 = vmatpush1.msra.mxu0 0.0
      %683 = vmatprep.subr.mxu0 0.0
      %684 = vmatpush1.msra.mxu0 0.0
      %685 = vmatprep.subr.mxu0 0.0
      %686 = vmatpush1.msra.mxu0 0.0
      %687 = vmatprep.subr.mxu0 0.0
      %688 = vmatpush1.msra.mxu0 0.0
      %689 = vmatprep.subr.mxu0 0.0
      %690 = vmatpush1.msra.mxu0 0.0
      %691 = vmatprep.subr.mxu0 0.0
      %692 = vmatpush1.msra.mxu0 0.0
      %693 = vmatprep.subr.mxu0 0.0
      %694 = vmatpush1.msra.mxu0 0.0
      %695 = vmatprep.subr.mxu0 0.0
      %696 = vmatpush1.msra.mxu0 0.0
      %697 = vmatprep.subr.mxu0 0.0
      %698 = vmatpush1.msra.mxu0 0.0
      %699 = vmatprep.subr.mxu0 0.0
      %700 = vmatpush1.msra.mxu0 0.0
      %701 = vmatprep.subr.mxu0 0.0
      %702 = vmatpush1.msra.mxu0 0.0
      %703 = vmatprep.subr.mxu0 0.0
      %704 = vmatpush1.msra.mxu0 0.0
      %705 = vmatprep.subr.mxu0 0.0
      %706 = vmatpush1.msra.mxu0 0.0
      %707 = vmatprep.subr.mxu0 0.0
      %708 = vmatpush1.msra.mxu0 0.0
      %709 = vmatprep.subr.mxu0 0.0
      %710 = vmatpush1.msra.mxu0 0.0
      %711 = vmatprep.subr.mxu0 0.0
      %712 = vmatpush1.msra.mxu0 0.0
      %713 = vmatprep.subr.mxu0 0.0
      %714 = vmatpush1.msra.mxu0 0.0
      %715 = vmatprep.subr.mxu0 0.0
      %716 = vmatpush1.msra.mxu0 0.0
      %717 = vmatprep.subr.mxu0 0.0
      %718 = vmatpush1.msra.mxu0 0.0
      %719 = vmatprep.subr.mxu0 0.0
      %720 = vmatpush1.msra.mxu0 0.0
      %721 = vmatprep.subr.mxu0 0.0
      %722 = vmatpush1.msra.mxu0 0.0
      %723 = vmatprep.subr.mxu0 0.0
      %724 = vmatpush1.msra.mxu0 0.0
      %725 = vmatprep.subr.mxu0 0.0
      %726 = vmatpush1.msra.mxu0 0.0
      %727 = vmatprep.subr.mxu0 0.0
      %728 = vmatpush1.msra.mxu0 0.0
      %729 = vmatprep.subr.mxu0 0.0
      %730 = vmatpush1.msra.mxu0 0.0
      %731 = vmatprep.subr.mxu0 0.0
      %732 = vmatpush1.msra.mxu0 0.0
      %733 = vmatprep.subr.mxu0 0.0
      %734 = vmatpush1.msra.mxu0 0.0
      %735 = vmatprep.subr.mxu0 0.0
      %736 = vmatpush1.msra.mxu0 0.0
      %737 = vmatprep.mubr.f32.mxu0 0.0
      %738 = vmatmul.mubr.f32.gmra.mrb[0].mxu0 %v600
      %v739 = vpop.f32.mrb[0].mxu0
      %v740 = vadd.f32 %v574, %v739
      %v741 = vpop.f32.mrb[0].mxu0
      %v742 = vadd.f32 %v578, %v741
      %743 = vdwg.mxu0
      %744 = vmatprep.subr.mxu0 %v538
      %745 = vmatpush1.msra.mxu0 %v537
      %746 = vmatprep.subr.mxu0 %v545
      %747 = vmatpush1.msra.mxu0 %v544
      %748 = vmatprep.subr.mxu0 %v552
      %749 = vmatpush1.msra.mxu0 %v551
      %750 = vmatprep.subr.mxu0 %v559
      %751 = vmatpush1.msra.mxu0 %v558
      %752 = vmatprep.subr.mxu0 0.0
      %753 = vmatpush1.msra.mxu0 0.0
      %754 = vmatprep.subr.mxu0 0.0
      %755 = vmatpush1.msra.mxu0 0.0
      %756 = vmatprep.subr.mxu0 0.0
      %757 = vmatpush1.msra.mxu0 0.0
      %758 = vmatprep.subr.mxu0 0.0
      %759 = vmatpush1.msra.mxu0 0.0
      %760 = vmatprep.subr.mxu0 0.0
      %761 = vmatpush1.msra.mxu0 0.0
      %762 = vmatprep.subr.mxu0 0.0
      %763 = vmatpush1.msra.mxu0 0.0
      %764 = vmatprep.subr.mxu0 0.0
      %765 = vmatpush1.msra.mxu0 0.0
      %766 = vmatprep.subr.mxu0 0.0
      %767 = vmatpush1.msra.mxu0 0.0
      %768 = vmatprep.subr.mxu0 0.0
      %769 = vmatpush1.msra.mxu0 0.0
      %770 = vmatprep.subr.mxu0 0.0
      %771 = vmatpush1.msra.mxu0 0.0
      %772 = vmatprep.subr.mxu0 0.0
      %773 = vmatpush1.msra.mxu0 0.0
      %774 = vmatprep.subr.mxu0 0.0
      %775 = vmatpush1.msra.mxu0 0.0
      %776 = vmatprep.subr.mxu0 0.0
      %777 = vmatpush1.msra.mxu0 0.0
      %778 = vmatprep.subr.mxu0 0.0
      %779 = vmatpush1.msra.mxu0 0.0
      %780 = vmatprep.subr.mxu0 0.0
      %781 = vmatpush1.msra.mxu0 0.0
      %782 = vmatprep.subr.mxu0 0.0
      %783 = vmatpush1.msra.mxu0 0.0
      %784 = vmatprep.subr.mxu0 0.0
      %785 = vmatpush1.msra.mxu0 0.0
      %786 = vmatprep.subr.mxu0 0.0
      %787 = vmatpush1.msra.mxu0 0.0
      %788 = vmatprep.subr.mxu0 0.0
      %789 = vmatpush1.msra.mxu0 0.0
      %790 = vmatprep.subr.mxu0 0.0
      %791 = vmatpush1.msra.mxu0 0.0
      %792 = vmatprep.subr.mxu0 0.0
      %793 = vmatpush1.msra.mxu0 0.0
      %794 = vmatprep.subr.mxu0 0.0
      %795 = vmatpush1.msra.mxu0 0.0
      %796 = vmatprep.subr.mxu0 0.0
      %797 = vmatpush1.msra.mxu0 0.0
      %798 = vmatprep.subr.mxu0 0.0
      %799 = vmatpush1.msra.mxu0 0.0
      %800 = vmatprep.subr.mxu0 0.0
      %801 = vmatpush1.msra.mxu0 0.0
      %802 = vmatprep.subr.mxu0 0.0
      %803 = vmatpush1.msra.mxu0 0.0
      %804 = vmatprep.subr.mxu0 0.0
      %805 = vmatpush1.msra.mxu0 0.0
      %806 = vmatprep.subr.mxu0 0.0
      %807 = vmatpush1.msra.mxu0 0.0
      %808 = vmatprep.mubr.f32.mxu0 0.0
      %809 = vmatmul.mubr.f32.gmra.mrb[0].mxu0 %v600
      %v810 = vpop.f32.mrb[0].mxu0
      %v811 = vadd.f32 %v582, %v810
      %v812 = vpop.f32.mrb[0].mxu0
      %v813 = vadd.f32 %v586, %v812
      %814 = vdwg.mxu0
      %815 = vmatprep.subr.mxu0 0.0
      %816 = vmatpush1.msra.mxu0 %v539
      %817 = vmatprep.subr.mxu0 0.0
      %818 = vmatpush1.msra.mxu0 %v546
      %819 = vmatprep.subr.mxu0 0.0
      %820 = vmatpush1.msra.mxu0 %v553
      %821 = vmatprep.subr.mxu0 0.0
      %822 = vmatpush1.msra.mxu0 %v560
      %823 = vmatprep.subr.mxu0 0.0
      %824 = vmatpush1.msra.mxu0 0.0
      %825 = vmatprep.subr.mxu0 0.0
      %826 = vmatpush1.msra.mxu0 0.0
      %827 = vmatprep.subr.mxu0 0.0
      %828 = vmatpush1.msra.mxu0 0.0
      %829 = vmatprep.subr.mxu0 0.0
      %830 = vmatpush1.msra.mxu0 0.0
      %831 = vmatprep.subr.mxu0 0.0
      %832 = vmatpush1.msra.mxu0 0.0
      %833 = vmatprep.subr.mxu0 0.0
      %834 = vmatpush1.msra.mxu0 0.0
      %835 = vmatprep.subr.mxu0 0.0
      %836 = vmatpush1.msra.mxu0 0.0
      %837 = vmatprep.subr.mxu0 0.0
      %838 = vmatpush1.msra.mxu0 0.0
      %839 = vmatprep.subr.mxu0 0.0
      %840 = vmatpush1.msra.mxu0 0.0
      %841 = vmatprep.subr.mxu0 0.0
      %842 = vmatpush1.msra.mxu0 0.0
      %843 = vmatprep.subr.mxu0 0.0
      %844 = vmatpush1.msra.mxu0 0.0
      %845 = vmatprep.subr.mxu0 0.0
      %846 = vmatpush1.msra.mxu0 0.0
      %847 = vmatprep.subr.mxu0 0.0
      %848 = vmatpush1.msra.mxu0 0.0
      %849 = vmatprep.subr.mxu0 0.0
      %850 = vmatpush1.msra.mxu0 0.0
      %851 = vmatprep.subr.mxu0 0.0
      %852 = vmatpush1.msra.mxu0 0.0
      %853 = vmatprep.subr.mxu0 0.0
      %854 = vmatpush1.msra.mxu0 0.0
      %855 = vmatprep.subr.mxu0 0.0
      %856 = vmatpush1.msra.mxu0 0.0
      %857 = vmatprep.subr.mxu0 0.0
      %858 = vmatpush1.msra.mxu0 0.0
      %859 = vmatprep.subr.mxu0 0.0
      %860 = vmatpush1.msra.mxu0 0.0
      %861 = vmatprep.subr.mxu0 0.0
      %862 = vmatpush1.msra.mxu0 0.0
      %863 = vmatprep.subr.mxu0 0.0
      %864 = vmatpush1.msra.mxu0 0.0
      %865 = vmatprep.subr.mxu0 0.0
      %866 = vmatpush1.msra.mxu0 0.0
      %867 = vmatprep.subr.mxu0 0.0
      %868 = vmatpush1.msra.mxu0 0.0
      %869 = vmatprep.subr.mxu0 0.0
      %870 = vmatpush1.msra.mxu0 0.0
      %871 = vmatprep.subr.mxu0 0.0
      %872 = vmatpush1.msra.mxu0 0.0
      %873 = vmatprep.subr.mxu0 0.0
      %874 = vmatpush1.msra.mxu0 0.0
      %875 = vmatprep.subr.mxu0 0.0
      %876 = vmatpush1.msra.mxu0 0.0
      %877 = vmatprep.subr.mxu0 0.0
      %878 = vmatpush1.msra.mxu0 0.0
      %879 = vmatprep.mubr.f32.mxu0 0.0
      %880 = vmatmul.mubr.f32.gmra.mrb[0].mxu0 %v600
      %v881 = vpop.f32.mrb[0].mxu0
      %v882 = vadd.f32 %v590, %v881
      %v883 = vpop.f32.mrb[0].mxu0
      %884 = vdwg.mxu0
      %v885 = vmax.f32 %v669, 0.0
      %v886 = vmax.f32 %v671, 0.0
      %v887 = vmax.f32 %v740, 0.0
      %v888 = vmax.f32 %v742, 0.0
      %v889 = vmax.f32 %v811, 0.0
      %v890 = vmax.f32 %v813, 0.0
      %v891 = vmax.f32 %v882, 0.0
      %892 = vst.msk [vmem:[#allocation2] sm:$0xff] %vm598, %v885
      %894 = vrot.lane.b32.xlu0 %v885, 96
      %v895 = vpop.permute.xlu0 %894
      %897 = vst.msk [vmem:[#allocation2 + $0x8] sm:$0xff] %vm598, %v895
      %898 = vrot.lane.b32.xlu0 %v885, 64
      %v899 = vpop.permute.xlu0 %898
      %901 = vst.msk [vmem:[#allocation2 + $0x10] sm:$0xff] %vm598, %v899
      %902 = vrot.lane.b32.xlu0 %v885, 32
      %v903 = vpop.permute.xlu0 %902
      %905 = vst.msk [vmem:[#allocation2 + $0x18] sm:$0xff] %vm598, %v903
      %906 = vst.msk [vmem:[#allocation2 + $0x20] sm:$0xff] %vm598, %v886
      %908 = vrot.lane.b32.xlu0 %v886, 96
      %v909 = vpop.permute.xlu0 %908
      %911 = vst.msk [vmem:[#allocation2 + $0x28] sm:$0xff] %vm598, %v909
      %912 = vrot.lane.b32.xlu0 %v886, 64
      %v913 = vpop.permute.xlu0 %912
      %915 = vst.msk [vmem:[#allocation2 + $0x30] sm:$0xff] %vm598, %v913
      %916 = vrot.lane.b32.xlu0 %v886, 32
      %v917 = vpop.permute.xlu0 %916
      %919 = vst.msk [vmem:[#allocation2 + $0x38] sm:$0xff] %vm598, %v917
      %920 = vst.msk [vmem:[#allocation2 + $0x40] sm:$0xff] %vm598, %v887
      %922 = vrot.lane.b32.xlu0 %v887, 96
      %v923 = vpop.permute.xlu0 %922
      %925 = vst.msk [vmem:[#allocation2 + $0x48] sm:$0xff] %vm598, %v923
      %926 = vrot.lane.b32.xlu0 %v887, 64
      %v927 = vpop.permute.xlu0 %926
      %929 = vst.msk [vmem:[#allocation2 + $0x50] sm:$0xff] %vm598, %v927
      %930 = vrot.lane.b32.xlu0 %v887, 32
      %v931 = vpop.permute.xlu0 %930
      %933 = vst.msk [vmem:[#allocation2 + $0x58] sm:$0xff] %vm598, %v931
      %934 = vst.msk [vmem:[#allocation2 + $0x60] sm:$0xff] %vm598, %v888
      %936 = vrot.lane.b32.xlu0 %v888, 96
      %v937 = vpop.permute.xlu0 %936
      %939 = vst.msk [vmem:[#allocation2 + $0x68] sm:$0xff] %vm598, %v937
      %940 = vrot.lane.b32.xlu0 %v888, 64
      %v941 = vpop.permute.xlu0 %940
      %943 = vst.msk [vmem:[#allocation2 + $0x70] sm:$0xff] %vm598, %v941
      %944 = vrot.lane.b32.xlu0 %v888, 32
      %v945 = vpop.permute.xlu0 %944
      %947 = vst.msk [vmem:[#allocation2 + $0x78] sm:$0xff] %vm598, %v945
      %948 = vst.msk [vmem:[#allocation2 + $0x80] sm:$0xff] %vm598, %v889
      %950 = vrot.lane.b32.xlu0 %v889, 96
      %v951 = vpop.permute.xlu0 %950
      %953 = vst.msk [vmem:[#allocation2 + $0x88] sm:$0xff] %vm598, %v951
      %954 = vrot.lane.b32.xlu0 %v889, 64
      %v955 = vpop.permute.xlu0 %954
      %957 = vst.msk [vmem:[#allocation2 + $0x90] sm:$0xff] %vm598, %v955
      %958 = vrot.lane.b32.xlu0 %v889, 32
      %v959 = vpop.permute.xlu0 %958
      %961 = vst.msk [vmem:[#allocation2 + $0x98] sm:$0xff] %vm598, %v959
      %962 = vst.msk [vmem:[#allocation2 + $0xa0] sm:$0xff] %vm598, %v890
      %964 = vrot.lane.b32.xlu0 %v890, 96
      %v965 = vpop.permute.xlu0 %964
      %967 = vst.msk [vmem:[#allocation2 + $0xa8] sm:$0xff] %vm598, %v965
      %968 = vrot.lane.b32.xlu0 %v890, 64
      %v969 = vpop.permute.xlu0 %968
      %971 = vst.msk [vmem:[#allocation2 + $0xb0] sm:$0xff] %vm598, %v969
      %972 = vrot.lane.b32.xlu0 %v890, 32
      %v973 = vpop.permute.xlu0 %972
      %975 = vst.msk [vmem:[#allocation2 + $0xb8] sm:$0xff] %vm598, %v973
      %976 = vst.msk [vmem:[#allocation2 + $0xc0] sm:$0xff] %vm598, %v891
      %978 = vrot.lane.b32.xlu0 %v891, 96
      %v979 = vpop.permute.xlu0 %978
      %981 = vst.msk [vmem:[#allocation2 + $0xc8] sm:$0xff] %vm598, %v979
      %982 = vrot.lane.b32.xlu0 %v891, 64
      %v983 = vpop.permute.xlu0 %982
      %985 = vst.msk [vmem:[#allocation2 + $0xd0] sm:$0xff] %vm598, %v983
      %v986 = vld [vmem:[#allocation2] sm:$0xff]
      %v987 = vld [vmem:[#allocation2 + $0x8] sm:$0xff]
      %v988 = vld [vmem:[#allocation2 + $0x10] sm:$0xff]
      %v989 = vld [vmem:[#allocation2 + $0x18] sm:$0xff]
      %v990 = vld [vmem:[#allocation2 + $0x20] sm:$0xff]
      %v991 = vld [vmem:[#allocation2 + $0x28] sm:$0xff]
      %v992 = vld [vmem:[#allocation2 + $0x30] sm:$0xff]
      %v993 = vld [vmem:[#allocation2 + $0x38] sm:$0xff]
      %v994 = vld [vmem:[#allocation2 + $0x40] sm:$0xff]
      %v995 = vld [vmem:[#allocation2 + $0x48] sm:$0xff]
      %v996 = vld [vmem:[#allocation2 + $0x50] sm:$0xff]
      %v997 = vld [vmem:[#allocation2 + $0x58] sm:$0xff]
      %v998 = vld [vmem:[#allocation2 + $0x60] sm:$0xff]
      %v999 = vld [vmem:[#allocation2 + $0x68] sm:$0xff]
      %v1000 = vld [vmem:[#allocation2 + $0x70] sm:$0xff]
      %v1001 = vld [vmem:[#allocation2 + $0x78] sm:$0xff]
      %v1002 = vld [vmem:[#allocation2 + $0x80] sm:$0xff]
      %v1003 = vld [vmem:[#allocation2 + $0x88] sm:$0xff]
      %v1004 = vld [vmem:[#allocation2 + $0x90] sm:$0xff]
      %v1005 = vld [vmem:[#allocation2 + $0x98] sm:$0xff]
      %v1006 = vld [vmem:[#allocation2 + $0xa0] sm:$0xff]
      %v1007 = vld [vmem:[#allocation2 + $0xa8] sm:$0xff]
      %v1008 = vld [vmem:[#allocation2 + $0xb0] sm:$0xff]
      %v1009 = vld [vmem:[#allocation2 + $0xb8] sm:$0xff]
      %v1010 = vld [vmem:[#allocation2 + $0xc0] sm:$0xff]
      %v1011 = vld [vmem:[#allocation2 + $0xc8] sm:$0xff]
      %v1012 = vld [vmem:[#allocation2 + $0xd0] sm:$0xff]
      %v1013 = vld [vmem:[%s3] sm:$0xff]
      %v1014 = vld [vmem:[%s3 + $0x8] sm:$0xff]
      %v1015 = vld [vmem:[%s3 + $0x10] sm:$0xff]
      %v1016 = vld [vmem:[%s3 + $0x18] sm:$0xff]
      %v1017 = vld [vmem:[%s3 + $0x20] sm:$0xff]
      %v1018 = vld [vmem:[%s3 + $0x28] sm:$0xff]
      %v1019 = vld [vmem:[%s3 + $0x30] sm:$0x7]
      %v1020 = vld [vmem:[%s3 + $0x38] sm:$0x7]
      %vm1021 = vcmask 719872
      %v1023 = vsel %vm1021, %v1014, 0
      %v1026 = vsel %vm1021, %v1016, 0
      %v1029 = vsel %vm1021, %v1018, 0
      %v1032 = vsel %vm1021, %v1020, 0
      %1034 = vmatprep.subr.mxu0 0.0
      %1035 = vmatpush1.msra.mxu0 %v986
      %1036 = vmatprep.subr.mxu0 0.0
      %1037 = vmatpush1.msra.mxu0 %v987
      %1038 = vmatprep.subr.mxu0 0.0
      %1039 = vmatpush1.msra.mxu0 %v988
      %1040 = vmatprep.subr.mxu0 0.0
      %1041 = vmatpush1.msra.mxu0 %v989
      %1042 = vmatprep.subr.mxu0 0.0
      %1043 = vmatpush1.msra.mxu0 %v990
      %1044 = vmatprep.subr.mxu0 0.0
      %1045 = vmatpush1.msra.mxu0 %v991
      %1046 = vmatprep.subr.mxu0 0.0
      %1047 = vmatpush1.msra.mxu0 %v992
      %1048 = vmatprep.subr.mxu0 0.0
      %1049 = vmatpush1.msra.mxu0 %v993
      %1050 = vmatprep.subr.mxu0 0.0
      %1051 = vmatpush1.msra.mxu0 %v994
      %1052 = vmatprep.subr.mxu0 0.0
      %1053 = vmatpush1.msra.mxu0 %v995
      %1054 = vmatprep.subr.mxu0 0.0
      %1055 = vmatpush1.msra.mxu0 %v996
      %1056 = vmatprep.subr.mxu0 0.0
      %1057 = vmatpush1.msra.mxu0 %v997
      %1058 = vmatprep.subr.mxu0 0.0
      %1059 = vmatpush1.msra.mxu0 %v998
      %1060 = vmatprep.subr.mxu0 0.0
      %1061 = vmatpush1.msra.mxu0 %v999
      %1062 = vmatprep.subr.mxu0 0.0
      %1063 = vmatpush1.msra.mxu0 %v1000
      %1064 = vmatprep.subr.mxu0 0.0
      %1065 = vmatpush1.msra.mxu0 %v1001
      %1066 = vmatprep.subr.mxu0 0.0
      %1067 = vmatpush1.msra.mxu0 %v1002
      %1068 = vmatprep.subr.mxu0 0.0
      %1069 = vmatpush1.msra.mxu0 %v1003
      %1070 = vmatprep.subr.mxu0 0.0
      %1071 = vmatpush1.msra.mxu0 %v1004
      %1072 = vmatprep.subr.mxu0 0.0
      %1073 = vmatpush1.msra.mxu0 %v1005
      %1074 = vmatprep.subr.mxu0 0.0
      %1075 = vmatpush1.msra.mxu0 %v1006
      %1076 = vmatprep.subr.mxu0 0.0
      %1077 = vmatpush1.msra.mxu0 %v1007
      %1078 = vmatprep.subr.mxu0 0.0
      %1079 = vmatpush1.msra.mxu0 %v1008
      %1080 = vmatprep.subr.mxu0 0.0
      %1081 = vmatpush1.msra.mxu0 %v1009
      %1082 = vmatprep.subr.mxu0 0.0
      %1083 = vmatpush1.msra.mxu0 %v1010
      %1084 = vmatprep.subr.mxu0 0.0
      %1085 = vmatpush1.msra.mxu0 %v1011
      %1086 = vmatprep.subr.mxu0 0.0
      %1087 = vmatpush1.msra.mxu0 %v1012
      %1088 = vmatprep.subr.mxu0 0.0
      %1089 = vmatpush1.msra.mxu0 0.0
      %1090 = vmatprep.subr.mxu0 0.0
      %1091 = vmatpush1.msra.mxu0 0.0
      %1092 = vmatprep.subr.mxu0 0.0
      %1093 = vmatpush1.msra.mxu0 0.0
      %1094 = vmatprep.subr.mxu0 0.0
      %1095 = vmatpush1.msra.mxu0 0.0
      %1096 = vmatprep.subr.mxu0 0.0
      %1097 = vmatpush1.msra.mxu0 0.0
      %1098 = vmatprep.mubr.f32.mxu0 %v1023
      %1099 = vmatmul.mubr.f32.gmra.mrb[0].mxu0 %v1013
      %v1100 = vpop.f32.mrb[0].mxu0
      %v1101 = vadd.f32 0.0, %v1100
      %v1102 = vpop.f32.mrb[0].mxu0
      %1103 = vmatprep.mubr.f32.mxu0 %v1026
      %1104 = vmatmul.mubr.f32.gmra.mrb[0].mxu0 %v1015
      %v1105 = vpop.f32.mrb[0].mxu0
      %v1106 = vadd.f32 0.0, %v1105
      %v1107 = vpop.f32.mrb[0].mxu0
      %1108 = vmatprep.mubr.f32.mxu0 %v1029
      %1109 = vmatmul.mubr.f32.gmra.mrb[0].mxu0 %v1017
      %v1110 = vpop.f32.mrb[0].mxu0
      %v1111 = vadd.f32 0.0, %v1110
      %v1112 = vpop.f32.mrb[0].mxu0
      %1113 = vmatprep.mubr.f32.mxu0 %v1032
      %1114 = vmatmul.mubr.f32.gmra.mrb[0].mxu0 %v1019
      %v1115 = vpop.f32.mrb[0].mxu0
      %v1116 = vadd.f32 0.0, %v1115
      %v1117 = vpop.f32.mrb[0].mxu0
      %1118 = vdwg.mxu0
      %1119 = vst.msk [vmem:[%s526] sm:$0xff] %vm598, %v1101
      %1120 = vst.msk [vmem:[%s526 + $0x8] sm:$0xff] %vm598, %v1106
      %1121 = vst.msk [vmem:[%s526 + $0x10] sm:$0xff] %vm598, %v1111
      %vm1122 = vcmask 256000
      %1123 = vst.msk [vmem:[%s526 + $0x18] sm:$0x7] %vm1122, %v1116
      %v1124 = vld [vmem:[%s8] sm:$0xff]
      %v1125 = vld [vmem:[%s8 + $0x8] sm:$0xff]
      %v1126 = vld [vmem:[%s8 + $0x10] sm:$0xff]
      %v1127 = vld [vmem:[%s8 + $0x18] sm:$0xff]
      %v1128 = vld [vmem:[%s9] sm:$0x1]
      %v1130 = vlaneseq
      %v1131 = vshrl.u32 %v1130, 7
      %v1132 = vsub.s32 0, %v1131
      %v1133 = vrot.slane %v1128, %v1132
      %1135 = vmatprep.subr.mxu0 0.0
      %1136 = vmatpush1.msra.mxu0 %v1124
      %1137 = vmatprep.subr.mxu0 0.0
      %1138 = vmatpush1.msra.mxu0 %v1125
      %1139 = vmatprep.subr.mxu0 0.0
      %1140 = vmatpush1.msra.mxu0 %v1126
      %1141 = vmatprep.subr.mxu0 0.0
      %1142 = vmatpush1.msra.mxu0 %v1127
      %1143 = vmatprep.subr.mxu0 0.0
      %1144 = vmatpush1.msra.mxu0 0.0
      %1145 = vmatprep.subr.mxu0 0.0
      %1146 = vmatpush1.msra.mxu0 0.0
      %1147 = vmatprep.subr.mxu0 0.0
      %1148 = vmatpush1.msra.mxu0 0.0
      %1149 = vmatprep.subr.mxu0 0.0
      %1150 = vmatpush1.msra.mxu0 0.0
      %1151 = vmatprep.subr.mxu0 0.0
      %1152 = vmatpush1.msra.mxu0 0.0
      %1153 = vmatprep.subr.mxu0 0.0
      %1154 = vmatpush1.msra.mxu0 0.0
      %1155 = vmatprep.subr.mxu0 0.0
      %1156 = vmatpush1.msra.mxu0 0.0
      %1157 = vmatprep.subr.mxu0 0.0
      %1158 = vmatpush1.msra.mxu0 0.0
      %1159 = vmatprep.subr.mxu0 0.0
      %1160 = vmatpush1.msra.mxu0 0.0
      %1161 = vmatprep.subr.mxu0 0.0
      %1162 = vmatpush1.msra.mxu0 0.0
      %1163 = vmatprep.subr.mxu0 0.0
      %1164 = vmatpush1.msra.mxu0 0.0
      %1165 = vmatprep.subr.mxu0 0.0
      %1166 = vmatpush1.msra.mxu0 0.0
      %1167 = vmatprep.subr.mxu0 0.0
      %1168 = vmatpush1.msra.mxu0 0.0
      %1169 = vmatprep.subr.mxu0 0.0
      %1170 = vmatpush1.msra.mxu0 0.0
      %1171 = vmatprep.subr.mxu0 0.0
      %1172 = vmatpush1.msra.mxu0 0.0
      %1173 = vmatprep.subr.mxu0 0.0
      %1174 = vmatpush1.msra.mxu0 0.0
      %1175 = vmatprep.subr.mxu0 0.0
      %1176 = vmatpush1.msra.mxu0 0.0
      %1177 = vmatprep.subr.mxu0 0.0
      %1178 = vmatpush1.msra.mxu0 0.0
      %1179 = vmatprep.subr.mxu0 0.0
      %1180 = vmatpush1.msra.mxu0 0.0
      %1181 = vmatprep.subr.mxu0 0.0
      %1182 = vmatpush1.msra.mxu0 0.0
      %1183 = vmatprep.subr.mxu0 0.0
      %1184 = vmatpush1.msra.mxu0 0.0
      %1185 = vmatprep.subr.mxu0 0.0
      %1186 = vmatpush1.msra.mxu0 0.0
      %1187 = vmatprep.subr.mxu0 0.0
      %1188 = vmatpush1.msra.mxu0 0.0
      %1189 = vmatprep.subr.mxu0 0.0
      %1190 = vmatpush1.msra.mxu0 0.0
      %1191 = vmatprep.subr.mxu0 0.0
      %1192 = vmatpush1.msra.mxu0 0.0
      %1193 = vmatprep.subr.mxu0 0.0
      %1194 = vmatpush1.msra.mxu0 0.0
      %1195 = vmatprep.subr.mxu0 0.0
      %1196 = vmatpush1.msra.mxu0 0.0
      %1197 = vmatprep.subr.mxu0 0.0
      %1198 = vmatpush1.msra.mxu0 0.0
      %1199 = vmatprep.mubr.f32.mxu0 0.0
      %1200 = vmatmul.mubr.f32.gmra.mrb[0].mxu0 %v600
      %v1201 = vpop.f32.mrb[0].mxu0
      %v1202 = vadd.f32 %v1133, %v1201
      %v1203 = vpop.f32.mrb[0].mxu0
      %1204 = vdwg.mxu0
      %v1205 = vld [vmem:[%s6] sm:$0xff]
      %v1206 = vld [vmem:[%s6 + $0x8] sm:$0xff]
      %v1207 = vld [vmem:[%s6 + $0x10] sm:$0xff]
      %v1208 = vld [vmem:[%s6 + $0x18] sm:$0xff]
      %v1209 = vld [vmem:[%s7] sm:$0x1]
      %v1211 = vlaneseq
      %v1212 = vshrl.u32 %v1211, 7
      %v1213 = vsub.s32 0, %v1212
      %v1214 = vrot.slane %v1209, %v1213
      %v1217 = vsel %vm598, %v986, 0
      %v1220 = vsel %vm598, %v987, 0
      %v1223 = vsel %vm598, %v988, 0
      %v1226 = vsel %vm598, %v989, 0
      %v1229 = vsel %vm598, %v990, 0
      %v1232 = vsel %vm598, %v991, 0
      %v1235 = vsel %vm598, %v992, 0
      %v1238 = vsel %vm598, %v993, 0
      %v1241 = vsel %vm598, %v994, 0
      %v1244 = vsel %vm598, %v995, 0
      %v1247 = vsel %vm598, %v996, 0
      %v1250 = vsel %vm598, %v997, 0
      %v1253 = vsel %vm598, %v998, 0
      %v1256 = vsel %vm598, %v999, 0
      %v1259 = vsel %vm598, %v1000, 0
      %v1262 = vsel %vm598, %v1001, 0
      %v1265 = vsel %vm598, %v1002, 0
      %v1268 = vsel %vm598, %v1003, 0
      %v1271 = vsel %vm598, %v1004, 0
      %v1274 = vsel %vm598, %v1005, 0
      %v1277 = vsel %vm598, %v1006, 0
      %v1280 = vsel %vm598, %v1007, 0
      %v1283 = vsel %vm598, %v1008, 0
      %v1286 = vsel %vm598, %v1009, 0
      %v1289 = vsel %vm598, %v1010, 0
      %v1292 = vsel %vm598, %v1011, 0
      %v1295 = vsel %vm598, %v1012, 0
      %1297 = vmatprep.subr.mxu0 0.0
      %1298 = vmatpush1.msra.mxu0 %v1205
      %1299 = vmatprep.subr.mxu0 0.0
      %1300 = vmatpush1.msra.mxu0 %v1206
      %1301 = vmatprep.subr.mxu0 0.0
      %1302 = vmatpush1.msra.mxu0 %v1207
      %1303 = vmatprep.subr.mxu0 0.0
      %1304 = vmatpush1.msra.mxu0 %v1208
      %1305 = vmatprep.subr.mxu0 0.0
      %1306 = vmatpush1.msra.mxu0 0.0
      %1307 = vmatprep.subr.mxu0 0.0
      %1308 = vmatpush1.msra.mxu0 0.0
      %1309 = vmatprep.subr.mxu0 0.0
      %1310 = vmatpush1.msra.mxu0 0.0
      %1311 = vmatprep.subr.mxu0 0.0
      %1312 = vmatpush1.msra.mxu0 0.0
      %1313 = vmatprep.subr.mxu0 0.0
      %1314 = vmatpush1.msra.mxu0 0.0
      %1315 = vmatprep.subr.mxu0 0.0
      %1316 = vmatpush1.msra.mxu0 0.0
      %1317 = vmatprep.subr.mxu0 0.0
      %1318 = vmatpush1.msra.mxu0 0.0
      %1319 = vmatprep.subr.mxu0 0.0
      %1320 = vmatpush1.msra.mxu0 0.0
      %1321 = vmatprep.subr.mxu0 0.0
      %1322 = vmatpush1.msra.mxu0 0.0
      %1323 = vmatprep.subr.mxu0 0.0
      %1324 = vmatpush1.msra.mxu0 0.0
      %1325 = vmatprep.subr.mxu0 0.0
      %1326 = vmatpush1.msra.mxu0 0.0
      %1327 = vmatprep.subr.mxu0 0.0
      %1328 = vmatpush1.msra.mxu0 0.0
      %1329 = vmatprep.subr.mxu0 0.0
      %1330 = vmatpush1.msra.mxu0 0.0
      %1331 = vmatprep.subr.mxu0 0.0
      %1332 = vmatpush1.msra.mxu0 0.0
      %1333 = vmatprep.subr.mxu0 0.0
      %1334 = vmatpush1.msra.mxu0 0.0
      %1335 = vmatprep.subr.mxu0 0.0
      %1336 = vmatpush1.msra.mxu0 0.0
      %1337 = vmatprep.subr.mxu0 0.0
      %1338 = vmatpush1.msra.mxu0 0.0
      %1339 = vmatprep.subr.mxu0 0.0
      %1340 = vmatpush1.msra.mxu0 0.0
      %1341 = vmatprep.subr.mxu0 0.0
      %1342 = vmatpush1.msra.mxu0 0.0
      %1343 = vmatprep.subr.mxu0 0.0
      %1344 = vmatpush1.msra.mxu0 0.0
      %1345 = vmatprep.subr.mxu0 0.0
      %1346 = vmatpush1.msra.mxu0 0.0
      %1347 = vmatprep.subr.mxu0 0.0
      %1348 = vmatpush1.msra.mxu0 0.0
      %1349 = vmatprep.subr.mxu0 0.0
      %1350 = vmatpush1.msra.mxu0 0.0
      %1351 = vmatprep.subr.mxu0 0.0
      %1352 = vmatpush1.msra.mxu0 0.0
      %1353 = vmatprep.subr.mxu0 0.0
      %1354 = vmatpush1.msra.mxu0 0.0
      %1355 = vmatprep.subr.mxu0 0.0
      %1356 = vmatpush1.msra.mxu0 0.0
      %1357 = vmatprep.subr.mxu0 0.0
      %1358 = vmatpush1.msra.mxu0 0.0
      %1359 = vmatprep.subr.mxu0 0.0
      %1360 = vmatpush1.msra.mxu0 0.0
      %1361 = vmatprep.mubr.f32.mxu0 0.0
      %1362 = vmatmul.mubr.f32.gmra.mrb[0].mxu0 %v1217
      %v1363 = vpop.f32.mrb[0].mxu0
      %v1364 = vadd.f32 %v1214, %v1363
      %v1365 = vpop.f32.mrb[0].mxu0
      %1366 = vmatprep.mubr.f32.mxu0 0.0
      %1367 = vmatmul.mubr.f32.gmra.mrb[0].mxu0 %v1220
      %v1368 = vpop.f32.mrb[0].mxu0
      %v1369 = vadd.f32 %v1214, %v1368
      %v1370 = vpop.f32.mrb[0].mxu0
      %1371 = vmatprep.mubr.f32.mxu0 0.0
      %1372 = vmatmul.mubr.f32.gmra.mrb[0].mxu0 %v1223
      %v1373 = vpop.f32.mrb[0].mxu0
      %v1374 = vadd.f32 %v1214, %v1373
      %v1375 = vpop.f32.mrb[0].mxu0
      %1376 = vmatprep.mubr.f32.mxu0 0.0
      %1377 = vmatmul.mubr.f32.gmra.mrb[0].mxu0 %v1226
      %v1378 = vpop.f32.mrb[0].mxu0
      %v1379 = vadd.f32 %v1214, %v1378
      %v1380 = vpop.f32.mrb[0].mxu0
      %1381 = vmatprep.mubr.f32.mxu0 0.0
      %1382 = vmatmul.mubr.f32.gmra.mrb[0].mxu0 %v1229
      %v1383 = vpop.f32.mrb[0].mxu0
      %v1384 = vadd.f32 %v1214, %v1383
      %v1385 = vpop.f32.mrb[0].mxu0
      %1386 = vmatprep.mubr.f32.mxu0 0.0
      %1387 = vmatmul.mubr.f32.gmra.mrb[0].mxu0 %v1232
      %v1388 = vpop.f32.mrb[0].mxu0
      %v1389 = vadd.f32 %v1214, %v1388
      %v1390 = vpop.f32.mrb[0].mxu0
      %1391 = vmatprep.mubr.f32.mxu0 0.0
      %1392 = vmatmul.mubr.f32.gmra.mrb[0].mxu0 %v1235
      %v1393 = vpop.f32.mrb[0].mxu0
      %v1394 = vadd.f32 %v1214, %v1393
      %v1395 = vpop.f32.mrb[0].mxu0
      %1396 = vmatprep.mubr.f32.mxu0 0.0
      %1397 = vmatmul.mubr.f32.gmra.mrb[0].mxu0 %v1238
      %v1398 = vpop.f32.mrb[0].mxu0
      %v1399 = vadd.f32 %v1214, %v1398
      %v1400 = vpop.f32.mrb[0].mxu0
      %1401 = vmatprep.mubr.f32.mxu0 0.0
      %1402 = vmatmul.mubr.f32.gmra.mrb[0].mxu0 %v1241
      %v1403 = vpop.f32.mrb[0].mxu0
      %v1404 = vadd.f32 %v1214, %v1403
      %v1405 = vpop.f32.mrb[0].mxu0
      %1406 = vmatprep.mubr.f32.mxu0 0.0
      %1407 = vmatmul.mubr.f32.gmra.mrb[0].mxu0 %v1244
      %v1408 = vpop.f32.mrb[0].mxu0
      %v1409 = vadd.f32 %v1214, %v1408
      %v1410 = vpop.f32.mrb[0].mxu0
      %1411 = vmatprep.mubr.f32.mxu0 0.0
      %1412 = vmatmul.mubr.f32.gmra.mrb[0].mxu0 %v1247
      %v1413 = vpop.f32.mrb[0].mxu0
      %v1414 = vadd.f32 %v1214, %v1413
      %v1415 = vpop.f32.mrb[0].mxu0
      %1416 = vmatprep.mubr.f32.mxu0 0.0
      %1417 = vmatmul.mubr.f32.gmra.mrb[0].mxu0 %v1250
      %v1418 = vpop.f32.mrb[0].mxu0
      %v1419 = vadd.f32 %v1214, %v1418
      %v1420 = vpop.f32.mrb[0].mxu0
      %1421 = vmatprep.mubr.f32.mxu0 0.0
      %1422 = vmatmul.mubr.f32.gmra.mrb[0].mxu0 %v1253
      %v1423 = vpop.f32.mrb[0].mxu0
      %v1424 = vadd.f32 %v1214, %v1423
      %v1425 = vpop.f32.mrb[0].mxu0
      %1426 = vmatprep.mubr.f32.mxu0 0.0
      %1427 = vmatmul.mubr.f32.gmra.mrb[0].mxu0 %v1256
      %v1428 = vpop.f32.mrb[0].mxu0
      %v1429 = vadd.f32 %v1214, %v1428
      %v1430 = vpop.f32.mrb[0].mxu0
      %1431 = vmatprep.mubr.f32.mxu0 0.0
      %1432 = vmatmul.mubr.f32.gmra.mrb[0].mxu0 %v1259
      %v1433 = vpop.f32.mrb[0].mxu0
      %v1434 = vadd.f32 %v1214, %v1433
      %v1435 = vpop.f32.mrb[0].mxu0
      %1436 = vmatprep.mubr.f32.mxu0 0.0
      %1437 = vmatmul.mubr.f32.gmra.mrb[0].mxu0 %v1262
      %v1438 = vpop.f32.mrb[0].mxu0
      %v1439 = vadd.f32 %v1214, %v1438
      %v1440 = vpop.f32.mrb[0].mxu0
      %1441 = vmatprep.mubr.f32.mxu0 0.0
      %1442 = vmatmul.mubr.f32.gmra.mrb[0].mxu0 %v1265
      %v1443 = vpop.f32.mrb[0].mxu0
      %v1444 = vadd.f32 %v1214, %v1443
      %v1445 = vpop.f32.mrb[0].mxu0
      %1446 = vmatprep.mubr.f32.mxu0 0.0
      %1447 = vmatmul.mubr.f32.gmra.mrb[0].mxu0 %v1268
      %v1448 = vpop.f32.mrb[0].mxu0
      %v1449 = vadd.f32 %v1214, %v1448
      %v1450 = vpop.f32.mrb[0].mxu0
      %1451 = vmatprep.mubr.f32.mxu0 0.0
      %1452 = vmatmul.mubr.f32.gmra.mrb[0].mxu0 %v1271
      %v1453 = vpop.f32.mrb[0].mxu0
      %v1454 = vadd.f32 %v1214, %v1453
      %v1455 = vpop.f32.mrb[0].mxu0
      %1456 = vmatprep.mubr.f32.mxu0 0.0
      %1457 = vmatmul.mubr.f32.gmra.mrb[0].mxu0 %v1274
      %v1458 = vpop.f32.mrb[0].mxu0
      %v1459 = vadd.f32 %v1214, %v1458
      %v1460 = vpop.f32.mrb[0].mxu0
      %1461 = vmatprep.mubr.f32.mxu0 0.0
      %1462 = vmatmul.mubr.f32.gmra.mrb[0].mxu0 %v1277
      %v1463 = vpop.f32.mrb[0].mxu0
      %v1464 = vadd.f32 %v1214, %v1463
      %v1465 = vpop.f32.mrb[0].mxu0
      %1466 = vmatprep.mubr.f32.mxu0 0.0
      %1467 = vmatmul.mubr.f32.gmra.mrb[0].mxu0 %v1280
      %v1468 = vpop.f32.mrb[0].mxu0
      %v1469 = vadd.f32 %v1214, %v1468
      %v1470 = vpop.f32.mrb[0].mxu0
      %1471 = vmatprep.mubr.f32.mxu0 0.0
      %1472 = vmatmul.mubr.f32.gmra.mrb[0].mxu0 %v1283
      %v1473 = vpop.f32.mrb[0].mxu0
      %v1474 = vadd.f32 %v1214, %v1473
      %v1475 = vpop.f32.mrb[0].mxu0
      %1476 = vmatprep.mubr.f32.mxu0 0.0
      %1477 = vmatmul.mubr.f32.gmra.mrb[0].mxu0 %v1286
      %v1478 = vpop.f32.mrb[0].mxu0
      %v1479 = vadd.f32 %v1214, %v1478
      %v1480 = vpop.f32.mrb[0].mxu0
      %1481 = vmatprep.mubr.f32.mxu0 0.0
      %1482 = vmatmul.mubr.f32.gmra.mrb[0].mxu0 %v1289
      %v1483 = vpop.f32.mrb[0].mxu0
      %v1484 = vadd.f32 %v1214, %v1483
      %v1485 = vpop.f32.mrb[0].mxu0
      %1486 = vmatprep.mubr.f32.mxu0 0.0
      %1487 = vmatmul.mubr.f32.gmra.mrb[0].mxu0 %v1292
      %v1488 = vpop.f32.mrb[0].mxu0
      %v1489 = vadd.f32 %v1214, %v1488
      %v1490 = vpop.f32.mrb[0].mxu0
      %1491 = vmatprep.mubr.f32.mxu0 0.0
      %1492 = vmatmul.mubr.f32.gmra.mrb[0].mxu0 %v1295
      %v1493 = vpop.f32.mrb[0].mxu0
      %v1494 = vadd.f32 %v1214, %v1493
      %v1495 = vpop.f32.mrb[0].mxu0
      %1496 = vdwg.mxu0
      %vm1497 = vcmask 130048
      %v1499 = vsel %vm1497, %v1364, 0
      %v1502 = vsel %vm1497, %v1369, 0
      %v1505 = vsel %vm1497, %v1374, 0
      %v1508 = vsel %vm1497, %v1379, 0
      %v1511 = vsel %vm1497, %v1384, 0
      %v1514 = vsel %vm1497, %v1389, 0
      %v1517 = vsel %vm1497, %v1394, 0
      %v1520 = vsel %vm1497, %v1399, 0
      %v1523 = vsel %vm1497, %v1404, 0
      %v1526 = vsel %vm1497, %v1409, 0
      %v1529 = vsel %vm1497, %v1414, 0
      %v1532 = vsel %vm1497, %v1419, 0
      %v1535 = vsel %vm1497, %v1424, 0
      %v1538 = vsel %vm1497, %v1429, 0
      %v1541 = vsel %vm1497, %v1434, 0
      %v1544 = vsel %vm1497, %v1439, 0
      %v1547 = vsel %vm1497, %v1444, 0
      %v1550 = vsel %vm1497, %v1449, 0
      %v1553 = vsel %vm1497, %v1454, 0
      %v1556 = vsel %vm1497, %v1459, 0
      %v1559 = vsel %vm1497, %v1464, 0
      %v1562 = vsel %vm1497, %v1469, 0
      %v1565 = vsel %vm1497, %v1474, 0
      %v1568 = vsel %vm1497, %v1479, 0
      %v1571 = vsel %vm1497, %v1484, 0
      %v1574 = vsel %vm1497, %v1489, 0
      %v1577 = vsel %vm1497, %v1494, 0
      %v1580 = vsel %vm1497, %v1202, 0
      %1582 = vmatprep.subr.mxu0 0.0
      %1583 = vmatpush1.xpose.msra.mxu0 %v1580
      %1584 = vmatprep.subr.mxu0 0.0
      %1585 = vmatpush1.xpose.msra.mxu0 0.0
      %1586 = vmatprep.subr.mxu0 0.0
      %1587 = vmatpush1.xpose.msra.mxu0 0.0
      %1588 = vmatprep.subr.mxu0 0.0
      %1589 = vmatpush1.xpose.msra.mxu0 0.0
      %1590 = vmatprep.subr.mxu0 0.0
      %1591 = vmatpush1.xpose.msra.mxu0 0.0
      %1592 = vmatprep.subr.mxu0 0.0
      %1593 = vmatpush1.xpose.msra.mxu0 0.0
      %1594 = vmatprep.subr.mxu0 0.0
      %1595 = vmatpush1.xpose.msra.mxu0 0.0
      %1596 = vmatprep.subr.mxu0 0.0
      %1597 = vmatpush1.xpose.msra.mxu0 0.0
      %1598 = vmatprep.subr.mxu0 0.0
      %1599 = vmatpush1.xpose.msra.mxu0 0.0
      %1600 = vmatprep.subr.mxu0 0.0
      %1601 = vmatpush1.xpose.msra.mxu0 0.0
      %1602 = vmatprep.subr.mxu0 0.0
      %1603 = vmatpush1.xpose.msra.mxu0 0.0
      %1604 = vmatprep.subr.mxu0 0.0
      %1605 = vmatpush1.xpose.msra.mxu0 0.0
      %1606 = vmatprep.subr.mxu0 0.0
      %1607 = vmatpush1.xpose.msra.mxu0 0.0
      %1608 = vmatprep.subr.mxu0 0.0
      %1609 = vmatpush1.xpose.msra.mxu0 0.0
      %1610 = vmatprep.subr.mxu0 0.0
      %1611 = vmatpush1.xpose.msra.mxu0 0.0
      %1612 = vmatprep.subr.mxu0 0.0
      %1613 = vmatpush1.xpose.msra.mxu0 0.0
      %1614 = vmatprep.subr.mxu0 0.0
      %1615 = vmatpush1.xpose.msra.mxu0 0.0
      %1616 = vmatprep.subr.mxu0 0.0
      %1617 = vmatpush1.xpose.msra.mxu0 0.0
      %1618 = vmatprep.subr.mxu0 0.0
      %1619 = vmatpush1.xpose.msra.mxu0 0.0
      %1620 = vmatprep.subr.mxu0 0.0
      %1621 = vmatpush1.xpose.msra.mxu0 0.0
      %1622 = vmatprep.subr.mxu0 0.0
      %1623 = vmatpush1.xpose.msra.mxu0 0.0
      %1624 = vmatprep.subr.mxu0 0.0
      %1625 = vmatpush1.xpose.msra.mxu0 0.0
      %1626 = vmatprep.subr.mxu0 0.0
      %1627 = vmatpush1.xpose.msra.mxu0 0.0
      %1628 = vmatprep.subr.mxu0 0.0
      %1629 = vmatpush1.xpose.msra.mxu0 0.0
      %1630 = vmatprep.subr.mxu0 0.0
      %1631 = vmatpush1.xpose.msra.mxu0 0.0
      %1632 = vmatprep.subr.mxu0 0.0
      %1633 = vmatpush1.xpose.msra.mxu0 0.0
      %1634 = vmatprep.subr.mxu0 0.0
      %1635 = vmatpush1.xpose.msra.mxu0 0.0
      %1636 = vmatprep.subr.mxu0 0.0
      %1637 = vmatpush1.xpose.msra.mxu0 0.0
      %1638 = vmatprep.subr.mxu0 0.0
      %1639 = vmatpush1.xpose.msra.mxu0 0.0
      %1640 = vmatprep.subr.mxu0 0.0
      %1641 = vmatpush1.xpose.msra.mxu0 0.0
      %1642 = vmatprep.subr.mxu0 0.0
      %1643 = vmatpush1.xpose.msra.mxu0 0.0
      %1644 = vmatprep.subr.mxu0 0.0
      %1645 = vmatpush1.xpose.msra.mxu0 0.0
      %1646 = vmatprep.mubr.f32.mxu0 0.0
      %1647 = vmatmul.mubr.f32.gmra.mrb[0].mxu0 %v1499
      %v1648 = vpop.f32.mrb[0].mxu0
      %v1649 = vadd.f32 0.0, %v1648
      %v1650 = vpop.f32.mrb[0].mxu0
      %1651 = vmatprep.mubr.f32.mxu0 0.0
      %1652 = vmatmul.mubr.f32.gmra.mrb[0].mxu0 %v1502
      %v1653 = vpop.f32.mrb[0].mxu0
      %v1654 = vadd.f32 0.0, %v1653
      %v1655 = vpop.f32.mrb[0].mxu0
      %1656 = vmatprep.mubr.f32.mxu0 0.0
      %1657 = vmatmul.mubr.f32.gmra.mrb[0].mxu0 %v1505
      %v1658 = vpop.f32.mrb[0].mxu0
      %v1659 = vadd.f32 0.0, %v1658
      %v1660 = vpop.f32.mrb[0].mxu0
      %1661 = vmatprep.mubr.f32.mxu0 0.0
      %1662 = vmatmul.mubr.f32.gmra.mrb[0].mxu0 %v1508
      %v1663 = vpop.f32.mrb[0].mxu0
      %v1664 = vadd.f32 0.0, %v1663
      %v1665 = vpop.f32.mrb[0].mxu0
      %1666 = vmatprep.mubr.f32.mxu0 0.0
      %1667 = vmatmul.mubr.f32.gmra.mrb[0].mxu0 %v1511
      %v1668 = vpop.f32.mrb[0].mxu0
      %v1669 = vadd.f32 0.0, %v1668
      %v1670 = vpop.f32.mrb[0].mxu0
      %1671 = vmatprep.mubr.f32.mxu0 0.0
      %1672 = vmatmul.mubr.f32.gmra.mrb[0].mxu0 %v1514
      %v1673 = vpop.f32.mrb[0].mxu0
      %v1674 = vadd.f32 0.0, %v1673
      %v1675 = vpop.f32.mrb[0].mxu0
      %1676 = vmatprep.mubr.f32.mxu0 0.0
      %1677 = vmatmul.mubr.f32.gmra.mrb[0].mxu0 %v1517
      %v1678 = vpop.f32.mrb[0].mxu0
      %v1679 = vadd.f32 0.0, %v1678
      %v1680 = vpop.f32.mrb[0].mxu0
      %1681 = vmatprep.mubr.f32.mxu0 0.0
      %1682 = vmatmul.mubr.f32.gmra.mrb[0].mxu0 %v1520
      %v1683 = vpop.f32.mrb[0].mxu0
      %v1684 = vadd.f32 0.0, %v1683
      %v1685 = vpop.f32.mrb[0].mxu0
      %1686 = vmatprep.mubr.f32.mxu0 0.0
      %1687 = vmatmul.mubr.f32.gmra.mrb[0].mxu0 %v1523
      %v1688 = vpop.f32.mrb[0].mxu0
      %v1689 = vadd.f32 0.0, %v1688
      %v1690 = vpop.f32.mrb[0].mxu0
      %1691 = vmatprep.mubr.f32.mxu0 0.0
      %1692 = vmatmul.mubr.f32.gmra.mrb[0].mxu0 %v1526
      %v1693 = vpop.f32.mrb[0].mxu0
      %v1694 = vadd.f32 0.0, %v1693
      %v1695 = vpop.f32.mrb[0].mxu0
      %1696 = vmatprep.mubr.f32.mxu0 0.0
      %1697 = vmatmul.mubr.f32.gmra.mrb[0].mxu0 %v1529
      %v1698 = vpop.f32.mrb[0].mxu0
      %v1699 = vadd.f32 0.0, %v1698
      %v1700 = vpop.f32.mrb[0].mxu0
      %1701 = vmatprep.mubr.f32.mxu0 0.0
      %1702 = vmatmul.mubr.f32.gmra.mrb[0].mxu0 %v1532
      %v1703 = vpop.f32.mrb[0].mxu0
      %v1704 = vadd.f32 0.0, %v1703
      %v1705 = vpop.f32.mrb[0].mxu0
      %1706 = vmatprep.mubr.f32.mxu0 0.0
      %1707 = vmatmul.mubr.f32.gmra.mrb[0].mxu0 %v1535
      %v1708 = vpop.f32.mrb[0].mxu0
      %v1709 = vadd.f32 0.0, %v1708
      %v1710 = vpop.f32.mrb[0].mxu0
      %1711 = vmatprep.mubr.f32.mxu0 0.0
      %1712 = vmatmul.mubr.f32.gmra.mrb[0].mxu0 %v1538
      %v1713 = vpop.f32.mrb[0].mxu0
      %v1714 = vadd.f32 0.0, %v1713
      %v1715 = vpop.f32.mrb[0].mxu0
      %1716 = vmatprep.mubr.f32.mxu0 0.0
      %1717 = vmatmul.mubr.f32.gmra.mrb[0].mxu0 %v1541
      %v1718 = vpop.f32.mrb[0].mxu0
      %v1719 = vadd.f32 0.0, %v1718
      %v1720 = vpop.f32.mrb[0].mxu0
      %1721 = vmatprep.mubr.f32.mxu0 0.0
      %1722 = vmatmul.mubr.f32.gmra.mrb[0].mxu0 %v1544
      %v1723 = vpop.f32.mrb[0].mxu0
      %v1724 = vadd.f32 0.0, %v1723
      %v1725 = vpop.f32.mrb[0].mxu0
      %1726 = vmatprep.mubr.f32.mxu0 0.0
      %1727 = vmatmul.mubr.f32.gmra.mrb[0].mxu0 %v1547
      %v1728 = vpop.f32.mrb[0].mxu0
      %v1729 = vadd.f32 0.0, %v1728
      %v1730 = vpop.f32.mrb[0].mxu0
      %1731 = vmatprep.mubr.f32.mxu0 0.0
      %1732 = vmatmul.mubr.f32.gmra.mrb[0].mxu0 %v1550
      %v1733 = vpop.f32.mrb[0].mxu0
      %v1734 = vadd.f32 0.0, %v1733
      %v1735 = vpop.f32.mrb[0].mxu0
      %1736 = vmatprep.mubr.f32.mxu0 0.0
      %1737 = vmatmul.mubr.f32.gmra.mrb[0].mxu0 %v1553
      %v1738 = vpop.f32.mrb[0].mxu0
      %v1739 = vadd.f32 0.0, %v1738
      %v1740 = vpop.f32.mrb[0].mxu0
      %1741 = vmatprep.mubr.f32.mxu0 0.0
      %1742 = vmatmul.mubr.f32.gmra.mrb[0].mxu0 %v1556
      %v1743 = vpop.f32.mrb[0].mxu0
      %v1744 = vadd.f32 0.0, %v1743
      %v1745 = vpop.f32.mrb[0].mxu0
      %1746 = vmatprep.mubr.f32.mxu0 0.0
      %1747 = vmatmul.mubr.f32.gmra.mrb[0].mxu0 %v1559
      %v1748 = vpop.f32.mrb[0].mxu0
      %v1749 = vadd.f32 0.0, %v1748
      %v1750 = vpop.f32.mrb[0].mxu0
      %1751 = vmatprep.mubr.f32.mxu0 0.0
      %1752 = vmatmul.mubr.f32.gmra.mrb[0].mxu0 %v1562
      %v1753 = vpop.f32.mrb[0].mxu0
      %v1754 = vadd.f32 0.0, %v1753
      %v1755 = vpop.f32.mrb[0].mxu0
      %1756 = vmatprep.mubr.f32.mxu0 0.0
      %1757 = vmatmul.mubr.f32.gmra.mrb[0].mxu0 %v1565
      %v1758 = vpop.f32.mrb[0].mxu0
      %v1759 = vadd.f32 0.0, %v1758
      %v1760 = vpop.f32.mrb[0].mxu0
      %1761 = vmatprep.mubr.f32.mxu0 0.0
      %1762 = vmatmul.mubr.f32.gmra.mrb[0].mxu0 %v1568
      %v1763 = vpop.f32.mrb[0].mxu0
      %v1764 = vadd.f32 0.0, %v1763
      %v1765 = vpop.f32.mrb[0].mxu0
      %1766 = vmatprep.mubr.f32.mxu0 0.0
      %1767 = vmatmul.mubr.f32.gmra.mrb[0].mxu0 %v1571
      %v1768 = vpop.f32.mrb[0].mxu0
      %v1769 = vadd.f32 0.0, %v1768
      %v1770 = vpop.f32.mrb[0].mxu0
      %1771 = vmatprep.mubr.f32.mxu0 0.0
      %1772 = vmatmul.mubr.f32.gmra.mrb[0].mxu0 %v1574
      %v1773 = vpop.f32.mrb[0].mxu0
      %v1774 = vadd.f32 0.0, %v1773
      %v1775 = vpop.f32.mrb[0].mxu0
      %1776 = vmatprep.mubr.f32.mxu0 0.0
      %1777 = vmatmul.mubr.f32.gmra.mrb[0].mxu0 %v1577
      %v1778 = vpop.f32.mrb[0].mxu0
      %v1779 = vadd.f32 0.0, %v1778
      %v1780 = vpop.f32.mrb[0].mxu0
      %1781 = vdwg.mxu0
      %vm1782 = vcmask 64512
      %v1783 = vsel %vm1782, %v1649, -inf
      %1784 = vmax.xlane.f32.xlu0 %v1783
      %v1785 = vpop.xlane.xlu0 %1784
      %v1786 = vsel %vm1782, %v1654, -inf
      %1787 = vmax.xlane.f32.xlu0 %v1786
      %v1788 = vpop.xlane.xlu0 %1787
      %v1789 = vsel %vm1782, %v1659, -inf
      %1790 = vmax.xlane.f32.xlu0 %v1789
      %v1791 = vpop.xlane.xlu0 %1790
      %v1792 = vsel %vm1782, %v1664, -inf
      %1793 = vmax.xlane.f32.xlu0 %v1792
      %v1794 = vpop.xlane.xlu0 %1793
      %v1795 = vsel %vm1782, %v1669, -inf
      %1796 = vmax.xlane.f32.xlu0 %v1795
      %v1797 = vpop.xlane.xlu0 %1796
      %v1798 = vsel %vm1782, %v1674, -inf
      %1799 = vmax.xlane.f32.xlu0 %v1798
      %v1800 = vpop.xlane.xlu0 %1799
      %v1801 = vsel %vm1782, %v1679, -inf
      %1802 = vmax.xlane.f32.xlu0 %v1801
      %v1803 = vpop.xlane.xlu0 %1802
      %v1804 = vsel %vm1782, %v1684, -inf
      %1805 = vmax.xlane.f32.xlu0 %v1804
      %v1806 = vpop.xlane.xlu0 %1805
      %v1807 = vsel %vm1782, %v1689, -inf
      %1808 = vmax.xlane.f32.xlu0 %v1807
      %v1809 = vpop.xlane.xlu0 %1808
      %v1810 = vsel %vm1782, %v1694, -inf
      %1811 = vmax.xlane.f32.xlu0 %v1810
      %v1812 = vpop.xlane.xlu0 %1811
      %v1813 = vsel %vm1782, %v1699, -inf
      %1814 = vmax.xlane.f32.xlu0 %v1813
      %v1815 = vpop.xlane.xlu0 %1814
      %v1816 = vsel %vm1782, %v1704, -inf
      %1817 = vmax.xlane.f32.xlu0 %v1816
      %v1818 = vpop.xlane.xlu0 %1817
      %v1819 = vsel %vm1782, %v1709, -inf
      %1820 = vmax.xlane.f32.xlu0 %v1819
      %v1821 = vpop.xlane.xlu0 %1820
      %v1822 = vsel %vm1782, %v1714, -inf
      %1823 = vmax.xlane.f32.xlu0 %v1822
      %v1824 = vpop.xlane.xlu0 %1823
      %v1825 = vsel %vm1782, %v1719, -inf
      %1826 = vmax.xlane.f32.xlu0 %v1825
      %v1827 = vpop.xlane.xlu0 %1826
      %v1828 = vsel %vm1782, %v1724, -inf
      %1829 = vmax.xlane.f32.xlu0 %v1828
      %v1830 = vpop.xlane.xlu0 %1829
      %v1831 = vsel %vm1782, %v1729, -inf
      %1832 = vmax.xlane.f32.xlu0 %v1831
      %v1833 = vpop.xlane.xlu0 %1832
      %v1834 = vsel %vm1782, %v1734, -inf
      %1835 = vmax.xlane.f32.xlu0 %v1834
      %v1836 = vpop.xlane.xlu0 %1835
      %v1837 = vsel %vm1782, %v1739, -inf
      %1838 = vmax.xlane.f32.xlu0 %v1837
      %v1839 = vpop.xlane.xlu0 %1838
      %v1840 = vsel %vm1782, %v1744, -inf
      %1841 = vmax.xlane.f32.xlu0 %v1840
      %v1842 = vpop.xlane.xlu0 %1841
      %v1843 = vsel %vm1782, %v1749, -inf
      %1844 = vmax.xlane.f32.xlu0 %v1843
      %v1845 = vpop.xlane.xlu0 %1844
      %v1846 = vsel %vm1782, %v1754, -inf
      %1847 = vmax.xlane.f32.xlu0 %v1846
      %v1848 = vpop.xlane.xlu0 %1847
      %v1849 = vsel %vm1782, %v1759, -inf
      %1850 = vmax.xlane.f32.xlu0 %v1849
      %v1851 = vpop.xlane.xlu0 %1850
      %v1852 = vsel %vm1782, %v1764, -inf
      %1853 = vmax.xlane.f32.xlu0 %v1852
      %v1854 = vpop.xlane.xlu0 %1853
      %v1855 = vsel %vm1782, %v1769, -inf
      %1856 = vmax.xlane.f32.xlu0 %v1855
      %v1857 = vpop.xlane.xlu0 %1856
      %v1858 = vsel %vm1782, %v1774, -inf
      %1859 = vmax.xlane.f32.xlu0 %v1858
      %v1860 = vpop.xlane.xlu0 %1859
      %v1861 = vsel %vm1782, %v1779, -inf
      %1862 = vmax.xlane.f32.xlu0 %v1861
      %v1863 = vpop.xlane.xlu0 %1862
      %v1864 = vsub.f32 %v1649, %v1785
      %v1865 = vsub.f32 %v1654, %v1788
      %v1866 = vsub.f32 %v1659, %v1791
      %v1867 = vsub.f32 %v1664, %v1794
      %v1868 = vsub.f32 %v1669, %v1797
      %v1869 = vsub.f32 %v1674, %v1800
      %v1870 = vsub.f32 %v1679, %v1803
      %v1871 = vsub.f32 %v1684, %v1806
      %v1872 = vsub.f32 %v1689, %v1809
      %v1873 = vsub.f32 %v1694, %v1812
      %v1874 = vsub.f32 %v1699, %v1815
      %v1875 = vsub.f32 %v1704, %v1818
      %v1876 = vsub.f32 %v1709, %v1821
      %v1877 = vsub.f32 %v1714, %v1824
      %v1878 = vsub.f32 %v1719, %v1827
      %v1879 = vsub.f32 %v1724, %v1830
      %v1880 = vsub.f32 %v1729, %v1833
      %v1881 = vsub.f32 %v1734, %v1836
      %v1882 = vsub.f32 %v1739, %v1839
      %v1883 = vsub.f32 %v1744, %v1842
      %v1884 = vsub.f32 %v1749, %v1845
      %v1885 = vsub.f32 %v1754, %v1848
      %v1886 = vsub.f32 %v1759, %v1851
      %v1887 = vsub.f32 %v1764, %v1854
      %v1888 = vsub.f32 %v1769, %v1857
      %v1889 = vsub.f32 %v1774, %v1860
      %v1890 = vsub.f32 %v1779, %v1863
      %v1891 = vmul.f32 %v1864, 1.442695
      %v1892 = vpow.pop %v1891
      %v1893 = vmul.f32 %v1865, 1.442695
      %v1894 = vpow.pop %v1893
      %v1895 = vmul.f32 %v1866, 1.442695
      %v1896 = vpow.pop %v1895
      %v1897 = vmul.f32 %v1867, 1.442695
      %v1898 = vpow.pop %v1897
      %v1899 = vmul.f32 %v1868, 1.442695
      %v1900 = vpow.pop %v1899
      %v1901 = vmul.f32 %v1869, 1.442695
      %v1902 = vpow.pop %v1901
      %v1903 = vmul.f32 %v1870, 1.442695
      %v1904 = vpow.pop %v1903
      %v1905 = vmul.f32 %v1871, 1.442695
      %v1906 = vpow.pop %v1905
      %v1907 = vmul.f32 %v1872, 1.442695
      %v1908 = vpow.pop %v1907
      %v1909 = vmul.f32 %v1873, 1.442695
      %v1910 = vpow.pop %v1909
      %v1911 = vmul.f32 %v1874, 1.442695
      %v1912 = vpow.pop %v1911
      %v1913 = vmul.f32 %v1875, 1.442695
      %v1914 = vpow.pop %v1913
      %v1915 = vmul.f32 %v1876, 1.442695
      %v1916 = vpow.pop %v1915
      %v1917 = vmul.f32 %v1877, 1.442695
      %v1918 = vpow.pop %v1917
      %v1919 = vmul.f32 %v1878, 1.442695
      %v1920 = vpow.pop %v1919
      %v1921 = vmul.f32 %v1879, 1.442695
      %v1922 = vpow.pop %v1921
      %v1923 = vmul.f32 %v1880, 1.442695
      %v1924 = vpow.pop %v1923
      %v1925 = vmul.f32 %v1881, 1.442695
      %v1926 = vpow.pop %v1925
      %v1927 = vmul.f32 %v1882, 1.442695
      %v1928 = vpow.pop %v1927
      %v1929 = vmul.f32 %v1883, 1.442695
      %v1930 = vpow.pop %v1929
      %v1931 = vmul.f32 %v1884, 1.442695
      %v1932 = vpow.pop %v1931
      %v1933 = vmul.f32 %v1885, 1.442695
      %v1934 = vpow.pop %v1933
      %v1935 = vmul.f32 %v1886, 1.442695
      %v1936 = vpow.pop %v1935
      %v1937 = vmul.f32 %v1887, 1.442695
      %v1938 = vpow.pop %v1937
      %v1939 = vmul.f32 %v1888, 1.442695
      %v1940 = vpow.pop %v1939
      %v1941 = vmul.f32 %v1889, 1.442695
      %v1942 = vpow.pop %v1941
      %v1943 = vmul.f32 %v1890, 1.442695
      %v1944 = vpow.pop %v1943
      %v1945 = vsel %vm1782, %v1892, 0.0
      %1946 = vadd.xlane.f32.xlu0 %v1945
      %v1947 = vpop.xlane.xlu0 %1946
      %v1948 = vsel %vm1782, %v1894, 0.0
      %1949 = vadd.xlane.f32.xlu0 %v1948
      %v1950 = vpop.xlane.xlu0 %1949
      %v1951 = vsel %vm1782, %v1896, 0.0
      %1952 = vadd.xlane.f32.xlu0 %v1951
      %v1953 = vpop.xlane.xlu0 %1952
      %v1954 = vsel %vm1782, %v1898, 0.0
      %1955 = vadd.xlane.f32.xlu0 %v1954
      %v1956 = vpop.xlane.xlu0 %1955
      %v1957 = vsel %vm1782, %v1900, 0.0
      %1958 = vadd.xlane.f32.xlu0 %v1957
      %v1959 = vpop.xlane.xlu0 %1958
      %v1960 = vsel %vm1782, %v1902, 0.0
      %1961 = vadd.xlane.f32.xlu0 %v1960
      %v1962 = vpop.xlane.xlu0 %1961
      %v1963 = vsel %vm1782, %v1904, 0.0
      %1964 = vadd.xlane.f32.xlu0 %v1963
      %v1965 = vpop.xlane.xlu0 %1964
      %v1966 = vsel %vm1782, %v1906, 0.0
      %1967 = vadd.xlane.f32.xlu0 %v1966
      %v1968 = vpop.xlane.xlu0 %1967
      %v1969 = vsel %vm1782, %v1908, 0.0
      %1970 = vadd.xlane.f32.xlu0 %v1969
      %v1971 = vpop.xlane.xlu0 %1970
      %v1972 = vsel %vm1782, %v1910, 0.0
      %1973 = vadd.xlane.f32.xlu0 %v1972
      %v1974 = vpop.xlane.xlu0 %1973
      %v1975 = vsel %vm1782, %v1912, 0.0
      %1976 = vadd.xlane.f32.xlu0 %v1975
      %v1977 = vpop.xlane.xlu0 %1976
      %v1978 = vsel %vm1782, %v1914, 0.0
      %1979 = vadd.xlane.f32.xlu0 %v1978
      %v1980 = vpop.xlane.xlu0 %1979
      %v1981 = vsel %vm1782, %v1916, 0.0
      %1982 = vadd.xlane.f32.xlu0 %v1981
      %v1983 = vpop.xlane.xlu0 %1982
      %v1984 = vsel %vm1782, %v1918, 0.0
      %1985 = vadd.xlane.f32.xlu0 %v1984
      %v1986 = vpop.xlane.xlu0 %1985
      %v1987 = vsel %vm1782, %v1920, 0.0
      %1988 = vadd.xlane.f32.xlu0 %v1987
      %v1989 = vpop.xlane.xlu0 %1988
      %v1990 = vsel %vm1782, %v1922, 0.0
      %1991 = vadd.xlane.f32.xlu0 %v1990
      %v1992 = vpop.xlane.xlu0 %1991
      %v1993 = vsel %vm1782, %v1924, 0.0
      %1994 = vadd.xlane.f32.xlu0 %v1993
      %v1995 = vpop.xlane.xlu0 %1994
      %v1996 = vsel %vm1782, %v1926, 0.0
      %1997 = vadd.xlane.f32.xlu0 %v1996
      %v1998 = vpop.xlane.xlu0 %1997
      %v1999 = vsel %vm1782, %v1928, 0.0
      %2000 = vadd.xlane.f32.xlu0 %v1999
      %v2001 = vpop.xlane.xlu0 %2000
      %v2002 = vsel %vm1782, %v1930, 0.0
      %2003 = vadd.xlane.f32.xlu0 %v2002
      %v2004 = vpop.xlane.xlu0 %2003
      %v2005 = vsel %vm1782, %v1932, 0.0
      %2006 = vadd.xlane.f32.xlu0 %v2005
      %v2007 = vpop.xlane.xlu0 %2006
      %v2008 = vsel %vm1782, %v1934, 0.0
      %2009 = vadd.xlane.f32.xlu0 %v2008
      %v2010 = vpop.xlane.xlu0 %2009
      %v2011 = vsel %vm1782, %v1936, 0.0
      %2012 = vadd.xlane.f32.xlu0 %v2011
      %v2013 = vpop.xlane.xlu0 %2012
      %v2014 = vsel %vm1782, %v1938, 0.0
      %2015 = vadd.xlane.f32.xlu0 %v2014
      %v2016 = vpop.xlane.xlu0 %2015
      %v2017 = vsel %vm1782, %v1940, 0.0
      %2018 = vadd.xlane.f32.xlu0 %v2017
      %v2019 = vpop.xlane.xlu0 %2018
      %v2020 = vsel %vm1782, %v1942, 0.0
      %2021 = vadd.xlane.f32.xlu0 %v2020
      %v2022 = vpop.xlane.xlu0 %2021
      %v2023 = vsel %vm1782, %v1944, 0.0
      %2024 = vadd.xlane.f32.xlu0 %v2023
      %v2025 = vpop.xlane.xlu0 %2024
      %v2026 = vrcp.pop %v1947
      %v2027 = vrcp.pop %v1950
      %v2028 = vrcp.pop %v1953
      %v2029 = vrcp.pop %v1956
      %v2030 = vrcp.pop %v1959
      %v2031 = vrcp.pop %v1962
      %v2032 = vrcp.pop %v1965
      %v2033 = vrcp.pop %v1968
      %v2034 = vrcp.pop %v1971
      %v2035 = vrcp.pop %v1974
      %v2036 = vrcp.pop %v1977
      %v2037 = vrcp.pop %v1980
      %v2038 = vrcp.pop %v1983
      %v2039 = vrcp.pop %v1986
      %v2040 = vrcp.pop %v1989
      %v2041 = vrcp.pop %v1992
      %v2042 = vrcp.pop %v1995
      %v2043 = vrcp.pop %v1998
      %v2044 = vrcp.pop %v2001
      %v2045 = vrcp.pop %v2004
      %v2046 = vrcp.pop %v2007
      %v2047 = vrcp.pop %v2010
      %v2048 = vrcp.pop %v2013
      %v2049 = vrcp.pop %v2016
      %v2050 = vrcp.pop %v2019
      %v2051 = vrcp.pop %v2022
      %v2052 = vrcp.pop %v2025
      %v2053 = vmul.f32 %v1892, %v2026
      %v2054 = vmul.f32 %v1894, %v2027
      %v2055 = vmul.f32 %v1896, %v2028
      %v2056 = vmul.f32 %v1898, %v2029
      %v2057 = vmul.f32 %v1900, %v2030
      %v2058 = vmul.f32 %v1902, %v2031
      %v2059 = vmul.f32 %v1904, %v2032
      %v2060 = vmul.f32 %v1906, %v2033
      %v2061 = vmul.f32 %v1908, %v2034
      %v2062 = vmul.f32 %v1910, %v2035
      %v2063 = vmul.f32 %v1912, %v2036
      %v2064 = vmul.f32 %v1914, %v2037
      %v2065 = vmul.f32 %v1916, %v2038
      %v2066 = vmul.f32 %v1918, %v2039
      %v2067 = vmul.f32 %v1920, %v2040
      %v2068 = vmul.f32 %v1922, %v2041
      %v2069 = vmul.f32 %v1924, %v2042
      %v2070 = vmul.f32 %v1926, %v2043
      %v2071 = vmul.f32 %v1928, %v2044
      %v2072 = vmul.f32 %v1930, %v2045
      %v2073 = vmul.f32 %v1932, %v2046
      %v2074 = vmul.f32 %v1934, %v2047
      %v2075 = vmul.f32 %v1936, %v2048
      %v2076 = vmul.f32 %v1938, %v2049
      %v2077 = vmul.f32 %v1940, %v2050
      %v2078 = vmul.f32 %v1942, %v2051
      %v2079 = vmul.f32 %v1944, %v2052
      %2080 = vrot.lane.b32.xlu0 %v1202, 112
      %v2081 = vpop.permute.xlu0 %2080
      %v2084 = vsel %vm1782, %v2053, 0
      %v2087 = vsel %vm1782, %v2054, 0
      %v2090 = vsel %vm1782, %v2055, 0
      %v2093 = vsel %vm1782, %v2056, 0
      %v2096 = vsel %vm1782, %v2057, 0
      %v2099 = vsel %vm1782, %v2058, 0
      %v2102 = vsel %vm1782, %v2059, 0
      %v2105 = vsel %vm1782, %v2060, 0
      %v2108 = vsel %vm1782, %v2061, 0
      %v2111 = vsel %vm1782, %v2062, 0
      %v2114 = vsel %vm1782, %v2063, 0
      %v2117 = vsel %vm1782, %v2064, 0
      %v2120 = vsel %vm1782, %v2065, 0
      %v2123 = vsel %vm1782, %v2066, 0
      %v2126 = vsel %vm1782, %v2067, 0
      %v2129 = vsel %vm1782, %v2068, 0
      %v2132 = vsel %vm1782, %v2069, 0
      %v2135 = vsel %vm1782, %v2070, 0
      %v2138 = vsel %vm1782, %v2071, 0
      %v2141 = vsel %vm1782, %v2072, 0
      %v2144 = vsel %vm1782, %v2073, 0
      %v2147 = vsel %vm1782, %v2074, 0
      %v2150 = vsel %vm1782, %v2075, 0
      %v2153 = vsel %vm1782, %v2076, 0
      %v2156 = vsel %vm1782, %v2077, 0
      %v2159 = vsel %vm1782, %v2078, 0
      %v2162 = vsel %vm1782, %v2079, 0
      %2164 = vmatprep.subr.mxu0 0.0
      %2165 = vmatpush1.msra.mxu0 %v2081
      %2166 = vmatprep.subr.mxu0 0.0
      %2167 = vmatpush1.msra.mxu0 0.0
      %2168 = vmatprep.subr.mxu0 0.0
      %2169 = vmatpush1.msra.mxu0 0.0
      %2170 = vmatprep.subr.mxu0 0.0
      %2171 = vmatpush1.msra.mxu0 0.0
      %2172 = vmatprep.subr.mxu0 0.0
      %2173 = vmatpush1.msra.mxu0 0.0
      %2174 = vmatprep.subr.mxu0 0.0
      %2175 = vmatpush1.msra.mxu0 0.0
      %2176 = vmatprep.subr.mxu0 0.0
      %2177 = vmatpush1.msra.mxu0 0.0
      %2178 = vmatprep.subr.mxu0 0.0
      %2179 = vmatpush1.msra.mxu0 0.0
      %2180 = vmatprep.subr.mxu0 0.0
      %2181 = vmatpush1.msra.mxu0 0.0
      %2182 = vmatprep.subr.mxu0 0.0
      %2183 = vmatpush1.msra.mxu0 0.0
      %2184 = vmatprep.subr.mxu0 0.0
      %2185 = vmatpush1.msra.mxu0 0.0
      %2186 = vmatprep.subr.mxu0 0.0
      %2187 = vmatpush1.msra.mxu0 0.0
      %2188 = vmatprep.subr.mxu0 0.0
      %2189 = vmatpush1.msra.mxu0 0.0
      %2190 = vmatprep.subr.mxu0 0.0
      %2191 = vmatpush1.msra.mxu0 0.0
      %2192 = vmatprep.subr.mxu0 0.0
      %2193 = vmatpush1.msra.mxu0 0.0
      %2194 = vmatprep.subr.mxu0 0.0
      %2195 = vmatpush1.msra.mxu0 0.0
      %2196 = vmatprep.subr.mxu0 0.0
      %2197 = vmatpush1.msra.mxu0 0.0
      %2198 = vmatprep.subr.mxu0 0.0
      %2199 = vmatpush1.msra.mxu0 0.0
      %2200 = vmatprep.subr.mxu0 0.0
      %2201 = vmatpush1.msra.mxu0 0.0
      %2202 = vmatprep.subr.mxu0 0.0
      %2203 = vmatpush1.msra.mxu0 0.0
      %2204 = vmatprep.subr.mxu0 0.0
      %2205 = vmatpush1.msra.mxu0 0.0
      %2206 = vmatprep.subr.mxu0 0.0
      %2207 = vmatpush1.msra.mxu0 0.0
      %2208 = vmatprep.subr.mxu0 0.0
      %2209 = vmatpush1.msra.mxu0 0.0
      %2210 = vmatprep.subr.mxu0 0.0
      %2211 = vmatpush1.msra.mxu0 0.0
      %2212 = vmatprep.subr.mxu0 0.0
      %2213 = vmatpush1.msra.mxu0 0.0
      %2214 = vmatprep.subr.mxu0 0.0
      %2215 = vmatpush1.msra.mxu0 0.0
      %2216 = vmatprep.subr.mxu0 0.0
      %2217 = vmatpush1.msra.mxu0 0.0
      %2218 = vmatprep.subr.mxu0 0.0
      %2219 = vmatpush1.msra.mxu0 0.0
      %2220 = vmatprep.subr.mxu0 0.0
      %2221 = vmatpush1.msra.mxu0 0.0
      %2222 = vmatprep.subr.mxu0 0.0
      %2223 = vmatpush1.msra.mxu0 0.0
      %2224 = vmatprep.subr.mxu0 0.0
      %2225 = vmatpush1.msra.mxu0 0.0
      %2226 = vmatprep.subr.mxu0 0.0
      %2227 = vmatpush1.msra.mxu0 0.0
      %2228 = vmatprep.mubr.f32.mxu0 0.0
      %2229 = vmatmul.mubr.f32.gmra.mrb[0].mxu0 %v2084
      %v2230 = vpop.f32.mrb[0].mxu0
      %v2231 = vadd.f32 0.0, %v2230
      %v2232 = vpop.f32.mrb[0].mxu0
      %2233 = vmatprep.mubr.f32.mxu0 0.0
      %2234 = vmatmul.mubr.f32.gmra.mrb[0].mxu0 %v2087
      %v2235 = vpop.f32.mrb[0].mxu0
      %v2236 = vadd.f32 0.0, %v2235
      %v2237 = vpop.f32.mrb[0].mxu0
      %2238 = vmatprep.mubr.f32.mxu0 0.0
      %2239 = vmatmul.mubr.f32.gmra.mrb[0].mxu0 %v2090
      %v2240 = vpop.f32.mrb[0].mxu0
      %v2241 = vadd.f32 0.0, %v2240
      %v2242 = vpop.f32.mrb[0].mxu0
      %2243 = vmatprep.mubr.f32.mxu0 0.0
      %2244 = vmatmul.mubr.f32.gmra.mrb[0].mxu0 %v2093
      %v2245 = vpop.f32.mrb[0].mxu0
      %v2246 = vadd.f32 0.0, %v2245
      %v2247 = vpop.f32.mrb[0].mxu0
      %2248 = vmatprep.mubr.f32.mxu0 0.0
      %2249 = vmatmul.mubr.f32.gmra.mrb[0].mxu0 %v2096
      %v2250 = vpop.f32.mrb[0].mxu0
      %v2251 = vadd.f32 0.0, %v2250
      %v2252 = vpop.f32.mrb[0].mxu0
      %2253 = vmatprep.mubr.f32.mxu0 0.0
      %2254 = vmatmul.mubr.f32.gmra.mrb[0].mxu0 %v2099
      %v2255 = vpop.f32.mrb[0].mxu0
      %v2256 = vadd.f32 0.0, %v2255
      %v2257 = vpop.f32.mrb[0].mxu0
      %2258 = vmatprep.mubr.f32.mxu0 0.0
      %2259 = vmatmul.mubr.f32.gmra.mrb[0].mxu0 %v2102
      %v2260 = vpop.f32.mrb[0].mxu0
      %v2261 = vadd.f32 0.0, %v2260
      %v2262 = vpop.f32.mrb[0].mxu0
      %2263 = vmatprep.mubr.f32.mxu0 0.0
      %2264 = vmatmul.mubr.f32.gmra.mrb[0].mxu0 %v2105
      %v2265 = vpop.f32.mrb[0].mxu0
      %v2266 = vadd.f32 0.0, %v2265
      %v2267 = vpop.f32.mrb[0].mxu0
      %2268 = vmatprep.mubr.f32.mxu0 0.0
      %2269 = vmatmul.mubr.f32.gmra.mrb[0].mxu0 %v2108
      %v2270 = vpop.f32.mrb[0].mxu0
      %v2271 = vadd.f32 0.0, %v2270
      %v2272 = vpop.f32.mrb[0].mxu0
      %2273 = vmatprep.mubr.f32.mxu0 0.0
      %2274 = vmatmul.mubr.f32.gmra.mrb[0].mxu0 %v2111
      %v2275 = vpop.f32.mrb[0].mxu0
      %v2276 = vadd.f32 0.0, %v2275
      %v2277 = vpop.f32.mrb[0].mxu0
      %2278 = vmatprep.mubr.f32.mxu0 0.0
      %2279 = vmatmul.mubr.f32.gmra.mrb[0].mxu0 %v2114
      %v2280 = vpop.f32.mrb[0].mxu0
      %v2281 = vadd.f32 0.0, %v2280
      %v2282 = vpop.f32.mrb[0].mxu0
      %2283 = vmatprep.mubr.f32.mxu0 0.0
      %2284 = vmatmul.mubr.f32.gmra.mrb[0].mxu0 %v2117
      %v2285 = vpop.f32.mrb[0].mxu0
      %v2286 = vadd.f32 0.0, %v2285
      %v2287 = vpop.f32.mrb[0].mxu0
      %2288 = vmatprep.mubr.f32.mxu0 0.0
      %2289 = vmatmul.mubr.f32.gmra.mrb[0].mxu0 %v2120
      %v2290 = vpop.f32.mrb[0].mxu0
      %v2291 = vadd.f32 0.0, %v2290
      %v2292 = vpop.f32.mrb[0].mxu0
      %2293 = vmatprep.mubr.f32.mxu0 0.0
      %2294 = vmatmul.mubr.f32.gmra.mrb[0].mxu0 %v2123
      %v2295 = vpop.f32.mrb[0].mxu0
      %v2296 = vadd.f32 0.0, %v2295
      %v2297 = vpop.f32.mrb[0].mxu0
      %2298 = vmatprep.mubr.f32.mxu0 0.0
      %2299 = vmatmul.mubr.f32.gmra.mrb[0].mxu0 %v2126
      %v2300 = vpop.f32.mrb[0].mxu0
      %v2301 = vadd.f32 0.0, %v2300
      %v2302 = vpop.f32.mrb[0].mxu0
      %2303 = vmatprep.mubr.f32.mxu0 0.0
      %2304 = vmatmul.mubr.f32.gmra.mrb[0].mxu0 %v2129
      %v2305 = vpop.f32.mrb[0].mxu0
      %v2306 = vadd.f32 0.0, %v2305
      %v2307 = vpop.f32.mrb[0].mxu0
      %2308 = vmatprep.mubr.f32.mxu0 0.0
      %2309 = vmatmul.mubr.f32.gmra.mrb[0].mxu0 %v2132
      %v2310 = vpop.f32.mrb[0].mxu0
      %v2311 = vadd.f32 0.0, %v2310
      %v2312 = vpop.f32.mrb[0].mxu0
      %2313 = vmatprep.mubr.f32.mxu0 0.0
      %2314 = vmatmul.mubr.f32.gmra.mrb[0].mxu0 %v2135
      %v2315 = vpop.f32.mrb[0].mxu0
      %v2316 = vadd.f32 0.0, %v2315
      %v2317 = vpop.f32.mrb[0].mxu0
      %2318 = vmatprep.mubr.f32.mxu0 0.0
      %2319 = vmatmul.mubr.f32.gmra.mrb[0].mxu0 %v2138
      %v2320 = vpop.f32.mrb[0].mxu0
      %v2321 = vadd.f32 0.0, %v2320
      %v2322 = vpop.f32.mrb[0].mxu0
      %2323 = vmatprep.mubr.f32.mxu0 0.0
      %2324 = vmatmul.mubr.f32.gmra.mrb[0].mxu0 %v2141
      %v2325 = vpop.f32.mrb[0].mxu0
      %v2326 = vadd.f32 0.0, %v2325
      %v2327 = vpop.f32.mrb[0].mxu0
      %2328 = vmatprep.mubr.f32.mxu0 0.0
      %2329 = vmatmul.mubr.f32.gmra.mrb[0].mxu0 %v2144
      %v2330 = vpop.f32.mrb[0].mxu0
      %v2331 = vadd.f32 0.0, %v2330
      %v2332 = vpop.f32.mrb[0].mxu0
      %2333 = vmatprep.mubr.f32.mxu0 0.0
      %2334 = vmatmul.mubr.f32.gmra.mrb[0].mxu0 %v2147
      %v2335 = vpop.f32.mrb[0].mxu0
      %v2336 = vadd.f32 0.0, %v2335
      %v2337 = vpop.f32.mrb[0].mxu0
      %2338 = vmatprep.mubr.f32.mxu0 0.0
      %2339 = vmatmul.mubr.f32.gmra.mrb[0].mxu0 %v2150
      %v2340 = vpop.f32.mrb[0].mxu0
      %v2341 = vadd.f32 0.0, %v2340
      %v2342 = vpop.f32.mrb[0].mxu0
      %2343 = vmatprep.mubr.f32.mxu0 0.0
      %2344 = vmatmul.mubr.f32.gmra.mrb[0].mxu0 %v2153
      %v2345 = vpop.f32.mrb[0].mxu0
      %v2346 = vadd.f32 0.0, %v2345
      %v2347 = vpop.f32.mrb[0].mxu0
      %2348 = vmatprep.mubr.f32.mxu0 0.0
      %2349 = vmatmul.mubr.f32.gmra.mrb[0].mxu0 %v2156
      %v2350 = vpop.f32.mrb[0].mxu0
      %v2351 = vadd.f32 0.0, %v2350
      %v2352 = vpop.f32.mrb[0].mxu0
      %2353 = vmatprep.mubr.f32.mxu0 0.0
      %2354 = vmatmul.mubr.f32.gmra.mrb[0].mxu0 %v2159
      %v2355 = vpop.f32.mrb[0].mxu0
      %v2356 = vadd.f32 0.0, %v2355
      %v2357 = vpop.f32.mrb[0].mxu0
      %2358 = vmatprep.mubr.f32.mxu0 0.0
      %2359 = vmatmul.mubr.f32.gmra.mrb[0].mxu0 %v2162
      %v2360 = vpop.f32.mrb[0].mxu0
      %v2361 = vadd.f32 0.0, %v2360
      %v2362 = vpop.f32.mrb[0].mxu0
      %2363 = vdwg.mxu0
      %v2364 = vld [vmem:[%s10] sm:$0xff]
      %v2365 = vld [vmem:[%s10 + $0x8] sm:$0xff]
      %v2366 = vld [vmem:[%s10 + $0x10] sm:$0xff]
      %v2367 = vld [vmem:[%s10 + $0x18] sm:$0xff]
      %v2368 = vld [vmem:[%s11] sm:$0x1]
      %v2370 = vlaneseq
      %v2371 = vshrl.u32 %v2370, 7
      %v2372 = vsub.s32 0, %v2371
      %v2373 = vrot.slane %v2368, %v2372
      %v2376 = vsel %vm598, %v2231, 0
      %v2379 = vsel %vm598, %v2236, 0
      %v2382 = vsel %vm598, %v2241, 0
      %v2385 = vsel %vm598, %v2246, 0
      %v2388 = vsel %vm598, %v2251, 0
      %v2391 = vsel %vm598, %v2256, 0
      %v2394 = vsel %vm598, %v2261, 0
      %v2397 = vsel %vm598, %v2266, 0
      %v2400 = vsel %vm598, %v2271, 0
      %v2403 = vsel %vm598, %v2276, 0
      %v2406 = vsel %vm598, %v2281, 0
      %v2409 = vsel %vm598, %v2286, 0
      %v2412 = vsel %vm598, %v2291, 0
      %v2415 = vsel %vm598, %v2296, 0
      %v2418 = vsel %vm598, %v2301, 0
      %v2421 = vsel %vm598, %v2306, 0
      %v2424 = vsel %vm598, %v2311, 0
      %v2427 = vsel %vm598, %v2316, 0
      %v2430 = vsel %vm598, %v2321, 0
      %v2433 = vsel %vm598, %v2326, 0
      %v2436 = vsel %vm598, %v2331, 0
      %v2439 = vsel %vm598, %v2336, 0
      %v2442 = vsel %vm598, %v2341, 0
      %v2445 = vsel %vm598, %v2346, 0
      %v2448 = vsel %vm598, %v2351, 0
      %v2451 = vsel %vm598, %v2356, 0
      %v2454 = vsel %vm598, %v2361, 0
      %2456 = vmatprep.subr.mxu0 0.0
      %2457 = vmatpush1.msra.mxu0 %v2364
      %2458 = vmatprep.subr.mxu0 0.0
      %2459 = vmatpush1.msra.mxu0 %v2365
      %2460 = vmatprep.subr.mxu0 0.0
      %2461 = vmatpush1.msra.mxu0 %v2366
      %2462 = vmatprep.subr.mxu0 0.0
      %2463 = vmatpush1.msra.mxu0 %v2367
      %2464 = vmatprep.subr.mxu0 0.0
      %2465 = vmatpush1.msra.mxu0 0.0
      %2466 = vmatprep.subr.mxu0 0.0
      %2467 = vmatpush1.msra.mxu0 0.0
      %2468 = vmatprep.subr.mxu0 0.0
      %2469 = vmatpush1.msra.mxu0 0.0
      %2470 = vmatprep.subr.mxu0 0.0
      %2471 = vmatpush1.msra.mxu0 0.0
      %2472 = vmatprep.subr.mxu0 0.0
      %2473 = vmatpush1.msra.mxu0 0.0
      %2474 = vmatprep.subr.mxu0 0.0
      %2475 = vmatpush1.msra.mxu0 0.0
      %2476 = vmatprep.subr.mxu0 0.0
      %2477 = vmatpush1.msra.mxu0 0.0
      %2478 = vmatprep.subr.mxu0 0.0
      %2479 = vmatpush1.msra.mxu0 0.0
      %2480 = vmatprep.subr.mxu0 0.0
      %2481 = vmatpush1.msra.mxu0 0.0
      %2482 = vmatprep.subr.mxu0 0.0
      %2483 = vmatpush1.msra.mxu0 0.0
      %2484 = vmatprep.subr.mxu0 0.0
      %2485 = vmatpush1.msra.mxu0 0.0
      %2486 = vmatprep.subr.mxu0 0.0
      %2487 = vmatpush1.msra.mxu0 0.0
      %2488 = vmatprep.subr.mxu0 0.0
      %2489 = vmatpush1.msra.mxu0 0.0
      %2490 = vmatprep.subr.mxu0 0.0
      %2491 = vmatpush1.msra.mxu0 0.0
      %2492 = vmatprep.subr.mxu0 0.0
      %2493 = vmatpush1.msra.mxu0 0.0
      %2494 = vmatprep.subr.mxu0 0.0
      %2495 = vmatpush1.msra.mxu0 0.0
      %2496 = vmatprep.subr.mxu0 0.0
      %2497 = vmatpush1.msra.mxu0 0.0
      %2498 = vmatprep.subr.mxu0 0.0
      %2499 = vmatpush1.msra.mxu0 0.0
      %2500 = vmatprep.subr.mxu0 0.0
      %2501 = vmatpush1.msra.mxu0 0.0
      %2502 = vmatprep.subr.mxu0 0.0
      %2503 = vmatpush1.msra.mxu0 0.0
      %2504 = vmatprep.subr.mxu0 0.0
      %2505 = vmatpush1.msra.mxu0 0.0
      %2506 = vmatprep.subr.mxu0 0.0
      %2507 = vmatpush1.msra.mxu0 0.0
      %2508 = vmatprep.subr.mxu0 0.0
      %2509 = vmatpush1.msra.mxu0 0.0
      %2510 = vmatprep.subr.mxu0 0.0
      %2511 = vmatpush1.msra.mxu0 0.0
      %2512 = vmatprep.subr.mxu0 0.0
      %2513 = vmatpush1.msra.mxu0 0.0
      %2514 = vmatprep.subr.mxu0 0.0
      %2515 = vmatpush1.msra.mxu0 0.0
      %2516 = vmatprep.subr.mxu0 0.0
      %2517 = vmatpush1.msra.mxu0 0.0
      %2518 = vmatprep.subr.mxu0 0.0
      %2519 = vmatpush1.msra.mxu0 0.0
      %2520 = vmatprep.mubr.f32.mxu0 0.0
      %2521 = vmatmul.mubr.f32.gmra.mrb[0].mxu0 %v2376
      %v2522 = vpop.f32.mrb[0].mxu0
      %v2523 = vadd.f32 %v2373, %v2522
      %v2524 = vpop.f32.mrb[0].mxu0
      %2525 = vmatprep.mubr.f32.mxu0 0.0
      %2526 = vmatmul.mubr.f32.gmra.mrb[0].mxu0 %v2379
      %v2527 = vpop.f32.mrb[0].mxu0
      %v2528 = vadd.f32 %v2373, %v2527
      %v2529 = vpop.f32.mrb[0].mxu0
      %2530 = vmatprep.mubr.f32.mxu0 0.0
      %2531 = vmatmul.mubr.f32.gmra.mrb[0].mxu0 %v2382
      %v2532 = vpop.f32.mrb[0].mxu0
      %v2533 = vadd.f32 %v2373, %v2532
      %v2534 = vpop.f32.mrb[0].mxu0
      %2535 = vmatprep.mubr.f32.mxu0 0.0
      %2536 = vmatmul.mubr.f32.gmra.mrb[0].mxu0 %v2385
      %v2537 = vpop.f32.mrb[0].mxu0
      %v2538 = vadd.f32 %v2373, %v2537
      %v2539 = vpop.f32.mrb[0].mxu0
      %2540 = vmatprep.mubr.f32.mxu0 0.0
      %2541 = vmatmul.mubr.f32.gmra.mrb[0].mxu0 %v2388
      %v2542 = vpop.f32.mrb[0].mxu0
      %v2543 = vadd.f32 %v2373, %v2542
      %v2544 = vpop.f32.mrb[0].mxu0
      %2545 = vmatprep.mubr.f32.mxu0 0.0
      %2546 = vmatmul.mubr.f32.gmra.mrb[0].mxu0 %v2391
      %v2547 = vpop.f32.mrb[0].mxu0
      %v2548 = vadd.f32 %v2373, %v2547
      %v2549 = vpop.f32.mrb[0].mxu0
      %2550 = vmatprep.mubr.f32.mxu0 0.0
      %2551 = vmatmul.mubr.f32.gmra.mrb[0].mxu0 %v2394
      %v2552 = vpop.f32.mrb[0].mxu0
      %v2553 = vadd.f32 %v2373, %v2552
      %v2554 = vpop.f32.mrb[0].mxu0
      %2555 = vmatprep.mubr.f32.mxu0 0.0
      %2556 = vmatmul.mubr.f32.gmra.mrb[0].mxu0 %v2397
      %v2557 = vpop.f32.mrb[0].mxu0
      %v2558 = vadd.f32 %v2373, %v2557
      %v2559 = vpop.f32.mrb[0].mxu0
      %2560 = vmatprep.mubr.f32.mxu0 0.0
      %2561 = vmatmul.mubr.f32.gmra.mrb[0].mxu0 %v2400
      %v2562 = vpop.f32.mrb[0].mxu0
      %v2563 = vadd.f32 %v2373, %v2562
      %v2564 = vpop.f32.mrb[0].mxu0
      %2565 = vmatprep.mubr.f32.mxu0 0.0
      %2566 = vmatmul.mubr.f32.gmra.mrb[0].mxu0 %v2403
      %v2567 = vpop.f32.mrb[0].mxu0
      %v2568 = vadd.f32 %v2373, %v2567
      %v2569 = vpop.f32.mrb[0].mxu0
      %2570 = vmatprep.mubr.f32.mxu0 0.0
      %2571 = vmatmul.mubr.f32.gmra.mrb[0].mxu0 %v2406
      %v2572 = vpop.f32.mrb[0].mxu0
      %v2573 = vadd.f32 %v2373, %v2572
      %v2574 = vpop.f32.mrb[0].mxu0
      %2575 = vmatprep.mubr.f32.mxu0 0.0
      %2576 = vmatmul.mubr.f32.gmra.mrb[0].mxu0 %v2409
      %v2577 = vpop.f32.mrb[0].mxu0
      %v2578 = vadd.f32 %v2373, %v2577
      %v2579 = vpop.f32.mrb[0].mxu0
      %2580 = vmatprep.mubr.f32.mxu0 0.0
      %2581 = vmatmul.mubr.f32.gmra.mrb[0].mxu0 %v2412
      %v2582 = vpop.f32.mrb[0].mxu0
      %v2583 = vadd.f32 %v2373, %v2582
      %v2584 = vpop.f32.mrb[0].mxu0
      %2585 = vmatprep.mubr.f32.mxu0 0.0
      %2586 = vmatmul.mubr.f32.gmra.mrb[0].mxu0 %v2415
      %v2587 = vpop.f32.mrb[0].mxu0
      %v2588 = vadd.f32 %v2373, %v2587
      %v2589 = vpop.f32.mrb[0].mxu0
      %2590 = vmatprep.mubr.f32.mxu0 0.0
      %2591 = vmatmul.mubr.f32.gmra.mrb[0].mxu0 %v2418
      %v2592 = vpop.f32.mrb[0].mxu0
      %v2593 = vadd.f32 %v2373, %v2592
      %v2594 = vpop.f32.mrb[0].mxu0
      %2595 = vmatprep.mubr.f32.mxu0 0.0
      %2596 = vmatmul.mubr.f32.gmra.mrb[0].mxu0 %v2421
      %v2597 = vpop.f32.mrb[0].mxu0
      %v2598 = vadd.f32 %v2373, %v2597
      %v2599 = vpop.f32.mrb[0].mxu0
      %2600 = vmatprep.mubr.f32.mxu0 0.0
      %2601 = vmatmul.mubr.f32.gmra.mrb[0].mxu0 %v2424
      %v2602 = vpop.f32.mrb[0].mxu0
      %v2603 = vadd.f32 %v2373, %v2602
      %v2604 = vpop.f32.mrb[0].mxu0
      %2605 = vmatprep.mubr.f32.mxu0 0.0
      %2606 = vmatmul.mubr.f32.gmra.mrb[0].mxu0 %v2427
      %v2607 = vpop.f32.mrb[0].mxu0
      %v2608 = vadd.f32 %v2373, %v2607
      %v2609 = vpop.f32.mrb[0].mxu0
      %2610 = vmatprep.mubr.f32.mxu0 0.0
      %2611 = vmatmul.mubr.f32.gmra.mrb[0].mxu0 %v2430
      %v2612 = vpop.f32.mrb[0].mxu0
      %v2613 = vadd.f32 %v2373, %v2612
      %v2614 = vpop.f32.mrb[0].mxu0
      %2615 = vmatprep.mubr.f32.mxu0 0.0
      %2616 = vmatmul.mubr.f32.gmra.mrb[0].mxu0 %v2433
      %v2617 = vpop.f32.mrb[0].mxu0
      %v2618 = vadd.f32 %v2373, %v2617
      %v2619 = vpop.f32.mrb[0].mxu0
      %2620 = vmatprep.mubr.f32.mxu0 0.0
      %2621 = vmatmul.mubr.f32.gmra.mrb[0].mxu0 %v2436
      %v2622 = vpop.f32.mrb[0].mxu0
      %v2623 = vadd.f32 %v2373, %v2622
      %v2624 = vpop.f32.mrb[0].mxu0
      %2625 = vmatprep.mubr.f32.mxu0 0.0
      %2626 = vmatmul.mubr.f32.gmra.mrb[0].mxu0 %v2439
      %v2627 = vpop.f32.mrb[0].mxu0
      %v2628 = vadd.f32 %v2373, %v2627
      %v2629 = vpop.f32.mrb[0].mxu0
      %2630 = vmatprep.mubr.f32.mxu0 0.0
      %2631 = vmatmul.mubr.f32.gmra.mrb[0].mxu0 %v2442
      %v2632 = vpop.f32.mrb[0].mxu0
      %v2633 = vadd.f32 %v2373, %v2632
      %v2634 = vpop.f32.mrb[0].mxu0
      %2635 = vmatprep.mubr.f32.mxu0 0.0
      %2636 = vmatmul.mubr.f32.gmra.mrb[0].mxu0 %v2445
      %v2637 = vpop.f32.mrb[0].mxu0
      %v2638 = vadd.f32 %v2373, %v2637
      %v2639 = vpop.f32.mrb[0].mxu0
      %2640 = vmatprep.mubr.f32.mxu0 0.0
      %2641 = vmatmul.mubr.f32.gmra.mrb[0].mxu0 %v2448
      %v2642 = vpop.f32.mrb[0].mxu0
      %v2643 = vadd.f32 %v2373, %v2642
      %v2644 = vpop.f32.mrb[0].mxu0
      %2645 = vmatprep.mubr.f32.mxu0 0.0
      %2646 = vmatmul.mubr.f32.gmra.mrb[0].mxu0 %v2451
      %v2647 = vpop.f32.mrb[0].mxu0
      %v2648 = vadd.f32 %v2373, %v2647
      %v2649 = vpop.f32.mrb[0].mxu0
      %2650 = vmatprep.mubr.f32.mxu0 0.0
      %2651 = vmatmul.mubr.f32.gmra.mrb[0].mxu0 %v2454
      %v2652 = vpop.f32.mrb[0].mxu0
      %v2653 = vadd.f32 %v2373, %v2652
      %v2654 = vpop.f32.mrb[0].mxu0
      %2655 = vdwg.mxu0
      %v2656 = vld [vmem:[%s12] sm:$0xff]
      %v2657 = vld [vmem:[%s12 + $0x8] sm:$0xff]
      %v2658 = vld [vmem:[%s12 + $0x10] sm:$0xff]
      %v2659 = vld [vmem:[%s12 + $0x18] sm:$0xff]
      %2687 = vrot.lane.b32.xlu0 %v2523, 96
      %v2688 = vpop.permute.xlu0 %2687
      %2689 = vrot.lane.b32.xlu0 %v2528, 96
      %v2690 = vpop.permute.xlu0 %2689
      %2691 = vrot.lane.b32.xlu0 %v2533, 96
      %v2692 = vpop.permute.xlu0 %2691
      %2693 = vrot.lane.b32.xlu0 %v2538, 96
      %v2694 = vpop.permute.xlu0 %2693
      %2695 = vrot.lane.b32.xlu0 %v2543, 96
      %v2696 = vpop.permute.xlu0 %2695
      %2697 = vrot.lane.b32.xlu0 %v2548, 96
      %v2698 = vpop.permute.xlu0 %2697
      %2699 = vrot.lane.b32.xlu0 %v2553, 96
      %v2700 = vpop.permute.xlu0 %2699
      %2701 = vrot.lane.b32.xlu0 %v2558, 96
      %v2702 = vpop.permute.xlu0 %2701
      %2703 = vrot.lane.b32.xlu0 %v2563, 96
      %v2704 = vpop.permute.xlu0 %2703
      %2705 = vrot.lane.b32.xlu0 %v2568, 96
      %v2706 = vpop.permute.xlu0 %2705
      %2707 = vrot.lane.b32.xlu0 %v2573, 96
      %v2708 = vpop.permute.xlu0 %2707
      %2709 = vrot.lane.b32.xlu0 %v2578, 96
      %v2710 = vpop.permute.xlu0 %2709
      %2711 = vrot.lane.b32.xlu0 %v2583, 96
      %v2712 = vpop.permute.xlu0 %2711
      %2713 = vrot.lane.b32.xlu0 %v2588, 96
      %v2714 = vpop.permute.xlu0 %2713
      %2715 = vrot.lane.b32.xlu0 %v2593, 96
      %v2716 = vpop.permute.xlu0 %2715
      %2717 = vrot.lane.b32.xlu0 %v2598, 96
      %v2718 = vpop.permute.xlu0 %2717
      %2719 = vrot.lane.b32.xlu0 %v2603, 96
      %v2720 = vpop.permute.xlu0 %2719
      %2721 = vrot.lane.b32.xlu0 %v2608, 96
      %v2722 = vpop.permute.xlu0 %2721
      %2723 = vrot.lane.b32.xlu0 %v2613, 96
      %v2724 = vpop.permute.xlu0 %2723
      %2725 = vrot.lane.b32.xlu0 %v2618, 96
      %v2726 = vpop.permute.xlu0 %2725
      %2727 = vrot.lane.b32.xlu0 %v2623, 96
      %v2728 = vpop.permute.xlu0 %2727
      %2729 = vrot.lane.b32.xlu0 %v2628, 96
      %v2730 = vpop.permute.xlu0 %2729
      %2731 = vrot.lane.b32.xlu0 %v2633, 96
      %v2732 = vpop.permute.xlu0 %2731
      %2733 = vrot.lane.b32.xlu0 %v2638, 96
      %v2734 = vpop.permute.xlu0 %2733
      %2735 = vrot.lane.b32.xlu0 %v2643, 96
      %v2736 = vpop.permute.xlu0 %2735
      %2737 = vrot.lane.b32.xlu0 %v2648, 96
      %v2738 = vpop.permute.xlu0 %2737
      %2739 = vrot.lane.b32.xlu0 %v2653, 96
      %v2740 = vpop.permute.xlu0 %2739
      %v2741 = vsel %vm598, %v2688, 0
      %v2743 = vsel %vm598, %v2690, 0
      %v2745 = vsel %vm598, %v2692, 0
      %v2747 = vsel %vm598, %v2694, 0
      %v2749 = vsel %vm598, %v2696, 0
      %v2751 = vsel %vm598, %v2698, 0
      %v2753 = vsel %vm598, %v2700, 0
      %v2755 = vsel %vm598, %v2702, 0
      %v2757 = vsel %vm598, %v2704, 0
      %v2759 = vsel %vm598, %v2706, 0
      %v2761 = vsel %vm598, %v2708, 0
      %v2763 = vsel %vm598, %v2710, 0
      %v2765 = vsel %vm598, %v2712, 0
      %v2767 = vsel %vm598, %v2714, 0
      %v2769 = vsel %vm598, %v2716, 0
      %v2771 = vsel %vm598, %v2718, 0
      %v2773 = vsel %vm598, %v2720, 0
      %v2775 = vsel %vm598, %v2722, 0
      %v2777 = vsel %vm598, %v2724, 0
      %v2779 = vsel %vm598, %v2726, 0
      %v2781 = vsel %vm598, %v2728, 0
      %v2783 = vsel %vm598, %v2730, 0
      %v2785 = vsel %vm598, %v2732, 0
      %v2787 = vsel %vm598, %v2734, 0
      %v2789 = vsel %vm598, %v2736, 0
      %v2791 = vsel %vm598, %v2738, 0
      %v2793 = vsel %vm598, %v2740, 0
      %2795 = vmatprep.subr.mxu0 0.0
      %2796 = vmatpush1.msra.mxu0 %v2656
      %2797 = vmatprep.subr.mxu0 0.0
      %2798 = vmatpush1.msra.mxu0 %v2657
      %2799 = vmatprep.subr.mxu0 0.0
      %2800 = vmatpush1.msra.mxu0 %v2658
      %2801 = vmatprep.subr.mxu0 0.0
      %2802 = vmatpush1.msra.mxu0 %v2659
      %2803 = vmatprep.subr.mxu0 0.0
      %2804 = vmatpush1.msra.mxu0 0.0
      %2805 = vmatprep.subr.mxu0 0.0
      %2806 = vmatpush1.msra.mxu0 0.0
      %2807 = vmatprep.subr.mxu0 0.0
      %2808 = vmatpush1.msra.mxu0 0.0
      %2809 = vmatprep.subr.mxu0 0.0
      %2810 = vmatpush1.msra.mxu0 0.0
      %2811 = vmatprep.subr.mxu0 0.0
      %2812 = vmatpush1.msra.mxu0 0.0
      %2813 = vmatprep.subr.mxu0 0.0
      %2814 = vmatpush1.msra.mxu0 0.0
      %2815 = vmatprep.subr.mxu0 0.0
      %2816 = vmatpush1.msra.mxu0 0.0
      %2817 = vmatprep.subr.mxu0 0.0
      %2818 = vmatpush1.msra.mxu0 0.0
      %2819 = vmatprep.subr.mxu0 0.0
      %2820 = vmatpush1.msra.mxu0 0.0
      %2821 = vmatprep.subr.mxu0 0.0
      %2822 = vmatpush1.msra.mxu0 0.0
      %2823 = vmatprep.subr.mxu0 0.0
      %2824 = vmatpush1.msra.mxu0 0.0
      %2825 = vmatprep.subr.mxu0 0.0
      %2826 = vmatpush1.msra.mxu0 0.0
      %2827 = vmatprep.subr.mxu0 0.0
      %2828 = vmatpush1.msra.mxu0 0.0
      %2829 = vmatprep.subr.mxu0 0.0
      %2830 = vmatpush1.msra.mxu0 0.0
      %2831 = vmatprep.subr.mxu0 0.0
      %2832 = vmatpush1.msra.mxu0 0.0
      %2833 = vmatprep.subr.mxu0 0.0
      %2834 = vmatpush1.msra.mxu0 0.0
      %2835 = vmatprep.subr.mxu0 0.0
      %2836 = vmatpush1.msra.mxu0 0.0
      %2837 = vmatprep.subr.mxu0 0.0
      %2838 = vmatpush1.msra.mxu0 0.0
      %2839 = vmatprep.subr.mxu0 0.0
      %2840 = vmatpush1.msra.mxu0 0.0
      %2841 = vmatprep.subr.mxu0 0.0
      %2842 = vmatpush1.msra.mxu0 0.0
      %2843 = vmatprep.subr.mxu0 0.0
      %2844 = vmatpush1.msra.mxu0 0.0
      %2845 = vmatprep.subr.mxu0 0.0
      %2846 = vmatpush1.msra.mxu0 0.0
      %2847 = vmatprep.subr.mxu0 0.0
      %2848 = vmatpush1.msra.mxu0 0.0
      %2849 = vmatprep.subr.mxu0 0.0
      %2850 = vmatpush1.msra.mxu0 0.0
      %2851 = vmatprep.subr.mxu0 0.0
      %2852 = vmatpush1.msra.mxu0 0.0
      %2853 = vmatprep.subr.mxu0 0.0
      %2854 = vmatpush1.msra.mxu0 0.0
      %2855 = vmatprep.subr.mxu0 0.0
      %2856 = vmatpush1.msra.mxu0 0.0
      %2857 = vmatprep.subr.mxu0 0.0
      %2858 = vmatpush1.msra.mxu0 0.0
      %2859 = vmatprep.mubr.f32.mxu0 0.0
      %2860 = vmatmul.mubr.f32.gmra.mrb[0].mxu0 %v2741
      %v2861 = vpop.f32.mrb[0].mxu0
      %v2862 = vadd.f32 0.0, %v2861
      %v2863 = vpop.f32.mrb[0].mxu0
      %2864 = vmatprep.mubr.f32.mxu0 0.0
      %2865 = vmatmul.mubr.f32.gmra.mrb[0].mxu0 %v2743
      %v2866 = vpop.f32.mrb[0].mxu0
      %v2867 = vadd.f32 0.0, %v2866
      %v2868 = vpop.f32.mrb[0].mxu0
      %2869 = vmatprep.mubr.f32.mxu0 0.0
      %2870 = vmatmul.mubr.f32.gmra.mrb[0].mxu0 %v2745
      %v2871 = vpop.f32.mrb[0].mxu0
      %v2872 = vadd.f32 0.0, %v2871
      %v2873 = vpop.f32.mrb[0].mxu0
      %2874 = vmatprep.mubr.f32.mxu0 0.0
      %2875 = vmatmul.mubr.f32.gmra.mrb[0].mxu0 %v2747
      %v2876 = vpop.f32.mrb[0].mxu0
      %v2877 = vadd.f32 0.0, %v2876
      %v2878 = vpop.f32.mrb[0].mxu0
      %2879 = vmatprep.mubr.f32.mxu0 0.0
      %2880 = vmatmul.mubr.f32.gmra.mrb[0].mxu0 %v2749
      %v2881 = vpop.f32.mrb[0].mxu0
      %v2882 = vadd.f32 0.0, %v2881
      %v2883 = vpop.f32.mrb[0].mxu0
      %2884 = vmatprep.mubr.f32.mxu0 0.0
      %2885 = vmatmul.mubr.f32.gmra.mrb[0].mxu0 %v2751
      %v2886 = vpop.f32.mrb[0].mxu0
      %v2887 = vadd.f32 0.0, %v2886
      %v2888 = vpop.f32.mrb[0].mxu0
      %2889 = vmatprep.mubr.f32.mxu0 0.0
      %2890 = vmatmul.mubr.f32.gmra.mrb[0].mxu0 %v2753
      %v2891 = vpop.f32.mrb[0].mxu0
      %v2892 = vadd.f32 0.0, %v2891
      %v2893 = vpop.f32.mrb[0].mxu0
      %2894 = vmatprep.mubr.f32.mxu0 0.0
      %2895 = vmatmul.mubr.f32.gmra.mrb[0].mxu0 %v2755
      %v2896 = vpop.f32.mrb[0].mxu0
      %v2897 = vadd.f32 0.0, %v2896
      %v2898 = vpop.f32.mrb[0].mxu0
      %2899 = vmatprep.mubr.f32.mxu0 0.0
      %2900 = vmatmul.mubr.f32.gmra.mrb[0].mxu0 %v2757
      %v2901 = vpop.f32.mrb[0].mxu0
      %v2902 = vadd.f32 0.0, %v2901
      %v2903 = vpop.f32.mrb[0].mxu0
      %2904 = vmatprep.mubr.f32.mxu0 0.0
      %2905 = vmatmul.mubr.f32.gmra.mrb[0].mxu0 %v2759
      %v2906 = vpop.f32.mrb[0].mxu0
      %v2907 = vadd.f32 0.0, %v2906
      %v2908 = vpop.f32.mrb[0].mxu0
      %2909 = vmatprep.mubr.f32.mxu0 0.0
      %2910 = vmatmul.mubr.f32.gmra.mrb[0].mxu0 %v2761
      %v2911 = vpop.f32.mrb[0].mxu0
      %v2912 = vadd.f32 0.0, %v2911
      %v2913 = vpop.f32.mrb[0].mxu0
      %2914 = vmatprep.mubr.f32.mxu0 0.0
      %2915 = vmatmul.mubr.f32.gmra.mrb[0].mxu0 %v2763
      %v2916 = vpop.f32.mrb[0].mxu0
      %v2917 = vadd.f32 0.0, %v2916
      %v2918 = vpop.f32.mrb[0].mxu0
      %2919 = vmatprep.mubr.f32.mxu0 0.0
      %2920 = vmatmul.mubr.f32.gmra.mrb[0].mxu0 %v2765
      %v2921 = vpop.f32.mrb[0].mxu0
      %v2922 = vadd.f32 0.0, %v2921
      %v2923 = vpop.f32.mrb[0].mxu0
      %2924 = vmatprep.mubr.f32.mxu0 0.0
      %2925 = vmatmul.mubr.f32.gmra.mrb[0].mxu0 %v2767
      %v2926 = vpop.f32.mrb[0].mxu0
      %v2927 = vadd.f32 0.0, %v2926
      %v2928 = vpop.f32.mrb[0].mxu0
      %2929 = vmatprep.mubr.f32.mxu0 0.0
      %2930 = vmatmul.mubr.f32.gmra.mrb[0].mxu0 %v2769
      %v2931 = vpop.f32.mrb[0].mxu0
      %v2932 = vadd.f32 0.0, %v2931
      %v2933 = vpop.f32.mrb[0].mxu0
      %2934 = vmatprep.mubr.f32.mxu0 0.0
      %2935 = vmatmul.mubr.f32.gmra.mrb[0].mxu0 %v2771
      %v2936 = vpop.f32.mrb[0].mxu0
      %v2937 = vadd.f32 0.0, %v2936
      %v2938 = vpop.f32.mrb[0].mxu0
      %2939 = vmatprep.mubr.f32.mxu0 0.0
      %2940 = vmatmul.mubr.f32.gmra.mrb[0].mxu0 %v2773
      %v2941 = vpop.f32.mrb[0].mxu0
      %v2942 = vadd.f32 0.0, %v2941
      %v2943 = vpop.f32.mrb[0].mxu0
      %2944 = vmatprep.mubr.f32.mxu0 0.0
      %2945 = vmatmul.mubr.f32.gmra.mrb[0].mxu0 %v2775
      %v2946 = vpop.f32.mrb[0].mxu0
      %v2947 = vadd.f32 0.0, %v2946
      %v2948 = vpop.f32.mrb[0].mxu0
      %2949 = vmatprep.mubr.f32.mxu0 0.0
      %2950 = vmatmul.mubr.f32.gmra.mrb[0].mxu0 %v2777
      %v2951 = vpop.f32.mrb[0].mxu0
      %v2952 = vadd.f32 0.0, %v2951
      %v2953 = vpop.f32.mrb[0].mxu0
      %2954 = vmatprep.mubr.f32.mxu0 0.0
      %2955 = vmatmul.mubr.f32.gmra.mrb[0].mxu0 %v2779
      %v2956 = vpop.f32.mrb[0].mxu0
      %v2957 = vadd.f32 0.0, %v2956
      %v2958 = vpop.f32.mrb[0].mxu0
      %2959 = vmatprep.mubr.f32.mxu0 0.0
      %2960 = vmatmul.mubr.f32.gmra.mrb[0].mxu0 %v2781
      %v2961 = vpop.f32.mrb[0].mxu0
      %v2962 = vadd.f32 0.0, %v2961
      %v2963 = vpop.f32.mrb[0].mxu0
      %2964 = vmatprep.mubr.f32.mxu0 0.0
      %2965 = vmatmul.mubr.f32.gmra.mrb[0].mxu0 %v2783
      %v2966 = vpop.f32.mrb[0].mxu0
      %v2967 = vadd.f32 0.0, %v2966
      %v2968 = vpop.f32.mrb[0].mxu0
      %2969 = vmatprep.mubr.f32.mxu0 0.0
      %2970 = vmatmul.mubr.f32.gmra.mrb[0].mxu0 %v2785
      %v2971 = vpop.f32.mrb[0].mxu0
      %v2972 = vadd.f32 0.0, %v2971
      %v2973 = vpop.f32.mrb[0].mxu0
      %2974 = vmatprep.mubr.f32.mxu0 0.0
      %2975 = vmatmul.mubr.f32.gmra.mrb[0].mxu0 %v2787
      %v2976 = vpop.f32.mrb[0].mxu0
      %v2977 = vadd.f32 0.0, %v2976
      %v2978 = vpop.f32.mrb[0].mxu0
      %2979 = vmatprep.mubr.f32.mxu0 0.0
      %2980 = vmatmul.mubr.f32.gmra.mrb[0].mxu0 %v2789
      %v2981 = vpop.f32.mrb[0].mxu0
      %v2982 = vadd.f32 0.0, %v2981
      %v2983 = vpop.f32.mrb[0].mxu0
      %2984 = vmatprep.mubr.f32.mxu0 0.0
      %2985 = vmatmul.mubr.f32.gmra.mrb[0].mxu0 %v2791
      %v2986 = vpop.f32.mrb[0].mxu0
      %v2987 = vadd.f32 0.0, %v2986
      %v2988 = vpop.f32.mrb[0].mxu0
      %2989 = vmatprep.mubr.f32.mxu0 0.0
      %2990 = vmatmul.mubr.f32.gmra.mrb[0].mxu0 %v2793
      %v2991 = vpop.f32.mrb[0].mxu0
      %v2992 = vadd.f32 0.0, %v2991
      %v2993 = vpop.f32.mrb[0].mxu0
      %2994 = vdwg.mxu0
      %2995 = vrot.lane.b32.xlu0 %v2523, 112
      %v2996 = vpop.permute.xlu0 %2995
      %2997 = vrot.lane.b32.xlu0 %v2528, 112
      %v2998 = vpop.permute.xlu0 %2997
      %2999 = vrot.lane.b32.xlu0 %v2533, 112
      %v3000 = vpop.permute.xlu0 %2999
      %3001 = vrot.lane.b32.xlu0 %v2538, 112
      %v3002 = vpop.permute.xlu0 %3001
      %3003 = vrot.lane.b32.xlu0 %v2543, 112
      %v3004 = vpop.permute.xlu0 %3003
      %3005 = vrot.lane.b32.xlu0 %v2548, 112
      %v3006 = vpop.permute.xlu0 %3005
      %3007 = vrot.lane.b32.xlu0 %v2553, 112
      %v3008 = vpop.permute.xlu0 %3007
      %3009 = vrot.lane.b32.xlu0 %v2558, 112
      %v3010 = vpop.permute.xlu0 %3009
      %3011 = vrot.lane.b32.xlu0 %v2563, 112
      %v3012 = vpop.permute.xlu0 %3011
      %3013 = vrot.lane.b32.xlu0 %v2568, 112
      %v3014 = vpop.permute.xlu0 %3013
      %3015 = vrot.lane.b32.xlu0 %v2573, 112
      %v3016 = vpop.permute.xlu0 %3015
      %3017 = vrot.lane.b32.xlu0 %v2578, 112
      %v3018 = vpop.permute.xlu0 %3017
      %3019 = vrot.lane.b32.xlu0 %v2583, 112
      %v3020 = vpop.permute.xlu0 %3019
      %3021 = vrot.lane.b32.xlu0 %v2588, 112
      %v3022 = vpop.permute.xlu0 %3021
      %3023 = vrot.lane.b32.xlu0 %v2593, 112
      %v3024 = vpop.permute.xlu0 %3023
      %3025 = vrot.lane.b32.xlu0 %v2598, 112
      %v3026 = vpop.permute.xlu0 %3025
      %3027 = vrot.lane.b32.xlu0 %v2603, 112
      %v3028 = vpop.permute.xlu0 %3027
      %3029 = vrot.lane.b32.xlu0 %v2608, 112
      %v3030 = vpop.permute.xlu0 %3029
      %3031 = vrot.lane.b32.xlu0 %v2613, 112
      %v3032 = vpop.permute.xlu0 %3031
      %3033 = vrot.lane.b32.xlu0 %v2618, 112
      %v3034 = vpop.permute.xlu0 %3033
      %3035 = vrot.lane.b32.xlu0 %v2623, 112
      %v3036 = vpop.permute.xlu0 %3035
      %3037 = vrot.lane.b32.xlu0 %v2628, 112
      %v3038 = vpop.permute.xlu0 %3037
      %3039 = vrot.lane.b32.xlu0 %v2633, 112
      %v3040 = vpop.permute.xlu0 %3039
      %3041 = vrot.lane.b32.xlu0 %v2638, 112
      %v3042 = vpop.permute.xlu0 %3041
      %3043 = vrot.lane.b32.xlu0 %v2643, 112
      %v3044 = vpop.permute.xlu0 %3043
      %3045 = vrot.lane.b32.xlu0 %v2648, 112
      %v3046 = vpop.permute.xlu0 %3045
      %3047 = vrot.lane.b32.xlu0 %v2653, 112
      %v3048 = vpop.permute.xlu0 %3047
      %v3049 = vsel %vm1497, %v2523, 0
      %v3051 = vsel %vm1497, %v2528, 0
      %v3053 = vsel %vm1497, %v2533, 0
      %v3055 = vsel %vm1497, %v2538, 0
      %v3057 = vsel %vm1497, %v2543, 0
      %v3059 = vsel %vm1497, %v2548, 0
      %v3061 = vsel %vm1497, %v2553, 0
      %v3063 = vsel %vm1497, %v2558, 0
      %v3065 = vsel %vm1497, %v2563, 0
      %v3067 = vsel %vm1497, %v2568, 0
      %v3069 = vsel %vm1497, %v2573, 0
      %v3071 = vsel %vm1497, %v2578, 0
      %v3073 = vsel %vm1497, %v2583, 0
      %v3075 = vsel %vm1497, %v2588, 0
      %v3077 = vsel %vm1497, %v2593, 0
      %v3079 = vsel %vm1497, %v2598, 0
      %v3081 = vsel %vm1497, %v2603, 0
      %v3083 = vsel %vm1497, %v2608, 0
      %v3085 = vsel %vm1497, %v2613, 0
      %v3087 = vsel %vm1497, %v2618, 0
      %v3089 = vsel %vm1497, %v2623, 0
      %v3091 = vsel %vm1497, %v2628, 0
      %v3093 = vsel %vm1497, %v2633, 0
      %v3095 = vsel %vm1497, %v2638, 0
      %v3097 = vsel %vm1497, %v2643, 0
      %v3099 = vsel %vm1497, %v2648, 0
      %v3101 = vsel %vm1497, %v2653, 0
      %v3103 = vsel %vm1497, %v2996, 0
      %v3105 = vsel %vm1497, %v2998, 0
      %v3107 = vsel %vm1497, %v3000, 0
      %v3109 = vsel %vm1497, %v3002, 0
      %v3111 = vsel %vm1497, %v3004, 0
      %v3113 = vsel %vm1497, %v3006, 0
      %v3115 = vsel %vm1497, %v3008, 0
      %v3117 = vsel %vm1497, %v3010, 0
      %v3119 = vsel %vm1497, %v3012, 0
      %v3121 = vsel %vm1497, %v3014, 0
      %v3123 = vsel %vm1497, %v3016, 0
      %v3125 = vsel %vm1497, %v3018, 0
      %v3127 = vsel %vm1497, %v3020, 0
      %v3129 = vsel %vm1497, %v3022, 0
      %v3131 = vsel %vm1497, %v3024, 0
      %v3133 = vsel %vm1497, %v3026, 0
      %v3135 = vsel %vm1497, %v3028, 0
      %v3137 = vsel %vm1497, %v3030, 0
      %v3139 = vsel %vm1497, %v3032, 0
      %v3141 = vsel %vm1497, %v3034, 0
      %v3143 = vsel %vm1497, %v3036, 0
      %v3145 = vsel %vm1497, %v3038, 0
      %v3147 = vsel %vm1497, %v3040, 0
      %v3149 = vsel %vm1497, %v3042, 0
      %v3151 = vsel %vm1497, %v3044, 0
      %v3153 = vsel %vm1497, %v3046, 0
      %v3155 = vsel %vm1497, %v3048, 0
      %3157 = vmatprep.subr.mxu0 0.0
      %3158 = vmatpush1.xpose.msra.mxu0 %v3103
      %3159 = vmatprep.subr.mxu0 0.0
      %3160 = vmatpush1.xpose.msra.mxu0 %v3105
      %3161 = vmatprep.subr.mxu0 0.0
      %3162 = vmatpush1.xpose.msra.mxu0 %v3107
      %3163 = vmatprep.subr.mxu0 0.0
      %3164 = vmatpush1.xpose.msra.mxu0 %v3109
      %3165 = vmatprep.subr.mxu0 0.0
      %3166 = vmatpush1.xpose.msra.mxu0 %v3111
      %3167 = vmatprep.subr.mxu0 0.0
      %3168 = vmatpush1.xpose.msra.mxu0 %v3113
      %3169 = vmatprep.subr.mxu0 0.0
      %3170 = vmatpush1.xpose.msra.mxu0 %v3115
      %3171 = vmatprep.subr.mxu0 0.0
      %3172 = vmatpush1.xpose.msra.mxu0 %v3117
      %3173 = vmatprep.subr.mxu0 0.0
      %3174 = vmatpush1.xpose.msra.mxu0 %v3119
      %3175 = vmatprep.subr.mxu0 0.0
      %3176 = vmatpush1.xpose.msra.mxu0 %v3121
      %3177 = vmatprep.subr.mxu0 0.0
      %3178 = vmatpush1.xpose.msra.mxu0 %v3123
      %3179 = vmatprep.subr.mxu0 0.0
      %3180 = vmatpush1.xpose.msra.mxu0 %v3125
      %3181 = vmatprep.subr.mxu0 0.0
      %3182 = vmatpush1.xpose.msra.mxu0 %v3127
      %3183 = vmatprep.subr.mxu0 0.0
      %3184 = vmatpush1.xpose.msra.mxu0 %v3129
      %3185 = vmatprep.subr.mxu0 0.0
      %3186 = vmatpush1.xpose.msra.mxu0 %v3131
      %3187 = vmatprep.subr.mxu0 0.0
      %3188 = vmatpush1.xpose.msra.mxu0 %v3133
      %3189 = vmatprep.subr.mxu0 0.0
      %3190 = vmatpush1.xpose.msra.mxu0 %v3135
      %3191 = vmatprep.subr.mxu0 0.0
      %3192 = vmatpush1.xpose.msra.mxu0 %v3137
      %3193 = vmatprep.subr.mxu0 0.0
      %3194 = vmatpush1.xpose.msra.mxu0 %v3139
      %3195 = vmatprep.subr.mxu0 0.0
      %3196 = vmatpush1.xpose.msra.mxu0 %v3141
      %3197 = vmatprep.subr.mxu0 0.0
      %3198 = vmatpush1.xpose.msra.mxu0 %v3143
      %3199 = vmatprep.subr.mxu0 0.0
      %3200 = vmatpush1.xpose.msra.mxu0 %v3145
      %3201 = vmatprep.subr.mxu0 0.0
      %3202 = vmatpush1.xpose.msra.mxu0 %v3147
      %3203 = vmatprep.subr.mxu0 0.0
      %3204 = vmatpush1.xpose.msra.mxu0 %v3149
      %3205 = vmatprep.subr.mxu0 0.0
      %3206 = vmatpush1.xpose.msra.mxu0 %v3151
      %3207 = vmatprep.subr.mxu0 0.0
      %3208 = vmatpush1.xpose.msra.mxu0 %v3153
      %3209 = vmatprep.subr.mxu0 0.0
      %3210 = vmatpush1.xpose.msra.mxu0 %v3155
      %3211 = vmatprep.subr.mxu0 0.0
      %3212 = vmatpush1.xpose.msra.mxu0 0.0
      %3213 = vmatprep.subr.mxu0 0.0
      %3214 = vmatpush1.xpose.msra.mxu0 0.0
      %3215 = vmatprep.subr.mxu0 0.0
      %3216 = vmatpush1.xpose.msra.mxu0 0.0
      %3217 = vmatprep.subr.mxu0 0.0
      %3218 = vmatpush1.xpose.msra.mxu0 0.0
      %3219 = vmatprep.subr.mxu0 0.0
      %3220 = vmatpush1.xpose.msra.mxu0 0.0
      %3221 = vmatprep.mubr.f32.mxu0 0.0
      %3222 = vmatmul.mubr.f32.gmra.mrb[0].mxu0 %v3049
      %v3223 = vpop.f32.mrb[0].mxu0
      %v3224 = vadd.f32 0.0, %v3223
      %v3225 = vpop.f32.mrb[0].mxu0
      %v3226 = vadd.f32 0.0, %v3225
      %3227 = vmatprep.mubr.f32.mxu0 0.0
      %3228 = vmatmul.mubr.f32.gmra.mrb[0].mxu0 %v3051
      %v3229 = vpop.f32.mrb[0].mxu0
      %v3230 = vadd.f32 0.0, %v3229
      %v3231 = vpop.f32.mrb[0].mxu0
      %v3232 = vadd.f32 0.0, %v3231
      %3233 = vmatprep.mubr.f32.mxu0 0.0
      %3234 = vmatmul.mubr.f32.gmra.mrb[0].mxu0 %v3053
      %v3235 = vpop.f32.mrb[0].mxu0
      %v3236 = vadd.f32 0.0, %v3235
      %v3237 = vpop.f32.mrb[0].mxu0
      %v3238 = vadd.f32 0.0, %v3237
      %3239 = vmatprep.mubr.f32.mxu0 0.0
      %3240 = vmatmul.mubr.f32.gmra.mrb[0].mxu0 %v3055
      %v3241 = vpop.f32.mrb[0].mxu0
      %v3242 = vadd.f32 0.0, %v3241
      %v3243 = vpop.f32.mrb[0].mxu0
      %v3244 = vadd.f32 0.0, %v3243
      %3245 = vmatprep.mubr.f32.mxu0 0.0
      %3246 = vmatmul.mubr.f32.gmra.mrb[0].mxu0 %v3057
      %v3247 = vpop.f32.mrb[0].mxu0
      %v3248 = vadd.f32 0.0, %v3247
      %v3249 = vpop.f32.mrb[0].mxu0
      %v3250 = vadd.f32 0.0, %v3249
      %3251 = vmatprep.mubr.f32.mxu0 0.0
      %3252 = vmatmul.mubr.f32.gmra.mrb[0].mxu0 %v3059
      %v3253 = vpop.f32.mrb[0].mxu0
      %v3254 = vadd.f32 0.0, %v3253
      %v3255 = vpop.f32.mrb[0].mxu0
      %v3256 = vadd.f32 0.0, %v3255
      %3257 = vmatprep.mubr.f32.mxu0 0.0
      %3258 = vmatmul.mubr.f32.gmra.mrb[0].mxu0 %v3061
      %v3259 = vpop.f32.mrb[0].mxu0
      %v3260 = vadd.f32 0.0, %v3259
      %v3261 = vpop.f32.mrb[0].mxu0
      %v3262 = vadd.f32 0.0, %v3261
      %3263 = vmatprep.mubr.f32.mxu0 0.0
      %3264 = vmatmul.mubr.f32.gmra.mrb[0].mxu0 %v3063
      %v3265 = vpop.f32.mrb[0].mxu0
      %v3266 = vadd.f32 0.0, %v3265
      %v3267 = vpop.f32.mrb[0].mxu0
      %v3268 = vadd.f32 0.0, %v3267
      %3269 = vmatprep.mubr.f32.mxu0 0.0
      %3270 = vmatmul.mubr.f32.gmra.mrb[0].mxu0 %v3065
      %v3271 = vpop.f32.mrb[0].mxu0
      %v3272 = vadd.f32 0.0, %v3271
      %v3273 = vpop.f32.mrb[0].mxu0
      %v3274 = vadd.f32 0.0, %v3273
      %3275 = vmatprep.mubr.f32.mxu0 0.0
      %3276 = vmatmul.mubr.f32.gmra.mrb[0].mxu0 %v3067
      %v3277 = vpop.f32.mrb[0].mxu0
      %v3278 = vadd.f32 0.0, %v3277
      %v3279 = vpop.f32.mrb[0].mxu0
      %v3280 = vadd.f32 0.0, %v3279
      %3281 = vmatprep.mubr.f32.mxu0 0.0
      %3282 = vmatmul.mubr.f32.gmra.mrb[0].mxu0 %v3069
      %v3283 = vpop.f32.mrb[0].mxu0
      %v3284 = vadd.f32 0.0, %v3283
      %v3285 = vpop.f32.mrb[0].mxu0
      %v3286 = vadd.f32 0.0, %v3285
      %3287 = vmatprep.mubr.f32.mxu0 0.0
      %3288 = vmatmul.mubr.f32.gmra.mrb[0].mxu0 %v3071
      %v3289 = vpop.f32.mrb[0].mxu0
      %v3290 = vadd.f32 0.0, %v3289
      %v3291 = vpop.f32.mrb[0].mxu0
      %v3292 = vadd.f32 0.0, %v3291
      %3293 = vmatprep.mubr.f32.mxu0 0.0
      %3294 = vmatmul.mubr.f32.gmra.mrb[0].mxu0 %v3073
      %v3295 = vpop.f32.mrb[0].mxu0
      %v3296 = vadd.f32 0.0, %v3295
      %v3297 = vpop.f32.mrb[0].mxu0
      %v3298 = vadd.f32 0.0, %v3297
      %3299 = vmatprep.mubr.f32.mxu0 0.0
      %3300 = vmatmul.mubr.f32.gmra.mrb[0].mxu0 %v3075
      %v3301 = vpop.f32.mrb[0].mxu0
      %v3302 = vadd.f32 0.0, %v3301
      %v3303 = vpop.f32.mrb[0].mxu0
      %v3304 = vadd.f32 0.0, %v3303
      %3305 = vmatprep.mubr.f32.mxu0 0.0
      %3306 = vmatmul.mubr.f32.gmra.mrb[0].mxu0 %v3077
      %v3307 = vpop.f32.mrb[0].mxu0
      %v3308 = vadd.f32 0.0, %v3307
      %v3309 = vpop.f32.mrb[0].mxu0
      %v3310 = vadd.f32 0.0, %v3309
      %3311 = vmatprep.mubr.f32.mxu0 0.0
      %3312 = vmatmul.mubr.f32.gmra.mrb[0].mxu0 %v3079
      %v3313 = vpop.f32.mrb[0].mxu0
      %v3314 = vadd.f32 0.0, %v3313
      %v3315 = vpop.f32.mrb[0].mxu0
      %v3316 = vadd.f32 0.0, %v3315
      %3317 = vmatprep.mubr.f32.mxu0 0.0
      %3318 = vmatmul.mubr.f32.gmra.mrb[0].mxu0 %v3081
      %v3319 = vpop.f32.mrb[0].mxu0
      %v3320 = vadd.f32 0.0, %v3319
      %v3321 = vpop.f32.mrb[0].mxu0
      %v3322 = vadd.f32 0.0, %v3321
      %3323 = vmatprep.mubr.f32.mxu0 0.0
      %3324 = vmatmul.mubr.f32.gmra.mrb[0].mxu0 %v3083
      %v3325 = vpop.f32.mrb[0].mxu0
      %v3326 = vadd.f32 0.0, %v3325
      %v3327 = vpop.f32.mrb[0].mxu0
      %v3328 = vadd.f32 0.0, %v3327
      %3329 = vmatprep.mubr.f32.mxu0 0.0
      %3330 = vmatmul.mubr.f32.gmra.mrb[0].mxu0 %v3085
      %v3331 = vpop.f32.mrb[0].mxu0
      %v3332 = vadd.f32 0.0, %v3331
      %v3333 = vpop.f32.mrb[0].mxu0
      %v3334 = vadd.f32 0.0, %v3333
      %3335 = vmatprep.mubr.f32.mxu0 0.0
      %3336 = vmatmul.mubr.f32.gmra.mrb[0].mxu0 %v3087
      %v3337 = vpop.f32.mrb[0].mxu0
      %v3338 = vadd.f32 0.0, %v3337
      %v3339 = vpop.f32.mrb[0].mxu0
      %v3340 = vadd.f32 0.0, %v3339
      %3341 = vmatprep.mubr.f32.mxu0 0.0
      %3342 = vmatmul.mubr.f32.gmra.mrb[0].mxu0 %v3089
      %v3343 = vpop.f32.mrb[0].mxu0
      %v3344 = vadd.f32 0.0, %v3343
      %v3345 = vpop.f32.mrb[0].mxu0
      %v3346 = vadd.f32 0.0, %v3345
      %3347 = vmatprep.mubr.f32.mxu0 0.0
      %3348 = vmatmul.mubr.f32.gmra.mrb[0].mxu0 %v3091
      %v3349 = vpop.f32.mrb[0].mxu0
      %v3350 = vadd.f32 0.0, %v3349
      %v3351 = vpop.f32.mrb[0].mxu0
      %v3352 = vadd.f32 0.0, %v3351
      %3353 = vmatprep.mubr.f32.mxu0 0.0
      %3354 = vmatmul.mubr.f32.gmra.mrb[0].mxu0 %v3093
      %v3355 = vpop.f32.mrb[0].mxu0
      %v3356 = vadd.f32 0.0, %v3355
      %v3357 = vpop.f32.mrb[0].mxu0
      %v3358 = vadd.f32 0.0, %v3357
      %3359 = vmatprep.mubr.f32.mxu0 0.0
      %3360 = vmatmul.mubr.f32.gmra.mrb[0].mxu0 %v3095
      %v3361 = vpop.f32.mrb[0].mxu0
      %v3362 = vadd.f32 0.0, %v3361
      %v3363 = vpop.f32.mrb[0].mxu0
      %v3364 = vadd.f32 0.0, %v3363
      %3365 = vmatprep.mubr.f32.mxu0 0.0
      %3366 = vmatmul.mubr.f32.gmra.mrb[0].mxu0 %v3097
      %v3367 = vpop.f32.mrb[0].mxu0
      %v3368 = vadd.f32 0.0, %v3367
      %v3369 = vpop.f32.mrb[0].mxu0
      %v3370 = vadd.f32 0.0, %v3369
      %3371 = vmatprep.mubr.f32.mxu0 0.0
      %3372 = vmatmul.mubr.f32.gmra.mrb[0].mxu0 %v3099
      %v3373 = vpop.f32.mrb[0].mxu0
      %v3374 = vadd.f32 0.0, %v3373
      %v3375 = vpop.f32.mrb[0].mxu0
      %v3376 = vadd.f32 0.0, %v3375
      %3377 = vmatprep.mubr.f32.mxu0 0.0
      %3378 = vmatmul.mubr.f32.gmra.mrb[0].mxu0 %v3101
      %v3379 = vpop.f32.mrb[0].mxu0
      %v3380 = vadd.f32 0.0, %v3379
      %v3381 = vpop.f32.mrb[0].mxu0
      %v3382 = vadd.f32 0.0, %v3381
      %3383 = vdwg.mxu0
      %v3384 = vsel %vm1021, %v3226, -inf
      %v3385 = vmax.f32 %v3224, %v3384
      %3386 = vmax.xlane.f32.xlu0 %v3385
      %v3387 = vpop.xlane.xlu0 %3386
      %v3388 = vsel %vm1021, %v3232, -inf
      %v3389 = vmax.f32 %v3230, %v3388
      %3390 = vmax.xlane.f32.xlu0 %v3389
      %v3391 = vpop.xlane.xlu0 %3390
      %v3392 = vsel %vm1021, %v3238, -inf
      %v3393 = vmax.f32 %v3236, %v3392
      %3394 = vmax.xlane.f32.xlu0 %v3393
      %v3395 = vpop.xlane.xlu0 %3394
      %v3396 = vsel %vm1021, %v3244, -inf
      %v3397 = vmax.f32 %v3242, %v3396
      %3398 = vmax.xlane.f32.xlu0 %v3397
      %v3399 = vpop.xlane.xlu0 %3398
      %v3400 = vsel %vm1021, %v3250, -inf
      %v3401 = vmax.f32 %v3248, %v3400
      %3402 = vmax.xlane.f32.xlu0 %v3401
      %v3403 = vpop.xlane.xlu0 %3402
      %v3404 = vsel %vm1021, %v3256, -inf
      %v3405 = vmax.f32 %v3254, %v3404
      %3406 = vmax.xlane.f32.xlu0 %v3405
      %v3407 = vpop.xlane.xlu0 %3406
      %v3408 = vsel %vm1021, %v3262, -inf
      %v3409 = vmax.f32 %v3260, %v3408
      %3410 = vmax.xlane.f32.xlu0 %v3409
      %v3411 = vpop.xlane.xlu0 %3410
      %v3412 = vsel %vm1021, %v3268, -inf
      %v3413 = vmax.f32 %v3266, %v3412
      %3414 = vmax.xlane.f32.xlu0 %v3413
      %v3415 = vpop.xlane.xlu0 %3414
      %v3416 = vsel %vm1021, %v3274, -inf
      %v3417 = vmax.f32 %v3272, %v3416
      %3418 = vmax.xlane.f32.xlu0 %v3417
      %v3419 = vpop.xlane.xlu0 %3418
      %v3420 = vsel %vm1021, %v3280, -inf
      %v3421 = vmax.f32 %v3278, %v3420
      %3422 = vmax.xlane.f32.xlu0 %v3421
      %v3423 = vpop.xlane.xlu0 %3422
      %v3424 = vsel %vm1021, %v3286, -inf
      %v3425 = vmax.f32 %v3284, %v3424
      %3426 = vmax.xlane.f32.xlu0 %v3425
      %v3427 = vpop.xlane.xlu0 %3426
      %v3428 = vsel %vm1021, %v3292, -inf
      %v3429 = vmax.f32 %v3290, %v3428
      %3430 = vmax.xlane.f32.xlu0 %v3429
      %v3431 = vpop.xlane.xlu0 %3430
      %v3432 = vsel %vm1021, %v3298, -inf
      %v3433 = vmax.f32 %v3296, %v3432
      %3434 = vmax.xlane.f32.xlu0 %v3433
      %v3435 = vpop.xlane.xlu0 %3434
      %v3436 = vsel %vm1021, %v3304, -inf
      %v3437 = vmax.f32 %v3302, %v3436
      %3438 = vmax.xlane.f32.xlu0 %v3437
      %v3439 = vpop.xlane.xlu0 %3438
      %v3440 = vsel %vm1021, %v3310, -inf
      %v3441 = vmax.f32 %v3308, %v3440
      %3442 = vmax.xlane.f32.xlu0 %v3441
      %v3443 = vpop.xlane.xlu0 %3442
      %v3444 = vsel %vm1021, %v3316, -inf
      %v3445 = vmax.f32 %v3314, %v3444
      %3446 = vmax.xlane.f32.xlu0 %v3445
      %v3447 = vpop.xlane.xlu0 %3446
      %v3448 = vsel %vm1021, %v3322, -inf
      %v3449 = vmax.f32 %v3320, %v3448
      %3450 = vmax.xlane.f32.xlu0 %v3449
      %v3451 = vpop.xlane.xlu0 %3450
      %v3452 = vsel %vm1021, %v3328, -inf
      %v3453 = vmax.f32 %v3326, %v3452
      %3454 = vmax.xlane.f32.xlu0 %v3453
      %v3455 = vpop.xlane.xlu0 %3454
      %v3456 = vsel %vm1021, %v3334, -inf
      %v3457 = vmax.f32 %v3332, %v3456
      %3458 = vmax.xlane.f32.xlu0 %v3457
      %v3459 = vpop.xlane.xlu0 %3458
      %v3460 = vsel %vm1021, %v3340, -inf
      %v3461 = vmax.f32 %v3338, %v3460
      %3462 = vmax.xlane.f32.xlu0 %v3461
      %v3463 = vpop.xlane.xlu0 %3462
      %v3464 = vsel %vm1021, %v3346, -inf
      %v3465 = vmax.f32 %v3344, %v3464
      %3466 = vmax.xlane.f32.xlu0 %v3465
      %v3467 = vpop.xlane.xlu0 %3466
      %v3468 = vsel %vm1021, %v3352, -inf
      %v3469 = vmax.f32 %v3350, %v3468
      %3470 = vmax.xlane.f32.xlu0 %v3469
      %v3471 = vpop.xlane.xlu0 %3470
      %v3472 = vsel %vm1021, %v3358, -inf
      %v3473 = vmax.f32 %v3356, %v3472
      %3474 = vmax.xlane.f32.xlu0 %v3473
      %v3475 = vpop.xlane.xlu0 %3474
      %v3476 = vsel %vm1021, %v3364, -inf
      %v3477 = vmax.f32 %v3362, %v3476
      %3478 = vmax.xlane.f32.xlu0 %v3477
      %v3479 = vpop.xlane.xlu0 %3478
      %v3480 = vsel %vm1021, %v3370, -inf
      %v3481 = vmax.f32 %v3368, %v3480
      %3482 = vmax.xlane.f32.xlu0 %v3481
      %v3483 = vpop.xlane.xlu0 %3482
      %v3484 = vsel %vm1021, %v3376, -inf
      %v3485 = vmax.f32 %v3374, %v3484
      %3486 = vmax.xlane.f32.xlu0 %v3485
      %v3487 = vpop.xlane.xlu0 %3486
      %v3488 = vsel %vm1021, %v3382, -inf
      %v3489 = vmax.f32 %v3380, %v3488
      %3490 = vmax.xlane.f32.xlu0 %v3489
      %v3491 = vpop.xlane.xlu0 %3490
      %v3492 = vsub.f32 %v3224, %v3387
      %v3493 = vsub.f32 %v3226, %v3387
      %v3494 = vsub.f32 %v3230, %v3391
      %v3495 = vsub.f32 %v3232, %v3391
      %v3496 = vsub.f32 %v3236, %v3395
      %v3497 = vsub.f32 %v3238, %v3395
      %v3498 = vsub.f32 %v3242, %v3399
      %v3499 = vsub.f32 %v3244, %v3399
      %v3500 = vsub.f32 %v3248, %v3403
      %v3501 = vsub.f32 %v3250, %v3403
      %v3502 = vsub.f32 %v3254, %v3407
      %v3503 = vsub.f32 %v3256, %v3407
      %v3504 = vsub.f32 %v3260, %v3411
      %v3505 = vsub.f32 %v3262, %v3411
      %v3506 = vsub.f32 %v3266, %v3415
      %v3507 = vsub.f32 %v3268, %v3415
      %v3508 = vsub.f32 %v3272, %v3419
      %v3509 = vsub.f32 %v3274, %v3419
      %v3510 = vsub.f32 %v3278, %v3423
      %v3511 = vsub.f32 %v3280, %v3423
      %v3512 = vsub.f32 %v3284, %v3427
      %v3513 = vsub.f32 %v3286, %v3427
      %v3514 = vsub.f32 %v3290, %v3431
      %v3515 = vsub.f32 %v3292, %v3431
      %v3516 = vsub.f32 %v3296, %v3435
      %v3517 = vsub.f32 %v3298, %v3435
      %v3518 = vsub.f32 %v3302, %v3439
      %v3519 = vsub.f32 %v3304, %v3439
      %v3520 = vsub.f32 %v3308, %v3443
      %v3521 = vsub.f32 %v3310, %v3443
      %v3522 = vsub.f32 %v3314, %v3447
      %v3523 = vsub.f32 %v3316, %v3447
      %v3524 = vsub.f32 %v3320, %v3451
      %v3525 = vsub.f32 %v3322, %v3451
      %v3526 = vsub.f32 %v3326, %v3455
      %v3527 = vsub.f32 %v3328, %v3455
      %v3528 = vsub.f32 %v3332, %v3459
      %v3529 = vsub.f32 %v3334, %v3459
      %v3530 = vsub.f32 %v3338, %v3463
      %v3531 = vsub.f32 %v3340, %v3463
      %v3532 = vsub.f32 %v3344, %v3467
      %v3533 = vsub.f32 %v3346, %v3467
      %v3534 = vsub.f32 %v3350, %v3471
      %v3535 = vsub.f32 %v3352, %v3471
      %v3536 = vsub.f32 %v3356, %v3475
      %v3537 = vsub.f32 %v3358, %v3475
      %v3538 = vsub.f32 %v3362, %v3479
      %v3539 = vsub.f32 %v3364, %v3479
      %v3540 = vsub.f32 %v3368, %v3483
      %v3541 = vsub.f32 %v3370, %v3483
      %v3542 = vsub.f32 %v3374, %v3487
      %v3543 = vsub.f32 %v3376, %v3487
      %v3544 = vsub.f32 %v3380, %v3491
      %v3545 = vsub.f32 %v3382, %v3491
      %v3546 = vmul.f32 %v3492, 1.442695
      %v3547 = vpow.pop %v3546
      %v3548 = vmul.f32 %v3493, 1.442695
      %v3549 = vpow.pop %v3548
      %v3550 = vmul.f32 %v3494, 1.442695
      %v3551 = vpow.pop %v3550
      %v3552 = vmul.f32 %v3495, 1.442695
      %v3553 = vpow.pop %v3552
      %v3554 = vmul.f32 %v3496, 1.442695
      %v3555 = vpow.pop %v3554
      %v3556 = vmul.f32 %v3497, 1.442695
      %v3557 = vpow.pop %v3556
      %v3558 = vmul.f32 %v3498, 1.442695
      %v3559 = vpow.pop %v3558
      %v3560 = vmul.f32 %v3499, 1.442695
      %v3561 = vpow.pop %v3560
      %v3562 = vmul.f32 %v3500, 1.442695
      %v3563 = vpow.pop %v3562
      %v3564 = vmul.f32 %v3501, 1.442695
      %v3565 = vpow.pop %v3564
      %v3566 = vmul.f32 %v3502, 1.442695
      %v3567 = vpow.pop %v3566
      %v3568 = vmul.f32 %v3503, 1.442695
      %v3569 = vpow.pop %v3568
      %v3570 = vmul.f32 %v3504, 1.442695
      %v3571 = vpow.pop %v3570
      %v3572 = vmul.f32 %v3505, 1.442695
      %v3573 = vpow.pop %v3572
      %v3574 = vmul.f32 %v3506, 1.442695
      %v3575 = vpow.pop %v3574
      %v3576 = vmul.f32 %v3507, 1.442695
      %v3577 = vpow.pop %v3576
      %v3578 = vmul.f32 %v3508, 1.442695
      %v3579 = vpow.pop %v3578
      %v3580 = vmul.f32 %v3509, 1.442695
      %v3581 = vpow.pop %v3580
      %v3582 = vmul.f32 %v3510, 1.442695
      %v3583 = vpow.pop %v3582
      %v3584 = vmul.f32 %v3511, 1.442695
      %v3585 = vpow.pop %v3584
      %v3586 = vmul.f32 %v3512, 1.442695
      %v3587 = vpow.pop %v3586
      %v3588 = vmul.f32 %v3513, 1.442695
      %v3589 = vpow.pop %v3588
      %v3590 = vmul.f32 %v3514, 1.442695
      %v3591 = vpow.pop %v3590
      %v3592 = vmul.f32 %v3515, 1.442695
      %v3593 = vpow.pop %v3592
      %v3594 = vmul.f32 %v3516, 1.442695
      %v3595 = vpow.pop %v3594
      %v3596 = vmul.f32 %v3517, 1.442695
      %v3597 = vpow.pop %v3596
      %v3598 = vmul.f32 %v3518, 1.442695
      %v3599 = vpow.pop %v3598
      %v3600 = vmul.f32 %v3519, 1.442695
      %v3601 = vpow.pop %v3600
      %v3602 = vmul.f32 %v3520, 1.442695
      %v3603 = vpow.pop %v3602
      %v3604 = vmul.f32 %v3521, 1.442695
      %v3605 = vpow.pop %v3604
      %v3606 = vmul.f32 %v3522, 1.442695
      %v3607 = vpow.pop %v3606
      %v3608 = vmul.f32 %v3523, 1.442695
      %v3609 = vpow.pop %v3608
      %v3610 = vmul.f32 %v3524, 1.442695
      %v3611 = vpow.pop %v3610
      %v3612 = vmul.f32 %v3525, 1.442695
      %v3613 = vpow.pop %v3612
      %v3614 = vmul.f32 %v3526, 1.442695
      %v3615 = vpow.pop %v3614
      %v3616 = vmul.f32 %v3527, 1.442695
      %v3617 = vpow.pop %v3616
      %v3618 = vmul.f32 %v3528, 1.442695
      %v3619 = vpow.pop %v3618
      %v3620 = vmul.f32 %v3529, 1.442695
      %v3621 = vpow.pop %v3620
      %v3622 = vmul.f32 %v3530, 1.442695
      %v3623 = vpow.pop %v3622
      %v3624 = vmul.f32 %v3531, 1.442695
      %v3625 = vpow.pop %v3624
      %v3626 = vmul.f32 %v3532, 1.442695
      %v3627 = vpow.pop %v3626
      %v3628 = vmul.f32 %v3533, 1.442695
      %v3629 = vpow.pop %v3628
      %v3630 = vmul.f32 %v3534, 1.442695
      %v3631 = vpow.pop %v3630
      %v3632 = vmul.f32 %v3535, 1.442695
      %v3633 = vpow.pop %v3632
      %v3634 = vmul.f32 %v3536, 1.442695
      %v3635 = vpow.pop %v3634
      %v3636 = vmul.f32 %v3537, 1.442695
      %v3637 = vpow.pop %v3636
      %v3638 = vmul.f32 %v3538, 1.442695
      %v3639 = vpow.pop %v3638
      %v3640 = vmul.f32 %v3539, 1.442695
      %v3641 = vpow.pop %v3640
      %v3642 = vmul.f32 %v3540, 1.442695
      %v3643 = vpow.pop %v3642
      %v3644 = vmul.f32 %v3541, 1.442695
      %v3645 = vpow.pop %v3644
      %v3646 = vmul.f32 %v3542, 1.442695
      %v3647 = vpow.pop %v3646
      %v3648 = vmul.f32 %v3543, 1.442695
      %v3649 = vpow.pop %v3648
      %v3650 = vmul.f32 %v3544, 1.442695
      %v3651 = vpow.pop %v3650
      %v3652 = vmul.f32 %v3545, 1.442695
      %v3653 = vpow.pop %v3652
      %v3654 = vld [vmem:[%s4] sm:$0xff]
      %v3655 = vld [vmem:[%s4 + $0x8] sm:$0xff]
      %v3656 = vld [vmem:[%s4 + $0x10] sm:$0xff]
      %v3657 = vld [vmem:[%s4 + $0x18] sm:$0xff]
      %v3658 = vld [vmem:[%s4 + $0x20] sm:$0xff]
      %v3659 = vld [vmem:[%s4 + $0x28] sm:$0xff]
      %v3660 = vld [vmem:[%s4 + $0x30] sm:$0xff]
      %v3661 = vld [vmem:[%s4 + $0x38] sm:$0xff]
      %v3662 = vld [vmem:[%s4 + $0x40] sm:$0xff]
      %v3663 = vld [vmem:[%s4 + $0x48] sm:$0xff]
      %v3664 = vld [vmem:[%s4 + $0x50] sm:$0xff]
      %v3665 = vld [vmem:[%s4 + $0x58] sm:$0xff]
      %v3666 = vld [vmem:[%s4 + $0x60] sm:$0xff]
      %v3667 = vld [vmem:[%s4 + $0x68] sm:$0xff]
      %v3668 = vld [vmem:[%s4 + $0x70] sm:$0xff]
      %v3669 = vld [vmem:[%s4 + $0x78] sm:$0xff]
      %v3670 = vld [vmem:[%s4 + $0x80] sm:$0xff]
      %v3671 = vld [vmem:[%s4 + $0x88] sm:$0xff]
      %v3672 = vld [vmem:[%s4 + $0x90] sm:$0xff]
      %v3673 = vld [vmem:[%s4 + $0x98] sm:$0xff]
      %v3674 = vld [vmem:[%s4 + $0xa0] sm:$0xff]
      %v3675 = vld [vmem:[%s4 + $0xa8] sm:$0xff]
      %v3676 = vld [vmem:[%s4 + $0xb0] sm:$0xff]
      %v3677 = vld [vmem:[%s4 + $0xb8] sm:$0xff]
      %v3678 = vld [vmem:[%s4 + $0xc0] sm:$0xff]
      %v3679 = vld [vmem:[%s4 + $0xc8] sm:$0xff]
      %v3680 = vld [vmem:[%s4 + $0xd0] sm:$0xff]
      %v3682 = vsel %vm1021, %v3549, 0
      %v3685 = vsel %vm1021, %v3553, 0
      %v3688 = vsel %vm1021, %v3557, 0
      %v3691 = vsel %vm1021, %v3561, 0
      %v3694 = vsel %vm1021, %v3565, 0
      %v3697 = vsel %vm1021, %v3569, 0
      %v3700 = vsel %vm1021, %v3573, 0
      %v3703 = vsel %vm1021, %v3577, 0
      %v3706 = vsel %vm1021, %v3581, 0
      %v3709 = vsel %vm1021, %v3585, 0
      %v3712 = vsel %vm1021, %v3589, 0
      %v3715 = vsel %vm1021, %v3593, 0
      %v3718 = vsel %vm1021, %v3597, 0
      %v3721 = vsel %vm1021, %v3601, 0
      %v3724 = vsel %vm1021, %v3605, 0
      %v3727 = vsel %vm1021, %v3609, 0
      %v3730 = vsel %vm1021, %v3613, 0
      %v3733 = vsel %vm1021, %v3617, 0
      %v3736 = vsel %vm1021, %v3621, 0
      %v3739 = vsel %vm1021, %v3625, 0
      %v3742 = vsel %vm1021, %v3629, 0
      %v3745 = vsel %vm1021, %v3633, 0
      %v3748 = vsel %vm1021, %v3637, 0
      %v3751 = vsel %vm1021, %v3641, 0
      %v3754 = vsel %vm1021, %v3645, 0
      %v3757 = vsel %vm1021, %v3649, 0
      %v3760 = vsel %vm1021, %v3653, 0
      %3762 = vmatprep.subr.mxu0 0.0
      %3763 = vmatpush1.msra.mxu0 %v3654
      %3764 = vmatprep.subr.mxu0 0.0
      %3765 = vmatpush1.msra.mxu0 %v3655
      %3766 = vmatprep.subr.mxu0 0.0
      %3767 = vmatpush1.msra.mxu0 %v3656
      %3768 = vmatprep.subr.mxu0 0.0
      %3769 = vmatpush1.msra.mxu0 %v3657
      %3770 = vmatprep.subr.mxu0 0.0
      %3771 = vmatpush1.msra.mxu0 %v3658
      %3772 = vmatprep.subr.mxu0 0.0
      %3773 = vmatpush1.msra.mxu0 %v3659
      %3774 = vmatprep.subr.mxu0 0.0
      %3775 = vmatpush1.msra.mxu0 %v3660
      %3776 = vmatprep.subr.mxu0 0.0
      %3777 = vmatpush1.msra.mxu0 %v3661
      %3778 = vmatprep.subr.mxu0 0.0
      %3779 = vmatpush1.msra.mxu0 %v3662
      %3780 = vmatprep.subr.mxu0 0.0
      %3781 = vmatpush1.msra.mxu0 %v3663
      %3782 = vmatprep.subr.mxu0 0.0
      %3783 = vmatpush1.msra.mxu0 %v3664
      %3784 = vmatprep.subr.mxu0 0.0
      %3785 = vmatpush1.msra.mxu0 %v3665
      %3786 = vmatprep.subr.mxu0 0.0
      %3787 = vmatpush1.msra.mxu0 %v3666
      %3788 = vmatprep.subr.mxu0 0.0
      %3789 = vmatpush1.msra.mxu0 %v3667
      %3790 = vmatprep.subr.mxu0 0.0
      %3791 = vmatpush1.msra.mxu0 %v3668
      %3792 = vmatprep.subr.mxu0 0.0
      %3793 = vmatpush1.msra.mxu0 %v3669
      %3794 = vmatprep.subr.mxu0 0.0
      %3795 = vmatpush1.msra.mxu0 %v3670
      %3796 = vmatprep.subr.mxu0 0.0
      %3797 = vmatpush1.msra.mxu0 %v3671
      %3798 = vmatprep.subr.mxu0 0.0
      %3799 = vmatpush1.msra.mxu0 %v3672
      %3800 = vmatprep.subr.mxu0 0.0
      %3801 = vmatpush1.msra.mxu0 %v3673
      %3802 = vmatprep.subr.mxu0 0.0
      %3803 = vmatpush1.msra.mxu0 %v3674
      %3804 = vmatprep.subr.mxu0 0.0
      %3805 = vmatpush1.msra.mxu0 %v3675
      %3806 = vmatprep.subr.mxu0 0.0
      %3807 = vmatpush1.msra.mxu0 %v3676
      %3808 = vmatprep.subr.mxu0 0.0
      %3809 = vmatpush1.msra.mxu0 %v3677
      %3810 = vmatprep.subr.mxu0 0.0
      %3811 = vmatpush1.msra.mxu0 %v3678
      %3812 = vmatprep.subr.mxu0 0.0
      %3813 = vmatpush1.msra.mxu0 %v3679
      %3814 = vmatprep.subr.mxu0 0.0
      %3815 = vmatpush1.msra.mxu0 %v3680
      %3816 = vmatprep.subr.mxu0 0.0
      %3817 = vmatpush1.msra.mxu0 0.0
      %3818 = vmatprep.subr.mxu0 0.0
      %3819 = vmatpush1.msra.mxu0 0.0
      %3820 = vmatprep.subr.mxu0 0.0
      %3821 = vmatpush1.msra.mxu0 0.0
      %3822 = vmatprep.subr.mxu0 0.0
      %3823 = vmatpush1.msra.mxu0 0.0
      %3824 = vmatprep.subr.mxu0 0.0
      %3825 = vmatpush1.msra.mxu0 0.0
      %3826 = vmatprep.mubr.f32.mxu0 %v3682
      %3827 = vmatmul.mubr.f32.gmra.mrb[0].mxu0 %v3547
      %v3828 = vpop.f32.mrb[0].mxu0
      %v3829 = vadd.f32 0.0, %v3828
      %v3830 = vpop.f32.mrb[0].mxu0
      %3831 = vmatprep.mubr.f32.mxu0 %v3685
      %3832 = vmatmul.mubr.f32.gmra.mrb[0].mxu0 %v3551
      %v3833 = vpop.f32.mrb[0].mxu0
      %v3834 = vadd.f32 0.0, %v3833
      %v3835 = vpop.f32.mrb[0].mxu0
      %3836 = vmatprep.mubr.f32.mxu0 %v3688
      %3837 = vmatmul.mubr.f32.gmra.mrb[0].mxu0 %v3555
      %v3838 = vpop.f32.mrb[0].mxu0
      %v3839 = vadd.f32 0.0, %v3838
      %v3840 = vpop.f32.mrb[0].mxu0
      %3841 = vmatprep.mubr.f32.mxu0 %v3691
      %3842 = vmatmul.mubr.f32.gmra.mrb[0].mxu0 %v3559
      %v3843 = vpop.f32.mrb[0].mxu0
      %v3844 = vadd.f32 0.0, %v3843
      %v3845 = vpop.f32.mrb[0].mxu0
      %3846 = vmatprep.mubr.f32.mxu0 %v3694
      %3847 = vmatmul.mubr.f32.gmra.mrb[0].mxu0 %v3563
      %v3848 = vpop.f32.mrb[0].mxu0
      %v3849 = vadd.f32 0.0, %v3848
      %v3850 = vpop.f32.mrb[0].mxu0
      %3851 = vmatprep.mubr.f32.mxu0 %v3697
      %3852 = vmatmul.mubr.f32.gmra.mrb[0].mxu0 %v3567
      %v3853 = vpop.f32.mrb[0].mxu0
      %v3854 = vadd.f32 0.0, %v3853
      %v3855 = vpop.f32.mrb[0].mxu0
      %3856 = vmatprep.mubr.f32.mxu0 %v3700
      %3857 = vmatmul.mubr.f32.gmra.mrb[0].mxu0 %v3571
      %v3858 = vpop.f32.mrb[0].mxu0
      %v3859 = vadd.f32 0.0, %v3858
      %v3860 = vpop.f32.mrb[0].mxu0
      %3861 = vmatprep.mubr.f32.mxu0 %v3703
      %3862 = vmatmul.mubr.f32.gmra.mrb[0].mxu0 %v3575
      %v3863 = vpop.f32.mrb[0].mxu0
      %v3864 = vadd.f32 0.0, %v3863
      %v3865 = vpop.f32.mrb[0].mxu0
      %3866 = vmatprep.mubr.f32.mxu0 %v3706
      %3867 = vmatmul.mubr.f32.gmra.mrb[0].mxu0 %v3579
      %v3868 = vpop.f32.mrb[0].mxu0
      %v3869 = vadd.f32 0.0, %v3868
      %v3870 = vpop.f32.mrb[0].mxu0
      %3871 = vmatprep.mubr.f32.mxu0 %v3709
      %3872 = vmatmul.mubr.f32.gmra.mrb[0].mxu0 %v3583
      %v3873 = vpop.f32.mrb[0].mxu0
      %v3874 = vadd.f32 0.0, %v3873
      %v3875 = vpop.f32.mrb[0].mxu0
      %3876 = vmatprep.mubr.f32.mxu0 %v3712
      %3877 = vmatmul.mubr.f32.gmra.mrb[0].mxu0 %v3587
      %v3878 = vpop.f32.mrb[0].mxu0
      %v3879 = vadd.f32 0.0, %v3878
      %v3880 = vpop.f32.mrb[0].mxu0
      %3881 = vmatprep.mubr.f32.mxu0 %v3715
      %3882 = vmatmul.mubr.f32.gmra.mrb[0].mxu0 %v3591
      %v3883 = vpop.f32.mrb[0].mxu0
      %v3884 = vadd.f32 0.0, %v3883
      %v3885 = vpop.f32.mrb[0].mxu0
      %3886 = vmatprep.mubr.f32.mxu0 %v3718
      %3887 = vmatmul.mubr.f32.gmra.mrb[0].mxu0 %v3595
      %v3888 = vpop.f32.mrb[0].mxu0
      %v3889 = vadd.f32 0.0, %v3888
      %v3890 = vpop.f32.mrb[0].mxu0
      %3891 = vmatprep.mubr.f32.mxu0 %v3721
      %3892 = vmatmul.mubr.f32.gmra.mrb[0].mxu0 %v3599
      %v3893 = vpop.f32.mrb[0].mxu0
      %v3894 = vadd.f32 0.0, %v3893
      %v3895 = vpop.f32.mrb[0].mxu0
      %3896 = vmatprep.mubr.f32.mxu0 %v3724
      %3897 = vmatmul.mubr.f32.gmra.mrb[0].mxu0 %v3603
      %v3898 = vpop.f32.mrb[0].mxu0
      %v3899 = vadd.f32 0.0, %v3898
      %v3900 = vpop.f32.mrb[0].mxu0
      %3901 = vmatprep.mubr.f32.mxu0 %v3727
      %3902 = vmatmul.mubr.f32.gmra.mrb[0].mxu0 %v3607
      %v3903 = vpop.f32.mrb[0].mxu0
      %v3904 = vadd.f32 0.0, %v3903
      %v3905 = vpop.f32.mrb[0].mxu0
      %3906 = vmatprep.mubr.f32.mxu0 %v3730
      %3907 = vmatmul.mubr.f32.gmra.mrb[0].mxu0 %v3611
      %v3908 = vpop.f32.mrb[0].mxu0
      %v3909 = vadd.f32 0.0, %v3908
      %v3910 = vpop.f32.mrb[0].mxu0
      %3911 = vmatprep.mubr.f32.mxu0 %v3733
      %3912 = vmatmul.mubr.f32.gmra.mrb[0].mxu0 %v3615
      %v3913 = vpop.f32.mrb[0].mxu0
      %v3914 = vadd.f32 0.0, %v3913
      %v3915 = vpop.f32.mrb[0].mxu0
      %3916 = vmatprep.mubr.f32.mxu0 %v3736
      %3917 = vmatmul.mubr.f32.gmra.mrb[0].mxu0 %v3619
      %v3918 = vpop.f32.mrb[0].mxu0
      %v3919 = vadd.f32 0.0, %v3918
      %v3920 = vpop.f32.mrb[0].mxu0
      %3921 = vmatprep.mubr.f32.mxu0 %v3739
      %3922 = vmatmul.mubr.f32.gmra.mrb[0].mxu0 %v3623
      %v3923 = vpop.f32.mrb[0].mxu0
      %v3924 = vadd.f32 0.0, %v3923
      %v3925 = vpop.f32.mrb[0].mxu0
      %3926 = vmatprep.mubr.f32.mxu0 %v3742
      %3927 = vmatmul.mubr.f32.gmra.mrb[0].mxu0 %v3627
      %v3928 = vpop.f32.mrb[0].mxu0
      %v3929 = vadd.f32 0.0, %v3928
      %v3930 = vpop.f32.mrb[0].mxu0
      %3931 = vmatprep.mubr.f32.mxu0 %v3745
      %3932 = vmatmul.mubr.f32.gmra.mrb[0].mxu0 %v3631
      %v3933 = vpop.f32.mrb[0].mxu0
      %v3934 = vadd.f32 0.0, %v3933
      %v3935 = vpop.f32.mrb[0].mxu0
      %3936 = vmatprep.mubr.f32.mxu0 %v3748
      %3937 = vmatmul.mubr.f32.gmra.mrb[0].mxu0 %v3635
      %v3938 = vpop.f32.mrb[0].mxu0
      %v3939 = vadd.f32 0.0, %v3938
      %v3940 = vpop.f32.mrb[0].mxu0
      %3941 = vmatprep.mubr.f32.mxu0 %v3751
      %3942 = vmatmul.mubr.f32.gmra.mrb[0].mxu0 %v3639
      %v3943 = vpop.f32.mrb[0].mxu0
      %v3944 = vadd.f32 0.0, %v3943
      %v3945 = vpop.f32.mrb[0].mxu0
      %3946 = vmatprep.mubr.f32.mxu0 %v3754
      %3947 = vmatmul.mubr.f32.gmra.mrb[0].mxu0 %v3643
      %v3948 = vpop.f32.mrb[0].mxu0
      %v3949 = vadd.f32 0.0, %v3948
      %v3950 = vpop.f32.mrb[0].mxu0
      %3951 = vmatprep.mubr.f32.mxu0 %v3757
      %3952 = vmatmul.mubr.f32.gmra.mrb[0].mxu0 %v3647
      %v3953 = vpop.f32.mrb[0].mxu0
      %v3954 = vadd.f32 0.0, %v3953
      %v3955 = vpop.f32.mrb[0].mxu0
      %3956 = vmatprep.mubr.f32.mxu0 %v3760
      %3957 = vmatmul.mubr.f32.gmra.mrb[0].mxu0 %v3651
      %v3958 = vpop.f32.mrb[0].mxu0
      %v3959 = vadd.f32 0.0, %v3958
      %v3960 = vpop.f32.mrb[0].mxu0
      %3961 = vdwg.mxu0
      %v3962 = vrcp.pop %v3829
      %v3963 = vrcp.pop %v3834
      %v3964 = vrcp.pop %v3839
      %v3965 = vrcp.pop %v3844
      %v3966 = vrcp.pop %v3849
      %v3967 = vrcp.pop %v3854
      %v3968 = vrcp.pop %v3859
      %v3969 = vrcp.pop %v3864
      %v3970 = vrcp.pop %v3869
      %v3971 = vrcp.pop %v3874
      %v3972 = vrcp.pop %v3879
      %v3973 = vrcp.pop %v3884
      %v3974 = vrcp.pop %v3889
      %v3975 = vrcp.pop %v3894
      %v3976 = vrcp.pop %v3899
      %v3977 = vrcp.pop %v3904
      %v3978 = vrcp.pop %v3909
      %v3979 = vrcp.pop %v3914
      %v3980 = vrcp.pop %v3919
      %v3981 = vrcp.pop %v3924
      %v3982 = vrcp.pop %v3929
      %v3983 = vrcp.pop %v3934
      %v3984 = vrcp.pop %v3939
      %v3985 = vrcp.pop %v3944
      %v3986 = vrcp.pop %v3949
      %v3987 = vrcp.pop %v3954
      %v3988 = vrcp.pop %v3959
      %v3989 = vld [vmem:[%s5] sm:$0xff]
      %v3990 = vld [vmem:[%s5 + $0x8] sm:$0xff]
      %v3991 = vld [vmem:[%s5 + $0x10] sm:$0xff]
      %v3992 = vld [vmem:[%s5 + $0x18] sm:$0xff]
      %v3993 = vld [vmem:[%s5 + $0x20] sm:$0xff]
      %v3994 = vld [vmem:[%s5 + $0x28] sm:$0xff]
      %v3995 = vld [vmem:[%s5 + $0x30] sm:$0x7]
      %v3996 = vld [vmem:[%s5 + $0x38] sm:$0x7]
      %vm3997 = vcmask 220160
      %v3999 = vsel %vm3997, %v3962, 0
      %v4002 = vsel %vm3997, %v3963, 0
      %v4005 = vsel %vm3997, %v3964, 0
      %v4008 = vsel %vm3997, %v3965, 0
      %v4011 = vsel %vm3997, %v3966, 0
      %v4014 = vsel %vm3997, %v3967, 0
      %v4017 = vsel %vm3997, %v3968, 0
      %v4020 = vsel %vm3997, %v3969, 0
      %v4023 = vsel %vm3997, %v3970, 0
      %v4026 = vsel %vm3997, %v3971, 0
      %v4029 = vsel %vm3997, %v3972, 0
      %v4032 = vsel %vm3997, %v3973, 0
      %v4035 = vsel %vm3997, %v3974, 0
      %v4038 = vsel %vm3997, %v3975, 0
      %v4041 = vsel %vm3997, %v3976, 0
      %v4044 = vsel %vm3997, %v3977, 0
      %v4047 = vsel %vm3997, %v3978, 0
      %v4050 = vsel %vm3997, %v3979, 0
      %v4053 = vsel %vm3997, %v3980, 0
      %v4056 = vsel %vm3997, %v3981, 0
      %v4059 = vsel %vm3997, %v3982, 0
      %v4062 = vsel %vm3997, %v3983, 0
      %v4065 = vsel %vm3997, %v3984, 0
      %v4068 = vsel %vm3997, %v3985, 0
      %v4071 = vsel %vm3997, %v3986, 0
      %v4074 = vsel %vm3997, %v3987, 0
      %v4077 = vsel %vm3997, %v3988, 0
      %vm4079 = vcmask 1042432
      %v4081 = vsel %vm4079, %v3995, 0
      %v4084 = vsel %vm4079, %v3996, 0
      %4086 = vmatprep.subr.mxu0 %v3990
      %4087 = vmatpush1.msra.mxu0 %v3989
      %4088 = vmatprep.subr.mxu0 %v3992
      %4089 = vmatpush1.msra.mxu0 %v3991
      %4090 = vmatprep.subr.mxu0 %v3994
      %4091 = vmatpush1.msra.mxu0 %v3993
      %4092 = vmatprep.subr.mxu0 %v4084
      %4093 = vmatpush1.msra.mxu0 %v4081
      %4094 = vmatprep.subr.mxu0 0.0
      %4095 = vmatpush1.msra.mxu0 0.0
      %4096 = vmatprep.subr.mxu0 0.0
      %4097 = vmatpush1.msra.mxu0 0.0
      %4098 = vmatprep.subr.mxu0 0.0
      %4099 = vmatpush1.msra.mxu0 0.0
      %4100 = vmatprep.subr.mxu0 0.0
      %4101 = vmatpush1.msra.mxu0 0.0
      %4102 = vmatprep.subr.mxu0 0.0
      %4103 = vmatpush1.msra.mxu0 0.0
      %4104 = vmatprep.subr.mxu0 0.0
      %4105 = vmatpush1.msra.mxu0 0.0
      %4106 = vmatprep.subr.mxu0 0.0
      %4107 = vmatpush1.msra.mxu0 0.0
      %4108 = vmatprep.subr.mxu0 0.0
      %4109 = vmatpush1.msra.mxu0 0.0
      %4110 = vmatprep.subr.mxu0 0.0
      %4111 = vmatpush1.msra.mxu0 0.0
      %4112 = vmatprep.subr.mxu0 0.0
      %4113 = vmatpush1.msra.mxu0 0.0
      %4114 = vmatprep.subr.mxu0 0.0
      %4115 = vmatpush1.msra.mxu0 0.0
      %4116 = vmatprep.subr.mxu0 0.0
      %4117 = vmatpush1.msra.mxu0 0.0
      %4118 = vmatprep.subr.mxu0 0.0
      %4119 = vmatpush1.msra.mxu0 0.0
      %4120 = vmatprep.subr.mxu0 0.0
      %4121 = vmatpush1.msra.mxu0 0.0
      %4122 = vmatprep.subr.mxu0 0.0
      %4123 = vmatpush1.msra.mxu0 0.0
      %4124 = vmatprep.subr.mxu0 0.0
      %4125 = vmatpush1.msra.mxu0 0.0
      %4126 = vmatprep.subr.mxu0 0.0
      %4127 = vmatpush1.msra.mxu0 0.0
      %4128 = vmatprep.subr.mxu0 0.0
      %4129 = vmatpush1.msra.mxu0 0.0
      %4130 = vmatprep.subr.mxu0 0.0
      %4131 = vmatpush1.msra.mxu0 0.0
      %4132 = vmatprep.subr.mxu0 0.0
      %4133 = vmatpush1.msra.mxu0 0.0
      %4134 = vmatprep.subr.mxu0 0.0
      %4135 = vmatpush1.msra.mxu0 0.0
      %4136 = vmatprep.subr.mxu0 0.0
      %4137 = vmatpush1.msra.mxu0 0.0
      %4138 = vmatprep.subr.mxu0 0.0
      %4139 = vmatpush1.msra.mxu0 0.0
      %4140 = vmatprep.subr.mxu0 0.0
      %4141 = vmatpush1.msra.mxu0 0.0
      %4142 = vmatprep.subr.mxu0 0.0
      %4143 = vmatpush1.msra.mxu0 0.0
      %4144 = vmatprep.subr.mxu0 0.0
      %4145 = vmatpush1.msra.mxu0 0.0
      %4146 = vmatprep.subr.mxu0 0.0
      %4147 = vmatpush1.msra.mxu0 0.0
      %4148 = vmatprep.subr.mxu0 0.0
      %4149 = vmatpush1.msra.mxu0 0.0
      %4150 = vmatprep.mubr.f32.mxu0 0.0
      %4151 = vmatmul.mubr.f32.gmra.mrb[0].mxu0 %v3999
      %v4152 = vpop.f32.mrb[0].mxu0
      %v4153 = vadd.f32 0.0, %v4152
      %v4154 = vpop.f32.mrb[0].mxu0
      %v4155 = vadd.f32 0.0, %v4154
      %4156 = vmatprep.mubr.f32.mxu0 0.0
      %4157 = vmatmul.mubr.f32.gmra.mrb[0].mxu0 %v4002
      %v4158 = vpop.f32.mrb[0].mxu0
      %v4159 = vadd.f32 0.0, %v4158
      %v4160 = vpop.f32.mrb[0].mxu0
      %v4161 = vadd.f32 0.0, %v4160
      %4162 = vmatprep.mubr.f32.mxu0 0.0
      %4163 = vmatmul.mubr.f32.gmra.mrb[0].mxu0 %v4005
      %v4164 = vpop.f32.mrb[0].mxu0
      %v4165 = vadd.f32 0.0, %v4164
      %v4166 = vpop.f32.mrb[0].mxu0
      %v4167 = vadd.f32 0.0, %v4166
      %4168 = vmatprep.mubr.f32.mxu0 0.0
      %4169 = vmatmul.mubr.f32.gmra.mrb[0].mxu0 %v4008
      %v4170 = vpop.f32.mrb[0].mxu0
      %v4171 = vadd.f32 0.0, %v4170
      %v4172 = vpop.f32.mrb[0].mxu0
      %v4173 = vadd.f32 0.0, %v4172
      %4174 = vmatprep.mubr.f32.mxu0 0.0
      %4175 = vmatmul.mubr.f32.gmra.mrb[0].mxu0 %v4011
      %v4176 = vpop.f32.mrb[0].mxu0
      %v4177 = vadd.f32 0.0, %v4176
      %v4178 = vpop.f32.mrb[0].mxu0
      %v4179 = vadd.f32 0.0, %v4178
      %4180 = vmatprep.mubr.f32.mxu0 0.0
      %4181 = vmatmul.mubr.f32.gmra.mrb[0].mxu0 %v4014
      %v4182 = vpop.f32.mrb[0].mxu0
      %v4183 = vadd.f32 0.0, %v4182
      %v4184 = vpop.f32.mrb[0].mxu0
      %v4185 = vadd.f32 0.0, %v4184
      %4186 = vmatprep.mubr.f32.mxu0 0.0
      %4187 = vmatmul.mubr.f32.gmra.mrb[0].mxu0 %v4017
      %v4188 = vpop.f32.mrb[0].mxu0
      %v4189 = vadd.f32 0.0, %v4188
      %v4190 = vpop.f32.mrb[0].mxu0
      %v4191 = vadd.f32 0.0, %v4190
      %4192 = vmatprep.mubr.f32.mxu0 0.0
      %4193 = vmatmul.mubr.f32.gmra.mrb[0].mxu0 %v4020
      %v4194 = vpop.f32.mrb[0].mxu0
      %v4195 = vadd.f32 0.0, %v4194
      %v4196 = vpop.f32.mrb[0].mxu0
      %v4197 = vadd.f32 0.0, %v4196
      %4198 = vmatprep.mubr.f32.mxu0 0.0
      %4199 = vmatmul.mubr.f32.gmra.mrb[0].mxu0 %v4023
      %v4200 = vpop.f32.mrb[0].mxu0
      %v4201 = vadd.f32 0.0, %v4200
      %v4202 = vpop.f32.mrb[0].mxu0
      %v4203 = vadd.f32 0.0, %v4202
      %4204 = vmatprep.mubr.f32.mxu0 0.0
      %4205 = vmatmul.mubr.f32.gmra.mrb[0].mxu0 %v4026
      %v4206 = vpop.f32.mrb[0].mxu0
      %v4207 = vadd.f32 0.0, %v4206
      %v4208 = vpop.f32.mrb[0].mxu0
      %v4209 = vadd.f32 0.0, %v4208
      %4210 = vmatprep.mubr.f32.mxu0 0.0
      %4211 = vmatmul.mubr.f32.gmra.mrb[0].mxu0 %v4029
      %v4212 = vpop.f32.mrb[0].mxu0
      %v4213 = vadd.f32 0.0, %v4212
      %v4214 = vpop.f32.mrb[0].mxu0
      %v4215 = vadd.f32 0.0, %v4214
      %4216 = vmatprep.mubr.f32.mxu0 0.0
      %4217 = vmatmul.mubr.f32.gmra.mrb[0].mxu0 %v4032
      %v4218 = vpop.f32.mrb[0].mxu0
      %v4219 = vadd.f32 0.0, %v4218
      %v4220 = vpop.f32.mrb[0].mxu0
      %v4221 = vadd.f32 0.0, %v4220
      %4222 = vmatprep.mubr.f32.mxu0 0.0
      %4223 = vmatmul.mubr.f32.gmra.mrb[0].mxu0 %v4035
      %v4224 = vpop.f32.mrb[0].mxu0
      %v4225 = vadd.f32 0.0, %v4224
      %v4226 = vpop.f32.mrb[0].mxu0
      %v4227 = vadd.f32 0.0, %v4226
      %4228 = vmatprep.mubr.f32.mxu0 0.0
      %4229 = vmatmul.mubr.f32.gmra.mrb[0].mxu0 %v4038
      %v4230 = vpop.f32.mrb[0].mxu0
      %v4231 = vadd.f32 0.0, %v4230
      %v4232 = vpop.f32.mrb[0].mxu0
      %v4233 = vadd.f32 0.0, %v4232
      %4234 = vmatprep.mubr.f32.mxu0 0.0
      %4235 = vmatmul.mubr.f32.gmra.mrb[0].mxu0 %v4041
      %v4236 = vpop.f32.mrb[0].mxu0
      %v4237 = vadd.f32 0.0, %v4236
      %v4238 = vpop.f32.mrb[0].mxu0
      %v4239 = vadd.f32 0.0, %v4238
      %4240 = vmatprep.mubr.f32.mxu0 0.0
      %4241 = vmatmul.mubr.f32.gmra.mrb[0].mxu0 %v4044
      %v4242 = vpop.f32.mrb[0].mxu0
      %v4243 = vadd.f32 0.0, %v4242
      %v4244 = vpop.f32.mrb[0].mxu0
      %v4245 = vadd.f32 0.0, %v4244
      %4246 = vmatprep.mubr.f32.mxu0 0.0
      %4247 = vmatmul.mubr.f32.gmra.mrb[0].mxu0 %v4047
      %v4248 = vpop.f32.mrb[0].mxu0
      %v4249 = vadd.f32 0.0, %v4248
      %v4250 = vpop.f32.mrb[0].mxu0
      %v4251 = vadd.f32 0.0, %v4250
      %4252 = vmatprep.mubr.f32.mxu0 0.0
      %4253 = vmatmul.mubr.f32.gmra.mrb[0].mxu0 %v4050
      %v4254 = vpop.f32.mrb[0].mxu0
      %v4255 = vadd.f32 0.0, %v4254
      %v4256 = vpop.f32.mrb[0].mxu0
      %v4257 = vadd.f32 0.0, %v4256
      %4258 = vmatprep.mubr.f32.mxu0 0.0
      %4259 = vmatmul.mubr.f32.gmra.mrb[0].mxu0 %v4053
      %v4260 = vpop.f32.mrb[0].mxu0
      %v4261 = vadd.f32 0.0, %v4260
      %v4262 = vpop.f32.mrb[0].mxu0
      %v4263 = vadd.f32 0.0, %v4262
      %4264 = vmatprep.mubr.f32.mxu0 0.0
      %4265 = vmatmul.mubr.f32.gmra.mrb[0].mxu0 %v4056
      %v4266 = vpop.f32.mrb[0].mxu0
      %v4267 = vadd.f32 0.0, %v4266
      %v4268 = vpop.f32.mrb[0].mxu0
      %v4269 = vadd.f32 0.0, %v4268
      %4270 = vmatprep.mubr.f32.mxu0 0.0
      %4271 = vmatmul.mubr.f32.gmra.mrb[0].mxu0 %v4059
      %v4272 = vpop.f32.mrb[0].mxu0
      %v4273 = vadd.f32 0.0, %v4272
      %v4274 = vpop.f32.mrb[0].mxu0
      %v4275 = vadd.f32 0.0, %v4274
      %4276 = vmatprep.mubr.f32.mxu0 0.0
      %4277 = vmatmul.mubr.f32.gmra.mrb[0].mxu0 %v4062
      %v4278 = vpop.f32.mrb[0].mxu0
      %v4279 = vadd.f32 0.0, %v4278
      %v4280 = vpop.f32.mrb[0].mxu0
      %v4281 = vadd.f32 0.0, %v4280
      %4282 = vmatprep.mubr.f32.mxu0 0.0
      %4283 = vmatmul.mubr.f32.gmra.mrb[0].mxu0 %v4065
      %v4284 = vpop.f32.mrb[0].mxu0
      %v4285 = vadd.f32 0.0, %v4284
      %v4286 = vpop.f32.mrb[0].mxu0
      %v4287 = vadd.f32 0.0, %v4286
      %4288 = vmatprep.mubr.f32.mxu0 0.0
      %4289 = vmatmul.mubr.f32.gmra.mrb[0].mxu0 %v4068
      %v4290 = vpop.f32.mrb[0].mxu0
      %v4291 = vadd.f32 0.0, %v4290
      %v4292 = vpop.f32.mrb[0].mxu0
      %v4293 = vadd.f32 0.0, %v4292
      %4294 = vmatprep.mubr.f32.mxu0 0.0
      %4295 = vmatmul.mubr.f32.gmra.mrb[0].mxu0 %v4071
      %v4296 = vpop.f32.mrb[0].mxu0
      %v4297 = vadd.f32 0.0, %v4296
      %v4298 = vpop.f32.mrb[0].mxu0
      %v4299 = vadd.f32 0.0, %v4298
      %4300 = vmatprep.mubr.f32.mxu0 0.0
      %4301 = vmatmul.mubr.f32.gmra.mrb[0].mxu0 %v4074
      %v4302 = vpop.f32.mrb[0].mxu0
      %v4303 = vadd.f32 0.0, %v4302
      %v4304 = vpop.f32.mrb[0].mxu0
      %v4305 = vadd.f32 0.0, %v4304
      %4306 = vmatprep.mubr.f32.mxu0 0.0
      %4307 = vmatmul.mubr.f32.gmra.mrb[0].mxu0 %v4077
      %v4308 = vpop.f32.mrb[0].mxu0
      %v4309 = vadd.f32 0.0, %v4308
      %v4310 = vpop.f32.mrb[0].mxu0
      %v4311 = vadd.f32 0.0, %v4310
      %4312 = vdwg.mxu0
      %v4313 = vmul.f32 %v3547, %v4153
      %v4314 = vmul.f32 %v3549, %v4155
      %v4315 = vmul.f32 %v3551, %v4159
      %v4316 = vmul.f32 %v3553, %v4161
      %v4317 = vmul.f32 %v3555, %v4165
      %v4318 = vmul.f32 %v3557, %v4167
      %v4319 = vmul.f32 %v3559, %v4171
      %v4320 = vmul.f32 %v3561, %v4173
      %v4321 = vmul.f32 %v3563, %v4177
      %v4322 = vmul.f32 %v3565, %v4179
      %v4323 = vmul.f32 %v3567, %v4183
      %v4324 = vmul.f32 %v3569, %v4185
      %v4325 = vmul.f32 %v3571, %v4189
      %v4326 = vmul.f32 %v3573, %v4191
      %v4327 = vmul.f32 %v3575, %v4195
      %v4328 = vmul.f32 %v3577, %v4197
      %v4329 = vmul.f32 %v3579, %v4201
      %v4330 = vmul.f32 %v3581, %v4203
      %v4331 = vmul.f32 %v3583, %v4207
      %v4332 = vmul.f32 %v3585, %v4209
      %v4333 = vmul.f32 %v3587, %v4213
      %v4334 = vmul.f32 %v3589, %v4215
      %v4335 = vmul.f32 %v3591, %v4219
      %v4336 = vmul.f32 %v3593, %v4221
      %v4337 = vmul.f32 %v3595, %v4225
      %v4338 = vmul.f32 %v3597, %v4227
      %v4339 = vmul.f32 %v3599, %v4231
      %v4340 = vmul.f32 %v3601, %v4233
      %v4341 = vmul.f32 %v3603, %v4237
      %v4342 = vmul.f32 %v3605, %v4239
      %v4343 = vmul.f32 %v3607, %v4243
      %v4344 = vmul.f32 %v3609, %v4245
      %v4345 = vmul.f32 %v3611, %v4249
      %v4346 = vmul.f32 %v3613, %v4251
      %v4347 = vmul.f32 %v3615, %v4255
      %v4348 = vmul.f32 %v3617, %v4257
      %v4349 = vmul.f32 %v3619, %v4261
      %v4350 = vmul.f32 %v3621, %v4263
      %v4351 = vmul.f32 %v3623, %v4267
      %v4352 = vmul.f32 %v3625, %v4269
      %v4353 = vmul.f32 %v3627, %v4273
      %v4354 = vmul.f32 %v3629, %v4275
      %v4355 = vmul.f32 %v3631, %v4279
      %v4356 = vmul.f32 %v3633, %v4281
      %v4357 = vmul.f32 %v3635, %v4285
      %v4358 = vmul.f32 %v3637, %v4287
      %v4359 = vmul.f32 %v3639, %v4291
      %v4360 = vmul.f32 %v3641, %v4293
      %v4361 = vmul.f32 %v3643, %v4297
      %v4362 = vmul.f32 %v3645, %v4299
      %v4363 = vmul.f32 %v3647, %v4303
      %v4364 = vmul.f32 %v3649, %v4305
      %v4365 = vmul.f32 %v3651, %v4309
      %v4366 = vmul.f32 %v3653, %v4311
      %v4367 = vld [vmem:[%s3] sm:$0xff]
      %v4368 = vld [vmem:[%s3 + $0x8] sm:$0xff]
      %v4369 = vld [vmem:[%s3 + $0x10] sm:$0xff]
      %v4370 = vld [vmem:[%s3 + $0x18] sm:$0xff]
      %v4371 = vld [vmem:[%s3 + $0x20] sm:$0xff]
      %v4372 = vld [vmem:[%s3 + $0x28] sm:$0xff]
      %v4373 = vld [vmem:[%s3 + $0x30] sm:$0x7]
      %v4374 = vld [vmem:[%s3 + $0x38] sm:$0x7]
      %v4376 = vsel %vm1021, %v4368, 0
      %v4379 = vsel %vm1021, %v4370, 0
      %v4382 = vsel %vm1021, %v4372, 0
      %v4385 = vsel %vm1021, %v4374, 0
      %4387 = vmatprep.subr.mxu0 %v4314
      %4388 = vmatpush1.msra.mxu0 %v4313
      %4389 = vmatprep.subr.mxu0 %v4316
      %4390 = vmatpush1.msra.mxu0 %v4315
      %4391 = vmatprep.subr.mxu0 %v4318
      %4392 = vmatpush1.msra.mxu0 %v4317
      %4393 = vmatprep.subr.mxu0 %v4320
      %4394 = vmatpush1.msra.mxu0 %v4319
      %4395 = vmatprep.subr.mxu0 %v4322
      %4396 = vmatpush1.msra.mxu0 %v4321
      %4397 = vmatprep.subr.mxu0 %v4324
      %4398 = vmatpush1.msra.mxu0 %v4323
      %4399 = vmatprep.subr.mxu0 %v4326
      %4400 = vmatpush1.msra.mxu0 %v4325
      %4401 = vmatprep.subr.mxu0 %v4328
      %4402 = vmatpush1.msra.mxu0 %v4327
      %4403 = vmatprep.subr.mxu0 %v4330
      %4404 = vmatpush1.msra.mxu0 %v4329
      %4405 = vmatprep.subr.mxu0 %v4332
      %4406 = vmatpush1.msra.mxu0 %v4331
      %4407 = vmatprep.subr.mxu0 %v4334
      %4408 = vmatpush1.msra.mxu0 %v4333
      %4409 = vmatprep.subr.mxu0 %v4336
      %4410 = vmatpush1.msra.mxu0 %v4335
      %4411 = vmatprep.subr.mxu0 %v4338
      %4412 = vmatpush1.msra.mxu0 %v4337
      %4413 = vmatprep.subr.mxu0 %v4340
      %4414 = vmatpush1.msra.mxu0 %v4339
      %4415 = vmatprep.subr.mxu0 %v4342
      %4416 = vmatpush1.msra.mxu0 %v4341
      %4417 = vmatprep.subr.mxu0 %v4344
      %4418 = vmatpush1.msra.mxu0 %v4343
      %4419 = vmatprep.subr.mxu0 %v4346
      %4420 = vmatpush1.msra.mxu0 %v4345
      %4421 = vmatprep.subr.mxu0 %v4348
      %4422 = vmatpush1.msra.mxu0 %v4347
      %4423 = vmatprep.subr.mxu0 %v4350
      %4424 = vmatpush1.msra.mxu0 %v4349
      %4425 = vmatprep.subr.mxu0 %v4352
      %4426 = vmatpush1.msra.mxu0 %v4351
      %4427 = vmatprep.subr.mxu0 %v4354
      %4428 = vmatpush1.msra.mxu0 %v4353
      %4429 = vmatprep.subr.mxu0 %v4356
      %4430 = vmatpush1.msra.mxu0 %v4355
      %4431 = vmatprep.subr.mxu0 %v4358
      %4432 = vmatpush1.msra.mxu0 %v4357
      %4433 = vmatprep.subr.mxu0 %v4360
      %4434 = vmatpush1.msra.mxu0 %v4359
      %4435 = vmatprep.subr.mxu0 %v4362
      %4436 = vmatpush1.msra.mxu0 %v4361
      %4437 = vmatprep.subr.mxu0 %v4364
      %4438 = vmatpush1.msra.mxu0 %v4363
      %4439 = vmatprep.subr.mxu0 %v4366
      %4440 = vmatpush1.msra.mxu0 %v4365
      %4441 = vmatprep.subr.mxu0 0.0
      %4442 = vmatpush1.msra.mxu0 0.0
      %4443 = vmatprep.subr.mxu0 0.0
      %4444 = vmatpush1.msra.mxu0 0.0
      %4445 = vmatprep.subr.mxu0 0.0
      %4446 = vmatpush1.msra.mxu0 0.0
      %4447 = vmatprep.subr.mxu0 0.0
      %4448 = vmatpush1.msra.mxu0 0.0
      %4449 = vmatprep.subr.mxu0 0.0
      %4450 = vmatpush1.msra.mxu0 0.0
      %4451 = vmatprep.mubr.f32.mxu0 %v4376
      %4452 = vmatmul.mubr.f32.gmra.mrb[0].mxu0 %v4367
      %v4453 = vpop.f32.mrb[0].mxu0
      %v4454 = vadd.f32 0.0, %v4453
      %v4455 = vpop.f32.mrb[0].mxu0
      %v4456 = vadd.f32 0.0, %v4455
      %4457 = vmatprep.mubr.f32.mxu0 %v4379
      %4458 = vmatmul.mubr.f32.gmra.mrb[0].mxu0 %v4369
      %v4459 = vpop.f32.mrb[0].mxu0
      %v4460 = vadd.f32 0.0, %v4459
      %v4461 = vpop.f32.mrb[0].mxu0
      %v4462 = vadd.f32 0.0, %v4461
      %4463 = vmatprep.mubr.f32.mxu0 %v4382
      %4464 = vmatmul.mubr.f32.gmra.mrb[0].mxu0 %v4371
      %v4465 = vpop.f32.mrb[0].mxu0
      %v4466 = vadd.f32 0.0, %v4465
      %v4467 = vpop.f32.mrb[0].mxu0
      %v4468 = vadd.f32 0.0, %v4467
      %4469 = vmatprep.mubr.f32.mxu0 %v4385
      %4470 = vmatmul.mubr.f32.gmra.mrb[0].mxu0 %v4373
      %v4471 = vpop.f32.mrb[0].mxu0
      %v4472 = vadd.f32 0.0, %v4471
      %v4473 = vpop.f32.mrb[0].mxu0
      %v4474 = vadd.f32 0.0, %v4473
      %4475 = vdwg.mxu0
      %v4477 = vsel %vm1782, %v4454, 0
      %v4480 = vsel %vm1782, %v4460, 0
      %v4483 = vsel %vm1782, %v4466, 0
      %v4486 = vsel %vm1782, %v4472, 0
      %4488 = vmatprep.subr.mxu0 0.0
      %4489 = vmatpush1.msra.mxu0 %v2862
      %4490 = vmatprep.subr.mxu0 0.0
      %4491 = vmatpush1.msra.mxu0 0.0
      %4492 = vmatprep.subr.mxu0 0.0
      %4493 = vmatpush1.msra.mxu0 0.0
      %4494 = vmatprep.subr.mxu0 0.0
      %4495 = vmatpush1.msra.mxu0 0.0
      %4496 = vmatprep.subr.mxu0 0.0
      %4497 = vmatpush1.msra.mxu0 0.0
      %4498 = vmatprep.subr.mxu0 0.0
      %4499 = vmatpush1.msra.mxu0 0.0
      %4500 = vmatprep.subr.mxu0 0.0
      %4501 = vmatpush1.msra.mxu0 0.0
      %4502 = vmatprep.subr.mxu0 0.0
      %4503 = vmatpush1.msra.mxu0 0.0
      %4504 = vmatprep.subr.mxu0 0.0
      %4505 = vmatpush1.msra.mxu0 0.0
      %4506 = vmatprep.subr.mxu0 0.0
      %4507 = vmatpush1.msra.mxu0 0.0
      %4508 = vmatprep.subr.mxu0 0.0
      %4509 = vmatpush1.msra.mxu0 0.0
      %4510 = vmatprep.subr.mxu0 0.0
      %4511 = vmatpush1.msra.mxu0 0.0
      %4512 = vmatprep.subr.mxu0 0.0
      %4513 = vmatpush1.msra.mxu0 0.0
      %4514 = vmatprep.subr.mxu0 0.0
      %4515 = vmatpush1.msra.mxu0 0.0
      %4516 = vmatprep.subr.mxu0 0.0
      %4517 = vmatpush1.msra.mxu0 0.0
      %4518 = vmatprep.subr.mxu0 0.0
      %4519 = vmatpush1.msra.mxu0 0.0
      %4520 = vmatprep.subr.mxu0 0.0
      %4521 = vmatpush1.msra.mxu0 0.0
      %4522 = vmatprep.subr.mxu0 0.0
      %4523 = vmatpush1.msra.mxu0 0.0
      %4524 = vmatprep.subr.mxu0 0.0
      %4525 = vmatpush1.msra.mxu0 0.0
      %4526 = vmatprep.subr.mxu0 0.0
      %4527 = vmatpush1.msra.mxu0 0.0
      %4528 = vmatprep.subr.mxu0 0.0
      %4529 = vmatpush1.msra.mxu0 0.0
      %4530 = vmatprep.subr.mxu0 0.0
      %4531 = vmatpush1.msra.mxu0 0.0
      %4532 = vmatprep.subr.mxu0 0.0
      %4533 = vmatpush1.msra.mxu0 0.0
      %4534 = vmatprep.subr.mxu0 0.0
      %4535 = vmatpush1.msra.mxu0 0.0
      %4536 = vmatprep.subr.mxu0 0.0
      %4537 = vmatpush1.msra.mxu0 0.0
      %4538 = vmatprep.subr.mxu0 0.0
      %4539 = vmatpush1.msra.mxu0 0.0
      %4540 = vmatprep.subr.mxu0 0.0
      %4541 = vmatpush1.msra.mxu0 0.0
      %4542 = vmatprep.subr.mxu0 0.0
      %4543 = vmatpush1.msra.mxu0 0.0
      %4544 = vmatprep.subr.mxu0 0.0
      %4545 = vmatpush1.msra.mxu0 0.0
      %4546 = vmatprep.subr.mxu0 0.0
      %4547 = vmatpush1.msra.mxu0 0.0
      %4548 = vmatprep.subr.mxu0 0.0
      %4549 = vmatpush1.msra.mxu0 0.0
      %4550 = vmatprep.subr.mxu0 0.0
      %4551 = vmatpush1.msra.mxu0 0.0
      %4552 = vmatprep.mubr.f32.mxu0 0.0
      %4553 = vmatmul.mubr.f32.gmra.mrb[0].mxu0 %v4477
      %v4554 = vpop.f32.mrb[0].mxu0
      %v4555 = vadd.f32 0.0, %v4554
      %v4556 = vpop.f32.mrb[0].mxu0
      %4557 = vmatprep.mubr.f32.mxu0 0.0
      %4558 = vmatmul.mubr.f32.gmra.mrb[0].mxu0 %v4480
      %v4559 = vpop.f32.mrb[0].mxu0
      %v4560 = vadd.f32 0.0, %v4559
      %v4561 = vpop.f32.mrb[0].mxu0
      %4562 = vmatprep.mubr.f32.mxu0 0.0
      %4563 = vmatmul.mubr.f32.gmra.mrb[0].mxu0 %v4483
      %v4564 = vpop.f32.mrb[0].mxu0
      %v4565 = vadd.f32 0.0, %v4564
      %v4566 = vpop.f32.mrb[0].mxu0
      %4567 = vmatprep.mubr.f32.mxu0 0.0
      %4568 = vmatmul.mubr.f32.gmra.mrb[0].mxu0 %v4486
      %v4569 = vpop.f32.mrb[0].mxu0
      %v4570 = vadd.f32 0.0, %v4569
      %v4571 = vpop.f32.mrb[0].mxu0
      %4572 = vdwg.mxu0
      %v4573 = vld [vmem:[%s13] sm:$0xff]
      %v4574 = vld [vmem:[%s13 + $0x8] sm:$0xff]
      %v4575 = vld [vmem:[%s13 + $0x10] sm:$0xff]
      %v4576 = vld [vmem:[%s13 + $0x18] sm:$0x7]
      %4578 = vset.pattern.permute.xlu0 0
      %4579 = vperm.xlu0 %4578, %v4573
      %v4580 = vpop.permute.xlu0 %4579
      %4583 = vset.pattern.permute.xlu0 0
      %4584 = vperm.xlu0 %4583, %v4574
      %v4585 = vpop.permute.xlu0 %4584
      %4588 = vset.pattern.permute.xlu0 0
      %4589 = vperm.xlu0 %4588, %v4575
      %v4590 = vpop.permute.xlu0 %4589
      %4593 = vset.pattern.permute.xlu0 0
      %4594 = vperm.xlu0 %4593, %v4576
      %v4595 = vpop.permute.xlu0 %4594
      %v4597 = vmul.f32 %v4555, %v4580
      %v4598 = vmul.f32 %v4560, %v4585
      %v4599 = vmul.f32 %v4565, %v4590
      %v4600 = vmul.f32 %v4570, %v4595
      %v4601 = vld [vmem:[%s14] sm:$0xff]
      %v4602 = vld [vmem:[%s14 + $0x8] sm:$0xff]
      %v4603 = vld [vmem:[%s14 + $0x10] sm:$0xff]
      %v4604 = vld [vmem:[%s14 + $0x18] sm:$0x7]
      %v4605 = vadd.f32 %v4597, %v4601
      %v4606 = vadd.f32 %v4598, %v4602
      %v4607 = vadd.f32 %v4599, %v4603
      %v4608 = vadd.f32 %v4600, %v4604
      %4609 = vst.msk [vmem:[%s531] sm:$0xff] %vm598, %v4605
      %4610 = vst.msk [vmem:[%s531 + $0x8] sm:$0xff] %vm598, %v4606
      %4611 = vst.msk [vmem:[%s531 + $0x10] sm:$0xff] %vm598, %v4607
      %4612 = vst.msk [vmem:[%s531 + $0x18] sm:$0x7] %vm1122, %v4608
      %4613 = vrot.lane.b32.xlu0 %v4454, 120
      %v4614 = vpop.permute.xlu0 %4613
      %4615 = vrot.lane.b32.xlu0 %v4460, 120
      %v4616 = vpop.permute.xlu0 %4615
      %4617 = vrot.lane.b32.xlu0 %v4466, 120
      %v4618 = vpop.permute.xlu0 %4617
      %4619 = vrot.lane.b32.xlu0 %v4472, 120
      %v4620 = vpop.permute.xlu0 %4619
      %v4621 = vsel %vm1782, %v4614, 0
      %v4623 = vsel %vm1782, %v4616, 0
      %v4625 = vsel %vm1782, %v4618, 0
      %v4627 = vsel %vm1782, %v4620, 0
      %4629 = vmatprep.subr.mxu0 0.0
      %4630 = vmatpush1.msra.mxu0 %v2867
      %4631 = vmatprep.subr.mxu0 0.0
      %4632 = vmatpush1.msra.mxu0 0.0
      %4633 = vmatprep.subr.mxu0 0.0
      %4634 = vmatpush1.msra.mxu0 0.0
      %4635 = vmatprep.subr.mxu0 0.0
      %4636 = vmatpush1.msra.mxu0 0.0
      %4637 = vmatprep.subr.mxu0 0.0
      %4638 = vmatpush1.msra.mxu0 0.0
      %4639 = vmatprep.subr.mxu0 0.0
      %4640 = vmatpush1.msra.mxu0 0.0
      %4641 = vmatprep.subr.mxu0 0.0
      %4642 = vmatpush1.msra.mxu0 0.0
      %4643 = vmatprep.subr.mxu0 0.0
      %4644 = vmatpush1.msra.mxu0 0.0
      %4645 = vmatprep.subr.mxu0 0.0
      %4646 = vmatpush1.msra.mxu0 0.0
      %4647 = vmatprep.subr.mxu0 0.0
      %4648 = vmatpush1.msra.mxu0 0.0
      %4649 = vmatprep.subr.mxu0 0.0
      %4650 = vmatpush1.msra.mxu0 0.0
      %4651 = vmatprep.subr.mxu0 0.0
      %4652 = vmatpush1.msra.mxu0 0.0
      %4653 = vmatprep.subr.mxu0 0.0
      %4654 = vmatpush1.msra.mxu0 0.0
      %4655 = vmatprep.subr.mxu0 0.0
      %4656 = vmatpush1.msra.mxu0 0.0
      %4657 = vmatprep.subr.mxu0 0.0
      %4658 = vmatpush1.msra.mxu0 0.0
      %4659 = vmatprep.subr.mxu0 0.0
      %4660 = vmatpush1.msra.mxu0 0.0
      %4661 = vmatprep.subr.mxu0 0.0
      %4662 = vmatpush1.msra.mxu0 0.0
      %4663 = vmatprep.subr.mxu0 0.0
      %4664 = vmatpush1.msra.mxu0 0.0
      %4665 = vmatprep.subr.mxu0 0.0
      %4666 = vmatpush1.msra.mxu0 0.0
      %4667 = vmatprep.subr.mxu0 0.0
      %4668 = vmatpush1.msra.mxu0 0.0
      %4669 = vmatprep.subr.mxu0 0.0
      %4670 = vmatpush1.msra.mxu0 0.0
      %4671 = vmatprep.subr.mxu0 0.0
      %4672 = vmatpush1.msra.mxu0 0.0
      %4673 = vmatprep.subr.mxu0 0.0
      %4674 = vmatpush1.msra.mxu0 0.0
      %4675 = vmatprep.subr.mxu0 0.0
      %4676 = vmatpush1.msra.mxu0 0.0
      %4677 = vmatprep.subr.mxu0 0.0
      %4678 = vmatpush1.msra.mxu0 0.0
      %4679 = vmatprep.subr.mxu0 0.0
      %4680 = vmatpush1.msra.mxu0 0.0
      %4681 = vmatprep.subr.mxu0 0.0
      %4682 = vmatpush1.msra.mxu0 0.0
      %4683 = vmatprep.subr.mxu0 0.0
      %4684 = vmatpush1.msra.mxu0 0.0
      %4685 = vmatprep.subr.mxu0 0.0
      %4686 = vmatpush1.msra.mxu0 0.0
      %4687 = vmatprep.subr.mxu0 0.0
      %4688 = vmatpush1.msra.mxu0 0.0
      %4689 = vmatprep.subr.mxu0 0.0
      %4690 = vmatpush1.msra.mxu0 0.0
      %4691 = vmatprep.subr.mxu0 0.0
      %4692 = vmatpush1.msra.mxu0 0.0
      %4693 = vmatprep.mubr.f32.mxu0 0.0
      %4694 = vmatmul.mubr.f32.gmra.mrb[0].mxu0 %v4621
      %v4695 = vpop.f32.mrb[0].mxu0
      %v4696 = vadd.f32 0.0, %v4695
      %v4697 = vpop.f32.mrb[0].mxu0
      %4698 = vmatprep.mubr.f32.mxu0 0.0
      %4699 = vmatmul.mubr.f32.gmra.mrb[0].mxu0 %v4623
      %v4700 = vpop.f32.mrb[0].mxu0
      %v4701 = vadd.f32 0.0, %v4700
      %v4702 = vpop.f32.mrb[0].mxu0
      %4703 = vmatprep.mubr.f32.mxu0 0.0
      %4704 = vmatmul.mubr.f32.gmra.mrb[0].mxu0 %v4625
      %v4705 = vpop.f32.mrb[0].mxu0
      %v4706 = vadd.f32 0.0, %v4705
      %v4707 = vpop.f32.mrb[0].mxu0
      %4708 = vmatprep.mubr.f32.mxu0 0.0
      %4709 = vmatmul.mubr.f32.gmra.mrb[0].mxu0 %v4627
      %v4710 = vpop.f32.mrb[0].mxu0
      %v4711 = vadd.f32 0.0, %v4710
      %v4712 = vpop.f32.mrb[0].mxu0
      %4713 = vdwg.mxu0
      %s4714 = scalar_lea.vmem %s13, 32
      %v4715 = vld [vmem:[%s4714] sm:$0xff]
      %v4716 = vld [vmem:[%s4714 + $0x8] sm:$0xff]
      %v4717 = vld [vmem:[%s4714 + $0x10] sm:$0xff]
      %v4718 = vld [vmem:[%s4714 + $0x18] sm:$0x7]
      %4720 = vset.pattern.permute.xlu0 0
      %4721 = vperm.xlu0 %4720, %v4715
      %v4722 = vpop.permute.xlu0 %4721
      %4725 = vset.pattern.permute.xlu0 0
      %4726 = vperm.xlu0 %4725, %v4716
      %v4727 = vpop.permute.xlu0 %4726
      %4730 = vset.pattern.permute.xlu0 0
      %4731 = vperm.xlu0 %4730, %v4717
      %v4732 = vpop.permute.xlu0 %4731
      %4735 = vset.pattern.permute.xlu0 0
      %4736 = vperm.xlu0 %4735, %v4718
      %v4737 = vpop.permute.xlu0 %4736
      %v4739 = vmul.f32 %v4696, %v4722
      %v4740 = vmul.f32 %v4701, %v4727
      %v4741 = vmul.f32 %v4706, %v4732
      %v4742 = vmul.f32 %v4711, %v4737
      %s4743 = scalar_lea.vmem %s14, 32
      %v4744 = vld [vmem:[%s4743] sm:$0xff]
      %v4745 = vld [vmem:[%s4743 + $0x8] sm:$0xff]
      %v4746 = vld [vmem:[%s4743 + $0x10] sm:$0xff]
      %v4747 = vld [vmem:[%s4743 + $0x18] sm:$0x7]
      %v4748 = vadd.f32 %v4739, %v4744
      %v4749 = vadd.f32 %v4740, %v4745
      %v4750 = vadd.f32 %v4741, %v4746
      %v4751 = vadd.f32 %v4742, %v4747
      %s4752 = scalar_lea.vmem %s531, 32
      %4753 = vst.msk [vmem:[%s4752] sm:$0xff] %vm598, %v4748
      %4754 = vst.msk [vmem:[%s4752 + $0x8] sm:$0xff] %vm598, %v4749
      %4755 = vst.msk [vmem:[%s4752 + $0x10] sm:$0xff] %vm598, %v4750
      %4756 = vst.msk [vmem:[%s4752 + $0x18] sm:$0x7] %vm1122, %v4751
      %4757 = vrot.lane.b32.xlu0 %v4454, 112
      %v4758 = vpop.permute.xlu0 %4757
      %4759 = vrot.lane.b32.xlu0 %v4460, 112
      %v4760 = vpop.permute.xlu0 %4759
      %4761 = vrot.lane.b32.xlu0 %v4466, 112
      %v4762 = vpop.permute.xlu0 %4761
      %4763 = vrot.lane.b32.xlu0 %v4472, 112
      %v4764 = vpop.permute.xlu0 %4763
      %v4765 = vsel %vm1782, %v4758, 0
      %v4767 = vsel %vm1782, %v4760, 0
      %v4769 = vsel %vm1782, %v4762, 0
      %v4771 = vsel %vm1782, %v4764, 0
      %4773 = vmatprep.subr.mxu0 0.0
      %4774 = vmatpush1.msra.mxu0 %v2872
      %4775 = vmatprep.subr.mxu0 0.0
      %4776 = vmatpush1.msra.mxu0 0.0
      %4777 = vmatprep.subr.mxu0 0.0
      %4778 = vmatpush1.msra.mxu0 0.0
      %4779 = vmatprep.subr.mxu0 0.0
      %4780 = vmatpush1.msra.mxu0 0.0
      %4781 = vmatprep.subr.mxu0 0.0
      %4782 = vmatpush1.msra.mxu0 0.0
      %4783 = vmatprep.subr.mxu0 0.0
      %4784 = vmatpush1.msra.mxu0 0.0
      %4785 = vmatprep.subr.mxu0 0.0
      %4786 = vmatpush1.msra.mxu0 0.0
      %4787 = vmatprep.subr.mxu0 0.0
      %4788 = vmatpush1.msra.mxu0 0.0
      %4789 = vmatprep.subr.mxu0 0.0
      %4790 = vmatpush1.msra.mxu0 0.0
      %4791 = vmatprep.subr.mxu0 0.0
      %4792 = vmatpush1.msra.mxu0 0.0
      %4793 = vmatprep.subr.mxu0 0.0
      %4794 = vmatpush1.msra.mxu0 0.0
      %4795 = vmatprep.subr.mxu0 0.0
      %4796 = vmatpush1.msra.mxu0 0.0
      %4797 = vmatprep.subr.mxu0 0.0
      %4798 = vmatpush1.msra.mxu0 0.0
      %4799 = vmatprep.subr.mxu0 0.0
      %4800 = vmatpush1.msra.mxu0 0.0
      %4801 = vmatprep.subr.mxu0 0.0
      %4802 = vmatpush1.msra.mxu0 0.0
      %4803 = vmatprep.subr.mxu0 0.0
      %4804 = vmatpush1.msra.mxu0 0.0
      %4805 = vmatprep.subr.mxu0 0.0
      %4806 = vmatpush1.msra.mxu0 0.0
      %4807 = vmatprep.subr.mxu0 0.0
      %4808 = vmatpush1.msra.mxu0 0.0
      %4809 = vmatprep.subr.mxu0 0.0
      %4810 = vmatpush1.msra.mxu0 0.0
      %4811 = vmatprep.subr.mxu0 0.0
      %4812 = vmatpush1.msra.mxu0 0.0
      %4813 = vmatprep.subr.mxu0 0.0
      %4814 = vmatpush1.msra.mxu0 0.0
      %4815 = vmatprep.subr.mxu0 0.0
      %4816 = vmatpush1.msra.mxu0 0.0
      %4817 = vmatprep.subr.mxu0 0.0
      %4818 = vmatpush1.msra.mxu0 0.0
      %4819 = vmatprep.subr.mxu0 0.0
      %4820 = vmatpush1.msra.mxu0 0.0
      %4821 = vmatprep.subr.mxu0 0.0
      %4822 = vmatpush1.msra.mxu0 0.0
      %4823 = vmatprep.subr.mxu0 0.0
      %4824 = vmatpush1.msra.mxu0 0.0
      %4825 = vmatprep.subr.mxu0 0.0
      %4826 = vmatpush1.msra.mxu0 0.0
      %4827 = vmatprep.subr.mxu0 0.0
      %4828 = vmatpush1.msra.mxu0 0.0
      %4829 = vmatprep.subr.mxu0 0.0
      %4830 = vmatpush1.msra.mxu0 0.0
      %4831 = vmatprep.subr.mxu0 0.0
      %4832 = vmatpush1.msra.mxu0 0.0
      %4833 = vmatprep.subr.mxu0 0.0
      %4834 = vmatpush1.msra.mxu0 0.0
      %4835 = vmatprep.subr.mxu0 0.0
      %4836 = vmatpush1.msra.mxu0 0.0
      %4837 = vmatprep.mubr.f32.mxu0 0.0
      %4838 = vmatmul.mubr.f32.gmra.mrb[0].mxu0 %v4765
      %v4839 = vpop.f32.mrb[0].mxu0
      %v4840 = vadd.f32 0.0, %v4839
      %v4841 = vpop.f32.mrb[0].mxu0
      %4842 = vmatprep.mubr.f32.mxu0 0.0
      %4843 = vmatmul.mubr.f32.gmra.mrb[0].mxu0 %v4767
      %v4844 = vpop.f32.mrb[0].mxu0
      %v4845 = vadd.f32 0.0, %v4844
      %v4846 = vpop.f32.mrb[0].mxu0
      %4847 = vmatprep.mubr.f32.mxu0 0.0
      %4848 = vmatmul.mubr.f32.gmra.mrb[0].mxu0 %v4769
      %v4849 = vpop.f32.mrb[0].mxu0
      %v4850 = vadd.f32 0.0, %v4849
      %v4851 = vpop.f32.mrb[0].mxu0
      %4852 = vmatprep.mubr.f32.mxu0 0.0
      %4853 = vmatmul.mubr.f32.gmra.mrb[0].mxu0 %v4771
      %v4854 = vpop.f32.mrb[0].mxu0
      %v4855 = vadd.f32 0.0, %v4854
      %v4856 = vpop.f32.mrb[0].mxu0
      %4857 = vdwg.mxu0
      %s4858 = scalar_lea.vmem %s13, 64
      %v4859 = vld [vmem:[%s4858] sm:$0xff]
      %v4860 = vld [vmem:[%s4858 + $0x8] sm:$0xff]
      %v4861 = vld [vmem:[%s4858 + $0x10] sm:$0xff]
      %v4862 = vld [vmem:[%s4858 + $0x18] sm:$0x7]
      %4864 = vset.pattern.permute.xlu0 0
      %4865 = vperm.xlu0 %4864, %v4859
      %v4866 = vpop.permute.xlu0 %4865
      %4869 = vset.pattern.permute.xlu0 0
      %4870 = vperm.xlu0 %4869, %v4860
      %v4871 = vpop.permute.xlu0 %4870
      %4874 = vset.pattern.permute.xlu0 0
      %4875 = vperm.xlu0 %4874, %v4861
      %v4876 = vpop.permute.xlu0 %4875
      %4879 = vset.pattern.permute.xlu0 0
      %4880 = vperm.xlu0 %4879, %v4862
      %v4881 = vpop.permute.xlu0 %4880
      %v4883 = vmul.f32 %v4840, %v4866
      %v4884 = vmul.f32 %v4845, %v4871
      %v4885 = vmul.f32 %v4850, %v4876
      %v4886 = vmul.f32 %v4855, %v4881
      %s4887 = scalar_lea.vmem %s14, 64
      %v4888 = vld [vmem:[%s4887] sm:$0xff]
      %v4889 = vld [vmem:[%s4887 + $0x8] sm:$0xff]
      %v4890 = vld [vmem:[%s4887 + $0x10] sm:$0xff]
      %v4891 = vld [vmem:[%s4887 + $0x18] sm:$0x7]
      %v4892 = vadd.f32 %v4883, %v4888
      %v4893 = vadd.f32 %v4884, %v4889
      %v4894 = vadd.f32 %v4885, %v4890
      %v4895 = vadd.f32 %v4886, %v4891
      %s4896 = scalar_lea.vmem %s531, 64
      %4897 = vst.msk [vmem:[%s4896] sm:$0xff] %vm598, %v4892
      %4898 = vst.msk [vmem:[%s4896 + $0x8] sm:$0xff] %vm598, %v4893
      %4899 = vst.msk [vmem:[%s4896 + $0x10] sm:$0xff] %vm598, %v4894
      %4900 = vst.msk [vmem:[%s4896 + $0x18] sm:$0x7] %vm1122, %v4895
      %4901 = vrot.lane.b32.xlu0 %v4454, 104
      %v4902 = vpop.permute.xlu0 %4901
      %4903 = vrot.lane.b32.xlu0 %v4460, 104
      %v4904 = vpop.permute.xlu0 %4903
      %4905 = vrot.lane.b32.xlu0 %v4466, 104
      %v4906 = vpop.permute.xlu0 %4905
      %4907 = vrot.lane.b32.xlu0 %v4472, 104
      %v4908 = vpop.permute.xlu0 %4907
      %v4909 = vsel %vm1782, %v4902, 0
      %v4911 = vsel %vm1782, %v4904, 0
      %v4913 = vsel %vm1782, %v4906, 0
      %v4915 = vsel %vm1782, %v4908, 0
      %4917 = vmatprep.subr.mxu0 0.0
      %4918 = vmatpush1.msra.mxu0 %v2877
      %4919 = vmatprep.subr.mxu0 0.0
      %4920 = vmatpush1.msra.mxu0 0.0
      %4921 = vmatprep.subr.mxu0 0.0
      %4922 = vmatpush1.msra.mxu0 0.0
      %4923 = vmatprep.subr.mxu0 0.0
      %4924 = vmatpush1.msra.mxu0 0.0
      %4925 = vmatprep.subr.mxu0 0.0
      %4926 = vmatpush1.msra.mxu0 0.0
      %4927 = vmatprep.subr.mxu0 0.0
      %4928 = vmatpush1.msra.mxu0 0.0
      %4929 = vmatprep.subr.mxu0 0.0
      %4930 = vmatpush1.msra.mxu0 0.0
      %4931 = vmatprep.subr.mxu0 0.0
      %4932 = vmatpush1.msra.mxu0 0.0
      %4933 = vmatprep.subr.mxu0 0.0
      %4934 = vmatpush1.msra.mxu0 0.0
      %4935 = vmatprep.subr.mxu0 0.0
      %4936 = vmatpush1.msra.mxu0 0.0
      %4937 = vmatprep.subr.mxu0 0.0
      %4938 = vmatpush1.msra.mxu0 0.0
      %4939 = vmatprep.subr.mxu0 0.0
      %4940 = vmatpush1.msra.mxu0 0.0
      %4941 = vmatprep.subr.mxu0 0.0
      %4942 = vmatpush1.msra.mxu0 0.0
      %4943 = vmatprep.subr.mxu0 0.0
      %4944 = vmatpush1.msra.mxu0 0.0
      %4945 = vmatprep.subr.mxu0 0.0
      %4946 = vmatpush1.msra.mxu0 0.0
      %4947 = vmatprep.subr.mxu0 0.0
      %4948 = vmatpush1.msra.mxu0 0.0
      %4949 = vmatprep.subr.mxu0 0.0
      %4950 = vmatpush1.msra.mxu0 0.0
      %4951 = vmatprep.subr.mxu0 0.0
      %4952 = vmatpush1.msra.mxu0 0.0
      %4953 = vmatprep.subr.mxu0 0.0
      %4954 = vmatpush1.msra.mxu0 0.0
      %4955 = vmatprep.subr.mxu0 0.0
      %4956 = vmatpush1.msra.mxu0 0.0
      %4957 = vmatprep.subr.mxu0 0.0
      %4958 = vmatpush1.msra.mxu0 0.0
      %4959 = vmatprep.subr.mxu0 0.0
      %4960 = vmatpush1.msra.mxu0 0.0
      %4961 = vmatprep.subr.mxu0 0.0
      %4962 = vmatpush1.msra.mxu0 0.0
      %4963 = vmatprep.subr.mxu0 0.0
      %4964 = vmatpush1.msra.mxu0 0.0
      %4965 = vmatprep.subr.mxu0 0.0
      %4966 = vmatpush1.msra.mxu0 0.0
      %4967 = vmatprep.subr.mxu0 0.0
      %4968 = vmatpush1.msra.mxu0 0.0
      %4969 = vmatprep.subr.mxu0 0.0
      %4970 = vmatpush1.msra.mxu0 0.0
      %4971 = vmatprep.subr.mxu0 0.0
      %4972 = vmatpush1.msra.mxu0 0.0
      %4973 = vmatprep.subr.mxu0 0.0
      %4974 = vmatpush1.msra.mxu0 0.0
      %4975 = vmatprep.subr.mxu0 0.0
      %4976 = vmatpush1.msra.mxu0 0.0
      %4977 = vmatprep.subr.mxu0 0.0
      %4978 = vmatpush1.msra.mxu0 0.0
      %4979 = vmatprep.subr.mxu0 0.0
      %4980 = vmatpush1.msra.mxu0 0.0
      %4981 = vmatprep.mubr.f32.mxu0 0.0
      %4982 = vmatmul.mubr.f32.gmra.mrb[0].mxu0 %v4909
      %v4983 = vpop.f32.mrb[0].mxu0
      %v4984 = vadd.f32 0.0, %v4983
      %v4985 = vpop.f32.mrb[0].mxu0
      %4986 = vmatprep.mubr.f32.mxu0 0.0
      %4987 = vmatmul.mubr.f32.gmra.mrb[0].mxu0 %v4911
      %v4988 = vpop.f32.mrb[0].mxu0
      %v4989 = vadd.f32 0.0, %v4988
      %v4990 = vpop.f32.mrb[0].mxu0
      %4991 = vmatprep.mubr.f32.mxu0 0.0
      %4992 = vmatmul.mubr.f32.gmra.mrb[0].mxu0 %v4913
      %v4993 = vpop.f32.mrb[0].mxu0
      %v4994 = vadd.f32 0.0, %v4993
      %v4995 = vpop.f32.mrb[0].mxu0
      %4996 = vmatprep.mubr.f32.mxu0 0.0
      %4997 = vmatmul.mubr.f32.gmra.mrb[0].mxu0 %v4915
      %v4998 = vpop.f32.mrb[0].mxu0
      %v4999 = vadd.f32 0.0, %v4998
      %v5000 = vpop.f32.mrb[0].mxu0
      %5001 = vdwg.mxu0
      %s5002 = scalar_lea.vmem %s13, 96
      %v5003 = vld [vmem:[%s5002] sm:$0xff]
      %v5004 = vld [vmem:[%s5002 + $0x8] sm:$0xff]
      %v5005 = vld [vmem:[%s5002 + $0x10] sm:$0xff]
      %v5006 = vld [vmem:[%s5002 + $0x18] sm:$0x7]
      %5008 = vset.pattern.permute.xlu0 0
      %5009 = vperm.xlu0 %5008, %v5003
      %v5010 = vpop.permute.xlu0 %5009
      %5013 = vset.pattern.permute.xlu0 0
      %5014 = vperm.xlu0 %5013, %v5004
      %v5015 = vpop.permute.xlu0 %5014
      %5018 = vset.pattern.permute.xlu0 0
      %5019 = vperm.xlu0 %5018, %v5005
      %v5020 = vpop.permute.xlu0 %5019
      %5023 = vset.pattern.permute.xlu0 0
      %5024 = vperm.xlu0 %5023, %v5006
      %v5025 = vpop.permute.xlu0 %5024
      %v5027 = vmul.f32 %v4984, %v5010
      %v5028 = vmul.f32 %v4989, %v5015
      %v5029 = vmul.f32 %v4994, %v5020
      %v5030 = vmul.f32 %v4999, %v5025
      %s5031 = scalar_lea.vmem %s14, 96
      %v5032 = vld [vmem:[%s5031] sm:$0xff]
      %v5033 = vld [vmem:[%s5031 + $0x8] sm:$0xff]
      %v5034 = vld [vmem:[%s5031 + $0x10] sm:$0xff]
      %v5035 = vld [vmem:[%s5031 + $0x18] sm:$0x7]
      %v5036 = vadd.f32 %v5027, %v5032
      %v5037 = vadd.f32 %v5028, %v5033
      %v5038 = vadd.f32 %v5029, %v5034
      %v5039 = vadd.f32 %v5030, %v5035
      %s5040 = scalar_lea.vmem %s531, 96
      %5041 = vst.msk [vmem:[%s5040] sm:$0xff] %vm598, %v5036
      %5042 = vst.msk [vmem:[%s5040 + $0x8] sm:$0xff] %vm598, %v5037
      %5043 = vst.msk [vmem:[%s5040 + $0x10] sm:$0xff] %vm598, %v5038
      %5044 = vst.msk [vmem:[%s5040 + $0x18] sm:$0x7] %vm1122, %v5039
      %5045 = vrot.lane.b32.xlu0 %v4454, 96
      %v5046 = vpop.permute.xlu0 %5045
      %5047 = vrot.lane.b32.xlu0 %v4460, 96
      %v5048 = vpop.permute.xlu0 %5047
      %5049 = vrot.lane.b32.xlu0 %v4466, 96
      %v5050 = vpop.permute.xlu0 %5049
      %5051 = vrot.lane.b32.xlu0 %v4472, 96
      %v5052 = vpop.permute.xlu0 %5051
      %v5053 = vsel %vm1782, %v5046, 0
      %v5055 = vsel %vm1782, %v5048, 0
      %v5057 = vsel %vm1782, %v5050, 0
      %v5059 = vsel %vm1782, %v5052, 0
      %5061 = vmatprep.subr.mxu0 0.0
      %5062 = vmatpush1.msra.mxu0 %v2882
      %5063 = vmatprep.subr.mxu0 0.0
      %5064 = vmatpush1.msra.mxu0 0.0
      %5065 = vmatprep.subr.mxu0 0.0
      %5066 = vmatpush1.msra.mxu0 0.0
      %5067 = vmatprep.subr.mxu0 0.0
      %5068 = vmatpush1.msra.mxu0 0.0
      %5069 = vmatprep.subr.mxu0 0.0
      %5070 = vmatpush1.msra.mxu0 0.0
      %5071 = vmatprep.subr.mxu0 0.0
      %5072 = vmatpush1.msra.mxu0 0.0
      %5073 = vmatprep.subr.mxu0 0.0
      %5074 = vmatpush1.msra.mxu0 0.0
      %5075 = vmatprep.subr.mxu0 0.0
      %5076 = vmatpush1.msra.mxu0 0.0
      %5077 = vmatprep.subr.mxu0 0.0
      %5078 = vmatpush1.msra.mxu0 0.0
      %5079 = vmatprep.subr.mxu0 0.0
      %5080 = vmatpush1.msra.mxu0 0.0
      %5081 = vmatprep.subr.mxu0 0.0
      %5082 = vmatpush1.msra.mxu0 0.0
      %5083 = vmatprep.subr.mxu0 0.0
      %5084 = vmatpush1.msra.mxu0 0.0
      %5085 = vmatprep.subr.mxu0 0.0
      %5086 = vmatpush1.msra.mxu0 0.0
      %5087 = vmatprep.subr.mxu0 0.0
      %5088 = vmatpush1.msra.mxu0 0.0
      %5089 = vmatprep.subr.mxu0 0.0
      %5090 = vmatpush1.msra.mxu0 0.0
      %5091 = vmatprep.subr.mxu0 0.0
      %5092 = vmatpush1.msra.mxu0 0.0
      %5093 = vmatprep.subr.mxu0 0.0
      %5094 = vmatpush1.msra.mxu0 0.0
      %5095 = vmatprep.subr.mxu0 0.0
      %5096 = vmatpush1.msra.mxu0 0.0
      %5097 = vmatprep.subr.mxu0 0.0
      %5098 = vmatpush1.msra.mxu0 0.0
      %5099 = vmatprep.subr.mxu0 0.0
      %5100 = vmatpush1.msra.mxu0 0.0
      %5101 = vmatprep.subr.mxu0 0.0
      %5102 = vmatpush1.msra.mxu0 0.0
      %5103 = vmatprep.subr.mxu0 0.0
      %5104 = vmatpush1.msra.mxu0 0.0
      %5105 = vmatprep.subr.mxu0 0.0
      %5106 = vmatpush1.msra.mxu0 0.0
      %5107 = vmatprep.subr.mxu0 0.0
      %5108 = vmatpush1.msra.mxu0 0.0
      %5109 = vmatprep.subr.mxu0 0.0
      %5110 = vmatpush1.msra.mxu0 0.0
      %5111 = vmatprep.subr.mxu0 0.0
      %5112 = vmatpush1.msra.mxu0 0.0
      %5113 = vmatprep.subr.mxu0 0.0
      %5114 = vmatpush1.msra.mxu0 0.0
      %5115 = vmatprep.subr.mxu0 0.0
      %5116 = vmatpush1.msra.mxu0 0.0
      %5117 = vmatprep.subr.mxu0 0.0
      %5118 = vmatpush1.msra.mxu0 0.0
      %5119 = vmatprep.subr.mxu0 0.0
      %5120 = vmatpush1.msra.mxu0 0.0
      %5121 = vmatprep.subr.mxu0 0.0
      %5122 = vmatpush1.msra.mxu0 0.0
      %5123 = vmatprep.subr.mxu0 0.0
      %5124 = vmatpush1.msra.mxu0 0.0
      %5125 = vmatprep.mubr.f32.mxu0 0.0
      %5126 = vmatmul.mubr.f32.gmra.mrb[0].mxu0 %v5053
      %v5127 = vpop.f32.mrb[0].mxu0
      %v5128 = vadd.f32 0.0, %v5127
      %v5129 = vpop.f32.mrb[0].mxu0
      %5130 = vmatprep.mubr.f32.mxu0 0.0
      %5131 = vmatmul.mubr.f32.gmra.mrb[0].mxu0 %v5055
      %v5132 = vpop.f32.mrb[0].mxu0
      %v5133 = vadd.f32 0.0, %v5132
      %v5134 = vpop.f32.mrb[0].mxu0
      %5135 = vmatprep.mubr.f32.mxu0 0.0
      %5136 = vmatmul.mubr.f32.gmra.mrb[0].mxu0 %v5057
      %v5137 = vpop.f32.mrb[0].mxu0
      %v5138 = vadd.f32 0.0, %v5137
      %v5139 = vpop.f32.mrb[0].mxu0
      %5140 = vmatprep.mubr.f32.mxu0 0.0
      %5141 = vmatmul.mubr.f32.gmra.mrb[0].mxu0 %v5059
      %v5142 = vpop.f32.mrb[0].mxu0
      %v5143 = vadd.f32 0.0, %v5142
      %v5144 = vpop.f32.mrb[0].mxu0
      %5145 = vdwg.mxu0
      %s5146 = scalar_lea.vmem %s13, 128
      %v5147 = vld [vmem:[%s5146] sm:$0xff]
      %v5148 = vld [vmem:[%s5146 + $0x8] sm:$0xff]
      %v5149 = vld [vmem:[%s5146 + $0x10] sm:$0xff]
      %v5150 = vld [vmem:[%s5146 + $0x18] sm:$0x7]
      %5152 = vset.pattern.permute.xlu0 0
      %5153 = vperm.xlu0 %5152, %v5147
      %v5154 = vpop.permute.xlu0 %5153
      %5157 = vset.pattern.permute.xlu0 0
      %5158 = vperm.xlu0 %5157, %v5148
      %v5159 = vpop.permute.xlu0 %5158
      %5162 = vset.pattern.permute.xlu0 0
      %5163 = vperm.xlu0 %5162, %v5149
      %v5164 = vpop.permute.xlu0 %5163
      %5167 = vset.pattern.permute.xlu0 0
      %5168 = vperm.xlu0 %5167, %v5150
      %v5169 = vpop.permute.xlu0 %5168
      %v5171 = vmul.f32 %v5128, %v5154
      %v5172 = vmul.f32 %v5133, %v5159
      %v5173 = vmul.f32 %v5138, %v5164
      %v5174 = vmul.f32 %v5143, %v5169
      %s5175 = scalar_lea.vmem %s14, 128
      %v5176 = vld [vmem:[%s5175] sm:$0xff]
      %v5177 = vld [vmem:[%s5175 + $0x8] sm:$0xff]
      %v5178 = vld [vmem:[%s5175 + $0x10] sm:$0xff]
      %v5179 = vld [vmem:[%s5175 + $0x18] sm:$0x7]
      %v5180 = vadd.f32 %v5171, %v5176
      %v5181 = vadd.f32 %v5172, %v5177
      %v5182 = vadd.f32 %v5173, %v5178
      %v5183 = vadd.f32 %v5174, %v5179
      %s5184 = scalar_lea.vmem %s531, 128
      %5185 = vst.msk [vmem:[%s5184] sm:$0xff] %vm598, %v5180
      %5186 = vst.msk [vmem:[%s5184 + $0x8] sm:$0xff] %vm598, %v5181
      %5187 = vst.msk [vmem:[%s5184 + $0x10] sm:$0xff] %vm598, %v5182
      %5188 = vst.msk [vmem:[%s5184 + $0x18] sm:$0x7] %vm1122, %v5183
      %5189 = vrot.lane.b32.xlu0 %v4454, 88
      %v5190 = vpop.permute.xlu0 %5189
      %5191 = vrot.lane.b32.xlu0 %v4460, 88
      %v5192 = vpop.permute.xlu0 %5191
      %5193 = vrot.lane.b32.xlu0 %v4466, 88
      %v5194 = vpop.permute.xlu0 %5193
      %5195 = vrot.lane.b32.xlu0 %v4472, 88
      %v5196 = vpop.permute.xlu0 %5195
      %v5197 = vsel %vm1782, %v5190, 0
      %v5199 = vsel %vm1782, %v5192, 0
      %v5201 = vsel %vm1782, %v5194, 0
      %v5203 = vsel %vm1782, %v5196, 0
      %5205 = vmatprep.subr.mxu0 0.0
      %5206 = vmatpush1.msra.mxu0 %v2887
      %5207 = vmatprep.subr.mxu0 0.0
      %5208 = vmatpush1.msra.mxu0 0.0
      %5209 = vmatprep.subr.mxu0 0.0
      %5210 = vmatpush1.msra.mxu0 0.0
      %5211 = vmatprep.subr.mxu0 0.0
      %5212 = vmatpush1.msra.mxu0 0.0
      %5213 = vmatprep.subr.mxu0 0.0
      %5214 = vmatpush1.msra.mxu0 0.0
      %5215 = vmatprep.subr.mxu0 0.0
      %5216 = vmatpush1.msra.mxu0 0.0
      %5217 = vmatprep.subr.mxu0 0.0
      %5218 = vmatpush1.msra.mxu0 0.0
      %5219 = vmatprep.subr.mxu0 0.0
      %5220 = vmatpush1.msra.mxu0 0.0
      %5221 = vmatprep.subr.mxu0 0.0
      %5222 = vmatpush1.msra.mxu0 0.0
      %5223 = vmatprep.subr.mxu0 0.0
      %5224 = vmatpush1.msra.mxu0 0.0
      %5225 = vmatprep.subr.mxu0 0.0
      %5226 = vmatpush1.msra.mxu0 0.0
      %5227 = vmatprep.subr.mxu0 0.0
      %5228 = vmatpush1.msra.mxu0 0.0
      %5229 = vmatprep.subr.mxu0 0.0
      %5230 = vmatpush1.msra.mxu0 0.0
      %5231 = vmatprep.subr.mxu0 0.0
      %5232 = vmatpush1.msra.mxu0 0.0
      %5233 = vmatprep.subr.mxu0 0.0
      %5234 = vmatpush1.msra.mxu0 0.0
      %5235 = vmatprep.subr.mxu0 0.0
      %5236 = vmatpush1.msra.mxu0 0.0
      %5237 = vmatprep.subr.mxu0 0.0
      %5238 = vmatpush1.msra.mxu0 0.0
      %5239 = vmatprep.subr.mxu0 0.0
      %5240 = vmatpush1.msra.mxu0 0.0
      %5241 = vmatprep.subr.mxu0 0.0
      %5242 = vmatpush1.msra.mxu0 0.0
      %5243 = vmatprep.subr.mxu0 0.0
      %5244 = vmatpush1.msra.mxu0 0.0
      %5245 = vmatprep.subr.mxu0 0.0
      %5246 = vmatpush1.msra.mxu0 0.0
      %5247 = vmatprep.subr.mxu0 0.0
      %5248 = vmatpush1.msra.mxu0 0.0
      %5249 = vmatprep.subr.mxu0 0.0
      %5250 = vmatpush1.msra.mxu0 0.0
      %5251 = vmatprep.subr.mxu0 0.0
      %5252 = vmatpush1.msra.mxu0 0.0
      %5253 = vmatprep.subr.mxu0 0.0
      %5254 = vmatpush1.msra.mxu0 0.0
      %5255 = vmatprep.subr.mxu0 0.0
      %5256 = vmatpush1.msra.mxu0 0.0
      %5257 = vmatprep.subr.mxu0 0.0
      %5258 = vmatpush1.msra.mxu0 0.0
      %5259 = vmatprep.subr.mxu0 0.0
      %5260 = vmatpush1.msra.mxu0 0.0
      %5261 = vmatprep.subr.mxu0 0.0
      %5262 = vmatpush1.msra.mxu0 0.0
      %5263 = vmatprep.subr.mxu0 0.0
      %5264 = vmatpush1.msra.mxu0 0.0
      %5265 = vmatprep.subr.mxu0 0.0
      %5266 = vmatpush1.msra.mxu0 0.0
      %5267 = vmatprep.subr.mxu0 0.0
      %5268 = vmatpush1.msra.mxu0 0.0
      %5269 = vmatprep.mubr.f32.mxu0 0.0
      %5270 = vmatmul.mubr.f32.gmra.mrb[0].mxu0 %v5197
      %v5271 = vpop.f32.mrb[0].mxu0
      %v5272 = vadd.f32 0.0, %v5271
      %v5273 = vpop.f32.mrb[0].mxu0
      %5274 = vmatprep.mubr.f32.mxu0 0.0
      %5275 = vmatmul.mubr.f32.gmra.mrb[0].mxu0 %v5199
      %v5276 = vpop.f32.mrb[0].mxu0
      %v5277 = vadd.f32 0.0, %v5276
      %v5278 = vpop.f32.mrb[0].mxu0
      %5279 = vmatprep.mubr.f32.mxu0 0.0
      %5280 = vmatmul.mubr.f32.gmra.mrb[0].mxu0 %v5201
      %v5281 = vpop.f32.mrb[0].mxu0
      %v5282 = vadd.f32 0.0, %v5281
      %v5283 = vpop.f32.mrb[0].mxu0
      %5284 = vmatprep.mubr.f32.mxu0 0.0
      %5285 = vmatmul.mubr.f32.gmra.mrb[0].mxu0 %v5203
      %v5286 = vpop.f32.mrb[0].mxu0
      %v5287 = vadd.f32 0.0, %v5286
      %v5288 = vpop.f32.mrb[0].mxu0
      %5289 = vdwg.mxu0
      %s5290 = scalar_lea.vmem %s13, 160
      %v5291 = vld [vmem:[%s5290] sm:$0xff]
      %v5292 = vld [vmem:[%s5290 + $0x8] sm:$0xff]
      %v5293 = vld [vmem:[%s5290 + $0x10] sm:$0xff]
      %v5294 = vld [vmem:[%s5290 + $0x18] sm:$0x7]
      %5296 = vset.pattern.permute.xlu0 0
      %5297 = vperm.xlu0 %5296, %v5291
      %v5298 = vpop.permute.xlu0 %5297
      %5301 = vset.pattern.permute.xlu0 0
      %5302 = vperm.xlu0 %5301, %v5292
      %v5303 = vpop.permute.xlu0 %5302
      %5306 = vset.pattern.permute.xlu0 0
      %5307 = vperm.xlu0 %5306, %v5293
      %v5308 = vpop.permute.xlu0 %5307
      %5311 = vset.pattern.permute.xlu0 0
      %5312 = vperm.xlu0 %5311, %v5294
      %v5313 = vpop.permute.xlu0 %5312
      %v5315 = vmul.f32 %v5272, %v5298
      %v5316 = vmul.f32 %v5277, %v5303
      %v5317 = vmul.f32 %v5282, %v5308
      %v5318 = vmul.f32 %v5287, %v5313
      %s5319 = scalar_lea.vmem %s14, 160
      %v5320 = vld [vmem:[%s5319] sm:$0xff]
      %v5321 = vld [vmem:[%s5319 + $0x8] sm:$0xff]
      %v5322 = vld [vmem:[%s5319 + $0x10] sm:$0xff]
      %v5323 = vld [vmem:[%s5319 + $0x18] sm:$0x7]
      %v5324 = vadd.f32 %v5315, %v5320
      %v5325 = vadd.f32 %v5316, %v5321
      %v5326 = vadd.f32 %v5317, %v5322
      %v5327 = vadd.f32 %v5318, %v5323
      %s5328 = scalar_lea.vmem %s531, 160
      %5329 = vst.msk [vmem:[%s5328] sm:$0xff] %vm598, %v5324
      %5330 = vst.msk [vmem:[%s5328 + $0x8] sm:$0xff] %vm598, %v5325
      %5331 = vst.msk [vmem:[%s5328 + $0x10] sm:$0xff] %vm598, %v5326
      %5332 = vst.msk [vmem:[%s5328 + $0x18] sm:$0x7] %vm1122, %v5327
      %5333 = vrot.lane.b32.xlu0 %v4454, 80
      %v5334 = vpop.permute.xlu0 %5333
      %5335 = vrot.lane.b32.xlu0 %v4460, 80
      %v5336 = vpop.permute.xlu0 %5335
      %5337 = vrot.lane.b32.xlu0 %v4466, 80
      %v5338 = vpop.permute.xlu0 %5337
      %5339 = vrot.lane.b32.xlu0 %v4472, 80
      %v5340 = vpop.permute.xlu0 %5339
      %v5341 = vsel %vm1782, %v5334, 0
      %v5343 = vsel %vm1782, %v5336, 0
      %v5345 = vsel %vm1782, %v5338, 0
      %v5347 = vsel %vm1782, %v5340, 0
      %5349 = vmatprep.subr.mxu0 0.0
      %5350 = vmatpush1.msra.mxu0 %v2892
      %5351 = vmatprep.subr.mxu0 0.0
      %5352 = vmatpush1.msra.mxu0 0.0
      %5353 = vmatprep.subr.mxu0 0.0
      %5354 = vmatpush1.msra.mxu0 0.0
      %5355 = vmatprep.subr.mxu0 0.0
      %5356 = vmatpush1.msra.mxu0 0.0
      %5357 = vmatprep.subr.mxu0 0.0
      %5358 = vmatpush1.msra.mxu0 0.0
      %5359 = vmatprep.subr.mxu0 0.0
      %5360 = vmatpush1.msra.mxu0 0.0
      %5361 = vmatprep.subr.mxu0 0.0
      %5362 = vmatpush1.msra.mxu0 0.0
      %5363 = vmatprep.subr.mxu0 0.0
      %5364 = vmatpush1.msra.mxu0 0.0
      %5365 = vmatprep.subr.mxu0 0.0
      %5366 = vmatpush1.msra.mxu0 0.0
      %5367 = vmatprep.subr.mxu0 0.0
      %5368 = vmatpush1.msra.mxu0 0.0
      %5369 = vmatprep.subr.mxu0 0.0
      %5370 = vmatpush1.msra.mxu0 0.0
      %5371 = vmatprep.subr.mxu0 0.0
      %5372 = vmatpush1.msra.mxu0 0.0
      %5373 = vmatprep.subr.mxu0 0.0
      %5374 = vmatpush1.msra.mxu0 0.0
      %5375 = vmatprep.subr.mxu0 0.0
      %5376 = vmatpush1.msra.mxu0 0.0
      %5377 = vmatprep.subr.mxu0 0.0
      %5378 = vmatpush1.msra.mxu0 0.0
      %5379 = vmatprep.subr.mxu0 0.0
      %5380 = vmatpush1.msra.mxu0 0.0
      %5381 = vmatprep.subr.mxu0 0.0
      %5382 = vmatpush1.msra.mxu0 0.0
      %5383 = vmatprep.subr.mxu0 0.0
      %5384 = vmatpush1.msra.mxu0 0.0
      %5385 = vmatprep.subr.mxu0 0.0
      %5386 = vmatpush1.msra.mxu0 0.0
      %5387 = vmatprep.subr.mxu0 0.0
      %5388 = vmatpush1.msra.mxu0 0.0
      %5389 = vmatprep.subr.mxu0 0.0
      %5390 = vmatpush1.msra.mxu0 0.0
      %5391 = vmatprep.subr.mxu0 0.0
      %5392 = vmatpush1.msra.mxu0 0.0
      %5393 = vmatprep.subr.mxu0 0.0
      %5394 = vmatpush1.msra.mxu0 0.0
      %5395 = vmatprep.subr.mxu0 0.0
      %5396 = vmatpush1.msra.mxu0 0.0
      %5397 = vmatprep.subr.mxu0 0.0
      %5398 = vmatpush1.msra.mxu0 0.0
      %5399 = vmatprep.subr.mxu0 0.0
      %5400 = vmatpush1.msra.mxu0 0.0
      %5401 = vmatprep.subr.mxu0 0.0
      %5402 = vmatpush1.msra.mxu0 0.0
      %5403 = vmatprep.subr.mxu0 0.0
      %5404 = vmatpush1.msra.mxu0 0.0
      %5405 = vmatprep.subr.mxu0 0.0
      %5406 = vmatpush1.msra.mxu0 0.0
      %5407 = vmatprep.subr.mxu0 0.0
      %5408 = vmatpush1.msra.mxu0 0.0
      %5409 = vmatprep.subr.mxu0 0.0
      %5410 = vmatpush1.msra.mxu0 0.0
      %5411 = vmatprep.subr.mxu0 0.0
      %5412 = vmatpush1.msra.mxu0 0.0
      %5413 = vmatprep.mubr.f32.mxu0 0.0
      %5414 = vmatmul.mubr.f32.gmra.mrb[0].mxu0 %v5341
      %v5415 = vpop.f32.mrb[0].mxu0
      %v5416 = vadd.f32 0.0, %v5415
      %v5417 = vpop.f32.mrb[0].mxu0
      %5418 = vmatprep.mubr.f32.mxu0 0.0
      %5419 = vmatmul.mubr.f32.gmra.mrb[0].mxu0 %v5343
      %v5420 = vpop.f32.mrb[0].mxu0
      %v5421 = vadd.f32 0.0, %v5420
      %v5422 = vpop.f32.mrb[0].mxu0
      %5423 = vmatprep.mubr.f32.mxu0 0.0
      %5424 = vmatmul.mubr.f32.gmra.mrb[0].mxu0 %v5345
      %v5425 = vpop.f32.mrb[0].mxu0
      %v5426 = vadd.f32 0.0, %v5425
      %v5427 = vpop.f32.mrb[0].mxu0
      %5428 = vmatprep.mubr.f32.mxu0 0.0
      %5429 = vmatmul.mubr.f32.gmra.mrb[0].mxu0 %v5347
      %v5430 = vpop.f32.mrb[0].mxu0
      %v5431 = vadd.f32 0.0, %v5430
      %v5432 = vpop.f32.mrb[0].mxu0
      %5433 = vdwg.mxu0
      %s5434 = scalar_lea.vmem %s13, 192
      %v5435 = vld [vmem:[%s5434] sm:$0xff]
      %v5436 = vld [vmem:[%s5434 + $0x8] sm:$0xff]
      %v5437 = vld [vmem:[%s5434 + $0x10] sm:$0xff]
      %v5438 = vld [vmem:[%s5434 + $0x18] sm:$0x7]
      %5440 = vset.pattern.permute.xlu0 0
      %5441 = vperm.xlu0 %5440, %v5435
      %v5442 = vpop.permute.xlu0 %5441
      %5445 = vset.pattern.permute.xlu0 0
      %5446 = vperm.xlu0 %5445, %v5436
      %v5447 = vpop.permute.xlu0 %5446
      %5450 = vset.pattern.permute.xlu0 0
      %5451 = vperm.xlu0 %5450, %v5437
      %v5452 = vpop.permute.xlu0 %5451
      %5455 = vset.pattern.permute.xlu0 0
      %5456 = vperm.xlu0 %5455, %v5438
      %v5457 = vpop.permute.xlu0 %5456
      %v5459 = vmul.f32 %v5416, %v5442
      %v5460 = vmul.f32 %v5421, %v5447
      %v5461 = vmul.f32 %v5426, %v5452
      %v5462 = vmul.f32 %v5431, %v5457
      %s5463 = scalar_lea.vmem %s14, 192
      %v5464 = vld [vmem:[%s5463] sm:$0xff]
      %v5465 = vld [vmem:[%s5463 + $0x8] sm:$0xff]
      %v5466 = vld [vmem:[%s5463 + $0x10] sm:$0xff]
      %v5467 = vld [vmem:[%s5463 + $0x18] sm:$0x7]
      %v5468 = vadd.f32 %v5459, %v5464
      %v5469 = vadd.f32 %v5460, %v5465
      %v5470 = vadd.f32 %v5461, %v5466
      %v5471 = vadd.f32 %v5462, %v5467
      %s5472 = scalar_lea.vmem %s531, 192
      %5473 = vst.msk [vmem:[%s5472] sm:$0xff] %vm598, %v5468
      %5474 = vst.msk [vmem:[%s5472 + $0x8] sm:$0xff] %vm598, %v5469
      %5475 = vst.msk [vmem:[%s5472 + $0x10] sm:$0xff] %vm598, %v5470
      %5476 = vst.msk [vmem:[%s5472 + $0x18] sm:$0x7] %vm1122, %v5471
      %5477 = vrot.lane.b32.xlu0 %v4454, 72
      %v5478 = vpop.permute.xlu0 %5477
      %5479 = vrot.lane.b32.xlu0 %v4460, 72
      %v5480 = vpop.permute.xlu0 %5479
      %5481 = vrot.lane.b32.xlu0 %v4466, 72
      %v5482 = vpop.permute.xlu0 %5481
      %5483 = vrot.lane.b32.xlu0 %v4472, 72
      %v5484 = vpop.permute.xlu0 %5483
      %v5485 = vsel %vm1782, %v5478, 0
      %v5487 = vsel %vm1782, %v5480, 0
      %v5489 = vsel %vm1782, %v5482, 0
      %v5491 = vsel %vm1782, %v5484, 0
      %5493 = vmatprep.subr.mxu0 0.0
      %5494 = vmatpush1.msra.mxu0 %v2897
      %5495 = vmatprep.subr.mxu0 0.0
      %5496 = vmatpush1.msra.mxu0 0.0
      %5497 = vmatprep.subr.mxu0 0.0
      %5498 = vmatpush1.msra.mxu0 0.0
      %5499 = vmatprep.subr.mxu0 0.0
      %5500 = vmatpush1.msra.mxu0 0.0
      %5501 = vmatprep.subr.mxu0 0.0
      %5502 = vmatpush1.msra.mxu0 0.0
      %5503 = vmatprep.subr.mxu0 0.0
      %5504 = vmatpush1.msra.mxu0 0.0
      %5505 = vmatprep.subr.mxu0 0.0
      %5506 = vmatpush1.msra.mxu0 0.0
      %5507 = vmatprep.subr.mxu0 0.0
      %5508 = vmatpush1.msra.mxu0 0.0
      %5509 = vmatprep.subr.mxu0 0.0
      %5510 = vmatpush1.msra.mxu0 0.0
      %5511 = vmatprep.subr.mxu0 0.0
      %5512 = vmatpush1.msra.mxu0 0.0
      %5513 = vmatprep.subr.mxu0 0.0
      %5514 = vmatpush1.msra.mxu0 0.0
      %5515 = vmatprep.subr.mxu0 0.0
      %5516 = vmatpush1.msra.mxu0 0.0
      %5517 = vmatprep.subr.mxu0 0.0
      %5518 = vmatpush1.msra.mxu0 0.0
      %5519 = vmatprep.subr.mxu0 0.0
      %5520 = vmatpush1.msra.mxu0 0.0
      %5521 = vmatprep.subr.mxu0 0.0
      %5522 = vmatpush1.msra.mxu0 0.0
      %5523 = vmatprep.subr.mxu0 0.0
      %5524 = vmatpush1.msra.mxu0 0.0
      %5525 = vmatprep.subr.mxu0 0.0
      %5526 = vmatpush1.msra.mxu0 0.0
      %5527 = vmatprep.subr.mxu0 0.0
      %5528 = vmatpush1.msra.mxu0 0.0
      %5529 = vmatprep.subr.mxu0 0.0
      %5530 = vmatpush1.msra.mxu0 0.0
      %5531 = vmatprep.subr.mxu0 0.0
      %5532 = vmatpush1.msra.mxu0 0.0
      %5533 = vmatprep.subr.mxu0 0.0
      %5534 = vmatpush1.msra.mxu0 0.0
      %5535 = vmatprep.subr.mxu0 0.0
      %5536 = vmatpush1.msra.mxu0 0.0
      %5537 = vmatprep.subr.mxu0 0.0
      %5538 = vmatpush1.msra.mxu0 0.0
      %5539 = vmatprep.subr.mxu0 0.0
      %5540 = vmatpush1.msra.mxu0 0.0
      %5541 = vmatprep.subr.mxu0 0.0
      %5542 = vmatpush1.msra.mxu0 0.0
      %5543 = vmatprep.subr.mxu0 0.0
      %5544 = vmatpush1.msra.mxu0 0.0
      %5545 = vmatprep.subr.mxu0 0.0
      %5546 = vmatpush1.msra.mxu0 0.0
      %5547 = vmatprep.subr.mxu0 0.0
      %5548 = vmatpush1.msra.mxu0 0.0
      %5549 = vmatprep.subr.mxu0 0.0
      %5550 = vmatpush1.msra.mxu0 0.0
      %5551 = vmatprep.subr.mxu0 0.0
      %5552 = vmatpush1.msra.mxu0 0.0
      %5553 = vmatprep.subr.mxu0 0.0
      %5554 = vmatpush1.msra.mxu0 0.0
      %5555 = vmatprep.subr.mxu0 0.0
      %5556 = vmatpush1.msra.mxu0 0.0
      %5557 = vmatprep.mubr.f32.mxu0 0.0
      %5558 = vmatmul.mubr.f32.gmra.mrb[0].mxu0 %v5485
      %v5559 = vpop.f32.mrb[0].mxu0
      %v5560 = vadd.f32 0.0, %v5559
      %v5561 = vpop.f32.mrb[0].mxu0
      %5562 = vmatprep.mubr.f32.mxu0 0.0
      %5563 = vmatmul.mubr.f32.gmra.mrb[0].mxu0 %v5487
      %v5564 = vpop.f32.mrb[0].mxu0
      %v5565 = vadd.f32 0.0, %v5564
      %v5566 = vpop.f32.mrb[0].mxu0
      %5567 = vmatprep.mubr.f32.mxu0 0.0
      %5568 = vmatmul.mubr.f32.gmra.mrb[0].mxu0 %v5489
      %v5569 = vpop.f32.mrb[0].mxu0
      %v5570 = vadd.f32 0.0, %v5569
      %v5571 = vpop.f32.mrb[0].mxu0
      %5572 = vmatprep.mubr.f32.mxu0 0.0
      %5573 = vmatmul.mubr.f32.gmra.mrb[0].mxu0 %v5491
      %v5574 = vpop.f32.mrb[0].mxu0
      %v5575 = vadd.f32 0.0, %v5574
      %v5576 = vpop.f32.mrb[0].mxu0
      %5577 = vdwg.mxu0
      %s5578 = scalar_lea.vmem %s13, 224
      %v5579 = vld [vmem:[%s5578] sm:$0xff]
      %v5580 = vld [vmem:[%s5578 + $0x8] sm:$0xff]
      %v5581 = vld [vmem:[%s5578 + $0x10] sm:$0xff]
      %v5582 = vld [vmem:[%s5578 + $0x18] sm:$0x7]
      %5584 = vset.pattern.permute.xlu0 0
      %5585 = vperm.xlu0 %5584, %v5579
      %v5586 = vpop.permute.xlu0 %5585
      %5589 = vset.pattern.permute.xlu0 0
      %5590 = vperm.xlu0 %5589, %v5580
      %v5591 = vpop.permute.xlu0 %5590
      %5594 = vset.pattern.permute.xlu0 0
      %5595 = vperm.xlu0 %5594, %v5581
      %v5596 = vpop.permute.xlu0 %5595
      %5599 = vset.pattern.permute.xlu0 0
      %5600 = vperm.xlu0 %5599, %v5582
      %v5601 = vpop.permute.xlu0 %5600
      %v5603 = vmul.f32 %v5560, %v5586
      %v5604 = vmul.f32 %v5565, %v5591
      %v5605 = vmul.f32 %v5570, %v5596
      %v5606 = vmul.f32 %v5575, %v5601
      %s5607 = scalar_lea.vmem %s14, 224
      %v5608 = vld [vmem:[%s5607] sm:$0xff]
      %v5609 = vld [vmem:[%s5607 + $0x8] sm:$0xff]
      %v5610 = vld [vmem:[%s5607 + $0x10] sm:$0xff]
      %v5611 = vld [vmem:[%s5607 + $0x18] sm:$0x7]
      %v5612 = vadd.f32 %v5603, %v5608
      %v5613 = vadd.f32 %v5604, %v5609
      %v5614 = vadd.f32 %v5605, %v5610
      %v5615 = vadd.f32 %v5606, %v5611
      %s5616 = scalar_lea.vmem %s531, 224
      %5617 = vst.msk [vmem:[%s5616] sm:$0xff] %vm598, %v5612
      %5618 = vst.msk [vmem:[%s5616 + $0x8] sm:$0xff] %vm598, %v5613
      %5619 = vst.msk [vmem:[%s5616 + $0x10] sm:$0xff] %vm598, %v5614
      %5620 = vst.msk [vmem:[%s5616 + $0x18] sm:$0x7] %vm1122, %v5615
      %5621 = vrot.lane.b32.xlu0 %v4454, 64
      %v5622 = vpop.permute.xlu0 %5621
      %5623 = vrot.lane.b32.xlu0 %v4460, 64
      %v5624 = vpop.permute.xlu0 %5623
      %5625 = vrot.lane.b32.xlu0 %v4466, 64
      %v5626 = vpop.permute.xlu0 %5625
      %5627 = vrot.lane.b32.xlu0 %v4472, 64
      %v5628 = vpop.permute.xlu0 %5627
      %v5629 = vsel %vm1782, %v5622, 0
      %v5631 = vsel %vm1782, %v5624, 0
      %v5633 = vsel %vm1782, %v5626, 0
      %v5635 = vsel %vm1782, %v5628, 0
      %5637 = vmatprep.subr.mxu0 0.0
      %5638 = vmatpush1.msra.mxu0 %v2902
      %5639 = vmatprep.subr.mxu0 0.0
      %5640 = vmatpush1.msra.mxu0 0.0
      %5641 = vmatprep.subr.mxu0 0.0
      %5642 = vmatpush1.msra.mxu0 0.0
      %5643 = vmatprep.subr.mxu0 0.0
      %5644 = vmatpush1.msra.mxu0 0.0
      %5645 = vmatprep.subr.mxu0 0.0
      %5646 = vmatpush1.msra.mxu0 0.0
      %5647 = vmatprep.subr.mxu0 0.0
      %5648 = vmatpush1.msra.mxu0 0.0
      %5649 = vmatprep.subr.mxu0 0.0
      %5650 = vmatpush1.msra.mxu0 0.0
      %5651 = vmatprep.subr.mxu0 0.0
      %5652 = vmatpush1.msra.mxu0 0.0
      %5653 = vmatprep.subr.mxu0 0.0
      %5654 = vmatpush1.msra.mxu0 0.0
      %5655 = vmatprep.subr.mxu0 0.0
      %5656 = vmatpush1.msra.mxu0 0.0
      %5657 = vmatprep.subr.mxu0 0.0
      %5658 = vmatpush1.msra.mxu0 0.0
      %5659 = vmatprep.subr.mxu0 0.0
      %5660 = vmatpush1.msra.mxu0 0.0
      %5661 = vmatprep.subr.mxu0 0.0
      %5662 = vmatpush1.msra.mxu0 0.0
      %5663 = vmatprep.subr.mxu0 0.0
      %5664 = vmatpush1.msra.mxu0 0.0
      %5665 = vmatprep.subr.mxu0 0.0
      %5666 = vmatpush1.msra.mxu0 0.0
      %5667 = vmatprep.subr.mxu0 0.0
      %5668 = vmatpush1.msra.mxu0 0.0
      %5669 = vmatprep.subr.mxu0 0.0
      %5670 = vmatpush1.msra.mxu0 0.0
      %5671 = vmatprep.subr.mxu0 0.0
      %5672 = vmatpush1.msra.mxu0 0.0
      %5673 = vmatprep.subr.mxu0 0.0
      %5674 = vmatpush1.msra.mxu0 0.0
      %5675 = vmatprep.subr.mxu0 0.0
      %5676 = vmatpush1.msra.mxu0 0.0
      %5677 = vmatprep.subr.mxu0 0.0
      %5678 = vmatpush1.msra.mxu0 0.0
      %5679 = vmatprep.subr.mxu0 0.0
      %5680 = vmatpush1.msra.mxu0 0.0
      %5681 = vmatprep.subr.mxu0 0.0
      %5682 = vmatpush1.msra.mxu0 0.0
      %5683 = vmatprep.subr.mxu0 0.0
      %5684 = vmatpush1.msra.mxu0 0.0
      %5685 = vmatprep.subr.mxu0 0.0
      %5686 = vmatpush1.msra.mxu0 0.0
      %5687 = vmatprep.subr.mxu0 0.0
      %5688 = vmatpush1.msra.mxu0 0.0
      %5689 = vmatprep.subr.mxu0 0.0
      %5690 = vmatpush1.msra.mxu0 0.0
      %5691 = vmatprep.subr.mxu0 0.0
      %5692 = vmatpush1.msra.mxu0 0.0
      %5693 = vmatprep.subr.mxu0 0.0
      %5694 = vmatpush1.msra.mxu0 0.0
      %5695 = vmatprep.subr.mxu0 0.0
      %5696 = vmatpush1.msra.mxu0 0.0
      %5697 = vmatprep.subr.mxu0 0.0
      %5698 = vmatpush1.msra.mxu0 0.0
      %5699 = vmatprep.subr.mxu0 0.0
      %5700 = vmatpush1.msra.mxu0 0.0
      %5701 = vmatprep.mubr.f32.mxu0 0.0
      %5702 = vmatmul.mubr.f32.gmra.mrb[0].mxu0 %v5629
      %v5703 = vpop.f32.mrb[0].mxu0
      %v5704 = vadd.f32 0.0, %v5703
      %v5705 = vpop.f32.mrb[0].mxu0
      %5706 = vmatprep.mubr.f32.mxu0 0.0
      %5707 = vmatmul.mubr.f32.gmra.mrb[0].mxu0 %v5631
      %v5708 = vpop.f32.mrb[0].mxu0
      %v5709 = vadd.f32 0.0, %v5708
      %v5710 = vpop.f32.mrb[0].mxu0
      %5711 = vmatprep.mubr.f32.mxu0 0.0
      %5712 = vmatmul.mubr.f32.gmra.mrb[0].mxu0 %v5633
      %v5713 = vpop.f32.mrb[0].mxu0
      %v5714 = vadd.f32 0.0, %v5713
      %v5715 = vpop.f32.mrb[0].mxu0
      %5716 = vmatprep.mubr.f32.mxu0 0.0
      %5717 = vmatmul.mubr.f32.gmra.mrb[0].mxu0 %v5635
      %v5718 = vpop.f32.mrb[0].mxu0
      %v5719 = vadd.f32 0.0, %v5718
      %v5720 = vpop.f32.mrb[0].mxu0
      %5721 = vdwg.mxu0
      %s5722 = scalar_lea.vmem %s13, 256
      %v5723 = vld [vmem:[%s5722] sm:$0xff]
      %v5724 = vld [vmem:[%s5722 + $0x8] sm:$0xff]
      %v5725 = vld [vmem:[%s5722 + $0x10] sm:$0xff]
      %v5726 = vld [vmem:[%s5722 + $0x18] sm:$0x7]
      %5728 = vset.pattern.permute.xlu0 0
      %5729 = vperm.xlu0 %5728, %v5723
      %v5730 = vpop.permute.xlu0 %5729
      %5733 = vset.pattern.permute.xlu0 0
      %5734 = vperm.xlu0 %5733, %v5724
      %v5735 = vpop.permute.xlu0 %5734
      %5738 = vset.pattern.permute.xlu0 0
      %5739 = vperm.xlu0 %5738, %v5725
      %v5740 = vpop.permute.xlu0 %5739
      %5743 = vset.pattern.permute.xlu0 0
      %5744 = vperm.xlu0 %5743, %v5726
      %v5745 = vpop.permute.xlu0 %5744
      %v5747 = vmul.f32 %v5704, %v5730
      %v5748 = vmul.f32 %v5709, %v5735
      %v5749 = vmul.f32 %v5714, %v5740
      %v5750 = vmul.f32 %v5719, %v5745
      %s5751 = scalar_lea.vmem %s14, 256
      %v5752 = vld [vmem:[%s5751] sm:$0xff]
      %v5753 = vld [vmem:[%s5751 + $0x8] sm:$0xff]
      %v5754 = vld [vmem:[%s5751 + $0x10] sm:$0xff]
      %v5755 = vld [vmem:[%s5751 + $0x18] sm:$0x7]
      %v5756 = vadd.f32 %v5747, %v5752
      %v5757 = vadd.f32 %v5748, %v5753
      %v5758 = vadd.f32 %v5749, %v5754
      %v5759 = vadd.f32 %v5750, %v5755
      %s5760 = scalar_lea.vmem %s531, 256
      %5761 = vst.msk [vmem:[%s5760] sm:$0xff] %vm598, %v5756
      %5762 = vst.msk [vmem:[%s5760 + $0x8] sm:$0xff] %vm598, %v5757
      %5763 = vst.msk [vmem:[%s5760 + $0x10] sm:$0xff] %vm598, %v5758
      %5764 = vst.msk [vmem:[%s5760 + $0x18] sm:$0x7] %vm1122, %v5759
      %5765 = vrot.lane.b32.xlu0 %v4454, 56
      %v5766 = vpop.permute.xlu0 %5765
      %5767 = vrot.lane.b32.xlu0 %v4460, 56
      %v5768 = vpop.permute.xlu0 %5767
      %5769 = vrot.lane.b32.xlu0 %v4466, 56
      %v5770 = vpop.permute.xlu0 %5769
      %5771 = vrot.lane.b32.xlu0 %v4472, 56
      %v5772 = vpop.permute.xlu0 %5771
      %v5773 = vsel %vm1782, %v5766, 0
      %v5775 = vsel %vm1782, %v5768, 0
      %v5777 = vsel %vm1782, %v5770, 0
      %v5779 = vsel %vm1782, %v5772, 0
      %5781 = vmatprep.subr.mxu0 0.0
      %5782 = vmatpush1.msra.mxu0 %v2907
      %5783 = vmatprep.subr.mxu0 0.0
      %5784 = vmatpush1.msra.mxu0 0.0
      %5785 = vmatprep.subr.mxu0 0.0
      %5786 = vmatpush1.msra.mxu0 0.0
      %5787 = vmatprep.subr.mxu0 0.0
      %5788 = vmatpush1.msra.mxu0 0.0
      %5789 = vmatprep.subr.mxu0 0.0
      %5790 = vmatpush1.msra.mxu0 0.0
      %5791 = vmatprep.subr.mxu0 0.0
      %5792 = vmatpush1.msra.mxu0 0.0
      %5793 = vmatprep.subr.mxu0 0.0
      %5794 = vmatpush1.msra.mxu0 0.0
      %5795 = vmatprep.subr.mxu0 0.0
      %5796 = vmatpush1.msra.mxu0 0.0
      %5797 = vmatprep.subr.mxu0 0.0
      %5798 = vmatpush1.msra.mxu0 0.0
      %5799 = vmatprep.subr.mxu0 0.0
      %5800 = vmatpush1.msra.mxu0 0.0
      %5801 = vmatprep.subr.mxu0 0.0
      %5802 = vmatpush1.msra.mxu0 0.0
      %5803 = vmatprep.subr.mxu0 0.0
      %5804 = vmatpush1.msra.mxu0 0.0
      %5805 = vmatprep.subr.mxu0 0.0
      %5806 = vmatpush1.msra.mxu0 0.0
      %5807 = vmatprep.subr.mxu0 0.0
      %5808 = vmatpush1.msra.mxu0 0.0
      %5809 = vmatprep.subr.mxu0 0.0
      %5810 = vmatpush1.msra.mxu0 0.0
      %5811 = vmatprep.subr.mxu0 0.0
      %5812 = vmatpush1.msra.mxu0 0.0
      %5813 = vmatprep.subr.mxu0 0.0
      %5814 = vmatpush1.msra.mxu0 0.0
      %5815 = vmatprep.subr.mxu0 0.0
      %5816 = vmatpush1.msra.mxu0 0.0
      %5817 = vmatprep.subr.mxu0 0.0
      %5818 = vmatpush1.msra.mxu0 0.0
      %5819 = vmatprep.subr.mxu0 0.0
      %5820 = vmatpush1.msra.mxu0 0.0
      %5821 = vmatprep.subr.mxu0 0.0
      %5822 = vmatpush1.msra.mxu0 0.0
      %5823 = vmatprep.subr.mxu0 0.0
      %5824 = vmatpush1.msra.mxu0 0.0
      %5825 = vmatprep.subr.mxu0 0.0
      %5826 = vmatpush1.msra.mxu0 0.0
      %5827 = vmatprep.subr.mxu0 0.0
      %5828 = vmatpush1.msra.mxu0 0.0
      %5829 = vmatprep.subr.mxu0 0.0
      %5830 = vmatpush1.msra.mxu0 0.0
      %5831 = vmatprep.subr.mxu0 0.0
      %5832 = vmatpush1.msra.mxu0 0.0
      %5833 = vmatprep.subr.mxu0 0.0
      %5834 = vmatpush1.msra.mxu0 0.0
      %5835 = vmatprep.subr.mxu0 0.0
      %5836 = vmatpush1.msra.mxu0 0.0
      %5837 = vmatprep.subr.mxu0 0.0
      %5838 = vmatpush1.msra.mxu0 0.0
      %5839 = vmatprep.subr.mxu0 0.0
      %5840 = vmatpush1.msra.mxu0 0.0
      %5841 = vmatprep.subr.mxu0 0.0
      %5842 = vmatpush1.msra.mxu0 0.0
      %5843 = vmatprep.subr.mxu0 0.0
      %5844 = vmatpush1.msra.mxu0 0.0
      %5845 = vmatprep.mubr.f32.mxu0 0.0
      %5846 = vmatmul.mubr.f32.gmra.mrb[0].mxu0 %v5773
      %v5847 = vpop.f32.mrb[0].mxu0
      %v5848 = vadd.f32 0.0, %v5847
      %v5849 = vpop.f32.mrb[0].mxu0
      %5850 = vmatprep.mubr.f32.mxu0 0.0
      %5851 = vmatmul.mubr.f32.gmra.mrb[0].mxu0 %v5775
      %v5852 = vpop.f32.mrb[0].mxu0
      %v5853 = vadd.f32 0.0, %v5852
      %v5854 = vpop.f32.mrb[0].mxu0
      %5855 = vmatprep.mubr.f32.mxu0 0.0
      %5856 = vmatmul.mubr.f32.gmra.mrb[0].mxu0 %v5777
      %v5857 = vpop.f32.mrb[0].mxu0
      %v5858 = vadd.f32 0.0, %v5857
      %v5859 = vpop.f32.mrb[0].mxu0
      %5860 = vmatprep.mubr.f32.mxu0 0.0
      %5861 = vmatmul.mubr.f32.gmra.mrb[0].mxu0 %v5779
      %v5862 = vpop.f32.mrb[0].mxu0
      %v5863 = vadd.f32 0.0, %v5862
      %v5864 = vpop.f32.mrb[0].mxu0
      %5865 = vdwg.mxu0
      %s5866 = scalar_lea.vmem %s13, 288
      %v5867 = vld [vmem:[%s5866] sm:$0xff]
      %v5868 = vld [vmem:[%s5866 + $0x8] sm:$0xff]
      %v5869 = vld [vmem:[%s5866 + $0x10] sm:$0xff]
      %v5870 = vld [vmem:[%s5866 + $0x18] sm:$0x7]
      %5872 = vset.pattern.permute.xlu0 0
      %5873 = vperm.xlu0 %5872, %v5867
      %v5874 = vpop.permute.xlu0 %5873
      %5877 = vset.pattern.permute.xlu0 0
      %5878 = vperm.xlu0 %5877, %v5868
      %v5879 = vpop.permute.xlu0 %5878
      %5882 = vset.pattern.permute.xlu0 0
      %5883 = vperm.xlu0 %5882, %v5869
      %v5884 = vpop.permute.xlu0 %5883
      %5887 = vset.pattern.permute.xlu0 0
      %5888 = vperm.xlu0 %5887, %v5870
      %v5889 = vpop.permute.xlu0 %5888
      %v5891 = vmul.f32 %v5848, %v5874
      %v5892 = vmul.f32 %v5853, %v5879
      %v5893 = vmul.f32 %v5858, %v5884
      %v5894 = vmul.f32 %v5863, %v5889
      %s5895 = scalar_lea.vmem %s14, 288
      %v5896 = vld [vmem:[%s5895] sm:$0xff]
      %v5897 = vld [vmem:[%s5895 + $0x8] sm:$0xff]
      %v5898 = vld [vmem:[%s5895 + $0x10] sm:$0xff]
      %v5899 = vld [vmem:[%s5895 + $0x18] sm:$0x7]
      %v5900 = vadd.f32 %v5891, %v5896
      %v5901 = vadd.f32 %v5892, %v5897
      %v5902 = vadd.f32 %v5893, %v5898
      %v5903 = vadd.f32 %v5894, %v5899
      %s5904 = scalar_lea.vmem %s531, 288
      %5905 = vst.msk [vmem:[%s5904] sm:$0xff] %vm598, %v5900
      %5906 = vst.msk [vmem:[%s5904 + $0x8] sm:$0xff] %vm598, %v5901
      %5907 = vst.msk [vmem:[%s5904 + $0x10] sm:$0xff] %vm598, %v5902
      %5908 = vst.msk [vmem:[%s5904 + $0x18] sm:$0x7] %vm1122, %v5903
      %5909 = vrot.lane.b32.xlu0 %v4454, 48
      %v5910 = vpop.permute.xlu0 %5909
      %5911 = vrot.lane.b32.xlu0 %v4460, 48
      %v5912 = vpop.permute.xlu0 %5911
      %5913 = vrot.lane.b32.xlu0 %v4466, 48
      %v5914 = vpop.permute.xlu0 %5913
      %5915 = vrot.lane.b32.xlu0 %v4472, 48
      %v5916 = vpop.permute.xlu0 %5915
      %v5917 = vsel %vm1782, %v5910, 0
      %v5919 = vsel %vm1782, %v5912, 0
      %v5921 = vsel %vm1782, %v5914, 0
      %v5923 = vsel %vm1782, %v5916, 0
      %5925 = vmatprep.subr.mxu0 0.0
      %5926 = vmatpush1.msra.mxu0 %v2912
      %5927 = vmatprep.subr.mxu0 0.0
      %5928 = vmatpush1.msra.mxu0 0.0
      %5929 = vmatprep.subr.mxu0 0.0
      %5930 = vmatpush1.msra.mxu0 0.0
      %5931 = vmatprep.subr.mxu0 0.0
      %5932 = vmatpush1.msra.mxu0 0.0
      %5933 = vmatprep.subr.mxu0 0.0
      %5934 = vmatpush1.msra.mxu0 0.0
      %5935 = vmatprep.subr.mxu0 0.0
      %5936 = vmatpush1.msra.mxu0 0.0
      %5937 = vmatprep.subr.mxu0 0.0
      %5938 = vmatpush1.msra.mxu0 0.0
      %5939 = vmatprep.subr.mxu0 0.0
      %5940 = vmatpush1.msra.mxu0 0.0
      %5941 = vmatprep.subr.mxu0 0.0
      %5942 = vmatpush1.msra.mxu0 0.0
      %5943 = vmatprep.subr.mxu0 0.0
      %5944 = vmatpush1.msra.mxu0 0.0
      %5945 = vmatprep.subr.mxu0 0.0
      %5946 = vmatpush1.msra.mxu0 0.0
      %5947 = vmatprep.subr.mxu0 0.0
      %5948 = vmatpush1.msra.mxu0 0.0
      %5949 = vmatprep.subr.mxu0 0.0
      %5950 = vmatpush1.msra.mxu0 0.0
      %5951 = vmatprep.subr.mxu0 0.0
      %5952 = vmatpush1.msra.mxu0 0.0
      %5953 = vmatprep.subr.mxu0 0.0
      %5954 = vmatpush1.msra.mxu0 0.0
      %5955 = vmatprep.subr.mxu0 0.0
      %5956 = vmatpush1.msra.mxu0 0.0
      %5957 = vmatprep.subr.mxu0 0.0
      %5958 = vmatpush1.msra.mxu0 0.0
      %5959 = vmatprep.subr.mxu0 0.0
      %5960 = vmatpush1.msra.mxu0 0.0
      %5961 = vmatprep.subr.mxu0 0.0
      %5962 = vmatpush1.msra.mxu0 0.0
      %5963 = vmatprep.subr.mxu0 0.0
      %5964 = vmatpush1.msra.mxu0 0.0
      %5965 = vmatprep.subr.mxu0 0.0
      %5966 = vmatpush1.msra.mxu0 0.0
      %5967 = vmatprep.subr.mxu0 0.0
      %5968 = vmatpush1.msra.mxu0 0.0
      %5969 = vmatprep.subr.mxu0 0.0
      %5970 = vmatpush1.msra.mxu0 0.0
      %5971 = vmatprep.subr.mxu0 0.0
      %5972 = vmatpush1.msra.mxu0 0.0
      %5973 = vmatprep.subr.mxu0 0.0
      %5974 = vmatpush1.msra.mxu0 0.0
      %5975 = vmatprep.subr.mxu0 0.0
      %5976 = vmatpush1.msra.mxu0 0.0
      %5977 = vmatprep.subr.mxu0 0.0
      %5978 = vmatpush1.msra.mxu0 0.0
      %5979 = vmatprep.subr.mxu0 0.0
      %5980 = vmatpush1.msra.mxu0 0.0
      %5981 = vmatprep.subr.mxu0 0.0
      %5982 = vmatpush1.msra.mxu0 0.0
      %5983 = vmatprep.subr.mxu0 0.0
      %5984 = vmatpush1.msra.mxu0 0.0
      %5985 = vmatprep.subr.mxu0 0.0
      %5986 = vmatpush1.msra.mxu0 0.0
      %5987 = vmatprep.subr.mxu0 0.0
      %5988 = vmatpush1.msra.mxu0 0.0
      %5989 = vmatprep.mubr.f32.mxu0 0.0
      %5990 = vmatmul.mubr.f32.gmra.mrb[0].mxu0 %v5917
      %v5991 = vpop.f32.mrb[0].mxu0
      %v5992 = vadd.f32 0.0, %v5991
      %v5993 = vpop.f32.mrb[0].mxu0
      %5994 = vmatprep.mubr.f32.mxu0 0.0
      %5995 = vmatmul.mubr.f32.gmra.mrb[0].mxu0 %v5919
      %v5996 = vpop.f32.mrb[0].mxu0
      %v5997 = vadd.f32 0.0, %v5996
      %v5998 = vpop.f32.mrb[0].mxu0
      %5999 = vmatprep.mubr.f32.mxu0 0.0
      %6000 = vmatmul.mubr.f32.gmra.mrb[0].mxu0 %v5921
      %v6001 = vpop.f32.mrb[0].mxu0
      %v6002 = vadd.f32 0.0, %v6001
      %v6003 = vpop.f32.mrb[0].mxu0
      %6004 = vmatprep.mubr.f32.mxu0 0.0
      %6005 = vmatmul.mubr.f32.gmra.mrb[0].mxu0 %v5923
      %v6006 = vpop.f32.mrb[0].mxu0
      %v6007 = vadd.f32 0.0, %v6006
      %v6008 = vpop.f32.mrb[0].mxu0
      %6009 = vdwg.mxu0
      %s6010 = scalar_lea.vmem %s13, 320
      %v6011 = vld [vmem:[%s6010] sm:$0xff]
      %v6012 = vld [vmem:[%s6010 + $0x8] sm:$0xff]
      %v6013 = vld [vmem:[%s6010 + $0x10] sm:$0xff]
      %v6014 = vld [vmem:[%s6010 + $0x18] sm:$0x7]
      %6016 = vset.pattern.permute.xlu0 0
      %6017 = vperm.xlu0 %6016, %v6011
      %v6018 = vpop.permute.xlu0 %6017
      %6021 = vset.pattern.permute.xlu0 0
      %6022 = vperm.xlu0 %6021, %v6012
      %v6023 = vpop.permute.xlu0 %6022
      %6026 = vset.pattern.permute.xlu0 0
      %6027 = vperm.xlu0 %6026, %v6013
      %v6028 = vpop.permute.xlu0 %6027
      %6031 = vset.pattern.permute.xlu0 0
      %6032 = vperm.xlu0 %6031, %v6014
      %v6033 = vpop.permute.xlu0 %6032
      %v6035 = vmul.f32 %v5992, %v6018
      %v6036 = vmul.f32 %v5997, %v6023
      %v6037 = vmul.f32 %v6002, %v6028
      %v6038 = vmul.f32 %v6007, %v6033
      %s6039 = scalar_lea.vmem %s14, 320
      %v6040 = vld [vmem:[%s6039] sm:$0xff]
      %v6041 = vld [vmem:[%s6039 + $0x8] sm:$0xff]
      %v6042 = vld [vmem:[%s6039 + $0x10] sm:$0xff]
      %v6043 = vld [vmem:[%s6039 + $0x18] sm:$0x7]
      %v6044 = vadd.f32 %v6035, %v6040
      %v6045 = vadd.f32 %v6036, %v6041
      %v6046 = vadd.f32 %v6037, %v6042
      %v6047 = vadd.f32 %v6038, %v6043
      %s6048 = scalar_lea.vmem %s531, 320
      %6049 = vst.msk [vmem:[%s6048] sm:$0xff] %vm598, %v6044
      %6050 = vst.msk [vmem:[%s6048 + $0x8] sm:$0xff] %vm598, %v6045
      %6051 = vst.msk [vmem:[%s6048 + $0x10] sm:$0xff] %vm598, %v6046
      %6052 = vst.msk [vmem:[%s6048 + $0x18] sm:$0x7] %vm1122, %v6047
      %6053 = vrot.lane.b32.xlu0 %v4454, 40
      %v6054 = vpop.permute.xlu0 %6053
      %6055 = vrot.lane.b32.xlu0 %v4460, 40
      %v6056 = vpop.permute.xlu0 %6055
      %6057 = vrot.lane.b32.xlu0 %v4466, 40
      %v6058 = vpop.permute.xlu0 %6057
      %6059 = vrot.lane.b32.xlu0 %v4472, 40
      %v6060 = vpop.permute.xlu0 %6059
      %v6061 = vsel %vm1782, %v6054, 0
      %v6063 = vsel %vm1782, %v6056, 0
      %v6065 = vsel %vm1782, %v6058, 0
      %v6067 = vsel %vm1782, %v6060, 0
      %6069 = vmatprep.subr.mxu0 0.0
      %6070 = vmatpush1.msra.mxu0 %v2917
      %6071 = vmatprep.subr.mxu0 0.0
      %6072 = vmatpush1.msra.mxu0 0.0
      %6073 = vmatprep.subr.mxu0 0.0
      %6074 = vmatpush1.msra.mxu0 0.0
      %6075 = vmatprep.subr.mxu0 0.0
      %6076 = vmatpush1.msra.mxu0 0.0
      %6077 = vmatprep.subr.mxu0 0.0
      %6078 = vmatpush1.msra.mxu0 0.0
      %6079 = vmatprep.subr.mxu0 0.0
      %6080 = vmatpush1.msra.mxu0 0.0
      %6081 = vmatprep.subr.mxu0 0.0
      %6082 = vmatpush1.msra.mxu0 0.0
      %6083 = vmatprep.subr.mxu0 0.0
      %6084 = vmatpush1.msra.mxu0 0.0
      %6085 = vmatprep.subr.mxu0 0.0
      %6086 = vmatpush1.msra.mxu0 0.0
      %6087 = vmatprep.subr.mxu0 0.0
      %6088 = vmatpush1.msra.mxu0 0.0
      %6089 = vmatprep.subr.mxu0 0.0
      %6090 = vmatpush1.msra.mxu0 0.0
      %6091 = vmatprep.subr.mxu0 0.0
      %6092 = vmatpush1.msra.mxu0 0.0
      %6093 = vmatprep.subr.mxu0 0.0
      %6094 = vmatpush1.msra.mxu0 0.0
      %6095 = vmatprep.subr.mxu0 0.0
      %6096 = vmatpush1.msra.mxu0 0.0
      %6097 = vmatprep.subr.mxu0 0.0
      %6098 = vmatpush1.msra.mxu0 0.0
      %6099 = vmatprep.subr.mxu0 0.0
      %6100 = vmatpush1.msra.mxu0 0.0
      %6101 = vmatprep.subr.mxu0 0.0
      %6102 = vmatpush1.msra.mxu0 0.0
      %6103 = vmatprep.subr.mxu0 0.0
      %6104 = vmatpush1.msra.mxu0 0.0
      %6105 = vmatprep.subr.mxu0 0.0
      %6106 = vmatpush1.msra.mxu0 0.0
      %6107 = vmatprep.subr.mxu0 0.0
      %6108 = vmatpush1.msra.mxu0 0.0
      %6109 = vmatprep.subr.mxu0 0.0
      %6110 = vmatpush1.msra.mxu0 0.0
      %6111 = vmatprep.subr.mxu0 0.0
      %6112 = vmatpush1.msra.mxu0 0.0
      %6113 = vmatprep.subr.mxu0 0.0
      %6114 = vmatpush1.msra.mxu0 0.0
      %6115 = vmatprep.subr.mxu0 0.0
      %6116 = vmatpush1.msra.mxu0 0.0
      %6117 = vmatprep.subr.mxu0 0.0
      %6118 = vmatpush1.msra.mxu0 0.0
      %6119 = vmatprep.subr.mxu0 0.0
      %6120 = vmatpush1.msra.mxu0 0.0
      %6121 = vmatprep.subr.mxu0 0.0
      %6122 = vmatpush1.msra.mxu0 0.0
      %6123 = vmatprep.subr.mxu0 0.0
      %6124 = vmatpush1.msra.mxu0 0.0
      %6125 = vmatprep.subr.mxu0 0.0
      %6126 = vmatpush1.msra.mxu0 0.0
      %6127 = vmatprep.subr.mxu0 0.0
      %6128 = vmatpush1.msra.mxu0 0.0
      %6129 = vmatprep.subr.mxu0 0.0
      %6130 = vmatpush1.msra.mxu0 0.0
      %6131 = vmatprep.subr.mxu0 0.0
      %6132 = vmatpush1.msra.mxu0 0.0
      %6133 = vmatprep.mubr.f32.mxu0 0.0
      %6134 = vmatmul.mubr.f32.gmra.mrb[0].mxu0 %v6061
      %v6135 = vpop.f32.mrb[0].mxu0
      %v6136 = vadd.f32 0.0, %v6135
      %v6137 = vpop.f32.mrb[0].mxu0
      %6138 = vmatprep.mubr.f32.mxu0 0.0
      %6139 = vmatmul.mubr.f32.gmra.mrb[0].mxu0 %v6063
      %v6140 = vpop.f32.mrb[0].mxu0
      %v6141 = vadd.f32 0.0, %v6140
      %v6142 = vpop.f32.mrb[0].mxu0
      %6143 = vmatprep.mubr.f32.mxu0 0.0
      %6144 = vmatmul.mubr.f32.gmra.mrb[0].mxu0 %v6065
      %v6145 = vpop.f32.mrb[0].mxu0
      %v6146 = vadd.f32 0.0, %v6145
      %v6147 = vpop.f32.mrb[0].mxu0
      %6148 = vmatprep.mubr.f32.mxu0 0.0
      %6149 = vmatmul.mubr.f32.gmra.mrb[0].mxu0 %v6067
      %v6150 = vpop.f32.mrb[0].mxu0
      %v6151 = vadd.f32 0.0, %v6150
      %v6152 = vpop.f32.mrb[0].mxu0
      %6153 = vdwg.mxu0
      %s6154 = scalar_lea.vmem %s13, 352
      %v6155 = vld [vmem:[%s6154] sm:$0xff]
      %v6156 = vld [vmem:[%s6154 + $0x8] sm:$0xff]
      %v6157 = vld [vmem:[%s6154 + $0x10] sm:$0xff]
      %v6158 = vld [vmem:[%s6154 + $0x18] sm:$0x7]
      %6160 = vset.pattern.permute.xlu0 0
      %6161 = vperm.xlu0 %6160, %v6155
      %v6162 = vpop.permute.xlu0 %6161
      %6165 = vset.pattern.permute.xlu0 0
      %6166 = vperm.xlu0 %6165, %v6156
      %v6167 = vpop.permute.xlu0 %6166
      %6170 = vset.pattern.permute.xlu0 0
      %6171 = vperm.xlu0 %6170, %v6157
      %v6172 = vpop.permute.xlu0 %6171
      %6175 = vset.pattern.permute.xlu0 0
      %6176 = vperm.xlu0 %6175, %v6158
      %v6177 = vpop.permute.xlu0 %6176
      %v6179 = vmul.f32 %v6136, %v6162
      %v6180 = vmul.f32 %v6141, %v6167
      %v6181 = vmul.f32 %v6146, %v6172
      %v6182 = vmul.f32 %v6151, %v6177
      %s6183 = scalar_lea.vmem %s14, 352
      %v6184 = vld [vmem:[%s6183] sm:$0xff]
      %v6185 = vld [vmem:[%s6183 + $0x8] sm:$0xff]
      %v6186 = vld [vmem:[%s6183 + $0x10] sm:$0xff]
      %v6187 = vld [vmem:[%s6183 + $0x18] sm:$0x7]
      %v6188 = vadd.f32 %v6179, %v6184
      %v6189 = vadd.f32 %v6180, %v6185
      %v6190 = vadd.f32 %v6181, %v6186
      %v6191 = vadd.f32 %v6182, %v6187
      %s6192 = scalar_lea.vmem %s531, 352
      %6193 = vst.msk [vmem:[%s6192] sm:$0xff] %vm598, %v6188
      %6194 = vst.msk [vmem:[%s6192 + $0x8] sm:$0xff] %vm598, %v6189
      %6195 = vst.msk [vmem:[%s6192 + $0x10] sm:$0xff] %vm598, %v6190
      %6196 = vst.msk [vmem:[%s6192 + $0x18] sm:$0x7] %vm1122, %v6191
      %6197 = vrot.lane.b32.xlu0 %v4454, 32
      %v6198 = vpop.permute.xlu0 %6197
      %6199 = vrot.lane.b32.xlu0 %v4460, 32
      %v6200 = vpop.permute.xlu0 %6199
      %6201 = vrot.lane.b32.xlu0 %v4466, 32
      %v6202 = vpop.permute.xlu0 %6201
      %6203 = vrot.lane.b32.xlu0 %v4472, 32
      %v6204 = vpop.permute.xlu0 %6203
      %v6205 = vsel %vm1782, %v6198, 0
      %v6207 = vsel %vm1782, %v6200, 0
      %v6209 = vsel %vm1782, %v6202, 0
      %v6211 = vsel %vm1782, %v6204, 0
      %6213 = vmatprep.subr.mxu0 0.0
      %6214 = vmatpush1.msra.mxu0 %v2922
      %6215 = vmatprep.subr.mxu0 0.0
      %6216 = vmatpush1.msra.mxu0 0.0
      %6217 = vmatprep.subr.mxu0 0.0
      %6218 = vmatpush1.msra.mxu0 0.0
      %6219 = vmatprep.subr.mxu0 0.0
      %6220 = vmatpush1.msra.mxu0 0.0
      %6221 = vmatprep.subr.mxu0 0.0
      %6222 = vmatpush1.msra.mxu0 0.0
      %6223 = vmatprep.subr.mxu0 0.0
      %6224 = vmatpush1.msra.mxu0 0.0
      %6225 = vmatprep.subr.mxu0 0.0
      %6226 = vmatpush1.msra.mxu0 0.0
      %6227 = vmatprep.subr.mxu0 0.0
      %6228 = vmatpush1.msra.mxu0 0.0
      %6229 = vmatprep.subr.mxu0 0.0
      %6230 = vmatpush1.msra.mxu0 0.0
      %6231 = vmatprep.subr.mxu0 0.0
      %6232 = vmatpush1.msra.mxu0 0.0
      %6233 = vmatprep.subr.mxu0 0.0
      %6234 = vmatpush1.msra.mxu0 0.0
      %6235 = vmatprep.subr.mxu0 0.0
      %6236 = vmatpush1.msra.mxu0 0.0
      %6237 = vmatprep.subr.mxu0 0.0
      %6238 = vmatpush1.msra.mxu0 0.0
      %6239 = vmatprep.subr.mxu0 0.0
      %6240 = vmatpush1.msra.mxu0 0.0
      %6241 = vmatprep.subr.mxu0 0.0
      %6242 = vmatpush1.msra.mxu0 0.0
      %6243 = vmatprep.subr.mxu0 0.0
      %6244 = vmatpush1.msra.mxu0 0.0
      %6245 = vmatprep.subr.mxu0 0.0
      %6246 = vmatpush1.msra.mxu0 0.0
      %6247 = vmatprep.subr.mxu0 0.0
      %6248 = vmatpush1.msra.mxu0 0.0
      %6249 = vmatprep.subr.mxu0 0.0
      %6250 = vmatpush1.msra.mxu0 0.0
      %6251 = vmatprep.subr.mxu0 0.0
      %6252 = vmatpush1.msra.mxu0 0.0
      %6253 = vmatprep.subr.mxu0 0.0
      %6254 = vmatpush1.msra.mxu0 0.0
      %6255 = vmatprep.subr.mxu0 0.0
      %6256 = vmatpush1.msra.mxu0 0.0
      %6257 = vmatprep.subr.mxu0 0.0
      %6258 = vmatpush1.msra.mxu0 0.0
      %6259 = vmatprep.subr.mxu0 0.0
      %6260 = vmatpush1.msra.mxu0 0.0
      %6261 = vmatprep.subr.mxu0 0.0
      %6262 = vmatpush1.msra.mxu0 0.0
      %6263 = vmatprep.subr.mxu0 0.0
      %6264 = vmatpush1.msra.mxu0 0.0
      %6265 = vmatprep.subr.mxu0 0.0
      %6266 = vmatpush1.msra.mxu0 0.0
      %6267 = vmatprep.subr.mxu0 0.0
      %6268 = vmatpush1.msra.mxu0 0.0
      %6269 = vmatprep.subr.mxu0 0.0
      %6270 = vmatpush1.msra.mxu0 0.0
      %6271 = vmatprep.subr.mxu0 0.0
      %6272 = vmatpush1.msra.mxu0 0.0
      %6273 = vmatprep.subr.mxu0 0.0
      %6274 = vmatpush1.msra.mxu0 0.0
      %6275 = vmatprep.subr.mxu0 0.0
      %6276 = vmatpush1.msra.mxu0 0.0
      %6277 = vmatprep.mubr.f32.mxu0 0.0
      %6278 = vmatmul.mubr.f32.gmra.mrb[0].mxu0 %v6205
      %v6279 = vpop.f32.mrb[0].mxu0
      %v6280 = vadd.f32 0.0, %v6279
      %v6281 = vpop.f32.mrb[0].mxu0
      %6282 = vmatprep.mubr.f32.mxu0 0.0
      %6283 = vmatmul.mubr.f32.gmra.mrb[0].mxu0 %v6207
      %v6284 = vpop.f32.mrb[0].mxu0
      %v6285 = vadd.f32 0.0, %v6284
      %v6286 = vpop.f32.mrb[0].mxu0
      %6287 = vmatprep.mubr.f32.mxu0 0.0
      %6288 = vmatmul.mubr.f32.gmra.mrb[0].mxu0 %v6209
      %v6289 = vpop.f32.mrb[0].mxu0
      %v6290 = vadd.f32 0.0, %v6289
      %v6291 = vpop.f32.mrb[0].mxu0
      %6292 = vmatprep.mubr.f32.mxu0 0.0
      %6293 = vmatmul.mubr.f32.gmra.mrb[0].mxu0 %v6211
      %v6294 = vpop.f32.mrb[0].mxu0
      %v6295 = vadd.f32 0.0, %v6294
      %v6296 = vpop.f32.mrb[0].mxu0
      %6297 = vdwg.mxu0
      %s6298 = scalar_lea.vmem %s13, 384
      %v6299 = vld [vmem:[%s6298] sm:$0xff]
      %v6300 = vld [vmem:[%s6298 + $0x8] sm:$0xff]
      %v6301 = vld [vmem:[%s6298 + $0x10] sm:$0xff]
      %v6302 = vld [vmem:[%s6298 + $0x18] sm:$0x7]
      %6304 = vset.pattern.permute.xlu0 0
      %6305 = vperm.xlu0 %6304, %v6299
      %v6306 = vpop.permute.xlu0 %6305
      %6309 = vset.pattern.permute.xlu0 0
      %6310 = vperm.xlu0 %6309, %v6300
      %v6311 = vpop.permute.xlu0 %6310
      %6314 = vset.pattern.permute.xlu0 0
      %6315 = vperm.xlu0 %6314, %v6301
      %v6316 = vpop.permute.xlu0 %6315
      %6319 = vset.pattern.permute.xlu0 0
      %6320 = vperm.xlu0 %6319, %v6302
      %v6321 = vpop.permute.xlu0 %6320
      %v6323 = vmul.f32 %v6280, %v6306
      %v6324 = vmul.f32 %v6285, %v6311
      %v6325 = vmul.f32 %v6290, %v6316
      %v6326 = vmul.f32 %v6295, %v6321
      %s6327 = scalar_lea.vmem %s14, 384
      %v6328 = vld [vmem:[%s6327] sm:$0xff]
      %v6329 = vld [vmem:[%s6327 + $0x8] sm:$0xff]
      %v6330 = vld [vmem:[%s6327 + $0x10] sm:$0xff]
      %v6331 = vld [vmem:[%s6327 + $0x18] sm:$0x7]
      %v6332 = vadd.f32 %v6323, %v6328
      %v6333 = vadd.f32 %v6324, %v6329
      %v6334 = vadd.f32 %v6325, %v6330
      %v6335 = vadd.f32 %v6326, %v6331
      %s6336 = scalar_lea.vmem %s531, 384
      %6337 = vst.msk [vmem:[%s6336] sm:$0xff] %vm598, %v6332
      %6338 = vst.msk [vmem:[%s6336 + $0x8] sm:$0xff] %vm598, %v6333
      %6339 = vst.msk [vmem:[%s6336 + $0x10] sm:$0xff] %vm598, %v6334
      %6340 = vst.msk [vmem:[%s6336 + $0x18] sm:$0x7] %vm1122, %v6335
      %6341 = vrot.lane.b32.xlu0 %v4454, 24
      %v6342 = vpop.permute.xlu0 %6341
      %6343 = vrot.lane.b32.xlu0 %v4460, 24
      %v6344 = vpop.permute.xlu0 %6343
      %6345 = vrot.lane.b32.xlu0 %v4466, 24
      %v6346 = vpop.permute.xlu0 %6345
      %6347 = vrot.lane.b32.xlu0 %v4472, 24
      %v6348 = vpop.permute.xlu0 %6347
      %v6349 = vsel %vm1782, %v6342, 0
      %v6351 = vsel %vm1782, %v6344, 0
      %v6353 = vsel %vm1782, %v6346, 0
      %v6355 = vsel %vm1782, %v6348, 0
      %6357 = vmatprep.subr.mxu0 0.0
      %6358 = vmatpush1.msra.mxu0 %v2927
      %6359 = vmatprep.subr.mxu0 0.0
      %6360 = vmatpush1.msra.mxu0 0.0
      %6361 = vmatprep.subr.mxu0 0.0
      %6362 = vmatpush1.msra.mxu0 0.0
      %6363 = vmatprep.subr.mxu0 0.0
      %6364 = vmatpush1.msra.mxu0 0.0
      %6365 = vmatprep.subr.mxu0 0.0
      %6366 = vmatpush1.msra.mxu0 0.0
      %6367 = vmatprep.subr.mxu0 0.0
      %6368 = vmatpush1.msra.mxu0 0.0
      %6369 = vmatprep.subr.mxu0 0.0
      %6370 = vmatpush1.msra.mxu0 0.0
      %6371 = vmatprep.subr.mxu0 0.0
      %6372 = vmatpush1.msra.mxu0 0.0
      %6373 = vmatprep.subr.mxu0 0.0
      %6374 = vmatpush1.msra.mxu0 0.0
      %6375 = vmatprep.subr.mxu0 0.0
      %6376 = vmatpush1.msra.mxu0 0.0
      %6377 = vmatprep.subr.mxu0 0.0
      %6378 = vmatpush1.msra.mxu0 0.0
      %6379 = vmatprep.subr.mxu0 0.0
      %6380 = vmatpush1.msra.mxu0 0.0
      %6381 = vmatprep.subr.mxu0 0.0
      %6382 = vmatpush1.msra.mxu0 0.0
      %6383 = vmatprep.subr.mxu0 0.0
      %6384 = vmatpush1.msra.mxu0 0.0
      %6385 = vmatprep.subr.mxu0 0.0
      %6386 = vmatpush1.msra.mxu0 0.0
      %6387 = vmatprep.subr.mxu0 0.0
      %6388 = vmatpush1.msra.mxu0 0.0
      %6389 = vmatprep.subr.mxu0 0.0
      %6390 = vmatpush1.msra.mxu0 0.0
      %6391 = vmatprep.subr.mxu0 0.0
      %6392 = vmatpush1.msra.mxu0 0.0
      %6393 = vmatprep.subr.mxu0 0.0
      %6394 = vmatpush1.msra.mxu0 0.0
      %6395 = vmatprep.subr.mxu0 0.0
      %6396 = vmatpush1.msra.mxu0 0.0
      %6397 = vmatprep.subr.mxu0 0.0
      %6398 = vmatpush1.msra.mxu0 0.0
      %6399 = vmatprep.subr.mxu0 0.0
      %6400 = vmatpush1.msra.mxu0 0.0
      %6401 = vmatprep.subr.mxu0 0.0
      %6402 = vmatpush1.msra.mxu0 0.0
      %6403 = vmatprep.subr.mxu0 0.0
      %6404 = vmatpush1.msra.mxu0 0.0
      %6405 = vmatprep.subr.mxu0 0.0
      %6406 = vmatpush1.msra.mxu0 0.0
      %6407 = vmatprep.subr.mxu0 0.0
      %6408 = vmatpush1.msra.mxu0 0.0
      %6409 = vmatprep.subr.mxu0 0.0
      %6410 = vmatpush1.msra.mxu0 0.0
      %6411 = vmatprep.subr.mxu0 0.0
      %6412 = vmatpush1.msra.mxu0 0.0
      %6413 = vmatprep.subr.mxu0 0.0
      %6414 = vmatpush1.msra.mxu0 0.0
      %6415 = vmatprep.subr.mxu0 0.0
      %6416 = vmatpush1.msra.mxu0 0.0
      %6417 = vmatprep.subr.mxu0 0.0
      %6418 = vmatpush1.msra.mxu0 0.0
      %6419 = vmatprep.subr.mxu0 0.0
      %6420 = vmatpush1.msra.mxu0 0.0
      %6421 = vmatprep.mubr.f32.mxu0 0.0
      %6422 = vmatmul.mubr.f32.gmra.mrb[0].mxu0 %v6349
      %v6423 = vpop.f32.mrb[0].mxu0
      %v6424 = vadd.f32 0.0, %v6423
      %v6425 = vpop.f32.mrb[0].mxu0
      %6426 = vmatprep.mubr.f32.mxu0 0.0
      %6427 = vmatmul.mubr.f32.gmra.mrb[0].mxu0 %v6351
      %v6428 = vpop.f32.mrb[0].mxu0
      %v6429 = vadd.f32 0.0, %v6428
      %v6430 = vpop.f32.mrb[0].mxu0
      %6431 = vmatprep.mubr.f32.mxu0 0.0
      %6432 = vmatmul.mubr.f32.gmra.mrb[0].mxu0 %v6353
      %v6433 = vpop.f32.mrb[0].mxu0
      %v6434 = vadd.f32 0.0, %v6433
      %v6435 = vpop.f32.mrb[0].mxu0
      %6436 = vmatprep.mubr.f32.mxu0 0.0
      %6437 = vmatmul.mubr.f32.gmra.mrb[0].mxu0 %v6355
      %v6438 = vpop.f32.mrb[0].mxu0
      %v6439 = vadd.f32 0.0, %v6438
      %v6440 = vpop.f32.mrb[0].mxu0
      %6441 = vdwg.mxu0
      %s6442 = scalar_lea.vmem %s13, 416
      %v6443 = vld [vmem:[%s6442] sm:$0xff]
      %v6444 = vld [vmem:[%s6442 + $0x8] sm:$0xff]
      %v6445 = vld [vmem:[%s6442 + $0x10] sm:$0xff]
      %v6446 = vld [vmem:[%s6442 + $0x18] sm:$0x7]
      %6448 = vset.pattern.permute.xlu0 0
      %6449 = vperm.xlu0 %6448, %v6443
      %v6450 = vpop.permute.xlu0 %6449
      %6453 = vset.pattern.permute.xlu0 0
      %6454 = vperm.xlu0 %6453, %v6444
      %v6455 = vpop.permute.xlu0 %6454
      %6458 = vset.pattern.permute.xlu0 0
      %6459 = vperm.xlu0 %6458, %v6445
      %v6460 = vpop.permute.xlu0 %6459
      %6463 = vset.pattern.permute.xlu0 0
      %6464 = vperm.xlu0 %6463, %v6446
      %v6465 = vpop.permute.xlu0 %6464
      %v6467 = vmul.f32 %v6424, %v6450
      %v6468 = vmul.f32 %v6429, %v6455
      %v6469 = vmul.f32 %v6434, %v6460
      %v6470 = vmul.f32 %v6439, %v6465
      %s6471 = scalar_lea.vmem %s14, 416
      %v6472 = vld [vmem:[%s6471] sm:$0xff]
      %v6473 = vld [vmem:[%s6471 + $0x8] sm:$0xff]
      %v6474 = vld [vmem:[%s6471 + $0x10] sm:$0xff]
      %v6475 = vld [vmem:[%s6471 + $0x18] sm:$0x7]
      %v6476 = vadd.f32 %v6467, %v6472
      %v6477 = vadd.f32 %v6468, %v6473
      %v6478 = vadd.f32 %v6469, %v6474
      %v6479 = vadd.f32 %v6470, %v6475
      %s6480 = scalar_lea.vmem %s531, 416
      %6481 = vst.msk [vmem:[%s6480] sm:$0xff] %vm598, %v6476
      %6482 = vst.msk [vmem:[%s6480 + $0x8] sm:$0xff] %vm598, %v6477
      %6483 = vst.msk [vmem:[%s6480 + $0x10] sm:$0xff] %vm598, %v6478
      %6484 = vst.msk [vmem:[%s6480 + $0x18] sm:$0x7] %vm1122, %v6479
      %6485 = vrot.lane.b32.xlu0 %v4454, 16
      %v6486 = vpop.permute.xlu0 %6485
      %6487 = vrot.lane.b32.xlu0 %v4460, 16
      %v6488 = vpop.permute.xlu0 %6487
      %6489 = vrot.lane.b32.xlu0 %v4466, 16
      %v6490 = vpop.permute.xlu0 %6489
      %6491 = vrot.lane.b32.xlu0 %v4472, 16
      %v6492 = vpop.permute.xlu0 %6491
      %v6493 = vsel %vm1782, %v6486, 0
      %v6495 = vsel %vm1782, %v6488, 0
      %v6497 = vsel %vm1782, %v6490, 0
      %v6499 = vsel %vm1782, %v6492, 0
      %6501 = vmatprep.subr.mxu0 0.0
      %6502 = vmatpush1.msra.mxu0 %v2932
      %6503 = vmatprep.subr.mxu0 0.0
      %6504 = vmatpush1.msra.mxu0 0.0
      %6505 = vmatprep.subr.mxu0 0.0
      %6506 = vmatpush1.msra.mxu0 0.0
      %6507 = vmatprep.subr.mxu0 0.0
      %6508 = vmatpush1.msra.mxu0 0.0
      %6509 = vmatprep.subr.mxu0 0.0
      %6510 = vmatpush1.msra.mxu0 0.0
      %6511 = vmatprep.subr.mxu0 0.0
      %6512 = vmatpush1.msra.mxu0 0.0
      %6513 = vmatprep.subr.mxu0 0.0
      %6514 = vmatpush1.msra.mxu0 0.0
      %6515 = vmatprep.subr.mxu0 0.0
      %6516 = vmatpush1.msra.mxu0 0.0
      %6517 = vmatprep.subr.mxu0 0.0
      %6518 = vmatpush1.msra.mxu0 0.0
      %6519 = vmatprep.subr.mxu0 0.0
      %6520 = vmatpush1.msra.mxu0 0.0
      %6521 = vmatprep.subr.mxu0 0.0
      %6522 = vmatpush1.msra.mxu0 0.0
      %6523 = vmatprep.subr.mxu0 0.0
      %6524 = vmatpush1.msra.mxu0 0.0
      %6525 = vmatprep.subr.mxu0 0.0
      %6526 = vmatpush1.msra.mxu0 0.0
      %6527 = vmatprep.subr.mxu0 0.0
      %6528 = vmatpush1.msra.mxu0 0.0
      %6529 = vmatprep.subr.mxu0 0.0
      %6530 = vmatpush1.msra.mxu0 0.0
      %6531 = vmatprep.subr.mxu0 0.0
      %6532 = vmatpush1.msra.mxu0 0.0
      %6533 = vmatprep.subr.mxu0 0.0
      %6534 = vmatpush1.msra.mxu0 0.0
      %6535 = vmatprep.subr.mxu0 0.0
      %6536 = vmatpush1.msra.mxu0 0.0
      %6537 = vmatprep.subr.mxu0 0.0
      %6538 = vmatpush1.msra.mxu0 0.0
      %6539 = vmatprep.subr.mxu0 0.0
      %6540 = vmatpush1.msra.mxu0 0.0
      %6541 = vmatprep.subr.mxu0 0.0
      %6542 = vmatpush1.msra.mxu0 0.0
      %6543 = vmatprep.subr.mxu0 0.0
      %6544 = vmatpush1.msra.mxu0 0.0
      %6545 = vmatprep.subr.mxu0 0.0
      %6546 = vmatpush1.msra.mxu0 0.0
      %6547 = vmatprep.subr.mxu0 0.0
      %6548 = vmatpush1.msra.mxu0 0.0
      %6549 = vmatprep.subr.mxu0 0.0
      %6550 = vmatpush1.msra.mxu0 0.0
      %6551 = vmatprep.subr.mxu0 0.0
      %6552 = vmatpush1.msra.mxu0 0.0
      %6553 = vmatprep.subr.mxu0 0.0
      %6554 = vmatpush1.msra.mxu0 0.0
      %6555 = vmatprep.subr.mxu0 0.0
      %6556 = vmatpush1.msra.mxu0 0.0
      %6557 = vmatprep.subr.mxu0 0.0
      %6558 = vmatpush1.msra.mxu0 0.0
      %6559 = vmatprep.subr.mxu0 0.0
      %6560 = vmatpush1.msra.mxu0 0.0
      %6561 = vmatprep.subr.mxu0 0.0
      %6562 = vmatpush1.msra.mxu0 0.0
      %6563 = vmatprep.subr.mxu0 0.0
      %6564 = vmatpush1.msra.mxu0 0.0
      %6565 = vmatprep.mubr.f32.mxu0 0.0
      %6566 = vmatmul.mubr.f32.gmra.mrb[0].mxu0 %v6493
      %v6567 = vpop.f32.mrb[0].mxu0
      %v6568 = vadd.f32 0.0, %v6567
      %v6569 = vpop.f32.mrb[0].mxu0
      %6570 = vmatprep.mubr.f32.mxu0 0.0
      %6571 = vmatmul.mubr.f32.gmra.mrb[0].mxu0 %v6495
      %v6572 = vpop.f32.mrb[0].mxu0
      %v6573 = vadd.f32 0.0, %v6572
      %v6574 = vpop.f32.mrb[0].mxu0
      %6575 = vmatprep.mubr.f32.mxu0 0.0
      %6576 = vmatmul.mubr.f32.gmra.mrb[0].mxu0 %v6497
      %v6577 = vpop.f32.mrb[0].mxu0
      %v6578 = vadd.f32 0.0, %v6577
      %v6579 = vpop.f32.mrb[0].mxu0
      %6580 = vmatprep.mubr.f32.mxu0 0.0
      %6581 = vmatmul.mubr.f32.gmra.mrb[0].mxu0 %v6499
      %v6582 = vpop.f32.mrb[0].mxu0
      %v6583 = vadd.f32 0.0, %v6582
      %v6584 = vpop.f32.mrb[0].mxu0
      %6585 = vdwg.mxu0
      %s6586 = scalar_lea.vmem %s13, 448
      %v6587 = vld [vmem:[%s6586] sm:$0xff]
      %v6588 = vld [vmem:[%s6586 + $0x8] sm:$0xff]
      %v6589 = vld [vmem:[%s6586 + $0x10] sm:$0xff]
      %v6590 = vld [vmem:[%s6586 + $0x18] sm:$0x7]
      %6592 = vset.pattern.permute.xlu0 0
      %6593 = vperm.xlu0 %6592, %v6587
      %v6594 = vpop.permute.xlu0 %6593
      %6597 = vset.pattern.permute.xlu0 0
      %6598 = vperm.xlu0 %6597, %v6588
      %v6599 = vpop.permute.xlu0 %6598
      %6602 = vset.pattern.permute.xlu0 0
      %6603 = vperm.xlu0 %6602, %v6589
      %v6604 = vpop.permute.xlu0 %6603
      %6607 = vset.pattern.permute.xlu0 0
      %6608 = vperm.xlu0 %6607, %v6590
      %v6609 = vpop.permute.xlu0 %6608
      %v6611 = vmul.f32 %v6568, %v6594
      %v6612 = vmul.f32 %v6573, %v6599
      %v6613 = vmul.f32 %v6578, %v6604
      %v6614 = vmul.f32 %v6583, %v6609
      %s6615 = scalar_lea.vmem %s14, 448
      %v6616 = vld [vmem:[%s6615] sm:$0xff]
      %v6617 = vld [vmem:[%s6615 + $0x8] sm:$0xff]
      %v6618 = vld [vmem:[%s6615 + $0x10] sm:$0xff]
      %v6619 = vld [vmem:[%s6615 + $0x18] sm:$0x7]
      %v6620 = vadd.f32 %v6611, %v6616
      %v6621 = vadd.f32 %v6612, %v6617
      %v6622 = vadd.f32 %v6613, %v6618
      %v6623 = vadd.f32 %v6614, %v6619
      %s6624 = scalar_lea.vmem %s531, 448
      %6625 = vst.msk [vmem:[%s6624] sm:$0xff] %vm598, %v6620
      %6626 = vst.msk [vmem:[%s6624 + $0x8] sm:$0xff] %vm598, %v6621
      %6627 = vst.msk [vmem:[%s6624 + $0x10] sm:$0xff] %vm598, %v6622
      %6628 = vst.msk [vmem:[%s6624 + $0x18] sm:$0x7] %vm1122, %v6623
      %6629 = vrot.lane.b32.xlu0 %v4454, 8
      %v6630 = vpop.permute.xlu0 %6629
      %6631 = vrot.lane.b32.xlu0 %v4460, 8
      %v6632 = vpop.permute.xlu0 %6631
      %6633 = vrot.lane.b32.xlu0 %v4466, 8
      %v6634 = vpop.permute.xlu0 %6633
      %6635 = vrot.lane.b32.xlu0 %v4472, 8
      %v6636 = vpop.permute.xlu0 %6635
      %v6637 = vsel %vm1782, %v6630, 0
      %v6639 = vsel %vm1782, %v6632, 0
      %v6641 = vsel %vm1782, %v6634, 0
      %v6643 = vsel %vm1782, %v6636, 0
      %6645 = vmatprep.subr.mxu0 0.0
      %6646 = vmatpush1.msra.mxu0 %v2937
      %6647 = vmatprep.subr.mxu0 0.0
      %6648 = vmatpush1.msra.mxu0 0.0
      %6649 = vmatprep.subr.mxu0 0.0
      %6650 = vmatpush1.msra.mxu0 0.0
      %6651 = vmatprep.subr.mxu0 0.0
      %6652 = vmatpush1.msra.mxu0 0.0
      %6653 = vmatprep.subr.mxu0 0.0
      %6654 = vmatpush1.msra.mxu0 0.0
      %6655 = vmatprep.subr.mxu0 0.0
      %6656 = vmatpush1.msra.mxu0 0.0
      %6657 = vmatprep.subr.mxu0 0.0
      %6658 = vmatpush1.msra.mxu0 0.0
      %6659 = vmatprep.subr.mxu0 0.0
      %6660 = vmatpush1.msra.mxu0 0.0
      %6661 = vmatprep.subr.mxu0 0.0
      %6662 = vmatpush1.msra.mxu0 0.0
      %6663 = vmatprep.subr.mxu0 0.0
      %6664 = vmatpush1.msra.mxu0 0.0
      %6665 = vmatprep.subr.mxu0 0.0
      %6666 = vmatpush1.msra.mxu0 0.0
      %6667 = vmatprep.subr.mxu0 0.0
      %6668 = vmatpush1.msra.mxu0 0.0
      %6669 = vmatprep.subr.mxu0 0.0
      %6670 = vmatpush1.msra.mxu0 0.0
      %6671 = vmatprep.subr.mxu0 0.0
      %6672 = vmatpush1.msra.mxu0 0.0
      %6673 = vmatprep.subr.mxu0 0.0
      %6674 = vmatpush1.msra.mxu0 0.0
      %6675 = vmatprep.subr.mxu0 0.0
      %6676 = vmatpush1.msra.mxu0 0.0
      %6677 = vmatprep.subr.mxu0 0.0
      %6678 = vmatpush1.msra.mxu0 0.0
      %6679 = vmatprep.subr.mxu0 0.0
      %6680 = vmatpush1.msra.mxu0 0.0
      %6681 = vmatprep.subr.mxu0 0.0
      %6682 = vmatpush1.msra.mxu0 0.0
      %6683 = vmatprep.subr.mxu0 0.0
      %6684 = vmatpush1.msra.mxu0 0.0
      %6685 = vmatprep.subr.mxu0 0.0
      %6686 = vmatpush1.msra.mxu0 0.0
      %6687 = vmatprep.subr.mxu0 0.0
      %6688 = vmatpush1.msra.mxu0 0.0
      %6689 = vmatprep.subr.mxu0 0.0
      %6690 = vmatpush1.msra.mxu0 0.0
      %6691 = vmatprep.subr.mxu0 0.0
      %6692 = vmatpush1.msra.mxu0 0.0
      %6693 = vmatprep.subr.mxu0 0.0
      %6694 = vmatpush1.msra.mxu0 0.0
      %6695 = vmatprep.subr.mxu0 0.0
      %6696 = vmatpush1.msra.mxu0 0.0
      %6697 = vmatprep.subr.mxu0 0.0
      %6698 = vmatpush1.msra.mxu0 0.0
      %6699 = vmatprep.subr.mxu0 0.0
      %6700 = vmatpush1.msra.mxu0 0.0
      %6701 = vmatprep.subr.mxu0 0.0
      %6702 = vmatpush1.msra.mxu0 0.0
      %6703 = vmatprep.subr.mxu0 0.0
      %6704 = vmatpush1.msra.mxu0 0.0
      %6705 = vmatprep.subr.mxu0 0.0
      %6706 = vmatpush1.msra.mxu0 0.0
      %6707 = vmatprep.subr.mxu0 0.0
      %6708 = vmatpush1.msra.mxu0 0.0
      %6709 = vmatprep.mubr.f32.mxu0 0.0
      %6710 = vmatmul.mubr.f32.gmra.mrb[0].mxu0 %v6637
      %v6711 = vpop.f32.mrb[0].mxu0
      %v6712 = vadd.f32 0.0, %v6711
      %v6713 = vpop.f32.mrb[0].mxu0
      %6714 = vmatprep.mubr.f32.mxu0 0.0
      %6715 = vmatmul.mubr.f32.gmra.mrb[0].mxu0 %v6639
      %v6716 = vpop.f32.mrb[0].mxu0
      %v6717 = vadd.f32 0.0, %v6716
      %v6718 = vpop.f32.mrb[0].mxu0
      %6719 = vmatprep.mubr.f32.mxu0 0.0
      %6720 = vmatmul.mubr.f32.gmra.mrb[0].mxu0 %v6641
      %v6721 = vpop.f32.mrb[0].mxu0
      %v6722 = vadd.f32 0.0, %v6721
      %v6723 = vpop.f32.mrb[0].mxu0
      %6724 = vmatprep.mubr.f32.mxu0 0.0
      %6725 = vmatmul.mubr.f32.gmra.mrb[0].mxu0 %v6643
      %v6726 = vpop.f32.mrb[0].mxu0
      %v6727 = vadd.f32 0.0, %v6726
      %v6728 = vpop.f32.mrb[0].mxu0
      %6729 = vdwg.mxu0
      %s6730 = scalar_lea.vmem %s13, 480
      %v6731 = vld [vmem:[%s6730] sm:$0xff]
      %v6732 = vld [vmem:[%s6730 + $0x8] sm:$0xff]
      %v6733 = vld [vmem:[%s6730 + $0x10] sm:$0xff]
      %v6734 = vld [vmem:[%s6730 + $0x18] sm:$0x7]
      %6736 = vset.pattern.permute.xlu0 0
      %6737 = vperm.xlu0 %6736, %v6731
      %v6738 = vpop.permute.xlu0 %6737
      %6741 = vset.pattern.permute.xlu0 0
      %6742 = vperm.xlu0 %6741, %v6732
      %v6743 = vpop.permute.xlu0 %6742
      %6746 = vset.pattern.permute.xlu0 0
      %6747 = vperm.xlu0 %6746, %v6733
      %v6748 = vpop.permute.xlu0 %6747
      %6751 = vset.pattern.permute.xlu0 0
      %6752 = vperm.xlu0 %6751, %v6734
      %v6753 = vpop.permute.xlu0 %6752
      %v6755 = vmul.f32 %v6712, %v6738
      %v6756 = vmul.f32 %v6717, %v6743
      %v6757 = vmul.f32 %v6722, %v6748
      %v6758 = vmul.f32 %v6727, %v6753
      %s6759 = scalar_lea.vmem %s14, 480
      %v6760 = vld [vmem:[%s6759] sm:$0xff]
      %v6761 = vld [vmem:[%s6759 + $0x8] sm:$0xff]
      %v6762 = vld [vmem:[%s6759 + $0x10] sm:$0xff]
      %v6763 = vld [vmem:[%s6759 + $0x18] sm:$0x7]
      %v6764 = vadd.f32 %v6755, %v6760
      %v6765 = vadd.f32 %v6756, %v6761
      %v6766 = vadd.f32 %v6757, %v6762
      %v6767 = vadd.f32 %v6758, %v6763
      %s6768 = scalar_lea.vmem %s531, 480
      %6769 = vst.msk [vmem:[%s6768] sm:$0xff] %vm598, %v6764
      %6770 = vst.msk [vmem:[%s6768 + $0x8] sm:$0xff] %vm598, %v6765
      %6771 = vst.msk [vmem:[%s6768 + $0x10] sm:$0xff] %vm598, %v6766
      %6772 = vst.msk [vmem:[%s6768 + $0x18] sm:$0x7] %vm1122, %v6767
      %v6774 = vsel %vm1782, %v4456, 0
      %v6777 = vsel %vm1782, %v4462, 0
      %v6780 = vsel %vm1782, %v4468, 0
      %v6783 = vsel %vm1782, %v4474, 0
      %6785 = vmatprep.subr.mxu0 0.0
      %6786 = vmatpush1.msra.mxu0 %v2942
      %6787 = vmatprep.subr.mxu0 0.0
      %6788 = vmatpush1.msra.mxu0 0.0
      %6789 = vmatprep.subr.mxu0 0.0
      %6790 = vmatpush1.msra.mxu0 0.0
      %6791 = vmatprep.subr.mxu0 0.0
      %6792 = vmatpush1.msra.mxu0 0.0
      %6793 = vmatprep.subr.mxu0 0.0
      %6794 = vmatpush1.msra.mxu0 0.0
      %6795 = vmatprep.subr.mxu0 0.0
      %6796 = vmatpush1.msra.mxu0 0.0
      %6797 = vmatprep.subr.mxu0 0.0
      %6798 = vmatpush1.msra.mxu0 0.0
      %6799 = vmatprep.subr.mxu0 0.0
      %6800 = vmatpush1.msra.mxu0 0.0
      %6801 = vmatprep.subr.mxu0 0.0
      %6802 = vmatpush1.msra.mxu0 0.0
      %6803 = vmatprep.subr.mxu0 0.0
      %6804 = vmatpush1.msra.mxu0 0.0
      %6805 = vmatprep.subr.mxu0 0.0
      %6806 = vmatpush1.msra.mxu0 0.0
      %6807 = vmatprep.subr.mxu0 0.0
      %6808 = vmatpush1.msra.mxu0 0.0
      %6809 = vmatprep.subr.mxu0 0.0
      %6810 = vmatpush1.msra.mxu0 0.0
      %6811 = vmatprep.subr.mxu0 0.0
      %6812 = vmatpush1.msra.mxu0 0.0
      %6813 = vmatprep.subr.mxu0 0.0
      %6814 = vmatpush1.msra.mxu0 0.0
      %6815 = vmatprep.subr.mxu0 0.0
      %6816 = vmatpush1.msra.mxu0 0.0
      %6817 = vmatprep.subr.mxu0 0.0
      %6818 = vmatpush1.msra.mxu0 0.0
      %6819 = vmatprep.subr.mxu0 0.0
      %6820 = vmatpush1.msra.mxu0 0.0
      %6821 = vmatprep.subr.mxu0 0.0
      %6822 = vmatpush1.msra.mxu0 0.0
      %6823 = vmatprep.subr.mxu0 0.0
      %6824 = vmatpush1.msra.mxu0 0.0
      %6825 = vmatprep.subr.mxu0 0.0
      %6826 = vmatpush1.msra.mxu0 0.0
      %6827 = vmatprep.subr.mxu0 0.0
      %6828 = vmatpush1.msra.mxu0 0.0
      %6829 = vmatprep.subr.mxu0 0.0
      %6830 = vmatpush1.msra.mxu0 0.0
      %6831 = vmatprep.subr.mxu0 0.0
      %6832 = vmatpush1.msra.mxu0 0.0
      %6833 = vmatprep.subr.mxu0 0.0
      %6834 = vmatpush1.msra.mxu0 0.0
      %6835 = vmatprep.subr.mxu0 0.0
      %6836 = vmatpush1.msra.mxu0 0.0
      %6837 = vmatprep.subr.mxu0 0.0
      %6838 = vmatpush1.msra.mxu0 0.0
      %6839 = vmatprep.subr.mxu0 0.0
      %6840 = vmatpush1.msra.mxu0 0.0
      %6841 = vmatprep.subr.mxu0 0.0
      %6842 = vmatpush1.msra.mxu0 0.0
      %6843 = vmatprep.subr.mxu0 0.0
      %6844 = vmatpush1.msra.mxu0 0.0
      %6845 = vmatprep.subr.mxu0 0.0
      %6846 = vmatpush1.msra.mxu0 0.0
      %6847 = vmatprep.subr.mxu0 0.0
      %6848 = vmatpush1.msra.mxu0 0.0
      %6849 = vmatprep.mubr.f32.mxu0 0.0
      %6850 = vmatmul.mubr.f32.gmra.mrb[0].mxu0 %v6774
      %v6851 = vpop.f32.mrb[0].mxu0
      %v6852 = vadd.f32 0.0, %v6851
      %v6853 = vpop.f32.mrb[0].mxu0
      %6854 = vmatprep.mubr.f32.mxu0 0.0
      %6855 = vmatmul.mubr.f32.gmra.mrb[0].mxu0 %v6777
      %v6856 = vpop.f32.mrb[0].mxu0
      %v6857 = vadd.f32 0.0, %v6856
      %v6858 = vpop.f32.mrb[0].mxu0
      %6859 = vmatprep.mubr.f32.mxu0 0.0
      %6860 = vmatmul.mubr.f32.gmra.mrb[0].mxu0 %v6780
      %v6861 = vpop.f32.mrb[0].mxu0
      %v6862 = vadd.f32 0.0, %v6861
      %v6863 = vpop.f32.mrb[0].mxu0
      %6864 = vmatprep.mubr.f32.mxu0 0.0
      %6865 = vmatmul.mubr.f32.gmra.mrb[0].mxu0 %v6783
      %v6866 = vpop.f32.mrb[0].mxu0
      %v6867 = vadd.f32 0.0, %v6866
      %v6868 = vpop.f32.mrb[0].mxu0
      %6869 = vdwg.mxu0
      %s6870 = scalar_lea.vmem %s13, 512
      %v6871 = vld [vmem:[%s6870] sm:$0xff]
      %v6872 = vld [vmem:[%s6870 + $0x8] sm:$0xff]
      %v6873 = vld [vmem:[%s6870 + $0x10] sm:$0xff]
      %v6874 = vld [vmem:[%s6870 + $0x18] sm:$0x7]
      %6876 = vset.pattern.permute.xlu0 0
      %6877 = vperm.xlu0 %6876, %v6871
      %v6878 = vpop.permute.xlu0 %6877
      %6881 = vset.pattern.permute.xlu0 0
      %6882 = vperm.xlu0 %6881, %v6872
      %v6883 = vpop.permute.xlu0 %6882
      %6886 = vset.pattern.permute.xlu0 0
      %6887 = vperm.xlu0 %6886, %v6873
      %v6888 = vpop.permute.xlu0 %6887
      %6891 = vset.pattern.permute.xlu0 0
      %6892 = vperm.xlu0 %6891, %v6874
      %v6893 = vpop.permute.xlu0 %6892
      %v6895 = vmul.f32 %v6852, %v6878
      %v6896 = vmul.f32 %v6857, %v6883
      %v6897 = vmul.f32 %v6862, %v6888
      %v6898 = vmul.f32 %v6867, %v6893
      %s6899 = scalar_lea.vmem %s14, 512
      %v6900 = vld [vmem:[%s6899] sm:$0xff]
      %v6901 = vld [vmem:[%s6899 + $0x8] sm:$0xff]
      %v6902 = vld [vmem:[%s6899 + $0x10] sm:$0xff]
      %v6903 = vld [vmem:[%s6899 + $0x18] sm:$0x7]
      %v6904 = vadd.f32 %v6895, %v6900
      %v6905 = vadd.f32 %v6896, %v6901
      %v6906 = vadd.f32 %v6897, %v6902
      %v6907 = vadd.f32 %v6898, %v6903
      %s6908 = scalar_lea.vmem %s531, 512
      %6909 = vst.msk [vmem:[%s6908] sm:$0xff] %vm598, %v6904
      %6910 = vst.msk [vmem:[%s6908 + $0x8] sm:$0xff] %vm598, %v6905
      %6911 = vst.msk [vmem:[%s6908 + $0x10] sm:$0xff] %vm598, %v6906
      %6912 = vst.msk [vmem:[%s6908 + $0x18] sm:$0x7] %vm1122, %v6907
      %6913 = vrot.lane.b32.xlu0 %v4456, 120
      %v6914 = vpop.permute.xlu0 %6913
      %6915 = vrot.lane.b32.xlu0 %v4462, 120
      %v6916 = vpop.permute.xlu0 %6915
      %6917 = vrot.lane.b32.xlu0 %v4468, 120
      %v6918 = vpop.permute.xlu0 %6917
      %6919 = vrot.lane.b32.xlu0 %v4474, 120
      %v6920 = vpop.permute.xlu0 %6919
      %v6921 = vsel %vm1782, %v6914, 0
      %v6923 = vsel %vm1782, %v6916, 0
      %v6925 = vsel %vm1782, %v6918, 0
      %v6927 = vsel %vm1782, %v6920, 0
      %6929 = vmatprep.subr.mxu0 0.0
      %6930 = vmatpush1.msra.mxu0 %v2947
      %6931 = vmatprep.subr.mxu0 0.0
      %6932 = vmatpush1.msra.mxu0 0.0
      %6933 = vmatprep.subr.mxu0 0.0
      %6934 = vmatpush1.msra.mxu0 0.0
      %6935 = vmatprep.subr.mxu0 0.0
      %6936 = vmatpush1.msra.mxu0 0.0
      %6937 = vmatprep.subr.mxu0 0.0
      %6938 = vmatpush1.msra.mxu0 0.0
      %6939 = vmatprep.subr.mxu0 0.0
      %6940 = vmatpush1.msra.mxu0 0.0
      %6941 = vmatprep.subr.mxu0 0.0
      %6942 = vmatpush1.msra.mxu0 0.0
      %6943 = vmatprep.subr.mxu0 0.0
      %6944 = vmatpush1.msra.mxu0 0.0
      %6945 = vmatprep.subr.mxu0 0.0
      %6946 = vmatpush1.msra.mxu0 0.0
      %6947 = vmatprep.subr.mxu0 0.0
      %6948 = vmatpush1.msra.mxu0 0.0
      %6949 = vmatprep.subr.mxu0 0.0
      %6950 = vmatpush1.msra.mxu0 0.0
      %6951 = vmatprep.subr.mxu0 0.0
      %6952 = vmatpush1.msra.mxu0 0.0
      %6953 = vmatprep.subr.mxu0 0.0
      %6954 = vmatpush1.msra.mxu0 0.0
      %6955 = vmatprep.subr.mxu0 0.0
      %6956 = vmatpush1.msra.mxu0 0.0
      %6957 = vmatprep.subr.mxu0 0.0
      %6958 = vmatpush1.msra.mxu0 0.0
      %6959 = vmatprep.subr.mxu0 0.0
      %6960 = vmatpush1.msra.mxu0 0.0
      %6961 = vmatprep.subr.mxu0 0.0
      %6962 = vmatpush1.msra.mxu0 0.0
      %6963 = vmatprep.subr.mxu0 0.0
      %6964 = vmatpush1.msra.mxu0 0.0
      %6965 = vmatprep.subr.mxu0 0.0
      %6966 = vmatpush1.msra.mxu0 0.0
      %6967 = vmatprep.subr.mxu0 0.0
      %6968 = vmatpush1.msra.mxu0 0.0
      %6969 = vmatprep.subr.mxu0 0.0
      %6970 = vmatpush1.msra.mxu0 0.0
      %6971 = vmatprep.subr.mxu0 0.0
      %6972 = vmatpush1.msra.mxu0 0.0
      %6973 = vmatprep.subr.mxu0 0.0
      %6974 = vmatpush1.msra.mxu0 0.0
      %6975 = vmatprep.subr.mxu0 0.0
      %6976 = vmatpush1.msra.mxu0 0.0
      %6977 = vmatprep.subr.mxu0 0.0
      %6978 = vmatpush1.msra.mxu0 0.0
      %6979 = vmatprep.subr.mxu0 0.0
      %6980 = vmatpush1.msra.mxu0 0.0
      %6981 = vmatprep.subr.mxu0 0.0
      %6982 = vmatpush1.msra.mxu0 0.0
      %6983 = vmatprep.subr.mxu0 0.0
      %6984 = vmatpush1.msra.mxu0 0.0
      %6985 = vmatprep.subr.mxu0 0.0
      %6986 = vmatpush1.msra.mxu0 0.0
      %6987 = vmatprep.subr.mxu0 0.0
      %6988 = vmatpush1.msra.mxu0 0.0
      %6989 = vmatprep.subr.mxu0 0.0
      %6990 = vmatpush1.msra.mxu0 0.0
      %6991 = vmatprep.subr.mxu0 0.0
      %6992 = vmatpush1.msra.mxu0 0.0
      %6993 = vmatprep.mubr.f32.mxu0 0.0
      %6994 = vmatmul.mubr.f32.gmra.mrb[0].mxu0 %v6921
      %v6995 = vpop.f32.mrb[0].mxu0
      %v6996 = vadd.f32 0.0, %v6995
      %v6997 = vpop.f32.mrb[0].mxu0
      %6998 = vmatprep.mubr.f32.mxu0 0.0
      %6999 = vmatmul.mubr.f32.gmra.mrb[0].mxu0 %v6923
      %v7000 = vpop.f32.mrb[0].mxu0
      %v7001 = vadd.f32 0.0, %v7000
      %v7002 = vpop.f32.mrb[0].mxu0
      %7003 = vmatprep.mubr.f32.mxu0 0.0
      %7004 = vmatmul.mubr.f32.gmra.mrb[0].mxu0 %v6925
      %v7005 = vpop.f32.mrb[0].mxu0
      %v7006 = vadd.f32 0.0, %v7005
      %v7007 = vpop.f32.mrb[0].mxu0
      %7008 = vmatprep.mubr.f32.mxu0 0.0
      %7009 = vmatmul.mubr.f32.gmra.mrb[0].mxu0 %v6927
      %v7010 = vpop.f32.mrb[0].mxu0
      %v7011 = vadd.f32 0.0, %v7010
      %v7012 = vpop.f32.mrb[0].mxu0
      %7013 = vdwg.mxu0
      %s7014 = scalar_lea.vmem %s13, 544
      %v7015 = vld [vmem:[%s7014] sm:$0xff]
      %v7016 = vld [vmem:[%s7014 + $0x8] sm:$0xff]
      %v7017 = vld [vmem:[%s7014 + $0x10] sm:$0xff]
      %v7018 = vld [vmem:[%s7014 + $0x18] sm:$0x7]
      %7020 = vset.pattern.permute.xlu0 0
      %7021 = vperm.xlu0 %7020, %v7015
      %v7022 = vpop.permute.xlu0 %7021
      %7025 = vset.pattern.permute.xlu0 0
      %7026 = vperm.xlu0 %7025, %v7016
      %v7027 = vpop.permute.xlu0 %7026
      %7030 = vset.pattern.permute.xlu0 0
      %7031 = vperm.xlu0 %7030, %v7017
      %v7032 = vpop.permute.xlu0 %7031
      %7035 = vset.pattern.permute.xlu0 0
      %7036 = vperm.xlu0 %7035, %v7018
      %v7037 = vpop.permute.xlu0 %7036
      %v7039 = vmul.f32 %v6996, %v7022
      %v7040 = vmul.f32 %v7001, %v7027
      %v7041 = vmul.f32 %v7006, %v7032
      %v7042 = vmul.f32 %v7011, %v7037
      %s7043 = scalar_lea.vmem %s14, 544
      %v7044 = vld [vmem:[%s7043] sm:$0xff]
      %v7045 = vld [vmem:[%s7043 + $0x8] sm:$0xff]
      %v7046 = vld [vmem:[%s7043 + $0x10] sm:$0xff]
      %v7047 = vld [vmem:[%s7043 + $0x18] sm:$0x7]
      %v7048 = vadd.f32 %v7039, %v7044
      %v7049 = vadd.f32 %v7040, %v7045
      %v7050 = vadd.f32 %v7041, %v7046
      %v7051 = vadd.f32 %v7042, %v7047
      %s7052 = scalar_lea.vmem %s531, 544
      %7053 = vst.msk [vmem:[%s7052] sm:$0xff] %vm598, %v7048
      %7054 = vst.msk [vmem:[%s7052 + $0x8] sm:$0xff] %vm598, %v7049
      %7055 = vst.msk [vmem:[%s7052 + $0x10] sm:$0xff] %vm598, %v7050
      %7056 = vst.msk [vmem:[%s7052 + $0x18] sm:$0x7] %vm1122, %v7051
      %7057 = vrot.lane.b32.xlu0 %v4456, 112
      %v7058 = vpop.permute.xlu0 %7057
      %7059 = vrot.lane.b32.xlu0 %v4462, 112
      %v7060 = vpop.permute.xlu0 %7059
      %7061 = vrot.lane.b32.xlu0 %v4468, 112
      %v7062 = vpop.permute.xlu0 %7061
      %7063 = vrot.lane.b32.xlu0 %v4474, 112
      %v7064 = vpop.permute.xlu0 %7063
      %v7065 = vsel %vm1782, %v7058, 0
      %v7067 = vsel %vm1782, %v7060, 0
      %v7069 = vsel %vm1782, %v7062, 0
      %v7071 = vsel %vm1782, %v7064, 0
      %7073 = vmatprep.subr.mxu0 0.0
      %7074 = vmatpush1.msra.mxu0 %v2952
      %7075 = vmatprep.subr.mxu0 0.0
      %7076 = vmatpush1.msra.mxu0 0.0
      %7077 = vmatprep.subr.mxu0 0.0
      %7078 = vmatpush1.msra.mxu0 0.0
      %7079 = vmatprep.subr.mxu0 0.0
      %7080 = vmatpush1.msra.mxu0 0.0
      %7081 = vmatprep.subr.mxu0 0.0
      %7082 = vmatpush1.msra.mxu0 0.0
      %7083 = vmatprep.subr.mxu0 0.0
      %7084 = vmatpush1.msra.mxu0 0.0
      %7085 = vmatprep.subr.mxu0 0.0
      %7086 = vmatpush1.msra.mxu0 0.0
      %7087 = vmatprep.subr.mxu0 0.0
      %7088 = vmatpush1.msra.mxu0 0.0
      %7089 = vmatprep.subr.mxu0 0.0
      %7090 = vmatpush1.msra.mxu0 0.0
      %7091 = vmatprep.subr.mxu0 0.0
      %7092 = vmatpush1.msra.mxu0 0.0
      %7093 = vmatprep.subr.mxu0 0.0
      %7094 = vmatpush1.msra.mxu0 0.0
      %7095 = vmatprep.subr.mxu0 0.0
      %7096 = vmatpush1.msra.mxu0 0.0
      %7097 = vmatprep.subr.mxu0 0.0
      %7098 = vmatpush1.msra.mxu0 0.0
      %7099 = vmatprep.subr.mxu0 0.0
      %7100 = vmatpush1.msra.mxu0 0.0
      %7101 = vmatprep.subr.mxu0 0.0
      %7102 = vmatpush1.msra.mxu0 0.0
      %7103 = vmatprep.subr.mxu0 0.0
      %7104 = vmatpush1.msra.mxu0 0.0
      %7105 = vmatprep.subr.mxu0 0.0
      %7106 = vmatpush1.msra.mxu0 0.0
      %7107 = vmatprep.subr.mxu0 0.0
      %7108 = vmatpush1.msra.mxu0 0.0
      %7109 = vmatprep.subr.mxu0 0.0
      %7110 = vmatpush1.msra.mxu0 0.0
      %7111 = vmatprep.subr.mxu0 0.0
      %7112 = vmatpush1.msra.mxu0 0.0
      %7113 = vmatprep.subr.mxu0 0.0
      %7114 = vmatpush1.msra.mxu0 0.0
      %7115 = vmatprep.subr.mxu0 0.0
      %7116 = vmatpush1.msra.mxu0 0.0
      %7117 = vmatprep.subr.mxu0 0.0
      %7118 = vmatpush1.msra.mxu0 0.0
      %7119 = vmatprep.subr.mxu0 0.0
      %7120 = vmatpush1.msra.mxu0 0.0
      %7121 = vmatprep.subr.mxu0 0.0
      %7122 = vmatpush1.msra.mxu0 0.0
      %7123 = vmatprep.subr.mxu0 0.0
      %7124 = vmatpush1.msra.mxu0 0.0
      %7125 = vmatprep.subr.mxu0 0.0
      %7126 = vmatpush1.msra.mxu0 0.0
      %7127 = vmatprep.subr.mxu0 0.0
      %7128 = vmatpush1.msra.mxu0 0.0
      %7129 = vmatprep.subr.mxu0 0.0
      %7130 = vmatpush1.msra.mxu0 0.0
      %7131 = vmatprep.subr.mxu0 0.0
      %7132 = vmatpush1.msra.mxu0 0.0
      %7133 = vmatprep.subr.mxu0 0.0
      %7134 = vmatpush1.msra.mxu0 0.0
      %7135 = vmatprep.subr.mxu0 0.0
      %7136 = vmatpush1.msra.mxu0 0.0
      %7137 = vmatprep.mubr.f32.mxu0 0.0
      %7138 = vmatmul.mubr.f32.gmra.mrb[0].mxu0 %v7065
      %v7139 = vpop.f32.mrb[0].mxu0
      %v7140 = vadd.f32 0.0, %v7139
      %v7141 = vpop.f32.mrb[0].mxu0
      %7142 = vmatprep.mubr.f32.mxu0 0.0
      %7143 = vmatmul.mubr.f32.gmra.mrb[0].mxu0 %v7067
      %v7144 = vpop.f32.mrb[0].mxu0
      %v7145 = vadd.f32 0.0, %v7144
      %v7146 = vpop.f32.mrb[0].mxu0
      %7147 = vmatprep.mubr.f32.mxu0 0.0
      %7148 = vmatmul.mubr.f32.gmra.mrb[0].mxu0 %v7069
      %v7149 = vpop.f32.mrb[0].mxu0
      %v7150 = vadd.f32 0.0, %v7149
      %v7151 = vpop.f32.mrb[0].mxu0
      %7152 = vmatprep.mubr.f32.mxu0 0.0
      %7153 = vmatmul.mubr.f32.gmra.mrb[0].mxu0 %v7071
      %v7154 = vpop.f32.mrb[0].mxu0
      %v7155 = vadd.f32 0.0, %v7154
      %v7156 = vpop.f32.mrb[0].mxu0
      %7157 = vdwg.mxu0
      %s7158 = scalar_lea.vmem %s13, 576
      %v7159 = vld [vmem:[%s7158] sm:$0xff]
      %v7160 = vld [vmem:[%s7158 + $0x8] sm:$0xff]
      %v7161 = vld [vmem:[%s7158 + $0x10] sm:$0xff]
      %v7162 = vld [vmem:[%s7158 + $0x18] sm:$0x7]
      %7164 = vset.pattern.permute.xlu0 0
      %7165 = vperm.xlu0 %7164, %v7159
      %v7166 = vpop.permute.xlu0 %7165
      %7169 = vset.pattern.permute.xlu0 0
      %7170 = vperm.xlu0 %7169, %v7160
      %v7171 = vpop.permute.xlu0 %7170
      %7174 = vset.pattern.permute.xlu0 0
      %7175 = vperm.xlu0 %7174, %v7161
      %v7176 = vpop.permute.xlu0 %7175
      %7179 = vset.pattern.permute.xlu0 0
      %7180 = vperm.xlu0 %7179, %v7162
      %v7181 = vpop.permute.xlu0 %7180
      %v7183 = vmul.f32 %v7140, %v7166
      %v7184 = vmul.f32 %v7145, %v7171
      %v7185 = vmul.f32 %v7150, %v7176
      %v7186 = vmul.f32 %v7155, %v7181
      %s7187 = scalar_lea.vmem %s14, 576
      %v7188 = vld [vmem:[%s7187] sm:$0xff]
      %v7189 = vld [vmem:[%s7187 + $0x8] sm:$0xff]
      %v7190 = vld [vmem:[%s7187 + $0x10] sm:$0xff]
      %v7191 = vld [vmem:[%s7187 + $0x18] sm:$0x7]
      %v7192 = vadd.f32 %v7183, %v7188
      %v7193 = vadd.f32 %v7184, %v7189
      %v7194 = vadd.f32 %v7185, %v7190
      %v7195 = vadd.f32 %v7186, %v7191
      %s7196 = scalar_lea.vmem %s531, 576
      %7197 = vst.msk [vmem:[%s7196] sm:$0xff] %vm598, %v7192
      %7198 = vst.msk [vmem:[%s7196 + $0x8] sm:$0xff] %vm598, %v7193
      %7199 = vst.msk [vmem:[%s7196 + $0x10] sm:$0xff] %vm598, %v7194
      %7200 = vst.msk [vmem:[%s7196 + $0x18] sm:$0x7] %vm1122, %v7195
      %7201 = vrot.lane.b32.xlu0 %v4456, 104
      %v7202 = vpop.permute.xlu0 %7201
      %7203 = vrot.lane.b32.xlu0 %v4462, 104
      %v7204 = vpop.permute.xlu0 %7203
      %7205 = vrot.lane.b32.xlu0 %v4468, 104
      %v7206 = vpop.permute.xlu0 %7205
      %7207 = vrot.lane.b32.xlu0 %v4474, 104
      %v7208 = vpop.permute.xlu0 %7207
      %v7209 = vsel %vm1782, %v7202, 0
      %v7211 = vsel %vm1782, %v7204, 0
      %v7213 = vsel %vm1782, %v7206, 0
      %v7215 = vsel %vm1782, %v7208, 0
      %7217 = vmatprep.subr.mxu0 0.0
      %7218 = vmatpush1.msra.mxu0 %v2957
      %7219 = vmatprep.subr.mxu0 0.0
      %7220 = vmatpush1.msra.mxu0 0.0
      %7221 = vmatprep.subr.mxu0 0.0
      %7222 = vmatpush1.msra.mxu0 0.0
      %7223 = vmatprep.subr.mxu0 0.0
      %7224 = vmatpush1.msra.mxu0 0.0
      %7225 = vmatprep.subr.mxu0 0.0
      %7226 = vmatpush1.msra.mxu0 0.0
      %7227 = vmatprep.subr.mxu0 0.0
      %7228 = vmatpush1.msra.mxu0 0.0
      %7229 = vmatprep.subr.mxu0 0.0
      %7230 = vmatpush1.msra.mxu0 0.0
      %7231 = vmatprep.subr.mxu0 0.0
      %7232 = vmatpush1.msra.mxu0 0.0
      %7233 = vmatprep.subr.mxu0 0.0
      %7234 = vmatpush1.msra.mxu0 0.0
      %7235 = vmatprep.subr.mxu0 0.0
      %7236 = vmatpush1.msra.mxu0 0.0
      %7237 = vmatprep.subr.mxu0 0.0
      %7238 = vmatpush1.msra.mxu0 0.0
      %7239 = vmatprep.subr.mxu0 0.0
      %7240 = vmatpush1.msra.mxu0 0.0
      %7241 = vmatprep.subr.mxu0 0.0
      %7242 = vmatpush1.msra.mxu0 0.0
      %7243 = vmatprep.subr.mxu0 0.0
      %7244 = vmatpush1.msra.mxu0 0.0
      %7245 = vmatprep.subr.mxu0 0.0
      %7246 = vmatpush1.msra.mxu0 0.0
      %7247 = vmatprep.subr.mxu0 0.0
      %7248 = vmatpush1.msra.mxu0 0.0
      %7249 = vmatprep.subr.mxu0 0.0
      %7250 = vmatpush1.msra.mxu0 0.0
      %7251 = vmatprep.subr.mxu0 0.0
      %7252 = vmatpush1.msra.mxu0 0.0
      %7253 = vmatprep.subr.mxu0 0.0
      %7254 = vmatpush1.msra.mxu0 0.0
      %7255 = vmatprep.subr.mxu0 0.0
      %7256 = vmatpush1.msra.mxu0 0.0
      %7257 = vmatprep.subr.mxu0 0.0
      %7258 = vmatpush1.msra.mxu0 0.0
      %7259 = vmatprep.subr.mxu0 0.0
      %7260 = vmatpush1.msra.mxu0 0.0
      %7261 = vmatprep.subr.mxu0 0.0
      %7262 = vmatpush1.msra.mxu0 0.0
      %7263 = vmatprep.subr.mxu0 0.0
      %7264 = vmatpush1.msra.mxu0 0.0
      %7265 = vmatprep.subr.mxu0 0.0
      %7266 = vmatpush1.msra.mxu0 0.0
      %7267 = vmatprep.subr.mxu0 0.0
      %7268 = vmatpush1.msra.mxu0 0.0
      %7269 = vmatprep.subr.mxu0 0.0
      %7270 = vmatpush1.msra.mxu0 0.0
      %7271 = vmatprep.subr.mxu0 0.0
      %7272 = vmatpush1.msra.mxu0 0.0
      %7273 = vmatprep.subr.mxu0 0.0
      %7274 = vmatpush1.msra.mxu0 0.0
      %7275 = vmatprep.subr.mxu0 0.0
      %7276 = vmatpush1.msra.mxu0 0.0
      %7277 = vmatprep.subr.mxu0 0.0
      %7278 = vmatpush1.msra.mxu0 0.0
      %7279 = vmatprep.subr.mxu0 0.0
      %7280 = vmatpush1.msra.mxu0 0.0
      %7281 = vmatprep.mubr.f32.mxu0 0.0
      %7282 = vmatmul.mubr.f32.gmra.mrb[0].mxu0 %v7209
      %v7283 = vpop.f32.mrb[0].mxu0
      %v7284 = vadd.f32 0.0, %v7283
      %v7285 = vpop.f32.mrb[0].mxu0
      %7286 = vmatprep.mubr.f32.mxu0 0.0
      %7287 = vmatmul.mubr.f32.gmra.mrb[0].mxu0 %v7211
      %v7288 = vpop.f32.mrb[0].mxu0
      %v7289 = vadd.f32 0.0, %v7288
      %v7290 = vpop.f32.mrb[0].mxu0
      %7291 = vmatprep.mubr.f32.mxu0 0.0
      %7292 = vmatmul.mubr.f32.gmra.mrb[0].mxu0 %v7213
      %v7293 = vpop.f32.mrb[0].mxu0
      %v7294 = vadd.f32 0.0, %v7293
      %v7295 = vpop.f32.mrb[0].mxu0
      %7296 = vmatprep.mubr.f32.mxu0 0.0
      %7297 = vmatmul.mubr.f32.gmra.mrb[0].mxu0 %v7215
      %v7298 = vpop.f32.mrb[0].mxu0
      %v7299 = vadd.f32 0.0, %v7298
      %v7300 = vpop.f32.mrb[0].mxu0
      %7301 = vdwg.mxu0
      %s7302 = scalar_lea.vmem %s13, 608
      %v7303 = vld [vmem:[%s7302] sm:$0xff]
      %v7304 = vld [vmem:[%s7302 + $0x8] sm:$0xff]
      %v7305 = vld [vmem:[%s7302 + $0x10] sm:$0xff]
      %v7306 = vld [vmem:[%s7302 + $0x18] sm:$0x7]
      %7308 = vset.pattern.permute.xlu0 0
      %7309 = vperm.xlu0 %7308, %v7303
      %v7310 = vpop.permute.xlu0 %7309
      %7313 = vset.pattern.permute.xlu0 0
      %7314 = vperm.xlu0 %7313, %v7304
      %v7315 = vpop.permute.xlu0 %7314
      %7318 = vset.pattern.permute.xlu0 0
      %7319 = vperm.xlu0 %7318, %v7305
      %v7320 = vpop.permute.xlu0 %7319
      %7323 = vset.pattern.permute.xlu0 0
      %7324 = vperm.xlu0 %7323, %v7306
      %v7325 = vpop.permute.xlu0 %7324
      %v7327 = vmul.f32 %v7284, %v7310
      %v7328 = vmul.f32 %v7289, %v7315
      %v7329 = vmul.f32 %v7294, %v7320
      %v7330 = vmul.f32 %v7299, %v7325
      %s7331 = scalar_lea.vmem %s14, 608
      %v7332 = vld [vmem:[%s7331] sm:$0xff]
      %v7333 = vld [vmem:[%s7331 + $0x8] sm:$0xff]
      %v7334 = vld [vmem:[%s7331 + $0x10] sm:$0xff]
      %v7335 = vld [vmem:[%s7331 + $0x18] sm:$0x7]
      %v7336 = vadd.f32 %v7327, %v7332
      %v7337 = vadd.f32 %v7328, %v7333
      %v7338 = vadd.f32 %v7329, %v7334
      %v7339 = vadd.f32 %v7330, %v7335
      %s7340 = scalar_lea.vmem %s531, 608
      %7341 = vst.msk [vmem:[%s7340] sm:$0xff] %vm598, %v7336
      %7342 = vst.msk [vmem:[%s7340 + $0x8] sm:$0xff] %vm598, %v7337
      %7343 = vst.msk [vmem:[%s7340 + $0x10] sm:$0xff] %vm598, %v7338
      %7344 = vst.msk [vmem:[%s7340 + $0x18] sm:$0x7] %vm1122, %v7339
      %7345 = vrot.lane.b32.xlu0 %v4456, 96
      %v7346 = vpop.permute.xlu0 %7345
      %7347 = vrot.lane.b32.xlu0 %v4462, 96
      %v7348 = vpop.permute.xlu0 %7347
      %7349 = vrot.lane.b32.xlu0 %v4468, 96
      %v7350 = vpop.permute.xlu0 %7349
      %7351 = vrot.lane.b32.xlu0 %v4474, 96
      %v7352 = vpop.permute.xlu0 %7351
      %v7353 = vsel %vm1782, %v7346, 0
      %v7355 = vsel %vm1782, %v7348, 0
      %v7357 = vsel %vm1782, %v7350, 0
      %v7359 = vsel %vm1782, %v7352, 0
      %7361 = vmatprep.subr.mxu0 0.0
      %7362 = vmatpush1.msra.mxu0 %v2962
      %7363 = vmatprep.subr.mxu0 0.0
      %7364 = vmatpush1.msra.mxu0 0.0
      %7365 = vmatprep.subr.mxu0 0.0
      %7366 = vmatpush1.msra.mxu0 0.0
      %7367 = vmatprep.subr.mxu0 0.0
      %7368 = vmatpush1.msra.mxu0 0.0
      %7369 = vmatprep.subr.mxu0 0.0
      %7370 = vmatpush1.msra.mxu0 0.0
      %7371 = vmatprep.subr.mxu0 0.0
      %7372 = vmatpush1.msra.mxu0 0.0
      %7373 = vmatprep.subr.mxu0 0.0
      %7374 = vmatpush1.msra.mxu0 0.0
      %7375 = vmatprep.subr.mxu0 0.0
      %7376 = vmatpush1.msra.mxu0 0.0
      %7377 = vmatprep.subr.mxu0 0.0
      %7378 = vmatpush1.msra.mxu0 0.0
      %7379 = vmatprep.subr.mxu0 0.0
      %7380 = vmatpush1.msra.mxu0 0.0
      %7381 = vmatprep.subr.mxu0 0.0
      %7382 = vmatpush1.msra.mxu0 0.0
      %7383 = vmatprep.subr.mxu0 0.0
      %7384 = vmatpush1.msra.mxu0 0.0
      %7385 = vmatprep.subr.mxu0 0.0
      %7386 = vmatpush1.msra.mxu0 0.0
      %7387 = vmatprep.subr.mxu0 0.0
      %7388 = vmatpush1.msra.mxu0 0.0
      %7389 = vmatprep.subr.mxu0 0.0
      %7390 = vmatpush1.msra.mxu0 0.0
      %7391 = vmatprep.subr.mxu0 0.0
      %7392 = vmatpush1.msra.mxu0 0.0
      %7393 = vmatprep.subr.mxu0 0.0
      %7394 = vmatpush1.msra.mxu0 0.0
      %7395 = vmatprep.subr.mxu0 0.0
      %7396 = vmatpush1.msra.mxu0 0.0
      %7397 = vmatprep.subr.mxu0 0.0
      %7398 = vmatpush1.msra.mxu0 0.0
      %7399 = vmatprep.subr.mxu0 0.0
      %7400 = vmatpush1.msra.mxu0 0.0
      %7401 = vmatprep.subr.mxu0 0.0
      %7402 = vmatpush1.msra.mxu0 0.0
      %7403 = vmatprep.subr.mxu0 0.0
      %7404 = vmatpush1.msra.mxu0 0.0
      %7405 = vmatprep.subr.mxu0 0.0
      %7406 = vmatpush1.msra.mxu0 0.0
      %7407 = vmatprep.subr.mxu0 0.0
      %7408 = vmatpush1.msra.mxu0 0.0
      %7409 = vmatprep.subr.mxu0 0.0
      %7410 = vmatpush1.msra.mxu0 0.0
      %7411 = vmatprep.subr.mxu0 0.0
      %7412 = vmatpush1.msra.mxu0 0.0
      %7413 = vmatprep.subr.mxu0 0.0
      %7414 = vmatpush1.msra.mxu0 0.0
      %7415 = vmatprep.subr.mxu0 0.0
      %7416 = vmatpush1.msra.mxu0 0.0
      %7417 = vmatprep.subr.mxu0 0.0
      %7418 = vmatpush1.msra.mxu0 0.0
      %7419 = vmatprep.subr.mxu0 0.0
      %7420 = vmatpush1.msra.mxu0 0.0
      %7421 = vmatprep.subr.mxu0 0.0
      %7422 = vmatpush1.msra.mxu0 0.0
      %7423 = vmatprep.subr.mxu0 0.0
      %7424 = vmatpush1.msra.mxu0 0.0
      %7425 = vmatprep.mubr.f32.mxu0 0.0
      %7426 = vmatmul.mubr.f32.gmra.mrb[0].mxu0 %v7353
      %v7427 = vpop.f32.mrb[0].mxu0
      %v7428 = vadd.f32 0.0, %v7427
      %v7429 = vpop.f32.mrb[0].mxu0
      %7430 = vmatprep.mubr.f32.mxu0 0.0
      %7431 = vmatmul.mubr.f32.gmra.mrb[0].mxu0 %v7355
      %v7432 = vpop.f32.mrb[0].mxu0
      %v7433 = vadd.f32 0.0, %v7432
      %v7434 = vpop.f32.mrb[0].mxu0
      %7435 = vmatprep.mubr.f32.mxu0 0.0
      %7436 = vmatmul.mubr.f32.gmra.mrb[0].mxu0 %v7357
      %v7437 = vpop.f32.mrb[0].mxu0
      %v7438 = vadd.f32 0.0, %v7437
      %v7439 = vpop.f32.mrb[0].mxu0
      %7440 = vmatprep.mubr.f32.mxu0 0.0
      %7441 = vmatmul.mubr.f32.gmra.mrb[0].mxu0 %v7359
      %v7442 = vpop.f32.mrb[0].mxu0
      %v7443 = vadd.f32 0.0, %v7442
      %v7444 = vpop.f32.mrb[0].mxu0
      %7445 = vdwg.mxu0
      %s7446 = scalar_lea.vmem %s13, 640
      %v7447 = vld [vmem:[%s7446] sm:$0xff]
      %v7448 = vld [vmem:[%s7446 + $0x8] sm:$0xff]
      %v7449 = vld [vmem:[%s7446 + $0x10] sm:$0xff]
      %v7450 = vld [vmem:[%s7446 + $0x18] sm:$0x7]
      %7452 = vset.pattern.permute.xlu0 0
      %7453 = vperm.xlu0 %7452, %v7447
      %v7454 = vpop.permute.xlu0 %7453
      %7457 = vset.pattern.permute.xlu0 0
      %7458 = vperm.xlu0 %7457, %v7448
      %v7459 = vpop.permute.xlu0 %7458
      %7462 = vset.pattern.permute.xlu0 0
      %7463 = vperm.xlu0 %7462, %v7449
      %v7464 = vpop.permute.xlu0 %7463
      %7467 = vset.pattern.permute.xlu0 0
      %7468 = vperm.xlu0 %7467, %v7450
      %v7469 = vpop.permute.xlu0 %7468
      %v7471 = vmul.f32 %v7428, %v7454
      %v7472 = vmul.f32 %v7433, %v7459
      %v7473 = vmul.f32 %v7438, %v7464
      %v7474 = vmul.f32 %v7443, %v7469
      %s7475 = scalar_lea.vmem %s14, 640
      %v7476 = vld [vmem:[%s7475] sm:$0xff]
      %v7477 = vld [vmem:[%s7475 + $0x8] sm:$0xff]
      %v7478 = vld [vmem:[%s7475 + $0x10] sm:$0xff]
      %v7479 = vld [vmem:[%s7475 + $0x18] sm:$0x7]
      %v7480 = vadd.f32 %v7471, %v7476
      %v7481 = vadd.f32 %v7472, %v7477
      %v7482 = vadd.f32 %v7473, %v7478
      %v7483 = vadd.f32 %v7474, %v7479
      %s7484 = scalar_lea.vmem %s531, 640
      %7485 = vst.msk [vmem:[%s7484] sm:$0xff] %vm598, %v7480
      %7486 = vst.msk [vmem:[%s7484 + $0x8] sm:$0xff] %vm598, %v7481
      %7487 = vst.msk [vmem:[%s7484 + $0x10] sm:$0xff] %vm598, %v7482
      %7488 = vst.msk [vmem:[%s7484 + $0x18] sm:$0x7] %vm1122, %v7483
      %7489 = vrot.lane.b32.xlu0 %v4456, 88
      %v7490 = vpop.permute.xlu0 %7489
      %7491 = vrot.lane.b32.xlu0 %v4462, 88
      %v7492 = vpop.permute.xlu0 %7491
      %7493 = vrot.lane.b32.xlu0 %v4468, 88
      %v7494 = vpop.permute.xlu0 %7493
      %7495 = vrot.lane.b32.xlu0 %v4474, 88
      %v7496 = vpop.permute.xlu0 %7495
      %v7497 = vsel %vm1782, %v7490, 0
      %v7499 = vsel %vm1782, %v7492, 0
      %v7501 = vsel %vm1782, %v7494, 0
      %v7503 = vsel %vm1782, %v7496, 0
      %7505 = vmatprep.subr.mxu0 0.0
      %7506 = vmatpush1.msra.mxu0 %v2967
      %7507 = vmatprep.subr.mxu0 0.0
      %7508 = vmatpush1.msra.mxu0 0.0
      %7509 = vmatprep.subr.mxu0 0.0
      %7510 = vmatpush1.msra.mxu0 0.0
      %7511 = vmatprep.subr.mxu0 0.0
      %7512 = vmatpush1.msra.mxu0 0.0
      %7513 = vmatprep.subr.mxu0 0.0
      %7514 = vmatpush1.msra.mxu0 0.0
      %7515 = vmatprep.subr.mxu0 0.0
      %7516 = vmatpush1.msra.mxu0 0.0
      %7517 = vmatprep.subr.mxu0 0.0
      %7518 = vmatpush1.msra.mxu0 0.0
      %7519 = vmatprep.subr.mxu0 0.0
      %7520 = vmatpush1.msra.mxu0 0.0
      %7521 = vmatprep.subr.mxu0 0.0
      %7522 = vmatpush1.msra.mxu0 0.0
      %7523 = vmatprep.subr.mxu0 0.0
      %7524 = vmatpush1.msra.mxu0 0.0
      %7525 = vmatprep.subr.mxu0 0.0
      %7526 = vmatpush1.msra.mxu0 0.0
      %7527 = vmatprep.subr.mxu0 0.0
      %7528 = vmatpush1.msra.mxu0 0.0
      %7529 = vmatprep.subr.mxu0 0.0
      %7530 = vmatpush1.msra.mxu0 0.0
      %7531 = vmatprep.subr.mxu0 0.0
      %7532 = vmatpush1.msra.mxu0 0.0
      %7533 = vmatprep.subr.mxu0 0.0
      %7534 = vmatpush1.msra.mxu0 0.0
      %7535 = vmatprep.subr.mxu0 0.0
      %7536 = vmatpush1.msra.mxu0 0.0
      %7537 = vmatprep.subr.mxu0 0.0
      %7538 = vmatpush1.msra.mxu0 0.0
      %7539 = vmatprep.subr.mxu0 0.0
      %7540 = vmatpush1.msra.mxu0 0.0
      %7541 = vmatprep.subr.mxu0 0.0
      %7542 = vmatpush1.msra.mxu0 0.0
      %7543 = vmatprep.subr.mxu0 0.0
      %7544 = vmatpush1.msra.mxu0 0.0
      %7545 = vmatprep.subr.mxu0 0.0
      %7546 = vmatpush1.msra.mxu0 0.0
      %7547 = vmatprep.subr.mxu0 0.0
      %7548 = vmatpush1.msra.mxu0 0.0
      %7549 = vmatprep.subr.mxu0 0.0
      %7550 = vmatpush1.msra.mxu0 0.0
      %7551 = vmatprep.subr.mxu0 0.0
      %7552 = vmatpush1.msra.mxu0 0.0
      %7553 = vmatprep.subr.mxu0 0.0
      %7554 = vmatpush1.msra.mxu0 0.0
      %7555 = vmatprep.subr.mxu0 0.0
      %7556 = vmatpush1.msra.mxu0 0.0
      %7557 = vmatprep.subr.mxu0 0.0
      %7558 = vmatpush1.msra.mxu0 0.0
      %7559 = vmatprep.subr.mxu0 0.0
      %7560 = vmatpush1.msra.mxu0 0.0
      %7561 = vmatprep.subr.mxu0 0.0
      %7562 = vmatpush1.msra.mxu0 0.0
      %7563 = vmatprep.subr.mxu0 0.0
      %7564 = vmatpush1.msra.mxu0 0.0
      %7565 = vmatprep.subr.mxu0 0.0
      %7566 = vmatpush1.msra.mxu0 0.0
      %7567 = vmatprep.subr.mxu0 0.0
      %7568 = vmatpush1.msra.mxu0 0.0
      %7569 = vmatprep.mubr.f32.mxu0 0.0
      %7570 = vmatmul.mubr.f32.gmra.mrb[0].mxu0 %v7497
      %v7571 = vpop.f32.mrb[0].mxu0
      %v7572 = vadd.f32 0.0, %v7571
      %v7573 = vpop.f32.mrb[0].mxu0
      %7574 = vmatprep.mubr.f32.mxu0 0.0
      %7575 = vmatmul.mubr.f32.gmra.mrb[0].mxu0 %v7499
      %v7576 = vpop.f32.mrb[0].mxu0
      %v7577 = vadd.f32 0.0, %v7576
      %v7578 = vpop.f32.mrb[0].mxu0
      %7579 = vmatprep.mubr.f32.mxu0 0.0
      %7580 = vmatmul.mubr.f32.gmra.mrb[0].mxu0 %v7501
      %v7581 = vpop.f32.mrb[0].mxu0
      %v7582 = vadd.f32 0.0, %v7581
      %v7583 = vpop.f32.mrb[0].mxu0
      %7584 = vmatprep.mubr.f32.mxu0 0.0
      %7585 = vmatmul.mubr.f32.gmra.mrb[0].mxu0 %v7503
      %v7586 = vpop.f32.mrb[0].mxu0
      %v7587 = vadd.f32 0.0, %v7586
      %v7588 = vpop.f32.mrb[0].mxu0
      %7589 = vdwg.mxu0
      %s7590 = scalar_lea.vmem %s13, 672
      %v7591 = vld [vmem:[%s7590] sm:$0xff]
      %v7592 = vld [vmem:[%s7590 + $0x8] sm:$0xff]
      %v7593 = vld [vmem:[%s7590 + $0x10] sm:$0xff]
      %v7594 = vld [vmem:[%s7590 + $0x18] sm:$0x7]
      %7596 = vset.pattern.permute.xlu0 0
      %7597 = vperm.xlu0 %7596, %v7591
      %v7598 = vpop.permute.xlu0 %7597
      %7601 = vset.pattern.permute.xlu0 0
      %7602 = vperm.xlu0 %7601, %v7592
      %v7603 = vpop.permute.xlu0 %7602
      %7606 = vset.pattern.permute.xlu0 0
      %7607 = vperm.xlu0 %7606, %v7593
      %v7608 = vpop.permute.xlu0 %7607
      %7611 = vset.pattern.permute.xlu0 0
      %7612 = vperm.xlu0 %7611, %v7594
      %v7613 = vpop.permute.xlu0 %7612
      %v7615 = vmul.f32 %v7572, %v7598
      %v7616 = vmul.f32 %v7577, %v7603
      %v7617 = vmul.f32 %v7582, %v7608
      %v7618 = vmul.f32 %v7587, %v7613
      %s7619 = scalar_lea.vmem %s14, 672
      %v7620 = vld [vmem:[%s7619] sm:$0xff]
      %v7621 = vld [vmem:[%s7619 + $0x8] sm:$0xff]
      %v7622 = vld [vmem:[%s7619 + $0x10] sm:$0xff]
      %v7623 = vld [vmem:[%s7619 + $0x18] sm:$0x7]
      %v7624 = vadd.f32 %v7615, %v7620
      %v7625 = vadd.f32 %v7616, %v7621
      %v7626 = vadd.f32 %v7617, %v7622
      %v7627 = vadd.f32 %v7618, %v7623
      %s7628 = scalar_lea.vmem %s531, 672
      %7629 = vst.msk [vmem:[%s7628] sm:$0xff] %vm598, %v7624
      %7630 = vst.msk [vmem:[%s7628 + $0x8] sm:$0xff] %vm598, %v7625
      %7631 = vst.msk [vmem:[%s7628 + $0x10] sm:$0xff] %vm598, %v7626
      %7632 = vst.msk [vmem:[%s7628 + $0x18] sm:$0x7] %vm1122, %v7627
      %7633 = vrot.lane.b32.xlu0 %v4456, 80
      %v7634 = vpop.permute.xlu0 %7633
      %7635 = vrot.lane.b32.xlu0 %v4462, 80
      %v7636 = vpop.permute.xlu0 %7635
      %7637 = vrot.lane.b32.xlu0 %v4468, 80
      %v7638 = vpop.permute.xlu0 %7637
      %7639 = vrot.lane.b32.xlu0 %v4474, 80
      %v7640 = vpop.permute.xlu0 %7639
      %v7641 = vsel %vm1782, %v7634, 0
      %v7643 = vsel %vm1782, %v7636, 0
      %v7645 = vsel %vm1782, %v7638, 0
      %v7647 = vsel %vm1782, %v7640, 0
      %7649 = vmatprep.subr.mxu0 0.0
      %7650 = vmatpush1.msra.mxu0 %v2972
      %7651 = vmatprep.subr.mxu0 0.0
      %7652 = vmatpush1.msra.mxu0 0.0
      %7653 = vmatprep.subr.mxu0 0.0
      %7654 = vmatpush1.msra.mxu0 0.0
      %7655 = vmatprep.subr.mxu0 0.0
      %7656 = vmatpush1.msra.mxu0 0.0
      %7657 = vmatprep.subr.mxu0 0.0
      %7658 = vmatpush1.msra.mxu0 0.0
      %7659 = vmatprep.subr.mxu0 0.0
      %7660 = vmatpush1.msra.mxu0 0.0
      %7661 = vmatprep.subr.mxu0 0.0
      %7662 = vmatpush1.msra.mxu0 0.0
      %7663 = vmatprep.subr.mxu0 0.0
      %7664 = vmatpush1.msra.mxu0 0.0
      %7665 = vmatprep.subr.mxu0 0.0
      %7666 = vmatpush1.msra.mxu0 0.0
      %7667 = vmatprep.subr.mxu0 0.0
      %7668 = vmatpush1.msra.mxu0 0.0
      %7669 = vmatprep.subr.mxu0 0.0
      %7670 = vmatpush1.msra.mxu0 0.0
      %7671 = vmatprep.subr.mxu0 0.0
      %7672 = vmatpush1.msra.mxu0 0.0
      %7673 = vmatprep.subr.mxu0 0.0
      %7674 = vmatpush1.msra.mxu0 0.0
      %7675 = vmatprep.subr.mxu0 0.0
      %7676 = vmatpush1.msra.mxu0 0.0
      %7677 = vmatprep.subr.mxu0 0.0
      %7678 = vmatpush1.msra.mxu0 0.0
      %7679 = vmatprep.subr.mxu0 0.0
      %7680 = vmatpush1.msra.mxu0 0.0
      %7681 = vmatprep.subr.mxu0 0.0
      %7682 = vmatpush1.msra.mxu0 0.0
      %7683 = vmatprep.subr.mxu0 0.0
      %7684 = vmatpush1.msra.mxu0 0.0
      %7685 = vmatprep.subr.mxu0 0.0
      %7686 = vmatpush1.msra.mxu0 0.0
      %7687 = vmatprep.subr.mxu0 0.0
      %7688 = vmatpush1.msra.mxu0 0.0
      %7689 = vmatprep.subr.mxu0 0.0
      %7690 = vmatpush1.msra.mxu0 0.0
      %7691 = vmatprep.subr.mxu0 0.0
      %7692 = vmatpush1.msra.mxu0 0.0
      %7693 = vmatprep.subr.mxu0 0.0
      %7694 = vmatpush1.msra.mxu0 0.0
      %7695 = vmatprep.subr.mxu0 0.0
      %7696 = vmatpush1.msra.mxu0 0.0
      %7697 = vmatprep.subr.mxu0 0.0
      %7698 = vmatpush1.msra.mxu0 0.0
      %7699 = vmatprep.subr.mxu0 0.0
      %7700 = vmatpush1.msra.mxu0 0.0
      %7701 = vmatprep.subr.mxu0 0.0
      %7702 = vmatpush1.msra.mxu0 0.0
      %7703 = vmatprep.subr.mxu0 0.0
      %7704 = vmatpush1.msra.mxu0 0.0
      %7705 = vmatprep.subr.mxu0 0.0
      %7706 = vmatpush1.msra.mxu0 0.0
      %7707 = vmatprep.subr.mxu0 0.0
      %7708 = vmatpush1.msra.mxu0 0.0
      %7709 = vmatprep.subr.mxu0 0.0
      %7710 = vmatpush1.msra.mxu0 0.0
      %7711 = vmatprep.subr.mxu0 0.0
      %7712 = vmatpush1.msra.mxu0 0.0
      %7713 = vmatprep.mubr.f32.mxu0 0.0
      %7714 = vmatmul.mubr.f32.gmra.mrb[0].mxu0 %v7641
      %v7715 = vpop.f32.mrb[0].mxu0
      %v7716 = vadd.f32 0.0, %v7715
      %v7717 = vpop.f32.mrb[0].mxu0
      %7718 = vmatprep.mubr.f32.mxu0 0.0
      %7719 = vmatmul.mubr.f32.gmra.mrb[0].mxu0 %v7643
      %v7720 = vpop.f32.mrb[0].mxu0
      %v7721 = vadd.f32 0.0, %v7720
      %v7722 = vpop.f32.mrb[0].mxu0
      %7723 = vmatprep.mubr.f32.mxu0 0.0
      %7724 = vmatmul.mubr.f32.gmra.mrb[0].mxu0 %v7645
      %v7725 = vpop.f32.mrb[0].mxu0
      %v7726 = vadd.f32 0.0, %v7725
      %v7727 = vpop.f32.mrb[0].mxu0
      %7728 = vmatprep.mubr.f32.mxu0 0.0
      %7729 = vmatmul.mubr.f32.gmra.mrb[0].mxu0 %v7647
      %v7730 = vpop.f32.mrb[0].mxu0
      %v7731 = vadd.f32 0.0, %v7730
      %v7732 = vpop.f32.mrb[0].mxu0
      %7733 = vdwg.mxu0
      %s7734 = scalar_lea.vmem %s13, 704
      %v7735 = vld [vmem:[%s7734] sm:$0xff]
      %v7736 = vld [vmem:[%s7734 + $0x8] sm:$0xff]
      %v7737 = vld [vmem:[%s7734 + $0x10] sm:$0xff]
      %v7738 = vld [vmem:[%s7734 + $0x18] sm:$0x7]
      %7740 = vset.pattern.permute.xlu0 0
      %7741 = vperm.xlu0 %7740, %v7735
      %v7742 = vpop.permute.xlu0 %7741
      %7745 = vset.pattern.permute.xlu0 0
      %7746 = vperm.xlu0 %7745, %v7736
      %v7747 = vpop.permute.xlu0 %7746
      %7750 = vset.pattern.permute.xlu0 0
      %7751 = vperm.xlu0 %7750, %v7737
      %v7752 = vpop.permute.xlu0 %7751
      %7755 = vset.pattern.permute.xlu0 0
      %7756 = vperm.xlu0 %7755, %v7738
      %v7757 = vpop.permute.xlu0 %7756
      %v7759 = vmul.f32 %v7716, %v7742
      %v7760 = vmul.f32 %v7721, %v7747
      %v7761 = vmul.f32 %v7726, %v7752
      %v7762 = vmul.f32 %v7731, %v7757
      %s7763 = scalar_lea.vmem %s14, 704
      %v7764 = vld [vmem:[%s7763] sm:$0xff]
      %v7765 = vld [vmem:[%s7763 + $0x8] sm:$0xff]
      %v7766 = vld [vmem:[%s7763 + $0x10] sm:$0xff]
      %v7767 = vld [vmem:[%s7763 + $0x18] sm:$0x7]
      %v7768 = vadd.f32 %v7759, %v7764
      %v7769 = vadd.f32 %v7760, %v7765
      %v7770 = vadd.f32 %v7761, %v7766
      %v7771 = vadd.f32 %v7762, %v7767
      %s7772 = scalar_lea.vmem %s531, 704
      %7773 = vst.msk [vmem:[%s7772] sm:$0xff] %vm598, %v7768
      %7774 = vst.msk [vmem:[%s7772 + $0x8] sm:$0xff] %vm598, %v7769
      %7775 = vst.msk [vmem:[%s7772 + $0x10] sm:$0xff] %vm598, %v7770
      %7776 = vst.msk [vmem:[%s7772 + $0x18] sm:$0x7] %vm1122, %v7771
      %7777 = vrot.lane.b32.xlu0 %v4456, 72
      %v7778 = vpop.permute.xlu0 %7777
      %7779 = vrot.lane.b32.xlu0 %v4462, 72
      %v7780 = vpop.permute.xlu0 %7779
      %7781 = vrot.lane.b32.xlu0 %v4468, 72
      %v7782 = vpop.permute.xlu0 %7781
      %7783 = vrot.lane.b32.xlu0 %v4474, 72
      %v7784 = vpop.permute.xlu0 %7783
      %v7785 = vsel %vm1782, %v7778, 0
      %v7787 = vsel %vm1782, %v7780, 0
      %v7789 = vsel %vm1782, %v7782, 0
      %v7791 = vsel %vm1782, %v7784, 0
      %7793 = vmatprep.subr.mxu0 0.0
      %7794 = vmatpush1.msra.mxu0 %v2977
      %7795 = vmatprep.subr.mxu0 0.0
      %7796 = vmatpush1.msra.mxu0 0.0
      %7797 = vmatprep.subr.mxu0 0.0
      %7798 = vmatpush1.msra.mxu0 0.0
      %7799 = vmatprep.subr.mxu0 0.0
      %7800 = vmatpush1.msra.mxu0 0.0
      %7801 = vmatprep.subr.mxu0 0.0
      %7802 = vmatpush1.msra.mxu0 0.0
      %7803 = vmatprep.subr.mxu0 0.0
      %7804 = vmatpush1.msra.mxu0 0.0
      %7805 = vmatprep.subr.mxu0 0.0
      %7806 = vmatpush1.msra.mxu0 0.0
      %7807 = vmatprep.subr.mxu0 0.0
      %7808 = vmatpush1.msra.mxu0 0.0
      %7809 = vmatprep.subr.mxu0 0.0
      %7810 = vmatpush1.msra.mxu0 0.0
      %7811 = vmatprep.subr.mxu0 0.0
      %7812 = vmatpush1.msra.mxu0 0.0
      %7813 = vmatprep.subr.mxu0 0.0
      %7814 = vmatpush1.msra.mxu0 0.0
      %7815 = vmatprep.subr.mxu0 0.0
      %7816 = vmatpush1.msra.mxu0 0.0
      %7817 = vmatprep.subr.mxu0 0.0
      %7818 = vmatpush1.msra.mxu0 0.0
      %7819 = vmatprep.subr.mxu0 0.0
      %7820 = vmatpush1.msra.mxu0 0.0
      %7821 = vmatprep.subr.mxu0 0.0
      %7822 = vmatpush1.msra.mxu0 0.0
      %7823 = vmatprep.subr.mxu0 0.0
      %7824 = vmatpush1.msra.mxu0 0.0
      %7825 = vmatprep.subr.mxu0 0.0
      %7826 = vmatpush1.msra.mxu0 0.0
      %7827 = vmatprep.subr.mxu0 0.0
      %7828 = vmatpush1.msra.mxu0 0.0
      %7829 = vmatprep.subr.mxu0 0.0
      %7830 = vmatpush1.msra.mxu0 0.0
      %7831 = vmatprep.subr.mxu0 0.0
      %7832 = vmatpush1.msra.mxu0 0.0
      %7833 = vmatprep.subr.mxu0 0.0
      %7834 = vmatpush1.msra.mxu0 0.0
      %7835 = vmatprep.subr.mxu0 0.0
      %7836 = vmatpush1.msra.mxu0 0.0
      %7837 = vmatprep.subr.mxu0 0.0
      %7838 = vmatpush1.msra.mxu0 0.0
      %7839 = vmatprep.subr.mxu0 0.0
      %7840 = vmatpush1.msra.mxu0 0.0
      %7841 = vmatprep.subr.mxu0 0.0
      %7842 = vmatpush1.msra.mxu0 0.0
      %7843 = vmatprep.subr.mxu0 0.0
      %7844 = vmatpush1.msra.mxu0 0.0
      %7845 = vmatprep.subr.mxu0 0.0
      %7846 = vmatpush1.msra.mxu0 0.0
      %7847 = vmatprep.subr.mxu0 0.0
      %7848 = vmatpush1.msra.mxu0 0.0
      %7849 = vmatprep.subr.mxu0 0.0
      %7850 = vmatpush1.msra.mxu0 0.0
      %7851 = vmatprep.subr.mxu0 0.0
      %7852 = vmatpush1.msra.mxu0 0.0
      %7853 = vmatprep.subr.mxu0 0.0
      %7854 = vmatpush1.msra.mxu0 0.0
      %7855 = vmatprep.subr.mxu0 0.0
      %7856 = vmatpush1.msra.mxu0 0.0
      %7857 = vmatprep.mubr.f32.mxu0 0.0
      %7858 = vmatmul.mubr.f32.gmra.mrb[0].mxu0 %v7785
      %v7859 = vpop.f32.mrb[0].mxu0
      %v7860 = vadd.f32 0.0, %v7859
      %v7861 = vpop.f32.mrb[0].mxu0
      %7862 = vmatprep.mubr.f32.mxu0 0.0
      %7863 = vmatmul.mubr.f32.gmra.mrb[0].mxu0 %v7787
      %v7864 = vpop.f32.mrb[0].mxu0
      %v7865 = vadd.f32 0.0, %v7864
      %v7866 = vpop.f32.mrb[0].mxu0
      %7867 = vmatprep.mubr.f32.mxu0 0.0
      %7868 = vmatmul.mubr.f32.gmra.mrb[0].mxu0 %v7789
      %v7869 = vpop.f32.mrb[0].mxu0
      %v7870 = vadd.f32 0.0, %v7869
      %v7871 = vpop.f32.mrb[0].mxu0
      %7872 = vmatprep.mubr.f32.mxu0 0.0
      %7873 = vmatmul.mubr.f32.gmra.mrb[0].mxu0 %v7791
      %v7874 = vpop.f32.mrb[0].mxu0
      %v7875 = vadd.f32 0.0, %v7874
      %v7876 = vpop.f32.mrb[0].mxu0
      %7877 = vdwg.mxu0
      %s7878 = scalar_lea.vmem %s13, 736
      %v7879 = vld [vmem:[%s7878] sm:$0xff]
      %v7880 = vld [vmem:[%s7878 + $0x8] sm:$0xff]
      %v7881 = vld [vmem:[%s7878 + $0x10] sm:$0xff]
      %v7882 = vld [vmem:[%s7878 + $0x18] sm:$0x7]
      %7884 = vset.pattern.permute.xlu0 0
      %7885 = vperm.xlu0 %7884, %v7879
      %v7886 = vpop.permute.xlu0 %7885
      %7889 = vset.pattern.permute.xlu0 0
      %7890 = vperm.xlu0 %7889, %v7880
      %v7891 = vpop.permute.xlu0 %7890
      %7894 = vset.pattern.permute.xlu0 0
      %7895 = vperm.xlu0 %7894, %v7881
      %v7896 = vpop.permute.xlu0 %7895
      %7899 = vset.pattern.permute.xlu0 0
      %7900 = vperm.xlu0 %7899, %v7882
      %v7901 = vpop.permute.xlu0 %7900
      %v7903 = vmul.f32 %v7860, %v7886
      %v7904 = vmul.f32 %v7865, %v7891
      %v7905 = vmul.f32 %v7870, %v7896
      %v7906 = vmul.f32 %v7875, %v7901
      %s7907 = scalar_lea.vmem %s14, 736
      %v7908 = vld [vmem:[%s7907] sm:$0xff]
      %v7909 = vld [vmem:[%s7907 + $0x8] sm:$0xff]
      %v7910 = vld [vmem:[%s7907 + $0x10] sm:$0xff]
      %v7911 = vld [vmem:[%s7907 + $0x18] sm:$0x7]
      %v7912 = vadd.f32 %v7903, %v7908
      %v7913 = vadd.f32 %v7904, %v7909
      %v7914 = vadd.f32 %v7905, %v7910
      %v7915 = vadd.f32 %v7906, %v7911
      %s7916 = scalar_lea.vmem %s531, 736
      %7917 = vst.msk [vmem:[%s7916] sm:$0xff] %vm598, %v7912
      %7918 = vst.msk [vmem:[%s7916 + $0x8] sm:$0xff] %vm598, %v7913
      %7919 = vst.msk [vmem:[%s7916 + $0x10] sm:$0xff] %vm598, %v7914
      %7920 = vst.msk [vmem:[%s7916 + $0x18] sm:$0x7] %vm1122, %v7915
      %7921 = vrot.lane.b32.xlu0 %v4456, 64
      %v7922 = vpop.permute.xlu0 %7921
      %7923 = vrot.lane.b32.xlu0 %v4462, 64
      %v7924 = vpop.permute.xlu0 %7923
      %7925 = vrot.lane.b32.xlu0 %v4468, 64
      %v7926 = vpop.permute.xlu0 %7925
      %7927 = vrot.lane.b32.xlu0 %v4474, 64
      %v7928 = vpop.permute.xlu0 %7927
      %v7929 = vsel %vm1782, %v7922, 0
      %v7931 = vsel %vm1782, %v7924, 0
      %v7933 = vsel %vm1782, %v7926, 0
      %v7935 = vsel %vm1782, %v7928, 0
      %7937 = vmatprep.subr.mxu0 0.0
      %7938 = vmatpush1.msra.mxu0 %v2982
      %7939 = vmatprep.subr.mxu0 0.0
      %7940 = vmatpush1.msra.mxu0 0.0
      %7941 = vmatprep.subr.mxu0 0.0
      %7942 = vmatpush1.msra.mxu0 0.0
      %7943 = vmatprep.subr.mxu0 0.0
      %7944 = vmatpush1.msra.mxu0 0.0
      %7945 = vmatprep.subr.mxu0 0.0
      %7946 = vmatpush1.msra.mxu0 0.0
      %7947 = vmatprep.subr.mxu0 0.0
      %7948 = vmatpush1.msra.mxu0 0.0
      %7949 = vmatprep.subr.mxu0 0.0
      %7950 = vmatpush1.msra.mxu0 0.0
      %7951 = vmatprep.subr.mxu0 0.0
      %7952 = vmatpush1.msra.mxu0 0.0
      %7953 = vmatprep.subr.mxu0 0.0
      %7954 = vmatpush1.msra.mxu0 0.0
      %7955 = vmatprep.subr.mxu0 0.0
      %7956 = vmatpush1.msra.mxu0 0.0
      %7957 = vmatprep.subr.mxu0 0.0
      %7958 = vmatpush1.msra.mxu0 0.0
      %7959 = vmatprep.subr.mxu0 0.0
      %7960 = vmatpush1.msra.mxu0 0.0
      %7961 = vmatprep.subr.mxu0 0.0
      %7962 = vmatpush1.msra.mxu0 0.0
      %7963 = vmatprep.subr.mxu0 0.0
      %7964 = vmatpush1.msra.mxu0 0.0
      %7965 = vmatprep.subr.mxu0 0.0
      %7966 = vmatpush1.msra.mxu0 0.0
      %7967 = vmatprep.subr.mxu0 0.0
      %7968 = vmatpush1.msra.mxu0 0.0
      %7969 = vmatprep.subr.mxu0 0.0
      %7970 = vmatpush1.msra.mxu0 0.0
      %7971 = vmatprep.subr.mxu0 0.0
      %7972 = vmatpush1.msra.mxu0 0.0
      %7973 = vmatprep.subr.mxu0 0.0
      %7974 = vmatpush1.msra.mxu0 0.0
      %7975 = vmatprep.subr.mxu0 0.0
      %7976 = vmatpush1.msra.mxu0 0.0
      %7977 = vmatprep.subr.mxu0 0.0
      %7978 = vmatpush1.msra.mxu0 0.0
      %7979 = vmatprep.subr.mxu0 0.0
      %7980 = vmatpush1.msra.mxu0 0.0
      %7981 = vmatprep.subr.mxu0 0.0
      %7982 = vmatpush1.msra.mxu0 0.0
      %7983 = vmatprep.subr.mxu0 0.0
      %7984 = vmatpush1.msra.mxu0 0.0
      %7985 = vmatprep.subr.mxu0 0.0
      %7986 = vmatpush1.msra.mxu0 0.0
      %7987 = vmatprep.subr.mxu0 0.0
      %7988 = vmatpush1.msra.mxu0 0.0
      %7989 = vmatprep.subr.mxu0 0.0
      %7990 = vmatpush1.msra.mxu0 0.0
      %7991 = vmatprep.subr.mxu0 0.0
      %7992 = vmatpush1.msra.mxu0 0.0
      %7993 = vmatprep.subr.mxu0 0.0
      %7994 = vmatpush1.msra.mxu0 0.0
      %7995 = vmatprep.subr.mxu0 0.0
      %7996 = vmatpush1.msra.mxu0 0.0
      %7997 = vmatprep.subr.mxu0 0.0
      %7998 = vmatpush1.msra.mxu0 0.0
      %7999 = vmatprep.subr.mxu0 0.0
      %8000 = vmatpush1.msra.mxu0 0.0
      %8001 = vmatprep.mubr.f32.mxu0 0.0
      %8002 = vmatmul.mubr.f32.gmra.mrb[0].mxu0 %v7929
      %v8003 = vpop.f32.mrb[0].mxu0
      %v8004 = vadd.f32 0.0, %v8003
      %v8005 = vpop.f32.mrb[0].mxu0
      %8006 = vmatprep.mubr.f32.mxu0 0.0
      %8007 = vmatmul.mubr.f32.gmra.mrb[0].mxu0 %v7931
      %v8008 = vpop.f32.mrb[0].mxu0
      %v8009 = vadd.f32 0.0, %v8008
      %v8010 = vpop.f32.mrb[0].mxu0
      %8011 = vmatprep.mubr.f32.mxu0 0.0
      %8012 = vmatmul.mubr.f32.gmra.mrb[0].mxu0 %v7933
      %v8013 = vpop.f32.mrb[0].mxu0
      %v8014 = vadd.f32 0.0, %v8013
      %v8015 = vpop.f32.mrb[0].mxu0
      %8016 = vmatprep.mubr.f32.mxu0 0.0
      %8017 = vmatmul.mubr.f32.gmra.mrb[0].mxu0 %v7935
      %v8018 = vpop.f32.mrb[0].mxu0
      %v8019 = vadd.f32 0.0, %v8018
      %v8020 = vpop.f32.mrb[0].mxu0
      %8021 = vdwg.mxu0
      %s8022 = scalar_lea.vmem %s13, 768
      %v8023 = vld [vmem:[%s8022] sm:$0xff]
      %v8024 = vld [vmem:[%s8022 + $0x8] sm:$0xff]
      %v8025 = vld [vmem:[%s8022 + $0x10] sm:$0xff]
      %v8026 = vld [vmem:[%s8022 + $0x18] sm:$0x7]
      %8028 = vset.pattern.permute.xlu0 0
      %8029 = vperm.xlu0 %8028, %v8023
      %v8030 = vpop.permute.xlu0 %8029
      %8033 = vset.pattern.permute.xlu0 0
      %8034 = vperm.xlu0 %8033, %v8024
      %v8035 = vpop.permute.xlu0 %8034
      %8038 = vset.pattern.permute.xlu0 0
      %8039 = vperm.xlu0 %8038, %v8025
      %v8040 = vpop.permute.xlu0 %8039
      %8043 = vset.pattern.permute.xlu0 0
      %8044 = vperm.xlu0 %8043, %v8026
      %v8045 = vpop.permute.xlu0 %8044
      %v8047 = vmul.f32 %v8004, %v8030
      %v8048 = vmul.f32 %v8009, %v8035
      %v8049 = vmul.f32 %v8014, %v8040
      %v8050 = vmul.f32 %v8019, %v8045
      %s8051 = scalar_lea.vmem %s14, 768
      %v8052 = vld [vmem:[%s8051] sm:$0xff]
      %v8053 = vld [vmem:[%s8051 + $0x8] sm:$0xff]
      %v8054 = vld [vmem:[%s8051 + $0x10] sm:$0xff]
      %v8055 = vld [vmem:[%s8051 + $0x18] sm:$0x7]
      %v8056 = vadd.f32 %v8047, %v8052
      %v8057 = vadd.f32 %v8048, %v8053
      %v8058 = vadd.f32 %v8049, %v8054
      %v8059 = vadd.f32 %v8050, %v8055
      %s8060 = scalar_lea.vmem %s531, 768
      %8061 = vst.msk [vmem:[%s8060] sm:$0xff] %vm598, %v8056
      %8062 = vst.msk [vmem:[%s8060 + $0x8] sm:$0xff] %vm598, %v8057
      %8063 = vst.msk [vmem:[%s8060 + $0x10] sm:$0xff] %vm598, %v8058
      %8064 = vst.msk [vmem:[%s8060 + $0x18] sm:$0x7] %vm1122, %v8059
      %8065 = vrot.lane.b32.xlu0 %v4456, 56
      %v8066 = vpop.permute.xlu0 %8065
      %8067 = vrot.lane.b32.xlu0 %v4462, 56
      %v8068 = vpop.permute.xlu0 %8067
      %8069 = vrot.lane.b32.xlu0 %v4468, 56
      %v8070 = vpop.permute.xlu0 %8069
      %8071 = vrot.lane.b32.xlu0 %v4474, 56
      %v8072 = vpop.permute.xlu0 %8071
      %v8073 = vsel %vm1782, %v8066, 0
      %v8075 = vsel %vm1782, %v8068, 0
      %v8077 = vsel %vm1782, %v8070, 0
      %v8079 = vsel %vm1782, %v8072, 0
      %8081 = vmatprep.subr.mxu0 0.0
      %8082 = vmatpush1.msra.mxu0 %v2987
      %8083 = vmatprep.subr.mxu0 0.0
      %8084 = vmatpush1.msra.mxu0 0.0
      %8085 = vmatprep.subr.mxu0 0.0
      %8086 = vmatpush1.msra.mxu0 0.0
      %8087 = vmatprep.subr.mxu0 0.0
      %8088 = vmatpush1.msra.mxu0 0.0
      %8089 = vmatprep.subr.mxu0 0.0
      %8090 = vmatpush1.msra.mxu0 0.0
      %8091 = vmatprep.subr.mxu0 0.0
      %8092 = vmatpush1.msra.mxu0 0.0
      %8093 = vmatprep.subr.mxu0 0.0
      %8094 = vmatpush1.msra.mxu0 0.0
      %8095 = vmatprep.subr.mxu0 0.0
      %8096 = vmatpush1.msra.mxu0 0.0
      %8097 = vmatprep.subr.mxu0 0.0
      %8098 = vmatpush1.msra.mxu0 0.0
      %8099 = vmatprep.subr.mxu0 0.0
      %8100 = vmatpush1.msra.mxu0 0.0
      %8101 = vmatprep.subr.mxu0 0.0
      %8102 = vmatpush1.msra.mxu0 0.0
      %8103 = vmatprep.subr.mxu0 0.0
      %8104 = vmatpush1.msra.mxu0 0.0
      %8105 = vmatprep.subr.mxu0 0.0
      %8106 = vmatpush1.msra.mxu0 0.0
      %8107 = vmatprep.subr.mxu0 0.0
      %8108 = vmatpush1.msra.mxu0 0.0
      %8109 = vmatprep.subr.mxu0 0.0
      %8110 = vmatpush1.msra.mxu0 0.0
      %8111 = vmatprep.subr.mxu0 0.0
      %8112 = vmatpush1.msra.mxu0 0.0
      %8113 = vmatprep.subr.mxu0 0.0
      %8114 = vmatpush1.msra.mxu0 0.0
      %8115 = vmatprep.subr.mxu0 0.0
      %8116 = vmatpush1.msra.mxu0 0.0
      %8117 = vmatprep.subr.mxu0 0.0
      %8118 = vmatpush1.msra.mxu0 0.0
      %8119 = vmatprep.subr.mxu0 0.0
      %8120 = vmatpush1.msra.mxu0 0.0
      %8121 = vmatprep.subr.mxu0 0.0
      %8122 = vmatpush1.msra.mxu0 0.0
      %8123 = vmatprep.subr.mxu0 0.0
      %8124 = vmatpush1.msra.mxu0 0.0
      %8125 = vmatprep.subr.mxu0 0.0
      %8126 = vmatpush1.msra.mxu0 0.0
      %8127 = vmatprep.subr.mxu0 0.0
      %8128 = vmatpush1.msra.mxu0 0.0
      %8129 = vmatprep.subr.mxu0 0.0
      %8130 = vmatpush1.msra.mxu0 0.0
      %8131 = vmatprep.subr.mxu0 0.0
      %8132 = vmatpush1.msra.mxu0 0.0
      %8133 = vmatprep.subr.mxu0 0.0
      %8134 = vmatpush1.msra.mxu0 0.0
      %8135 = vmatprep.subr.mxu0 0.0
      %8136 = vmatpush1.msra.mxu0 0.0
      %8137 = vmatprep.subr.mxu0 0.0
      %8138 = vmatpush1.msra.mxu0 0.0
      %8139 = vmatprep.subr.mxu0 0.0
      %8140 = vmatpush1.msra.mxu0 0.0
      %8141 = vmatprep.subr.mxu0 0.0
      %8142 = vmatpush1.msra.mxu0 0.0
      %8143 = vmatprep.subr.mxu0 0.0
      %8144 = vmatpush1.msra.mxu0 0.0
      %8145 = vmatprep.mubr.f32.mxu0 0.0
      %8146 = vmatmul.mubr.f32.gmra.mrb[0].mxu0 %v8073
      %v8147 = vpop.f32.mrb[0].mxu0
      %v8148 = vadd.f32 0.0, %v8147
      %v8149 = vpop.f32.mrb[0].mxu0
      %8150 = vmatprep.mubr.f32.mxu0 0.0
      %8151 = vmatmul.mubr.f32.gmra.mrb[0].mxu0 %v8075
      %v8152 = vpop.f32.mrb[0].mxu0
      %v8153 = vadd.f32 0.0, %v8152
      %v8154 = vpop.f32.mrb[0].mxu0
      %8155 = vmatprep.mubr.f32.mxu0 0.0
      %8156 = vmatmul.mubr.f32.gmra.mrb[0].mxu0 %v8077
      %v8157 = vpop.f32.mrb[0].mxu0
      %v8158 = vadd.f32 0.0, %v8157
      %v8159 = vpop.f32.mrb[0].mxu0
      %8160 = vmatprep.mubr.f32.mxu0 0.0
      %8161 = vmatmul.mubr.f32.gmra.mrb[0].mxu0 %v8079
      %v8162 = vpop.f32.mrb[0].mxu0
      %v8163 = vadd.f32 0.0, %v8162
      %v8164 = vpop.f32.mrb[0].mxu0
      %8165 = vdwg.mxu0
      %s8166 = scalar_lea.vmem %s13, 800
      %v8167 = vld [vmem:[%s8166] sm:$0xff]
      %v8168 = vld [vmem:[%s8166 + $0x8] sm:$0xff]
      %v8169 = vld [vmem:[%s8166 + $0x10] sm:$0xff]
      %v8170 = vld [vmem:[%s8166 + $0x18] sm:$0x7]
      %8172 = vset.pattern.permute.xlu0 0
      %8173 = vperm.xlu0 %8172, %v8167
      %v8174 = vpop.permute.xlu0 %8173
      %8177 = vset.pattern.permute.xlu0 0
      %8178 = vperm.xlu0 %8177, %v8168
      %v8179 = vpop.permute.xlu0 %8178
      %8182 = vset.pattern.permute.xlu0 0
      %8183 = vperm.xlu0 %8182, %v8169
      %v8184 = vpop.permute.xlu0 %8183
      %8187 = vset.pattern.permute.xlu0 0
      %8188 = vperm.xlu0 %8187, %v8170
      %v8189 = vpop.permute.xlu0 %8188
      %v8191 = vmul.f32 %v8148, %v8174
      %v8192 = vmul.f32 %v8153, %v8179
      %v8193 = vmul.f32 %v8158, %v8184
      %v8194 = vmul.f32 %v8163, %v8189
      %s8195 = scalar_lea.vmem %s14, 800
      %v8196 = vld [vmem:[%s8195] sm:$0xff]
      %v8197 = vld [vmem:[%s8195 + $0x8] sm:$0xff]
      %v8198 = vld [vmem:[%s8195 + $0x10] sm:$0xff]
      %v8199 = vld [vmem:[%s8195 + $0x18] sm:$0x7]
      %v8200 = vadd.f32 %v8191, %v8196
      %v8201 = vadd.f32 %v8192, %v8197
      %v8202 = vadd.f32 %v8193, %v8198
      %v8203 = vadd.f32 %v8194, %v8199
      %s8204 = scalar_lea.vmem %s531, 800
      %8205 = vst.msk [vmem:[%s8204] sm:$0xff] %vm598, %v8200
      %8206 = vst.msk [vmem:[%s8204 + $0x8] sm:$0xff] %vm598, %v8201
      %8207 = vst.msk [vmem:[%s8204 + $0x10] sm:$0xff] %vm598, %v8202
      %8208 = vst.msk [vmem:[%s8204 + $0x18] sm:$0x7] %vm1122, %v8203
      %8209 = vrot.lane.b32.xlu0 %v4456, 48
      %v8210 = vpop.permute.xlu0 %8209
      %8211 = vrot.lane.b32.xlu0 %v4462, 48
      %v8212 = vpop.permute.xlu0 %8211
      %8213 = vrot.lane.b32.xlu0 %v4468, 48
      %v8214 = vpop.permute.xlu0 %8213
      %8215 = vrot.lane.b32.xlu0 %v4474, 48
      %v8216 = vpop.permute.xlu0 %8215
      %v8217 = vsel %vm1782, %v8210, 0
      %v8219 = vsel %vm1782, %v8212, 0
      %v8221 = vsel %vm1782, %v8214, 0
      %v8223 = vsel %vm1782, %v8216, 0
      %8225 = vmatprep.subr.mxu0 0.0
      %8226 = vmatpush1.msra.mxu0 %v2992
      %8227 = vmatprep.subr.mxu0 0.0
      %8228 = vmatpush1.msra.mxu0 0.0
      %8229 = vmatprep.subr.mxu0 0.0
      %8230 = vmatpush1.msra.mxu0 0.0
      %8231 = vmatprep.subr.mxu0 0.0
      %8232 = vmatpush1.msra.mxu0 0.0
      %8233 = vmatprep.subr.mxu0 0.0
      %8234 = vmatpush1.msra.mxu0 0.0
      %8235 = vmatprep.subr.mxu0 0.0
      %8236 = vmatpush1.msra.mxu0 0.0
      %8237 = vmatprep.subr.mxu0 0.0
      %8238 = vmatpush1.msra.mxu0 0.0
      %8239 = vmatprep.subr.mxu0 0.0
      %8240 = vmatpush1.msra.mxu0 0.0
      %8241 = vmatprep.subr.mxu0 0.0
      %8242 = vmatpush1.msra.mxu0 0.0
      %8243 = vmatprep.subr.mxu0 0.0
      %8244 = vmatpush1.msra.mxu0 0.0
      %8245 = vmatprep.subr.mxu0 0.0
      %8246 = vmatpush1.msra.mxu0 0.0
      %8247 = vmatprep.subr.mxu0 0.0
      %8248 = vmatpush1.msra.mxu0 0.0
      %8249 = vmatprep.subr.mxu0 0.0
      %8250 = vmatpush1.msra.mxu0 0.0
      %8251 = vmatprep.subr.mxu0 0.0
      %8252 = vmatpush1.msra.mxu0 0.0
      %8253 = vmatprep.subr.mxu0 0.0
      %8254 = vmatpush1.msra.mxu0 0.0
      %8255 = vmatprep.subr.mxu0 0.0
      %8256 = vmatpush1.msra.mxu0 0.0
      %8257 = vmatprep.subr.mxu0 0.0
      %8258 = vmatpush1.msra.mxu0 0.0
      %8259 = vmatprep.subr.mxu0 0.0
      %8260 = vmatpush1.msra.mxu0 0.0
      %8261 = vmatprep.subr.mxu0 0.0
      %8262 = vmatpush1.msra.mxu0 0.0
      %8263 = vmatprep.subr.mxu0 0.0
      %8264 = vmatpush1.msra.mxu0 0.0
      %8265 = vmatprep.subr.mxu0 0.0
      %8266 = vmatpush1.msra.mxu0 0.0
      %8267 = vmatprep.subr.mxu0 0.0
      %8268 = vmatpush1.msra.mxu0 0.0
      %8269 = vmatprep.subr.mxu0 0.0
      %8270 = vmatpush1.msra.mxu0 0.0
      %8271 = vmatprep.subr.mxu0 0.0
      %8272 = vmatpush1.msra.mxu0 0.0
      %8273 = vmatprep.subr.mxu0 0.0
      %8274 = vmatpush1.msra.mxu0 0.0
      %8275 = vmatprep.subr.mxu0 0.0
      %8276 = vmatpush1.msra.mxu0 0.0
      %8277 = vmatprep.subr.mxu0 0.0
      %8278 = vmatpush1.msra.mxu0 0.0
      %8279 = vmatprep.subr.mxu0 0.0
      %8280 = vmatpush1.msra.mxu0 0.0
      %8281 = vmatprep.subr.mxu0 0.0
      %8282 = vmatpush1.msra.mxu0 0.0
      %8283 = vmatprep.subr.mxu0 0.0
      %8284 = vmatpush1.msra.mxu0 0.0
      %8285 = vmatprep.subr.mxu0 0.0
      %8286 = vmatpush1.msra.mxu0 0.0
      %8287 = vmatprep.subr.mxu0 0.0
      %8288 = vmatpush1.msra.mxu0 0.0
      %8289 = vmatprep.mubr.f32.mxu0 0.0
      %8290 = vmatmul.mubr.f32.gmra.mrb[0].mxu0 %v8217
      %v8291 = vpop.f32.mrb[0].mxu0
      %v8292 = vadd.f32 0.0, %v8291
      %v8293 = vpop.f32.mrb[0].mxu0
      %8294 = vmatprep.mubr.f32.mxu0 0.0
      %8295 = vmatmul.mubr.f32.gmra.mrb[0].mxu0 %v8219
      %v8296 = vpop.f32.mrb[0].mxu0
      %v8297 = vadd.f32 0.0, %v8296
      %v8298 = vpop.f32.mrb[0].mxu0
      %8299 = vmatprep.mubr.f32.mxu0 0.0
      %8300 = vmatmul.mubr.f32.gmra.mrb[0].mxu0 %v8221
      %v8301 = vpop.f32.mrb[0].mxu0
      %v8302 = vadd.f32 0.0, %v8301
      %v8303 = vpop.f32.mrb[0].mxu0
      %8304 = vmatprep.mubr.f32.mxu0 0.0
      %8305 = vmatmul.mubr.f32.gmra.mrb[0].mxu0 %v8223
      %v8306 = vpop.f32.mrb[0].mxu0
      %v8307 = vadd.f32 0.0, %v8306
      %v8308 = vpop.f32.mrb[0].mxu0
      %8309 = vdwg.mxu0
      %s8310 = scalar_lea.vmem %s13, 832
      %v8311 = vld [vmem:[%s8310] sm:$0xff]
      %v8312 = vld [vmem:[%s8310 + $0x8] sm:$0xff]
      %v8313 = vld [vmem:[%s8310 + $0x10] sm:$0xff]
      %v8314 = vld [vmem:[%s8310 + $0x18] sm:$0x7]
      %8316 = vset.pattern.permute.xlu0 0
      %8317 = vperm.xlu0 %8316, %v8311
      %v8318 = vpop.permute.xlu0 %8317
      %8321 = vset.pattern.permute.xlu0 0
      %8322 = vperm.xlu0 %8321, %v8312
      %v8323 = vpop.permute.xlu0 %8322
      %8326 = vset.pattern.permute.xlu0 0
      %8327 = vperm.xlu0 %8326, %v8313
      %v8328 = vpop.permute.xlu0 %8327
      %8331 = vset.pattern.permute.xlu0 0
      %8332 = vperm.xlu0 %8331, %v8314
      %v8333 = vpop.permute.xlu0 %8332
      %v8335 = vmul.f32 %v8292, %v8318
      %v8336 = vmul.f32 %v8297, %v8323
      %v8337 = vmul.f32 %v8302, %v8328
      %v8338 = vmul.f32 %v8307, %v8333
      %s8339 = scalar_lea.vmem %s14, 832
      %v8340 = vld [vmem:[%s8339] sm:$0xff]
      %v8341 = vld [vmem:[%s8339 + $0x8] sm:$0xff]
      %v8342 = vld [vmem:[%s8339 + $0x10] sm:$0xff]
      %v8343 = vld [vmem:[%s8339 + $0x18] sm:$0x7]
      %v8344 = vadd.f32 %v8335, %v8340
      %v8345 = vadd.f32 %v8336, %v8341
      %v8346 = vadd.f32 %v8337, %v8342
      %v8347 = vadd.f32 %v8338, %v8343
      %s8348 = scalar_lea.vmem %s531, 832
      %8349 = vst.msk [vmem:[%s8348] sm:$0xff] %vm598, %v8344
      %8350 = vst.msk [vmem:[%s8348 + $0x8] sm:$0xff] %vm598, %v8345
      %8351 = vst.msk [vmem:[%s8348 + $0x10] sm:$0xff] %vm598, %v8346
      %8352 = vst.msk [vmem:[%s8348 + $0x18] sm:$0x7] %vm1122, %v8347
      %p8353 = scmp.lt.s32.totalorder %s28, 1
      %s8354 = scalar_select %p8353, %s28, 1
      %s8355 = smul.addr %s8354, 4
      %s8356 = smul.addr %s8355, 8
      %s8357 = scalar_lea.vmem %s15, %s8356
      %p8358 = scmp.lt.s32.totalorder %s28, 1
      %s8359 = scalar_select %p8358, %s28, 1
      %s8360 = smul.addr %s8359, 108
      %s8361 = smul.addr %s8360, 8
      %s8362 = scalar_lea.vmem %s16, %s8361
      // Predicated region
      $region81: #{head_forward.1} parent=79 // pred_check
        %p8363 = pneg %p366
      $region82: #{head_forward.1} parent=79 // pred_check_branch
        %8365 = sbr.rel (%p8363) target = $region84
      $region83: #{head_forward.1} parent=79 // pred_region
        _
      $region84: #{head_forward.1} parent=79 // pred_fallthru
        _
      // Predicated region
      $region85: #{head_forward.1} parent=79 // pred_check
        %p8366 = pneg %p392
      $region86: #{head_forward.1} parent=79 // pred_check_branch
        %8368 = sbr.rel (%p8366) target = $region88
      $region87: #{head_forward.1} parent=79 // pred_region
        _
      $region88: #{head_forward.1} parent=79 // pred_fallthru
        _
    $region80: #{head_forward.1} parent=5 // pred_fallthru
      _
    %p8369 = scmp.le.s32.totalorder 2, %s23
    // Predicated region
    $region89: #{head_forward.1} parent=5 // pred_check
      %p8370 = pneg %p8369
    $region90: #{head_forward.1} parent=5 // pred_check_branch
      %8372 = sbr.rel (%p8370) target = $region92
    $region91: #{head_forward.1} parent=5 // pred_region
      %s8373 = ssub.s32 %s23, 2
      // Predicated region
      $region93: #{head_forward.1} parent=91 // pred_check
        %p8374 = pneg %p372
      $region94: #{head_forward.1} parent=91 // pred_check_branch
        %8376 = sbr.rel (%p8374) target = $region96
      $region95: #{head_forward.1} parent=91 // pred_region
        %p8377 = scmp.lt.s32.totalorder %s29, 1
        %s8378 = scalar_select %p8377, %s29, 1
        %s8379 = smul.addr %s8378, 4
        %s8380 = smul.addr %s8379, 8
        %s8381 = scalar_lea.vmem %s15, %s8380
      $region96: #{head_forward.1} parent=91 // pred_fallthru
        _
      // Predicated region
      $region97: #{head_forward.1} parent=91 // pred_check
        %p8382 = pneg %p398
      $region98: #{head_forward.1} parent=91 // pred_check_branch
        %8384 = sbr.rel (%p8382) target = $region100
      $region99: #{head_forward.1} parent=91 // pred_region
        %p8385 = scmp.lt.s32.totalorder %s29, 1
        %s8386 = scalar_select %p8385, %s29, 1
        %s8387 = smul.addr %s8386, 108
        %s8388 = smul.addr %s8387, 8
        %s8389 = scalar_lea.vmem %s16, %s8388
      $region100: #{head_forward.1} parent=91 // pred_fallthru
        _
    $region92: #{head_forward.1} parent=5 // pred_fallthru
      _
  $region6: #{head_forward.1} parent=0 // loop_footer
    %s27 = sadd.s32 1, %s23
  $region7: #{head_forward.1} parent=0 // loop_footer_branch
    %22 = sbr.rel target = $region3
  $region8: #{head_forward.1} parent=0 // loop_exit
    _

</llo_original>
